<compile_context>
chip_gen: v7x
topology: tpu7x:2x2x1
jax: 0.10.0
libtpu: 0.0.40
codegen_flags: <defaults>
</compile_context>

<pallas_src>
import math
from functools import partial

import jax
import jax.numpy as jnp
from jax.experimental import pallas as pl
from jax.experimental.pallas import tpu as pltpu

# ----------------- config (small, consistent with the module) -----------------
C_I = 4           # channels of input_i
C_Q = 4           # channels of input_q
IN_CH = C_I + C_Q # in_channels
SEQ = 16          # sequence length
Q_SIZE = 16       # q_size
ENC_H = 16        # encoder_hidden_size
DEC_H = 32        # decoder_hidden_size
Z_DIM = 8         # z_dim
MLP_H = 32        # linear1 hidden
DROPOUT_P = 0.1   # unused at inference


# ------------------------------- fused kernel ----------------------------------
def _vcd_fused_kernel(x_ref, wq_ref, bq_ref, wk_ref, bk_ref, wv_ref, bv_ref,
                      wih_e_ref, bih_e_ref, whh_e_ref, bhh_e_ref,
                      wmv_ref, bmv_ref, wdz_ref, bdz_ref,
                      wih_d_ref, bih_d_ref, whh_d_ref, bhh_d_ref,
                      w1_ref, b1_ref, w2_ref, b2_ref,
                      res_ref, zmu_ref, zvar_ref,
                      *, Bt, L, Q, He, Hd, Z, inv_sqrt_dim):
    """Full VCD forward (inference path) for one (Bt, L, IN_CH) batch chunk."""
    f32 = jnp.float32
    x = x_ref[...].reshape(Bt * L, x_ref.shape[-1])                   # (Bt*L, IN)

    # ---- attention block: Q/K/V (+ReLU), scaled dot-product softmax, context
    q = jnp.maximum(jnp.dot(x, wq_ref[...], preferred_element_type=f32) + bq_ref[...], 0.0)
    k = jnp.maximum(jnp.dot(x, wk_ref[...], preferred_element_type=f32) + bk_ref[...], 0.0)
    v = jnp.maximum(jnp.dot(x, wv_ref[...], preferred_element_type=f32) + bv_ref[...], 0.0)
    q3 = q.reshape(Bt, L, Q)
    k3 = k.reshape(Bt, L, Q)
    v3 = v.reshape(Bt, L, Q)
    score = jnp.einsum("bld,bmd->blm", q3, k3, preferred_element_type=f32) * inv_sqrt_dim
    score = score - jnp.max(score, axis=-1, keepdims=True)
    p = jnp.exp(score)
    attn = p * pl.reciprocal(jnp.sum(p, axis=-1, keepdims=True), approx=True)
    ctx = jnp.einsum("blm,bmd->bld", attn, v3, preferred_element_type=f32)
    enc_in = jnp.concatenate([q3, ctx], axis=-1).reshape(Bt * L, 2 * Q)

    # ---- bidirectional GRU encoder: fwd & bwd fused into a single recurrence
    # input gates for both directions in one matmul: columns [fwd r z n | bwd r z n]
    gi = jnp.dot(enc_in, wih_e_ref[...], preferred_element_type=f32) + bih_e_ref[...]
    gi = gi.reshape(Bt, L, 6 * He)
    gif = gi[:, :, :3 * He]
    gib = gi[:, :, 3 * He:]
    whh_e = whh_e_ref[...]           # (2He, 6He) block-diagonal, cols [rf rb zf zb nf nb]
    bhh_e = bhh_e_ref[...]           # (1, 6He)   same grouping

    h = jnp.zeros((Bt, 2 * He), f32)                 # [h_fwd | h_bwd]
    en_fwd = [None] * L
    en_bwd = [None] * L
    for t in range(L):               # fully unrolled (L static); one MXU push per step
        tb = L - 1 - t
        gh = jnp.dot(h, whh_e, preferred_element_type=f32) + bhh_e    # (Bt, 6He)
        gr = jnp.concatenate([gif[:, t, 0 * He:1 * He], gib[:, tb, 0 * He:1 * He]], axis=-1)
        gz = jnp.concatenate([gif[:, t, 1 * He:2 * He], gib[:, tb, 1 * He:2 * He]], axis=-1)
        gn = jnp.concatenate([gif[:, t, 2 * He:3 * He], gib[:, tb, 2 * He:3 * He]], axis=-1)
        r = jax.nn.sigmoid(gr + gh[:, :2 * He])
        z = jax.nn.sigmoid(gz + gh[:, 2 * He:4 * He])
        n = jnp.tanh(gn + r * gh[:, 4 * He:])        # b_hh inside r*(...) per PyTorch
        h = (1.0 - z) * n + z * h
        en_fwd[t] = h[:, :He]        # forward hidden for time t
        en_bwd[tb] = h[:, He:]       # backward hidden corresponds to time L-1-t

    en_out = jnp.concatenate([jnp.stack(en_fwd, axis=1),
                              jnp.stack(en_bwd, axis=1)], axis=-1)     # (Bt, L, 2He)
    en2 = en_out.reshape(Bt * L, 2 * He)

    # ---- latent heads (z_mu / z_var fused into one matmul); z = z_mu (train=False)
    zz = jnp.dot(en2, wmv_ref[...], preferred_element_type=f32) + bmv_ref[...]   # (Bt*L, 2Z)
    z_mu = zz[:, :Z]
    zmu_ref[...] = z_mu.reshape(Bt, L, Z)
    zvar_ref[...] = zz[:, Z:].reshape(Bt, L, Z)
    de_in = jnp.dot(z_mu, wdz_ref[...], preferred_element_type=f32) + bdz_ref[...]   # (Bt*L, Hd)

    # ---- unidirectional GRU decoder
    gd = jnp.dot(de_in, wih_d_ref[...], preferred_element_type=f32) + bih_d_ref[...]
    gd = gd.reshape(Bt, L, 3 * Hd)
    whh_d = whh_d_ref[...]
    bhh_d = bhh_d_ref[...]
    hd = jnp.zeros((Bt, Hd), f32)
    de_out = [None] * L
    for t in range(L):               # fully unrolled
        gh = jnp.dot(hd, whh_d, preferred_element_type=f32) + bhh_d
        gt = gd[:, t, :]
        r = jax.nn.sigmoid(gt[:, :Hd] + gh[:, :Hd])
        z = jax.nn.sigmoid(gt[:, Hd:2 * Hd] + gh[:, Hd:2 * Hd])
        n = jnp.tanh(gt[:, 2 * Hd:] + r * gh[:, 2 * Hd:])
        hd = (1.0 - z) * n + z * hd
        de_out[t] = hd
    de2 = jnp.stack(de_out, axis=1).reshape(Bt * L, Hd)

    # ---- MLP head; last projection as VPU reduction so the final store is lane-dense
    hid = jnp.maximum(jnp.dot(de2, w1_ref[...], preferred_element_type=f32) + b1_ref[...], 0.0)
    res = jnp.sum(hid.reshape(Bt, L, -1) * w2_ref[...].reshape(1, 1, -1), axis=-1)
    res = res + b2_ref[...]                           # (Bt, L)
    res_ref[...] = res.reshape(Bt, 1, L)


# ------------------------------ parameters -------------------------------------
def init_params(key):
    keys = jax.random.split(key, 16)

    def lin(k, fan_in, fan_out):
        kw, kb = jax.random.split(k)
        bound = 1.0 / math.sqrt(fan_in)
        w = jax.random.uniform(kw, (fan_in, fan_out), jnp.float32, -bound, bound)
        b = jax.random.uniform(kb, (1, fan_out), jnp.float32, -bound, bound)
        return w, b

    def gru(k, in_size, hidden):
        k1, k2, k3, k4 = jax.random.split(k, 4)
        bound = 1.0 / math.sqrt(hidden)
        wih = jax.random.uniform(k1, (in_size, 3 * hidden), jnp.float32, -bound, bound)   # W_ih^T
        whh = jax.random.uniform(k2, (hidden, 3 * hidden), jnp.float32, -bound, bound)    # W_hh^T
        bih = jax.random.uniform(k3, (1, 3 * hidden), jnp.float32, -bound, bound)
        bhh = jax.random.uniform(k4, (1, 3 * hidden), jnp.float32, -bound, bound)
        return wih, whh, bih, bhh

    return {
        "query": lin(keys[0], IN_CH, Q_SIZE),
        "key": lin(keys[1], IN_CH, Q_SIZE),
        "value": lin(keys[2], IN_CH, Q_SIZE),
        "enc_f": gru(keys[3], 2 * Q_SIZE, ENC_H),
        "enc_b": gru(keys[4], 2 * Q_SIZE, ENC_H),
        "dec": gru(keys[5], DEC_H, DEC_H),
        "z_mu": lin(keys[6], 2 * ENC_H, Z_DIM),
        "z_var": lin(keys[7], 2 * ENC_H, Z_DIM),
        "dec_in_z": lin(keys[8], Z_DIM, DEC_H),
        "linear1": lin(keys[9], DEC_H, MLP_H),
        "linear2": lin(keys[10], MLP_H, 1),
    }


# --------------------------- weight fusion helpers ------------------------------
def _fuse_bigru_recurrent(whhf, whhb, bhhf, bhhb, H):
    """Block-diagonal W_hh^T and regrouped b_hh so fwd+bwd share one MXU matmul.

    Column layout: [r_f r_b z_f z_b n_f n_b]; hidden layout: [h_fwd | h_bwd].
    """
    zeros = jnp.zeros((H, H), jnp.float32)
    wcols, bcols = [], []
    for g in range(3):                                   # r, z, n
        cf = whhf[:, g * H:(g + 1) * H]
        cb = whhb[:, g * H:(g + 1) * H]
        wcols.append(jnp.concatenate([cf, zeros], axis=0))
        wcols.append(jnp.concatenate([zeros, cb], axis=0))
        bcols.append(bhhf[:, g * H:(g + 1) * H])
        bcols.append(bhhb[:, g * H:(g + 1) * H])
    return jnp.concatenate(wcols, axis=1), jnp.concatenate(bcols, axis=1)


# ------------------------------ forward pass ------------------------------------
@jax.jit
def vcd_forward(input_i, input_q, params):
    B = input_i.shape[0]
    x = jnp.concatenate([input_i, input_q], axis=1)                    # (B, IN_CH, L)
    x = jnp.transpose(x, (0, 2, 1)).astype(jnp.float32)                # (B, L, IN_CH)
    L = x.shape[1]

    # ≤2 "parallel" grid steps (v7x has 2 TensorCores); remaining batch rows are
    # carried inside each step so every matmul has M = Bt rows.
    G = 2 if B >= 2 else 1
    Bt = pl.cdiv(B, G)
    Bp = G * Bt
    if Bp != B:
        x = jnp.pad(x, ((0, Bp - B), (0, 0), (0, 0)))

    wq, bq = params["query"]
    wk, bk = params["key"]
    wv, bv = params["value"]
    wihf, whhf, bihf, bhhf = params["enc_f"]
    wihb, whhb, bihb, bhhb = params["enc_b"]
    wih_e = jnp.concatenate([wihf, wihb], axis=1)                      # (2Q, 6He)
    bih_e = jnp.concatenate([bihf, bihb], axis=1)                      # (1, 6He)
    whh_e, bhh_e = _fuse_bigru_recurrent(whhf, whhb, bhhf, bhhb, ENC_H)
    wmu, bmu = params["z_mu"]
    wvar, bvar = params["z_var"]
    wmv = jnp.concatenate([wmu, wvar], axis=1)                         # (2He, 2Z)
    bmv = jnp.concatenate([bmu, bvar], axis=1)
    wdz, bdz = params["dec_in_z"]
    wih_d, whh_d, bih_d, bhh_d = params["dec"]
    w1, b1 = params["linear1"]
    w2, b2 = params["linear2"]
    w2_row = w2.reshape(1, MLP_H)

    weights = (wq, bq, wk, bk, wv, bv,
               wih_e, bih_e, whh_e, bhh_e,
               wmv, bmv, wdz, bdz,
               wih_d, bih_d, whh_d, bhh_d,
               w1, b1, w2_row, b2)

    kernel = partial(_vcd_fused_kernel, Bt=Bt, L=L, Q=Q_SIZE, He=ENC_H,
                     Hd=DEC_H, Z=Z_DIM, inv_sqrt_dim=1.0 / math.sqrt(Q_SIZE))

    res, z_mu, z_var = pl.pallas_call(
        kernel,
        out_shape=(
            jax.ShapeDtypeStruct((Bp, 1, L), jnp.float32),
            jax.ShapeDtypeStruct((Bp, L, Z_DIM), jnp.float32),
            jax.ShapeDtypeStruct((Bp, L, Z_DIM), jnp.float32),
        ),
        grid=(G,),
        in_specs=[pl.BlockSpec((Bt, L, IN_CH), lambda b: (b, 0, 0))]
                 + [pl.BlockSpec(w.shape, lambda b: (0, 0)) for w in weights],
        out_specs=(
            pl.BlockSpec((Bt, 1, L), lambda b: (b, 0, 0)),
            pl.BlockSpec((Bt, L, Z_DIM), lambda b: (b, 0, 0)),
            pl.BlockSpec((Bt, L, Z_DIM), lambda b: (b, 0, 0)),
        ),
        compiler_params=pltpu.CompilerParams(dimension_semantics=("parallel",)),
    )(x, *weights)

    result = res[:B, 0, :][..., None]                                  # (B, L, 1)
    return result, z_mu[:B], z_var[:B]


# --------------------------- pure-JAX reference ---------------------------------
def _vcd_reference(input_i, input_q, params):
    x = jnp.concatenate([input_i, input_q], axis=1)
    x = jnp.transpose(x, (0, 2, 1)).astype(jnp.float32)                # (B, L, IN)
    L = x.shape[1]

    def lin(p, a):
        return a @ p[0] + p[1]

    q = jax.nn.relu(lin(params["query"], x))
    k = jax.nn.relu(lin(params["key"], x))
    v = jax.nn.relu(lin(params["value"], x))
    score = jnp.einsum("bld,bmd->blm", q, k) / math.sqrt(Q_SIZE)
    attn = jax.nn.softmax(score, axis=-1)
    ctx = jnp.einsum("blm,bmd->bld", attn, v)
    enc_in = jnp.concatenate([q, ctx], axis=-1)

    def gru(xseq, p, reverse=False):
        wih, whh, bih, bhh = p
        H = whh.shape[0]
        h = jnp.zeros((xseq.shape[0], H), jnp.float32)
        out = [None] * L
        idx = range(L - 1, -1, -1) if reverse else range(L)
        for t in idx:
            gi = xseq[:, t] @ wih + bih
            gh = h @ whh + bhh
            r = jax.nn.sigmoid(gi[:, :H] + gh[:, :H])
            z = jax.nn.sigmoid(gi[:, H:2 * H] + gh[:, H:2 * H])
            n = jnp.tanh(gi[:, 2 * H:] + r * gh[:, 2 * H:])
            h = (1.0 - z) * n + z * h
            out[t] = h
        return jnp.stack(out, axis=1)

    en_out = jnp.concatenate([gru(enc_in, params["enc_f"]),
                              gru(enc_in, params["enc_b"], reverse=True)], axis=-1)
    z_mu = lin(params["z_mu"], en_out)
    z_var = lin(params["z_var"], en_out)
    de_in = lin(params["dec_in_z"], z_mu)                              # z = z_mu
    de_out = gru(de_in, params["dec"])
    hid = jax.nn.relu(lin(params["linear1"], de_out))
    result = lin(params["linear2"], hid)
    return result, z_mu, z_var


if __name__ == "__main__":
    key = jax.random.PRNGKey(0)
    kp, ki, kq = jax.random.split(key, 3)
    params = init_params(kp)
    input_i = jax.random.normal(ki, (2, C_I, SEQ), jnp.float32)
    input_q = jax.random.normal(kq, (2, C_Q, SEQ), jnp.float32)

    result, z_mu, z_var = vcd_forward(input_i, input_q, params)
    jax.block_until_ready((result, z_mu, z_var))

    assert result.shape == (2, SEQ, 1)
    assert z_mu.shape == (2, SEQ, Z_DIM)
    assert z_var.shape == (2, SEQ, Z_DIM)
    assert bool(jnp.all(jnp.isfinite(result)))

    r_ref, mu_ref, var_ref = _vcd_reference(input_i, input_q, params)
    assert bool(jnp.allclose(result, r_ref, rtol=1e-2, atol=1e-2))
    assert bool(jnp.allclose(z_mu, mu_ref, rtol=1e-2, atol=1e-2))
    assert bool(jnp.allclose(z_var, var_ref, rtol=1e-2, atol=1e-2))

    print("KERNEL_OK")
</pallas_src>

<mosaic_0001>
module attributes {stable_mosaic.version = 11 : i64} {
  func.func @_vcd_fused_kernel(%arg0: i32, %arg1: memref<1x16x8xf32, #tpu.memory_space<vmem>>, %arg2: memref<8x16xf32, #tpu.memory_space<vmem>>, %arg3: memref<1x16xf32, #tpu.memory_space<vmem>>, %arg4: memref<8x16xf32, #tpu.memory_space<vmem>>, %arg5: memref<1x16xf32, #tpu.memory_space<vmem>>, %arg6: memref<8x16xf32, #tpu.memory_space<vmem>>, %arg7: memref<1x16xf32, #tpu.memory_space<vmem>>, %arg8: memref<32x96xf32, #tpu.memory_space<vmem>>, %arg9: memref<1x96xf32, #tpu.memory_space<vmem>>, %arg10: memref<32x96xf32, #tpu.memory_space<vmem>>, %arg11: memref<1x96xf32, #tpu.memory_space<vmem>>, %arg12: memref<32x16xf32, #tpu.memory_space<vmem>>, %arg13: memref<1x16xf32, #tpu.memory_space<vmem>>, %arg14: memref<8x32xf32, #tpu.memory_space<vmem>>, %arg15: memref<1x32xf32, #tpu.memory_space<vmem>>, %arg16: memref<32x96xf32, #tpu.memory_space<vmem>>, %arg17: memref<1x96xf32, #tpu.memory_space<vmem>>, %arg18: memref<32x96xf32, #tpu.memory_space<vmem>>, %arg19: memref<1x96xf32, #tpu.memory_space<vmem>>, %arg20: memref<32x32xf32, #tpu.memory_space<vmem>>, %arg21: memref<1x32xf32, #tpu.memory_space<vmem>>, %arg22: memref<1x32xf32, #tpu.memory_space<vmem>>, %arg23: memref<1x1xf32, #tpu.memory_space<vmem>>, %arg24: memref<1x1x16xf32, #tpu.memory_space<vmem>>, %arg25: memref<1x16x8xf32, #tpu.memory_space<vmem>>, %arg26: memref<1x16x8xf32, #tpu.memory_space<vmem>>) attributes {dimension_semantics = [#tpu.dimension_semantics<parallel>], iteration_bounds = array<i64: 2>, scalar_prefetch = 0 : i64, scratch_operands = 0 : i64, tpu.core_type = #tpu.core_type<tc>, window_params = [{transform_indices = @transform_0, window_bounds = array<i64: 1, 16, 8>}, {pipeline_mode = #tpu.pipeline_mode<synchronous>, transform_indices = @transform_1, window_bounds = array<i64: 8, 16>}, {pipeline_mode = #tpu.pipeline_mode<synchronous>, transform_indices = @transform_2, window_bounds = array<i64: 1, 16>}, {pipeline_mode = #tpu.pipeline_mode<synchronous>, transform_indices = @transform_3, window_bounds = array<i64: 8, 16>}, {pipeline_mode = #tpu.pipeline_mode<synchronous>, transform_indices = @transform_4, window_bounds = array<i64: 1, 16>}, {pipeline_mode = #tpu.pipeline_mode<synchronous>, transform_indices = @transform_5, window_bounds = array<i64: 8, 16>}, {pipeline_mode = #tpu.pipeline_mode<synchronous>, transform_indices = @transform_6, window_bounds = array<i64: 1, 16>}, {pipeline_mode = #tpu.pipeline_mode<synchronous>, transform_indices = @transform_7, window_bounds = array<i64: 32, 96>}, {pipeline_mode = #tpu.pipeline_mode<synchronous>, transform_indices = @transform_8, window_bounds = array<i64: 1, 96>}, {pipeline_mode = #tpu.pipeline_mode<synchronous>, transform_indices = @transform_9, window_bounds = array<i64: 32, 96>}, {pipeline_mode = #tpu.pipeline_mode<synchronous>, transform_indices = @transform_10, window_bounds = array<i64: 1, 96>}, {pipeline_mode = #tpu.pipeline_mode<synchronous>, transform_indices = @transform_11, window_bounds = array<i64: 32, 16>}, {pipeline_mode = #tpu.pipeline_mode<synchronous>, transform_indices = @transform_12, window_bounds = array<i64: 1, 16>}, {pipeline_mode = #tpu.pipeline_mode<synchronous>, transform_indices = @transform_13, window_bounds = array<i64: 8, 32>}, {pipeline_mode = #tpu.pipeline_mode<synchronous>, transform_indices = @transform_14, window_bounds = array<i64: 1, 32>}, {pipeline_mode = #tpu.pipeline_mode<synchronous>, transform_indices = @transform_15, window_bounds = array<i64: 32, 96>}, {pipeline_mode = #tpu.pipeline_mode<synchronous>, transform_indices = @transform_16, window_bounds = array<i64: 1, 96>}, {pipeline_mode = #tpu.pipeline_mode<synchronous>, transform_indices = @transform_17, window_bounds = array<i64: 32, 96>}, {pipeline_mode = #tpu.pipeline_mode<synchronous>, transform_indices = @transform_18, window_bounds = array<i64: 1, 96>}, {pipeline_mode = #tpu.pipeline_mode<synchronous>, transform_indices = @transform_19, window_bounds = array<i64: 32, 32>}, {pipeline_mode = #tpu.pipeline_mode<synchronous>, transform_indices = @transform_20, window_bounds = array<i64: 1, 32>}, {pipeline_mode = #tpu.pipeline_mode<synchronous>, transform_indices = @transform_21, window_bounds = array<i64: 1, 32>}, {pipeline_mode = #tpu.pipeline_mode<synchronous>, transform_indices = @transform_22, window_bounds = array<i64: 1, 1>}, {transform_indices = @transform_23, window_bounds = array<i64: 1, 1, 16>}, {transform_indices = @transform_24, window_bounds = array<i64: 1, 16, 8>}, {transform_indices = @transform_25, window_bounds = array<i64: 1, 16, 8>}]} {
    %c0 = arith.constant 0 : index
    %c0_0 = arith.constant 0 : index
    %c0_1 = arith.constant 0 : index
    %0 = vector.load %arg1[%c0, %c0_0, %c0_1] : memref<1x16x8xf32, #tpu.memory_space<vmem>>, vector<1x16x8xf32>
    %1 = vector.shape_cast %0 : vector<1x16x8xf32> to vector<16x8xf32>
    %c0_2 = arith.constant 0 : index
    %c0_3 = arith.constant 0 : index
    %2 = vector.load %arg2[%c0_2, %c0_3] : memref<8x16xf32, #tpu.memory_space<vmem>>, vector<8x16xf32>
    %cst = arith.constant dense<0.000000e+00> : vector<16x16xf32>
    %3 = tpu.matmul %1, %2, %cst {dimension_numbers = #tpu.dot_dimension_numbers<[1], [0], [0], [1], [0, 0, 1, 1], [], []>} : vector<16x8xf32>, vector<8x16xf32>, vector<16x16xf32> -> vector<16x16xf32>
    %c0_4 = arith.constant 0 : index
    %c0_5 = arith.constant 0 : index
    %4 = vector.load %arg3[%c0_4, %c0_5] : memref<1x16xf32, #tpu.memory_space<vmem>>, vector<1x16xf32>
    %5 = vector.broadcast %4 : vector<1x16xf32> to vector<16x16xf32>
    %6 = arith.addf %3, %5 : vector<16x16xf32>
    %cst_6 = arith.constant 0.000000e+00 : f32
    %7 = vector.broadcast %cst_6 : f32 to vector<16x16xf32>
    %8 = arith.maximumf %6, %7 : vector<16x16xf32>
    %c0_7 = arith.constant 0 : index
    %c0_8 = arith.constant 0 : index
    %9 = vector.load %arg4[%c0_7, %c0_8] : memref<8x16xf32, #tpu.memory_space<vmem>>, vector<8x16xf32>
    %cst_9 = arith.constant dense<0.000000e+00> : vector<16x16xf32>
    %10 = tpu.matmul %1, %9, %cst_9 {dimension_numbers = #tpu.dot_dimension_numbers<[1], [0], [0], [1], [0, 0, 1, 1], [], []>} : vector<16x8xf32>, vector<8x16xf32>, vector<16x16xf32> -> vector<16x16xf32>
    %c0_10 = arith.constant 0 : index
    %c0_11 = arith.constant 0 : index
    %11 = vector.load %arg5[%c0_10, %c0_11] : memref<1x16xf32, #tpu.memory_space<vmem>>, vector<1x16xf32>
    %12 = vector.broadcast %11 : vector<1x16xf32> to vector<16x16xf32>
    %13 = arith.addf %10, %12 : vector<16x16xf32>
    %cst_12 = arith.constant 0.000000e+00 : f32
    %14 = vector.broadcast %cst_12 : f32 to vector<16x16xf32>
    %15 = arith.maximumf %13, %14 : vector<16x16xf32>
    %c0_13 = arith.constant 0 : index
    %c0_14 = arith.constant 0 : index
    %16 = vector.load %arg6[%c0_13, %c0_14] : memref<8x16xf32, #tpu.memory_space<vmem>>, vector<8x16xf32>
    %cst_15 = arith.constant dense<0.000000e+00> : vector<16x16xf32>
    %17 = tpu.matmul %1, %16, %cst_15 {dimension_numbers = #tpu.dot_dimension_numbers<[1], [0], [0], [1], [0, 0, 1, 1], [], []>} : vector<16x8xf32>, vector<8x16xf32>, vector<16x16xf32> -> vector<16x16xf32>
    %c0_16 = arith.constant 0 : index
    %c0_17 = arith.constant 0 : index
    %18 = vector.load %arg7[%c0_16, %c0_17] : memref<1x16xf32, #tpu.memory_space<vmem>>, vector<1x16xf32>
    %19 = vector.broadcast %18 : vector<1x16xf32> to vector<16x16xf32>
    %20 = arith.addf %17, %19 : vector<16x16xf32>
    %cst_18 = arith.constant 0.000000e+00 : f32
    %21 = vector.broadcast %cst_18 : f32 to vector<16x16xf32>
    %22 = arith.maximumf %20, %21 : vector<16x16xf32>
    %23 = vector.shape_cast %8 : vector<16x16xf32> to vector<1x16x16xf32>
    %24 = vector.shape_cast %15 : vector<16x16xf32> to vector<1x16x16xf32>
    %25 = vector.shape_cast %22 : vector<16x16xf32> to vector<1x16x16xf32>
    "tpu.trace_start"() <{level = 10 : i32, message = "bld,bmd->blm"}> : () -> ()
    %cst_19 = arith.constant dense<0.000000e+00> : vector<1x16x16xf32>
    %26 = tpu.matmul %23, %24, %cst_19 {dimension_numbers = #tpu.dot_dimension_numbers<[2], [2], [1], [1], [0, 0, 0, 1, 1, 1], [0], [0]>} : vector<1x16x16xf32>, vector<1x16x16xf32>, vector<1x16x16xf32> -> vector<1x16x16xf32>
    "tpu.trace_stop"() : () -> ()
    %cst_20 = arith.constant 2.500000e-01 : f32
    %27 = vector.broadcast %cst_20 : f32 to vector<1x16x16xf32>
    %28 = arith.mulf %26, %27 : vector<1x16x16xf32>
    %cst_21 = arith.constant dense<0xFF800000> : vector<1x16xf32>
    %29 = vector.multi_reduction <maximumf>, %28, %cst_21 [2] : vector<1x16x16xf32> to vector<1x16xf32>
    %30 = vector.shape_cast %29 : vector<1x16xf32> to vector<1x16x1xf32>
    %31 = vector.broadcast %30 : vector<1x16x1xf32> to vector<1x16x16xf32>
    %32 = arith.subf %28, %31 : vector<1x16x16xf32>
    %33 = math.exp %32 : vector<1x16x16xf32>
    %cst_22 = arith.constant dense<0.000000e+00> : vector<1x16xf32>
    %34 = vector.multi_reduction <add>, %33, %cst_22 [2] : vector<1x16x16xf32> to vector<1x16xf32>
    %35 = vector.shape_cast %34 : vector<1x16xf32> to vector<1x16x1xf32>
    %36 = tpu.reciprocal %35 {approx = true} : vector<1x16x1xf32> -> vector<1x16x1xf32>
    %37 = vector.broadcast %36 : vector<1x16x1xf32> to vector<1x16x16xf32>
    %38 = arith.mulf %33, %37 : vector<1x16x16xf32>
    "tpu.trace_start"() <{level = 10 : i32, message = "blm,bmd->bld"}> : () -> ()
    %cst_23 = arith.constant dense<0.000000e+00> : vector<1x16x16xf32>
    %39 = tpu.matmul %38, %25, %cst_23 {dimension_numbers = #tpu.dot_dimension_numbers<[2], [1], [1], [2], [0, 0, 0, 1, 1, 2], [0], [0]>} : vector<1x16x16xf32>, vector<1x16x16xf32>, vector<1x16x16xf32> -> vector<1x16x16xf32>
    "tpu.trace_stop"() : () -> ()
    %40 = tpu.concatenate %23, %39 in 2 : vector<1x16x16xf32>, vector<1x16x16xf32> -> vector<1x16x32xf32>
    %41 = vector.shape_cast %40 : vector<1x16x32xf32> to vector<16x32xf32>
    %c0_24 = arith.constant 0 : index
    %c0_25 = arith.constant 0 : index
    %42 = vector.load %arg8[%c0_24, %c0_25] : memref<32x96xf32, #tpu.memory_space<vmem>>, vector<32x96xf32>
    %cst_26 = arith.constant dense<0.000000e+00> : vector<16x96xf32>
    %43 = tpu.matmul %41, %42, %cst_26 {dimension_numbers = #tpu.dot_dimension_numbers<[1], [0], [0], [1], [0, 0, 1, 1], [], []>} : vector<16x32xf32>, vector<32x96xf32>, vector<16x96xf32> -> vector<16x96xf32>
    %c0_27 = arith.constant 0 : index
    %c0_28 = arith.constant 0 : index
    %44 = vector.load %arg9[%c0_27, %c0_28] : memref<1x96xf32, #tpu.memory_space<vmem>>, vector<1x96xf32>
    %45 = vector.broadcast %44 : vector<1x96xf32> to vector<16x96xf32>
    %46 = arith.addf %43, %45 : vector<16x96xf32>
    %47 = vector.shape_cast %46 : vector<16x96xf32> to vector<1x16x96xf32>
    %48 = vector.extract_strided_slice %47 {offsets = [0, 0, 0], sizes = [1, 16, 48], strides = [1, 1, 1]} : vector<1x16x96xf32> to vector<1x16x48xf32>
    %49 = vector.extract_strided_slice %47 {offsets = [0, 0, 48], sizes = [1, 16, 48], strides = [1, 1, 1]} : vector<1x16x96xf32> to vector<1x16x48xf32>
    %c0_29 = arith.constant 0 : index
    %c0_30 = arith.constant 0 : index
    %50 = vector.load %arg10[%c0_29, %c0_30] : memref<32x96xf32, #tpu.memory_space<vmem>>, vector<32x96xf32>
    %c0_31 = arith.constant 0 : index
    %c0_32 = arith.constant 0 : index
    %51 = vector.load %arg11[%c0_31, %c0_32] : memref<1x96xf32, #tpu.memory_space<vmem>>, vector<1x96xf32>
    %cst_33 = arith.constant 0.000000e+00 : f32
    %52 = vector.broadcast %cst_33 : f32 to vector<1x32xf32>
    %cst_34 = arith.constant dense<0.000000e+00> : vector<1x96xf32>
    %53 = tpu.matmul %52, %50, %cst_34 {dimension_numbers = #tpu.dot_dimension_numbers<[1], [0], [0], [1], [0, 0, 1, 1], [], []>} : vector<1x32xf32>, vector<32x96xf32>, vector<1x96xf32> -> vector<1x96xf32>
    %54 = arith.addf %53, %51 : vector<1x96xf32>
    %55 = vector.extract_strided_slice %48 {offsets = [0, 0, 0], sizes = [1, 1, 16], strides = [1, 1, 1]} : vector<1x16x48xf32> to vector<1x1x16xf32>
    %56 = vector.shape_cast %55 : vector<1x1x16xf32> to vector<1x16xf32>
    %57 = vector.extract_strided_slice %49 {offsets = [0, 15, 0], sizes = [1, 1, 16], strides = [1, 1, 1]} : vector<1x16x48xf32> to vector<1x1x16xf32>
    %58 = vector.shape_cast %57 : vector<1x1x16xf32> to vector<1x16xf32>
    %59 = tpu.concatenate %56, %58 in 1 : vector<1x16xf32>, vector<1x16xf32> -> vector<1x32xf32>
    %60 = vector.extract_strided_slice %48 {offsets = [0, 0, 16], sizes = [1, 1, 16], strides = [1, 1, 1]} : vector<1x16x48xf32> to vector<1x1x16xf32>
    %61 = vector.shape_cast %60 : vector<1x1x16xf32> to vector<1x16xf32>
    %62 = vector.extract_strided_slice %49 {offsets = [0, 15, 16], sizes = [1, 1, 16], strides = [1, 1, 1]} : vector<1x16x48xf32> to vector<1x1x16xf32>
    %63 = vector.shape_cast %62 : vector<1x1x16xf32> to vector<1x16xf32>
    %64 = tpu.concatenate %61, %63 in 1 : vector<1x16xf32>, vector<1x16xf32> -> vector<1x32xf32>
    %65 = vector.extract_strided_slice %48 {offsets = [0, 0, 32], sizes = [1, 1, 16], strides = [1, 1, 1]} : vector<1x16x48xf32> to vector<1x1x16xf32>
    %66 = vector.shape_cast %65 : vector<1x1x16xf32> to vector<1x16xf32>
    %67 = vector.extract_strided_slice %49 {offsets = [0, 15, 32], sizes = [1, 1, 16], strides = [1, 1, 1]} : vector<1x16x48xf32> to vector<1x1x16xf32>
    %68 = vector.shape_cast %67 : vector<1x1x16xf32> to vector<1x16xf32>
    %69 = tpu.concatenate %66, %68 in 1 : vector<1x16xf32>, vector<1x16xf32> -> vector<1x32xf32>
    %70 = vector.extract_strided_slice %54 {offsets = [0, 0], sizes = [1, 32], strides = [1, 1]} : vector<1x96xf32> to vector<1x32xf32>
    %71 = arith.addf %59, %70 : vector<1x32xf32>
    %72 = arith.negf %71 : vector<1x32xf32>
    %73 = math.exp %72 : vector<1x32xf32>
    %cst_35 = arith.constant 1.000000e+00 : f32
    %74 = vector.broadcast %cst_35 : f32 to vector<1x32xf32>
    %75 = arith.addf %74, %73 : vector<1x32xf32>
    %76 = arith.divf %74, %75 : vector<1x32xf32>
    %77 = vector.extract_strided_slice %54 {offsets = [0, 32], sizes = [1, 32], strides = [1, 1]} : vector<1x96xf32> to vector<1x32xf32>
    %78 = arith.addf %64, %77 : vector<1x32xf32>
    %79 = arith.negf %78 : vector<1x32xf32>
    %80 = math.exp %79 : vector<1x32xf32>
    %cst_36 = arith.constant 1.000000e+00 : f32
    %81 = vector.broadcast %cst_36 : f32 to vector<1x32xf32>
    %82 = arith.addf %81, %80 : vector<1x32xf32>
    %83 = arith.divf %81, %82 : vector<1x32xf32>
    %84 = vector.extract_strided_slice %54 {offsets = [0, 64], sizes = [1, 32], strides = [1, 1]} : vector<1x96xf32> to vector<1x32xf32>
    %85 = arith.mulf %76, %84 : vector<1x32xf32>
    %86 = arith.addf %69, %85 : vector<1x32xf32>
    %87 = math.tanh %86 : vector<1x32xf32>
    %cst_37 = arith.constant 1.000000e+00 : f32
    %88 = vector.broadcast %cst_37 : f32 to vector<1x32xf32>
    %89 = arith.subf %88, %83 : vector<1x32xf32>
    %90 = arith.mulf %89, %87 : vector<1x32xf32>
    %91 = arith.mulf %83, %52 : vector<1x32xf32>
    %92 = arith.addf %90, %91 : vector<1x32xf32>
    %93 = vector.extract_strided_slice %92 {offsets = [0, 0], sizes = [1, 16], strides = [1, 1]} : vector<1x32xf32> to vector<1x16xf32>
    %94 = vector.extract_strided_slice %92 {offsets = [0, 16], sizes = [1, 16], strides = [1, 1]} : vector<1x32xf32> to vector<1x16xf32>
    %cst_38 = arith.constant dense<0.000000e+00> : vector<1x96xf32>
    %95 = tpu.matmul %92, %50, %cst_38 {dimension_numbers = #tpu.dot_dimension_numbers<[1], [0], [0], [1], [0, 0, 1, 1], [], []>} : vector<1x32xf32>, vector<32x96xf32>, vector<1x96xf32> -> vector<1x96xf32>
    %96 = arith.addf %95, %51 : vector<1x96xf32>
    %97 = vector.extract_strided_slice %48 {offsets = [0, 1, 0], sizes = [1, 1, 16], strides = [1, 1, 1]} : vector<1x16x48xf32> to vector<1x1x16xf32>
    %98 = vector.shape_cast %97 : vector<1x1x16xf32> to vector<1x16xf32>
    %99 = vector.extract_strided_slice %49 {offsets = [0, 14, 0], sizes = [1, 1, 16], strides = [1, 1, 1]} : vector<1x16x48xf32> to vector<1x1x16xf32>
    %100 = vector.shape_cast %99 : vector<1x1x16xf32> to vector<1x16xf32>
    %101 = tpu.concatenate %98, %100 in 1 : vector<1x16xf32>, vector<1x16xf32> -> vector<1x32xf32>
    %102 = vector.extract_strided_slice %48 {offsets = [0, 1, 16], sizes = [1, 1, 16], strides = [1, 1, 1]} : vector<1x16x48xf32> to vector<1x1x16xf32>
    %103 = vector.shape_cast %102 : vector<1x1x16xf32> to vector<1x16xf32>
    %104 = vector.extract_strided_slice %49 {offsets = [0, 14, 16], sizes = [1, 1, 16], strides = [1, 1, 1]} : vector<1x16x48xf32> to vector<1x1x16xf32>
    %105 = vector.shape_cast %104 : vector<1x1x16xf32> to vector<1x16xf32>
    %106 = tpu.concatenate %103, %105 in 1 : vector<1x16xf32>, vector<1x16xf32> -> vector<1x32xf32>
    %107 = vector.extract_strided_slice %48 {offsets = [0, 1, 32], sizes = [1, 1, 16], strides = [1, 1, 1]} : vector<1x16x48xf32> to vector<1x1x16xf32>
    %108 = vector.shape_cast %107 : vector<1x1x16xf32> to vector<1x16xf32>
    %109 = vector.extract_strided_slice %49 {offsets = [0, 14, 32], sizes = [1, 1, 16], strides = [1, 1, 1]} : vector<1x16x48xf32> to vector<1x1x16xf32>
    %110 = vector.shape_cast %109 : vector<1x1x16xf32> to vector<1x16xf32>
    %111 = tpu.concatenate %108, %110 in 1 : vector<1x16xf32>, vector<1x16xf32> -> vector<1x32xf32>
    %112 = vector.extract_strided_slice %96 {offsets = [0, 0], sizes = [1, 32], strides = [1, 1]} : vector<1x96xf32> to vector<1x32xf32>
    %113 = arith.addf %101, %112 : vector<1x32xf32>
    %114 = arith.negf %113 : vector<1x32xf32>
    %115 = math.exp %114 : vector<1x32xf32>
    %cst_39 = arith.constant 1.000000e+00 : f32
    %116 = vector.broadcast %cst_39 : f32 to vector<1x32xf32>
    %117 = arith.addf %116, %115 : vector<1x32xf32>
    %118 = arith.divf %116, %117 : vector<1x32xf32>
    %119 = vector.extract_strided_slice %96 {offsets = [0, 32], sizes = [1, 32], strides = [1, 1]} : vector<1x96xf32> to vector<1x32xf32>
    %120 = arith.addf %106, %119 : vector<1x32xf32>
    %121 = arith.negf %120 : vector<1x32xf32>
    %122 = math.exp %121 : vector<1x32xf32>
    %cst_40 = arith.constant 1.000000e+00 : f32
    %123 = vector.broadcast %cst_40 : f32 to vector<1x32xf32>
    %124 = arith.addf %123, %122 : vector<1x32xf32>
    %125 = arith.divf %123, %124 : vector<1x32xf32>
    %126 = vector.extract_strided_slice %96 {offsets = [0, 64], sizes = [1, 32], strides = [1, 1]} : vector<1x96xf32> to vector<1x32xf32>
    %127 = arith.mulf %118, %126 : vector<1x32xf32>
    %128 = arith.addf %111, %127 : vector<1x32xf32>
    %129 = math.tanh %128 : vector<1x32xf32>
    %cst_41 = arith.constant 1.000000e+00 : f32
    %130 = vector.broadcast %cst_41 : f32 to vector<1x32xf32>
    %131 = arith.subf %130, %125 : vector<1x32xf32>
    %132 = arith.mulf %131, %129 : vector<1x32xf32>
    %133 = arith.mulf %125, %92 : vector<1x32xf32>
    %134 = arith.addf %132, %133 : vector<1x32xf32>
    %135 = vector.extract_strided_slice %134 {offsets = [0, 0], sizes = [1, 16], strides = [1, 1]} : vector<1x32xf32> to vector<1x16xf32>
    %136 = vector.extract_strided_slice %134 {offsets = [0, 16], sizes = [1, 16], strides = [1, 1]} : vector<1x32xf32> to vector<1x16xf32>
    %cst_42 = arith.constant dense<0.000000e+00> : vector<1x96xf32>
    %137 = tpu.matmul %134, %50, %cst_42 {dimension_numbers = #tpu.dot_dimension_numbers<[1], [0], [0], [1], [0, 0, 1, 1], [], []>} : vector<1x32xf32>, vector<32x96xf32>, vector<1x96xf32> -> vector<1x96xf32>
    %138 = arith.addf %137, %51 : vector<1x96xf32>
    %139 = vector.extract_strided_slice %48 {offsets = [0, 2, 0], sizes = [1, 1, 16], strides = [1, 1, 1]} : vector<1x16x48xf32> to vector<1x1x16xf32>
    %140 = vector.shape_cast %139 : vector<1x1x16xf32> to vector<1x16xf32>
    %141 = vector.extract_strided_slice %49 {offsets = [0, 13, 0], sizes = [1, 1, 16], strides = [1, 1, 1]} : vector<1x16x48xf32> to vector<1x1x16xf32>
    %142 = vector.shape_cast %141 : vector<1x1x16xf32> to vector<1x16xf32>
    %143 = tpu.concatenate %140, %142 in 1 : vector<1x16xf32>, vector<1x16xf32> -> vector<1x32xf32>
    %144 = vector.extract_strided_slice %48 {offsets = [0, 2, 16], sizes = [1, 1, 16], strides = [1, 1, 1]} : vector<1x16x48xf32> to vector<1x1x16xf32>
    %145 = vector.shape_cast %144 : vector<1x1x16xf32> to vector<1x16xf32>
    %146 = vector.extract_strided_slice %49 {offsets = [0, 13, 16], sizes = [1, 1, 16], strides = [1, 1, 1]} : vector<1x16x48xf32> to vector<1x1x16xf32>
    %147 = vector.shape_cast %146 : vector<1x1x16xf32> to vector<1x16xf32>
    %148 = tpu.concatenate %145, %147 in 1 : vector<1x16xf32>, vector<1x16xf32> -> vector<1x32xf32>
    %149 = vector.extract_strided_slice %48 {offsets = [0, 2, 32], sizes = [1, 1, 16], strides = [1, 1, 1]} : vector<1x16x48xf32> to vector<1x1x16xf32>
    %150 = vector.shape_cast %149 : vector<1x1x16xf32> to vector<1x16xf32>
    %151 = vector.extract_strided_slice %49 {offsets = [0, 13, 32], sizes = [1, 1, 16], strides = [1, 1, 1]} : vector<1x16x48xf32> to vector<1x1x16xf32>
    %152 = vector.shape_cast %151 : vector<1x1x16xf32> to vector<1x16xf32>
    %153 = tpu.concatenate %150, %152 in 1 : vector<1x16xf32>, vector<1x16xf32> -> vector<1x32xf32>
    %154 = vector.extract_strided_slice %138 {offsets = [0, 0], sizes = [1, 32], strides = [1, 1]} : vector<1x96xf32> to vector<1x32xf32>
    %155 = arith.addf %143, %154 : vector<1x32xf32>
    %156 = arith.negf %155 : vector<1x32xf32>
    %157 = math.exp %156 : vector<1x32xf32>
    %cst_43 = arith.constant 1.000000e+00 : f32
    %158 = vector.broadcast %cst_43 : f32 to vector<1x32xf32>
    %159 = arith.addf %158, %157 : vector<1x32xf32>
    %160 = arith.divf %158, %159 : vector<1x32xf32>
    %161 = vector.extract_strided_slice %138 {offsets = [0, 32], sizes = [1, 32], strides = [1, 1]} : vector<1x96xf32> to vector<1x32xf32>
    %162 = arith.addf %148, %161 : vector<1x32xf32>
    %163 = arith.negf %162 : vector<1x32xf32>
    %164 = math.exp %163 : vector<1x32xf32>
    %cst_44 = arith.constant 1.000000e+00 : f32
    %165 = vector.broadcast %cst_44 : f32 to vector<1x32xf32>
    %166 = arith.addf %165, %164 : vector<1x32xf32>
    %167 = arith.divf %165, %166 : vector<1x32xf32>
    %168 = vector.extract_strided_slice %138 {offsets = [0, 64], sizes = [1, 32], strides = [1, 1]} : vector<1x96xf32> to vector<1x32xf32>
    %169 = arith.mulf %160, %168 : vector<1x32xf32>
    %170 = arith.addf %153, %169 : vector<1x32xf32>
    %171 = math.tanh %170 : vector<1x32xf32>
    %cst_45 = arith.constant 1.000000e+00 : f32
    %172 = vector.broadcast %cst_45 : f32 to vector<1x32xf32>
    %173 = arith.subf %172, %167 : vector<1x32xf32>
    %174 = arith.mulf %173, %171 : vector<1x32xf32>
    %175 = arith.mulf %167, %134 : vector<1x32xf32>
    %176 = arith.addf %174, %175 : vector<1x32xf32>
    %177 = vector.extract_strided_slice %176 {offsets = [0, 0], sizes = [1, 16], strides = [1, 1]} : vector<1x32xf32> to vector<1x16xf32>
    %178 = vector.extract_strided_slice %176 {offsets = [0, 16], sizes = [1, 16], strides = [1, 1]} : vector<1x32xf32> to vector<1x16xf32>
    %cst_46 = arith.constant dense<0.000000e+00> : vector<1x96xf32>
    %179 = tpu.matmul %176, %50, %cst_46 {dimension_numbers = #tpu.dot_dimension_numbers<[1], [0], [0], [1], [0, 0, 1, 1], [], []>} : vector<1x32xf32>, vector<32x96xf32>, vector<1x96xf32> -> vector<1x96xf32>
    %180 = arith.addf %179, %51 : vector<1x96xf32>
    %181 = vector.extract_strided_slice %48 {offsets = [0, 3, 0], sizes = [1, 1, 16], strides = [1, 1, 1]} : vector<1x16x48xf32> to vector<1x1x16xf32>
    %182 = vector.shape_cast %181 : vector<1x1x16xf32> to vector<1x16xf32>
    %183 = vector.extract_strided_slice %49 {offsets = [0, 12, 0], sizes = [1, 1, 16], strides = [1, 1, 1]} : vector<1x16x48xf32> to vector<1x1x16xf32>
    %184 = vector.shape_cast %183 : vector<1x1x16xf32> to vector<1x16xf32>
    %185 = tpu.concatenate %182, %184 in 1 : vector<1x16xf32>, vector<1x16xf32> -> vector<1x32xf32>
    %186 = vector.extract_strided_slice %48 {offsets = [0, 3, 16], sizes = [1, 1, 16], strides = [1, 1, 1]} : vector<1x16x48xf32> to vector<1x1x16xf32>
    %187 = vector.shape_cast %186 : vector<1x1x16xf32> to vector<1x16xf32>
    %188 = vector.extract_strided_slice %49 {offsets = [0, 12, 16], sizes = [1, 1, 16], strides = [1, 1, 1]} : vector<1x16x48xf32> to vector<1x1x16xf32>
    %189 = vector.shape_cast %188 : vector<1x1x16xf32> to vector<1x16xf32>
    %190 = tpu.concatenate %187, %189 in 1 : vector<1x16xf32>, vector<1x16xf32> -> vector<1x32xf32>
    %191 = vector.extract_strided_slice %48 {offsets = [0, 3, 32], sizes = [1, 1, 16], strides = [1, 1, 1]} : vector<1x16x48xf32> to vector<1x1x16xf32>
    %192 = vector.shape_cast %191 : vector<1x1x16xf32> to vector<1x16xf32>
    %193 = vector.extract_strided_slice %49 {offsets = [0, 12, 32], sizes = [1, 1, 16], strides = [1, 1, 1]} : vector<1x16x48xf32> to vector<1x1x16xf32>
    %194 = vector.shape_cast %193 : vector<1x1x16xf32> to vector<1x16xf32>
    %195 = tpu.concatenate %192, %194 in 1 : vector<1x16xf32>, vector<1x16xf32> -> vector<1x32xf32>
    %196 = vector.extract_strided_slice %180 {offsets = [0, 0], sizes = [1, 32], strides = [1, 1]} : vector<1x96xf32> to vector<1x32xf32>
    %197 = arith.addf %185, %196 : vector<1x32xf32>
    %198 = arith.negf %197 : vector<1x32xf32>
    %199 = math.exp %198 : vector<1x32xf32>
    %cst_47 = arith.constant 1.000000e+00 : f32
    %200 = vector.broadcast %cst_47 : f32 to vector<1x32xf32>
    %201 = arith.addf %200, %199 : vector<1x32xf32>
    %202 = arith.divf %200, %201 : vector<1x32xf32>
    %203 = vector.extract_strided_slice %180 {offsets = [0, 32], sizes = [1, 32], strides = [1, 1]} : vector<1x96xf32> to vector<1x32xf32>
    %204 = arith.addf %190, %203 : vector<1x32xf32>
    %205 = arith.negf %204 : vector<1x32xf32>
    %206 = math.exp %205 : vector<1x32xf32>
    %cst_48 = arith.constant 1.000000e+00 : f32
    %207 = vector.broadcast %cst_48 : f32 to vector<1x32xf32>
    %208 = arith.addf %207, %206 : vector<1x32xf32>
    %209 = arith.divf %207, %208 : vector<1x32xf32>
    %210 = vector.extract_strided_slice %180 {offsets = [0, 64], sizes = [1, 32], strides = [1, 1]} : vector<1x96xf32> to vector<1x32xf32>
    %211 = arith.mulf %202, %210 : vector<1x32xf32>
    %212 = arith.addf %195, %211 : vector<1x32xf32>
    %213 = math.tanh %212 : vector<1x32xf32>
    %cst_49 = arith.constant 1.000000e+00 : f32
    %214 = vector.broadcast %cst_49 : f32 to vector<1x32xf32>
    %215 = arith.subf %214, %209 : vector<1x32xf32>
    %216 = arith.mulf %215, %213 : vector<1x32xf32>
    %217 = arith.mulf %209, %176 : vector<1x32xf32>
    %218 = arith.addf %216, %217 : vector<1x32xf32>
    %219 = vector.extract_strided_slice %218 {offsets = [0, 0], sizes = [1, 16], strides = [1, 1]} : vector<1x32xf32> to vector<1x16xf32>
    %220 = vector.extract_strided_slice %218 {offsets = [0, 16], sizes = [1, 16], strides = [1, 1]} : vector<1x32xf32> to vector<1x16xf32>
    %cst_50 = arith.constant dense<0.000000e+00> : vector<1x96xf32>
    %221 = tpu.matmul %218, %50, %cst_50 {dimension_numbers = #tpu.dot_dimension_numbers<[1], [0], [0], [1], [0, 0, 1, 1], [], []>} : vector<1x32xf32>, vector<32x96xf32>, vector<1x96xf32> -> vector<1x96xf32>
    %222 = arith.addf %221, %51 : vector<1x96xf32>
    %223 = vector.extract_strided_slice %48 {offsets = [0, 4, 0], sizes = [1, 1, 16], strides = [1, 1, 1]} : vector<1x16x48xf32> to vector<1x1x16xf32>
    %224 = vector.shape_cast %223 : vector<1x1x16xf32> to vector<1x16xf32>
    %225 = vector.extract_strided_slice %49 {offsets = [0, 11, 0], sizes = [1, 1, 16], strides = [1, 1, 1]} : vector<1x16x48xf32> to vector<1x1x16xf32>
    %226 = vector.shape_cast %225 : vector<1x1x16xf32> to vector<1x16xf32>
    %227 = tpu.concatenate %224, %226 in 1 : vector<1x16xf32>, vector<1x16xf32> -> vector<1x32xf32>
    %228 = vector.extract_strided_slice %48 {offsets = [0, 4, 16], sizes = [1, 1, 16], strides = [1, 1, 1]} : vector<1x16x48xf32> to vector<1x1x16xf32>
    %229 = vector.shape_cast %228 : vector<1x1x16xf32> to vector<1x16xf32>
    %230 = vector.extract_strided_slice %49 {offsets = [0, 11, 16], sizes = [1, 1, 16], strides = [1, 1, 1]} : vector<1x16x48xf32> to vector<1x1x16xf32>
    %231 = vector.shape_cast %230 : vector<1x1x16xf32> to vector<1x16xf32>
    %232 = tpu.concatenate %229, %231 in 1 : vector<1x16xf32>, vector<1x16xf32> -> vector<1x32xf32>
    %233 = vector.extract_strided_slice %48 {offsets = [0, 4, 32], sizes = [1, 1, 16], strides = [1, 1, 1]} : vector<1x16x48xf32> to vector<1x1x16xf32>
    %234 = vector.shape_cast %233 : vector<1x1x16xf32> to vector<1x16xf32>
    %235 = vector.extract_strided_slice %49 {offsets = [0, 11, 32], sizes = [1, 1, 16], strides = [1, 1, 1]} : vector<1x16x48xf32> to vector<1x1x16xf32>
    %236 = vector.shape_cast %235 : vector<1x1x16xf32> to vector<1x16xf32>
    %237 = tpu.concatenate %234, %236 in 1 : vector<1x16xf32>, vector<1x16xf32> -> vector<1x32xf32>
    %238 = vector.extract_strided_slice %222 {offsets = [0, 0], sizes = [1, 32], strides = [1, 1]} : vector<1x96xf32> to vector<1x32xf32>
    %239 = arith.addf %227, %238 : vector<1x32xf32>
    %240 = arith.negf %239 : vector<1x32xf32>
    %241 = math.exp %240 : vector<1x32xf32>
    %cst_51 = arith.constant 1.000000e+00 : f32
    %242 = vector.broadcast %cst_51 : f32 to vector<1x32xf32>
    %243 = arith.addf %242, %241 : vector<1x32xf32>
    %244 = arith.divf %242, %243 : vector<1x32xf32>
    %245 = vector.extract_strided_slice %222 {offsets = [0, 32], sizes = [1, 32], strides = [1, 1]} : vector<1x96xf32> to vector<1x32xf32>
    %246 = arith.addf %232, %245 : vector<1x32xf32>
    %247 = arith.negf %246 : vector<1x32xf32>
    %248 = math.exp %247 : vector<1x32xf32>
    %cst_52 = arith.constant 1.000000e+00 : f32
    %249 = vector.broadcast %cst_52 : f32 to vector<1x32xf32>
    %250 = arith.addf %249, %248 : vector<1x32xf32>
    %251 = arith.divf %249, %250 : vector<1x32xf32>
    %252 = vector.extract_strided_slice %222 {offsets = [0, 64], sizes = [1, 32], strides = [1, 1]} : vector<1x96xf32> to vector<1x32xf32>
    %253 = arith.mulf %244, %252 : vector<1x32xf32>
    %254 = arith.addf %237, %253 : vector<1x32xf32>
    %255 = math.tanh %254 : vector<1x32xf32>
    %cst_53 = arith.constant 1.000000e+00 : f32
    %256 = vector.broadcast %cst_53 : f32 to vector<1x32xf32>
    %257 = arith.subf %256, %251 : vector<1x32xf32>
    %258 = arith.mulf %257, %255 : vector<1x32xf32>
    %259 = arith.mulf %251, %218 : vector<1x32xf32>
    %260 = arith.addf %258, %259 : vector<1x32xf32>
    %261 = vector.extract_strided_slice %260 {offsets = [0, 0], sizes = [1, 16], strides = [1, 1]} : vector<1x32xf32> to vector<1x16xf32>
    %262 = vector.extract_strided_slice %260 {offsets = [0, 16], sizes = [1, 16], strides = [1, 1]} : vector<1x32xf32> to vector<1x16xf32>
    %cst_54 = arith.constant dense<0.000000e+00> : vector<1x96xf32>
    %263 = tpu.matmul %260, %50, %cst_54 {dimension_numbers = #tpu.dot_dimension_numbers<[1], [0], [0], [1], [0, 0, 1, 1], [], []>} : vector<1x32xf32>, vector<32x96xf32>, vector<1x96xf32> -> vector<1x96xf32>
    %264 = arith.addf %263, %51 : vector<1x96xf32>
    %265 = vector.extract_strided_slice %48 {offsets = [0, 5, 0], sizes = [1, 1, 16], strides = [1, 1, 1]} : vector<1x16x48xf32> to vector<1x1x16xf32>
    %266 = vector.shape_cast %265 : vector<1x1x16xf32> to vector<1x16xf32>
    %267 = vector.extract_strided_slice %49 {offsets = [0, 10, 0], sizes = [1, 1, 16], strides = [1, 1, 1]} : vector<1x16x48xf32> to vector<1x1x16xf32>
    %268 = vector.shape_cast %267 : vector<1x1x16xf32> to vector<1x16xf32>
    %269 = tpu.concatenate %266, %268 in 1 : vector<1x16xf32>, vector<1x16xf32> -> vector<1x32xf32>
    %270 = vector.extract_strided_slice %48 {offsets = [0, 5, 16], sizes = [1, 1, 16], strides = [1, 1, 1]} : vector<1x16x48xf32> to vector<1x1x16xf32>
    %271 = vector.shape_cast %270 : vector<1x1x16xf32> to vector<1x16xf32>
    %272 = vector.extract_strided_slice %49 {offsets = [0, 10, 16], sizes = [1, 1, 16], strides = [1, 1, 1]} : vector<1x16x48xf32> to vector<1x1x16xf32>
    %273 = vector.shape_cast %272 : vector<1x1x16xf32> to vector<1x16xf32>
    %274 = tpu.concatenate %271, %273 in 1 : vector<1x16xf32>, vector<1x16xf32> -> vector<1x32xf32>
    %275 = vector.extract_strided_slice %48 {offsets = [0, 5, 32], sizes = [1, 1, 16], strides = [1, 1, 1]} : vector<1x16x48xf32> to vector<1x1x16xf32>
    %276 = vector.shape_cast %275 : vector<1x1x16xf32> to vector<1x16xf32>
    %277 = vector.extract_strided_slice %49 {offsets = [0, 10, 32], sizes = [1, 1, 16], strides = [1, 1, 1]} : vector<1x16x48xf32> to vector<1x1x16xf32>
    %278 = vector.shape_cast %277 : vector<1x1x16xf32> to vector<1x16xf32>
    %279 = tpu.concatenate %276, %278 in 1 : vector<1x16xf32>, vector<1x16xf32> -> vector<1x32xf32>
    %280 = vector.extract_strided_slice %264 {offsets = [0, 0], sizes = [1, 32], strides = [1, 1]} : vector<1x96xf32> to vector<1x32xf32>
    %281 = arith.addf %269, %280 : vector<1x32xf32>
    %282 = arith.negf %281 : vector<1x32xf32>
    %283 = math.exp %282 : vector<1x32xf32>
    %cst_55 = arith.constant 1.000000e+00 : f32
    %284 = vector.broadcast %cst_55 : f32 to vector<1x32xf32>
    %285 = arith.addf %284, %283 : vector<1x32xf32>
    %286 = arith.divf %284, %285 : vector<1x32xf32>
    %287 = vector.extract_strided_slice %264 {offsets = [0, 32], sizes = [1, 32], strides = [1, 1]} : vector<1x96xf32> to vector<1x32xf32>
    %288 = arith.addf %274, %287 : vector<1x32xf32>
    %289 = arith.negf %288 : vector<1x32xf32>
    %290 = math.exp %289 : vector<1x32xf32>
    %cst_56 = arith.constant 1.000000e+00 : f32
    %291 = vector.broadcast %cst_56 : f32 to vector<1x32xf32>
    %292 = arith.addf %291, %290 : vector<1x32xf32>
    %293 = arith.divf %291, %292 : vector<1x32xf32>
    %294 = vector.extract_strided_slice %264 {offsets = [0, 64], sizes = [1, 32], strides = [1, 1]} : vector<1x96xf32> to vector<1x32xf32>
    %295 = arith.mulf %286, %294 : vector<1x32xf32>
    %296 = arith.addf %279, %295 : vector<1x32xf32>
    %297 = math.tanh %296 : vector<1x32xf32>
    %cst_57 = arith.constant 1.000000e+00 : f32
    %298 = vector.broadcast %cst_57 : f32 to vector<1x32xf32>
    %299 = arith.subf %298, %293 : vector<1x32xf32>
    %300 = arith.mulf %299, %297 : vector<1x32xf32>
    %301 = arith.mulf %293, %260 : vector<1x32xf32>
    %302 = arith.addf %300, %301 : vector<1x32xf32>
    %303 = vector.extract_strided_slice %302 {offsets = [0, 0], sizes = [1, 16], strides = [1, 1]} : vector<1x32xf32> to vector<1x16xf32>
    %304 = vector.extract_strided_slice %302 {offsets = [0, 16], sizes = [1, 16], strides = [1, 1]} : vector<1x32xf32> to vector<1x16xf32>
    %cst_58 = arith.constant dense<0.000000e+00> : vector<1x96xf32>
    %305 = tpu.matmul %302, %50, %cst_58 {dimension_numbers = #tpu.dot_dimension_numbers<[1], [0], [0], [1], [0, 0, 1, 1], [], []>} : vector<1x32xf32>, vector<32x96xf32>, vector<1x96xf32> -> vector<1x96xf32>
    %306 = arith.addf %305, %51 : vector<1x96xf32>
    %307 = vector.extract_strided_slice %48 {offsets = [0, 6, 0], sizes = [1, 1, 16], strides = [1, 1, 1]} : vector<1x16x48xf32> to vector<1x1x16xf32>
    %308 = vector.shape_cast %307 : vector<1x1x16xf32> to vector<1x16xf32>
    %309 = vector.extract_strided_slice %49 {offsets = [0, 9, 0], sizes = [1, 1, 16], strides = [1, 1, 1]} : vector<1x16x48xf32> to vector<1x1x16xf32>
    %310 = vector.shape_cast %309 : vector<1x1x16xf32> to vector<1x16xf32>
    %311 = tpu.concatenate %308, %310 in 1 : vector<1x16xf32>, vector<1x16xf32> -> vector<1x32xf32>
    %312 = vector.extract_strided_slice %48 {offsets = [0, 6, 16], sizes = [1, 1, 16], strides = [1, 1, 1]} : vector<1x16x48xf32> to vector<1x1x16xf32>
    %313 = vector.shape_cast %312 : vector<1x1x16xf32> to vector<1x16xf32>
    %314 = vector.extract_strided_slice %49 {offsets = [0, 9, 16], sizes = [1, 1, 16], strides = [1, 1, 1]} : vector<1x16x48xf32> to vector<1x1x16xf32>
    %315 = vector.shape_cast %314 : vector<1x1x16xf32> to vector<1x16xf32>
    %316 = tpu.concatenate %313, %315 in 1 : vector<1x16xf32>, vector<1x16xf32> -> vector<1x32xf32>
    %317 = vector.extract_strided_slice %48 {offsets = [0, 6, 32], sizes = [1, 1, 16], strides = [1, 1, 1]} : vector<1x16x48xf32> to vector<1x1x16xf32>
    %318 = vector.shape_cast %317 : vector<1x1x16xf32> to vector<1x16xf32>
    %319 = vector.extract_strided_slice %49 {offsets = [0, 9, 32], sizes = [1, 1, 16], strides = [1, 1, 1]} : vector<1x16x48xf32> to vector<1x1x16xf32>
    %320 = vector.shape_cast %319 : vector<1x1x16xf32> to vector<1x16xf32>
    %321 = tpu.concatenate %318, %320 in 1 : vector<1x16xf32>, vector<1x16xf32> -> vector<1x32xf32>
    %322 = vector.extract_strided_slice %306 {offsets = [0, 0], sizes = [1, 32], strides = [1, 1]} : vector<1x96xf32> to vector<1x32xf32>
    %323 = arith.addf %311, %322 : vector<1x32xf32>
    %324 = arith.negf %323 : vector<1x32xf32>
    %325 = math.exp %324 : vector<1x32xf32>
    %cst_59 = arith.constant 1.000000e+00 : f32
    %326 = vector.broadcast %cst_59 : f32 to vector<1x32xf32>
    %327 = arith.addf %326, %325 : vector<1x32xf32>
    %328 = arith.divf %326, %327 : vector<1x32xf32>
    %329 = vector.extract_strided_slice %306 {offsets = [0, 32], sizes = [1, 32], strides = [1, 1]} : vector<1x96xf32> to vector<1x32xf32>
    %330 = arith.addf %316, %329 : vector<1x32xf32>
    %331 = arith.negf %330 : vector<1x32xf32>
    %332 = math.exp %331 : vector<1x32xf32>
    %cst_60 = arith.constant 1.000000e+00 : f32
    %333 = vector.broadcast %cst_60 : f32 to vector<1x32xf32>
    %334 = arith.addf %333, %332 : vector<1x32xf32>
    %335 = arith.divf %333, %334 : vector<1x32xf32>
    %336 = vector.extract_strided_slice %306 {offsets = [0, 64], sizes = [1, 32], strides = [1, 1]} : vector<1x96xf32> to vector<1x32xf32>
    %337 = arith.mulf %328, %336 : vector<1x32xf32>
    %338 = arith.addf %321, %337 : vector<1x32xf32>
    %339 = math.tanh %338 : vector<1x32xf32>
    %cst_61 = arith.constant 1.000000e+00 : f32
    %340 = vector.broadcast %cst_61 : f32 to vector<1x32xf32>
    %341 = arith.subf %340, %335 : vector<1x32xf32>
    %342 = arith.mulf %341, %339 : vector<1x32xf32>
    %343 = arith.mulf %335, %302 : vector<1x32xf32>
    %344 = arith.addf %342, %343 : vector<1x32xf32>
    %345 = vector.extract_strided_slice %344 {offsets = [0, 0], sizes = [1, 16], strides = [1, 1]} : vector<1x32xf32> to vector<1x16xf32>
    %346 = vector.extract_strided_slice %344 {offsets = [0, 16], sizes = [1, 16], strides = [1, 1]} : vector<1x32xf32> to vector<1x16xf32>
    %cst_62 = arith.constant dense<0.000000e+00> : vector<1x96xf32>
    %347 = tpu.matmul %344, %50, %cst_62 {dimension_numbers = #tpu.dot_dimension_numbers<[1], [0], [0], [1], [0, 0, 1, 1], [], []>} : vector<1x32xf32>, vector<32x96xf32>, vector<1x96xf32> -> vector<1x96xf32>
    %348 = arith.addf %347, %51 : vector<1x96xf32>
    %349 = vector.extract_strided_slice %48 {offsets = [0, 7, 0], sizes = [1, 1, 16], strides = [1, 1, 1]} : vector<1x16x48xf32> to vector<1x1x16xf32>
    %350 = vector.shape_cast %349 : vector<1x1x16xf32> to vector<1x16xf32>
    %351 = vector.extract_strided_slice %49 {offsets = [0, 8, 0], sizes = [1, 1, 16], strides = [1, 1, 1]} : vector<1x16x48xf32> to vector<1x1x16xf32>
    %352 = vector.shape_cast %351 : vector<1x1x16xf32> to vector<1x16xf32>
    %353 = tpu.concatenate %350, %352 in 1 : vector<1x16xf32>, vector<1x16xf32> -> vector<1x32xf32>
    %354 = vector.extract_strided_slice %48 {offsets = [0, 7, 16], sizes = [1, 1, 16], strides = [1, 1, 1]} : vector<1x16x48xf32> to vector<1x1x16xf32>
    %355 = vector.shape_cast %354 : vector<1x1x16xf32> to vector<1x16xf32>
    %356 = vector.extract_strided_slice %49 {offsets = [0, 8, 16], sizes = [1, 1, 16], strides = [1, 1, 1]} : vector<1x16x48xf32> to vector<1x1x16xf32>
    %357 = vector.shape_cast %356 : vector<1x1x16xf32> to vector<1x16xf32>
    %358 = tpu.concatenate %355, %357 in 1 : vector<1x16xf32>, vector<1x16xf32> -> vector<1x32xf32>
    %359 = vector.extract_strided_slice %48 {offsets = [0, 7, 32], sizes = [1, 1, 16], strides = [1, 1, 1]} : vector<1x16x48xf32> to vector<1x1x16xf32>
    %360 = vector.shape_cast %359 : vector<1x1x16xf32> to vector<1x16xf32>
    %361 = vector.extract_strided_slice %49 {offsets = [0, 8, 32], sizes = [1, 1, 16], strides = [1, 1, 1]} : vector<1x16x48xf32> to vector<1x1x16xf32>
    %362 = vector.shape_cast %361 : vector<1x1x16xf32> to vector<1x16xf32>
    %363 = tpu.concatenate %360, %362 in 1 : vector<1x16xf32>, vector<1x16xf32> -> vector<1x32xf32>
    %364 = vector.extract_strided_slice %348 {offsets = [0, 0], sizes = [1, 32], strides = [1, 1]} : vector<1x96xf32> to vector<1x32xf32>
    %365 = arith.addf %353, %364 : vector<1x32xf32>
    %366 = arith.negf %365 : vector<1x32xf32>
    %367 = math.exp %366 : vector<1x32xf32>
    %cst_63 = arith.constant 1.000000e+00 : f32
    %368 = vector.broadcast %cst_63 : f32 to vector<1x32xf32>
    %369 = arith.addf %368, %367 : vector<1x32xf32>
    %370 = arith.divf %368, %369 : vector<1x32xf32>
    %371 = vector.extract_strided_slice %348 {offsets = [0, 32], sizes = [1, 32], strides = [1, 1]} : vector<1x96xf32> to vector<1x32xf32>
    %372 = arith.addf %358, %371 : vector<1x32xf32>
    %373 = arith.negf %372 : vector<1x32xf32>
    %374 = math.exp %373 : vector<1x32xf32>
    %cst_64 = arith.constant 1.000000e+00 : f32
    %375 = vector.broadcast %cst_64 : f32 to vector<1x32xf32>
    %376 = arith.addf %375, %374 : vector<1x32xf32>
    %377 = arith.divf %375, %376 : vector<1x32xf32>
    %378 = vector.extract_strided_slice %348 {offsets = [0, 64], sizes = [1, 32], strides = [1, 1]} : vector<1x96xf32> to vector<1x32xf32>
    %379 = arith.mulf %370, %378 : vector<1x32xf32>
    %380 = arith.addf %363, %379 : vector<1x32xf32>
    %381 = math.tanh %380 : vector<1x32xf32>
    %cst_65 = arith.constant 1.000000e+00 : f32
    %382 = vector.broadcast %cst_65 : f32 to vector<1x32xf32>
    %383 = arith.subf %382, %377 : vector<1x32xf32>
    %384 = arith.mulf %383, %381 : vector<1x32xf32>
    %385 = arith.mulf %377, %344 : vector<1x32xf32>
    %386 = arith.addf %384, %385 : vector<1x32xf32>
    %387 = vector.extract_strided_slice %386 {offsets = [0, 0], sizes = [1, 16], strides = [1, 1]} : vector<1x32xf32> to vector<1x16xf32>
    %388 = vector.extract_strided_slice %386 {offsets = [0, 16], sizes = [1, 16], strides = [1, 1]} : vector<1x32xf32> to vector<1x16xf32>
    %cst_66 = arith.constant dense<0.000000e+00> : vector<1x96xf32>
    %389 = tpu.matmul %386, %50, %cst_66 {dimension_numbers = #tpu.dot_dimension_numbers<[1], [0], [0], [1], [0, 0, 1, 1], [], []>} : vector<1x32xf32>, vector<32x96xf32>, vector<1x96xf32> -> vector<1x96xf32>
    %390 = arith.addf %389, %51 : vector<1x96xf32>
    %391 = vector.extract_strided_slice %48 {offsets = [0, 8, 0], sizes = [1, 1, 16], strides = [1, 1, 1]} : vector<1x16x48xf32> to vector<1x1x16xf32>
    %392 = vector.shape_cast %391 : vector<1x1x16xf32> to vector<1x16xf32>
    %393 = vector.extract_strided_slice %49 {offsets = [0, 7, 0], sizes = [1, 1, 16], strides = [1, 1, 1]} : vector<1x16x48xf32> to vector<1x1x16xf32>
    %394 = vector.shape_cast %393 : vector<1x1x16xf32> to vector<1x16xf32>
    %395 = tpu.concatenate %392, %394 in 1 : vector<1x16xf32>, vector<1x16xf32> -> vector<1x32xf32>
    %396 = vector.extract_strided_slice %48 {offsets = [0, 8, 16], sizes = [1, 1, 16], strides = [1, 1, 1]} : vector<1x16x48xf32> to vector<1x1x16xf32>
    %397 = vector.shape_cast %396 : vector<1x1x16xf32> to vector<1x16xf32>
    %398 = vector.extract_strided_slice %49 {offsets = [0, 7, 16], sizes = [1, 1, 16], strides = [1, 1, 1]} : vector<1x16x48xf32> to vector<1x1x16xf32>
    %399 = vector.shape_cast %398 : vector<1x1x16xf32> to vector<1x16xf32>
    %400 = tpu.concatenate %397, %399 in 1 : vector<1x16xf32>, vector<1x16xf32> -> vector<1x32xf32>
    %401 = vector.extract_strided_slice %48 {offsets = [0, 8, 32], sizes = [1, 1, 16], strides = [1, 1, 1]} : vector<1x16x48xf32> to vector<1x1x16xf32>
    %402 = vector.shape_cast %401 : vector<1x1x16xf32> to vector<1x16xf32>
    %403 = vector.extract_strided_slice %49 {offsets = [0, 7, 32], sizes = [1, 1, 16], strides = [1, 1, 1]} : vector<1x16x48xf32> to vector<1x1x16xf32>
    %404 = vector.shape_cast %403 : vector<1x1x16xf32> to vector<1x16xf32>
    %405 = tpu.concatenate %402, %404 in 1 : vector<1x16xf32>, vector<1x16xf32> -> vector<1x32xf32>
    %406 = vector.extract_strided_slice %390 {offsets = [0, 0], sizes = [1, 32], strides = [1, 1]} : vector<1x96xf32> to vector<1x32xf32>
    %407 = arith.addf %395, %406 : vector<1x32xf32>
    %408 = arith.negf %407 : vector<1x32xf32>
    %409 = math.exp %408 : vector<1x32xf32>
    %cst_67 = arith.constant 1.000000e+00 : f32
    %410 = vector.broadcast %cst_67 : f32 to vector<1x32xf32>
    %411 = arith.addf %410, %409 : vector<1x32xf32>
    %412 = arith.divf %410, %411 : vector<1x32xf32>
    %413 = vector.extract_strided_slice %390 {offsets = [0, 32], sizes = [1, 32], strides = [1, 1]} : vector<1x96xf32> to vector<1x32xf32>
    %414 = arith.addf %400, %413 : vector<1x32xf32>
    %415 = arith.negf %414 : vector<1x32xf32>
    %416 = math.exp %415 : vector<1x32xf32>
    %cst_68 = arith.constant 1.000000e+00 : f32
    %417 = vector.broadcast %cst_68 : f32 to vector<1x32xf32>
    %418 = arith.addf %417, %416 : vector<1x32xf32>
    %419 = arith.divf %417, %418 : vector<1x32xf32>
    %420 = vector.extract_strided_slice %390 {offsets = [0, 64], sizes = [1, 32], strides = [1, 1]} : vector<1x96xf32> to vector<1x32xf32>
    %421 = arith.mulf %412, %420 : vector<1x32xf32>
    %422 = arith.addf %405, %421 : vector<1x32xf32>
    %423 = math.tanh %422 : vector<1x32xf32>
    %cst_69 = arith.constant 1.000000e+00 : f32
    %424 = vector.broadcast %cst_69 : f32 to vector<1x32xf32>
    %425 = arith.subf %424, %419 : vector<1x32xf32>
    %426 = arith.mulf %425, %423 : vector<1x32xf32>
    %427 = arith.mulf %419, %386 : vector<1x32xf32>
    %428 = arith.addf %426, %427 : vector<1x32xf32>
    %429 = vector.extract_strided_slice %428 {offsets = [0, 0], sizes = [1, 16], strides = [1, 1]} : vector<1x32xf32> to vector<1x16xf32>
    %430 = vector.extract_strided_slice %428 {offsets = [0, 16], sizes = [1, 16], strides = [1, 1]} : vector<1x32xf32> to vector<1x16xf32>
    %cst_70 = arith.constant dense<0.000000e+00> : vector<1x96xf32>
    %431 = tpu.matmul %428, %50, %cst_70 {dimension_numbers = #tpu.dot_dimension_numbers<[1], [0], [0], [1], [0, 0, 1, 1], [], []>} : vector<1x32xf32>, vector<32x96xf32>, vector<1x96xf32> -> vector<1x96xf32>
    %432 = arith.addf %431, %51 : vector<1x96xf32>
    %433 = vector.extract_strided_slice %48 {offsets = [0, 9, 0], sizes = [1, 1, 16], strides = [1, 1, 1]} : vector<1x16x48xf32> to vector<1x1x16xf32>
    %434 = vector.shape_cast %433 : vector<1x1x16xf32> to vector<1x16xf32>
    %435 = vector.extract_strided_slice %49 {offsets = [0, 6, 0], sizes = [1, 1, 16], strides = [1, 1, 1]} : vector<1x16x48xf32> to vector<1x1x16xf32>
    %436 = vector.shape_cast %435 : vector<1x1x16xf32> to vector<1x16xf32>
    %437 = tpu.concatenate %434, %436 in 1 : vector<1x16xf32>, vector<1x16xf32> -> vector<1x32xf32>
    %438 = vector.extract_strided_slice %48 {offsets = [0, 9, 16], sizes = [1, 1, 16], strides = [1, 1, 1]} : vector<1x16x48xf32> to vector<1x1x16xf32>
    %439 = vector.shape_cast %438 : vector<1x1x16xf32> to vector<1x16xf32>
    %440 = vector.extract_strided_slice %49 {offsets = [0, 6, 16], sizes = [1, 1, 16], strides = [1, 1, 1]} : vector<1x16x48xf32> to vector<1x1x16xf32>
    %441 = vector.shape_cast %440 : vector<1x1x16xf32> to vector<1x16xf32>
    %442 = tpu.concatenate %439, %441 in 1 : vector<1x16xf32>, vector<1x16xf32> -> vector<1x32xf32>
    %443 = vector.extract_strided_slice %48 {offsets = [0, 9, 32], sizes = [1, 1, 16], strides = [1, 1, 1]} : vector<1x16x48xf32> to vector<1x1x16xf32>
    %444 = vector.shape_cast %443 : vector<1x1x16xf32> to vector<1x16xf32>
    %445 = vector.extract_strided_slice %49 {offsets = [0, 6, 32], sizes = [1, 1, 16], strides = [1, 1, 1]} : vector<1x16x48xf32> to vector<1x1x16xf32>
    %446 = vector.shape_cast %445 : vector<1x1x16xf32> to vector<1x16xf32>
    %447 = tpu.concatenate %444, %446 in 1 : vector<1x16xf32>, vector<1x16xf32> -> vector<1x32xf32>
    %448 = vector.extract_strided_slice %432 {offsets = [0, 0], sizes = [1, 32], strides = [1, 1]} : vector<1x96xf32> to vector<1x32xf32>
    %449 = arith.addf %437, %448 : vector<1x32xf32>
    %450 = arith.negf %449 : vector<1x32xf32>
    %451 = math.exp %450 : vector<1x32xf32>
    %cst_71 = arith.constant 1.000000e+00 : f32
    %452 = vector.broadcast %cst_71 : f32 to vector<1x32xf32>
    %453 = arith.addf %452, %451 : vector<1x32xf32>
    %454 = arith.divf %452, %453 : vector<1x32xf32>
    %455 = vector.extract_strided_slice %432 {offsets = [0, 32], sizes = [1, 32], strides = [1, 1]} : vector<1x96xf32> to vector<1x32xf32>
    %456 = arith.addf %442, %455 : vector<1x32xf32>
    %457 = arith.negf %456 : vector<1x32xf32>
    %458 = math.exp %457 : vector<1x32xf32>
    %cst_72 = arith.constant 1.000000e+00 : f32
    %459 = vector.broadcast %cst_72 : f32 to vector<1x32xf32>
    %460 = arith.addf %459, %458 : vector<1x32xf32>
    %461 = arith.divf %459, %460 : vector<1x32xf32>
    %462 = vector.extract_strided_slice %432 {offsets = [0, 64], sizes = [1, 32], strides = [1, 1]} : vector<1x96xf32> to vector<1x32xf32>
    %463 = arith.mulf %454, %462 : vector<1x32xf32>
    %464 = arith.addf %447, %463 : vector<1x32xf32>
    %465 = math.tanh %464 : vector<1x32xf32>
    %cst_73 = arith.constant 1.000000e+00 : f32
    %466 = vector.broadcast %cst_73 : f32 to vector<1x32xf32>
    %467 = arith.subf %466, %461 : vector<1x32xf32>
    %468 = arith.mulf %467, %465 : vector<1x32xf32>
    %469 = arith.mulf %461, %428 : vector<1x32xf32>
    %470 = arith.addf %468, %469 : vector<1x32xf32>
    %471 = vector.extract_strided_slice %470 {offsets = [0, 0], sizes = [1, 16], strides = [1, 1]} : vector<1x32xf32> to vector<1x16xf32>
    %472 = vector.extract_strided_slice %470 {offsets = [0, 16], sizes = [1, 16], strides = [1, 1]} : vector<1x32xf32> to vector<1x16xf32>
    %cst_74 = arith.constant dense<0.000000e+00> : vector<1x96xf32>
    %473 = tpu.matmul %470, %50, %cst_74 {dimension_numbers = #tpu.dot_dimension_numbers<[1], [0], [0], [1], [0, 0, 1, 1], [], []>} : vector<1x32xf32>, vector<32x96xf32>, vector<1x96xf32> -> vector<1x96xf32>
    %474 = arith.addf %473, %51 : vector<1x96xf32>
    %475 = vector.extract_strided_slice %48 {offsets = [0, 10, 0], sizes = [1, 1, 16], strides = [1, 1, 1]} : vector<1x16x48xf32> to vector<1x1x16xf32>
    %476 = vector.shape_cast %475 : vector<1x1x16xf32> to vector<1x16xf32>
    %477 = vector.extract_strided_slice %49 {offsets = [0, 5, 0], sizes = [1, 1, 16], strides = [1, 1, 1]} : vector<1x16x48xf32> to vector<1x1x16xf32>
    %478 = vector.shape_cast %477 : vector<1x1x16xf32> to vector<1x16xf32>
    %479 = tpu.concatenate %476, %478 in 1 : vector<1x16xf32>, vector<1x16xf32> -> vector<1x32xf32>
    %480 = vector.extract_strided_slice %48 {offsets = [0, 10, 16], sizes = [1, 1, 16], strides = [1, 1, 1]} : vector<1x16x48xf32> to vector<1x1x16xf32>
    %481 = vector.shape_cast %480 : vector<1x1x16xf32> to vector<1x16xf32>
    %482 = vector.extract_strided_slice %49 {offsets = [0, 5, 16], sizes = [1, 1, 16], strides = [1, 1, 1]} : vector<1x16x48xf32> to vector<1x1x16xf32>
    %483 = vector.shape_cast %482 : vector<1x1x16xf32> to vector<1x16xf32>
    %484 = tpu.concatenate %481, %483 in 1 : vector<1x16xf32>, vector<1x16xf32> -> vector<1x32xf32>
    %485 = vector.extract_strided_slice %48 {offsets = [0, 10, 32], sizes = [1, 1, 16], strides = [1, 1, 1]} : vector<1x16x48xf32> to vector<1x1x16xf32>
    %486 = vector.shape_cast %485 : vector<1x1x16xf32> to vector<1x16xf32>
    %487 = vector.extract_strided_slice %49 {offsets = [0, 5, 32], sizes = [1, 1, 16], strides = [1, 1, 1]} : vector<1x16x48xf32> to vector<1x1x16xf32>
    %488 = vector.shape_cast %487 : vector<1x1x16xf32> to vector<1x16xf32>
    %489 = tpu.concatenate %486, %488 in 1 : vector<1x16xf32>, vector<1x16xf32> -> vector<1x32xf32>
    %490 = vector.extract_strided_slice %474 {offsets = [0, 0], sizes = [1, 32], strides = [1, 1]} : vector<1x96xf32> to vector<1x32xf32>
    %491 = arith.addf %479, %490 : vector<1x32xf32>
    %492 = arith.negf %491 : vector<1x32xf32>
    %493 = math.exp %492 : vector<1x32xf32>
    %cst_75 = arith.constant 1.000000e+00 : f32
    %494 = vector.broadcast %cst_75 : f32 to vector<1x32xf32>
    %495 = arith.addf %494, %493 : vector<1x32xf32>
    %496 = arith.divf %494, %495 : vector<1x32xf32>
    %497 = vector.extract_strided_slice %474 {offsets = [0, 32], sizes = [1, 32], strides = [1, 1]} : vector<1x96xf32> to vector<1x32xf32>
    %498 = arith.addf %484, %497 : vector<1x32xf32>
    %499 = arith.negf %498 : vector<1x32xf32>
    %500 = math.exp %499 : vector<1x32xf32>
    %cst_76 = arith.constant 1.000000e+00 : f32
    %501 = vector.broadcast %cst_76 : f32 to vector<1x32xf32>
    %502 = arith.addf %501, %500 : vector<1x32xf32>
    %503 = arith.divf %501, %502 : vector<1x32xf32>
    %504 = vector.extract_strided_slice %474 {offsets = [0, 64], sizes = [1, 32], strides = [1, 1]} : vector<1x96xf32> to vector<1x32xf32>
    %505 = arith.mulf %496, %504 : vector<1x32xf32>
    %506 = arith.addf %489, %505 : vector<1x32xf32>
    %507 = math.tanh %506 : vector<1x32xf32>
    %cst_77 = arith.constant 1.000000e+00 : f32
    %508 = vector.broadcast %cst_77 : f32 to vector<1x32xf32>
    %509 = arith.subf %508, %503 : vector<1x32xf32>
    %510 = arith.mulf %509, %507 : vector<1x32xf32>
    %511 = arith.mulf %503, %470 : vector<1x32xf32>
    %512 = arith.addf %510, %511 : vector<1x32xf32>
    %513 = vector.extract_strided_slice %512 {offsets = [0, 0], sizes = [1, 16], strides = [1, 1]} : vector<1x32xf32> to vector<1x16xf32>
    %514 = vector.extract_strided_slice %512 {offsets = [0, 16], sizes = [1, 16], strides = [1, 1]} : vector<1x32xf32> to vector<1x16xf32>
    %cst_78 = arith.constant dense<0.000000e+00> : vector<1x96xf32>
    %515 = tpu.matmul %512, %50, %cst_78 {dimension_numbers = #tpu.dot_dimension_numbers<[1], [0], [0], [1], [0, 0, 1, 1], [], []>} : vector<1x32xf32>, vector<32x96xf32>, vector<1x96xf32> -> vector<1x96xf32>
    %516 = arith.addf %515, %51 : vector<1x96xf32>
    %517 = vector.extract_strided_slice %48 {offsets = [0, 11, 0], sizes = [1, 1, 16], strides = [1, 1, 1]} : vector<1x16x48xf32> to vector<1x1x16xf32>
    %518 = vector.shape_cast %517 : vector<1x1x16xf32> to vector<1x16xf32>
    %519 = vector.extract_strided_slice %49 {offsets = [0, 4, 0], sizes = [1, 1, 16], strides = [1, 1, 1]} : vector<1x16x48xf32> to vector<1x1x16xf32>
    %520 = vector.shape_cast %519 : vector<1x1x16xf32> to vector<1x16xf32>
    %521 = tpu.concatenate %518, %520 in 1 : vector<1x16xf32>, vector<1x16xf32> -> vector<1x32xf32>
    %522 = vector.extract_strided_slice %48 {offsets = [0, 11, 16], sizes = [1, 1, 16], strides = [1, 1, 1]} : vector<1x16x48xf32> to vector<1x1x16xf32>
    %523 = vector.shape_cast %522 : vector<1x1x16xf32> to vector<1x16xf32>
    %524 = vector.extract_strided_slice %49 {offsets = [0, 4, 16], sizes = [1, 1, 16], strides = [1, 1, 1]} : vector<1x16x48xf32> to vector<1x1x16xf32>
    %525 = vector.shape_cast %524 : vector<1x1x16xf32> to vector<1x16xf32>
    %526 = tpu.concatenate %523, %525 in 1 : vector<1x16xf32>, vector<1x16xf32> -> vector<1x32xf32>
    %527 = vector.extract_strided_slice %48 {offsets = [0, 11, 32], sizes = [1, 1, 16], strides = [1, 1, 1]} : vector<1x16x48xf32> to vector<1x1x16xf32>
    %528 = vector.shape_cast %527 : vector<1x1x16xf32> to vector<1x16xf32>
    %529 = vector.extract_strided_slice %49 {offsets = [0, 4, 32], sizes = [1, 1, 16], strides = [1, 1, 1]} : vector<1x16x48xf32> to vector<1x1x16xf32>
    %530 = vector.shape_cast %529 : vector<1x1x16xf32> to vector<1x16xf32>
    %531 = tpu.concatenate %528, %530 in 1 : vector<1x16xf32>, vector<1x16xf32> -> vector<1x32xf32>
    %532 = vector.extract_strided_slice %516 {offsets = [0, 0], sizes = [1, 32], strides = [1, 1]} : vector<1x96xf32> to vector<1x32xf32>
    %533 = arith.addf %521, %532 : vector<1x32xf32>
    %534 = arith.negf %533 : vector<1x32xf32>
    %535 = math.exp %534 : vector<1x32xf32>
    %cst_79 = arith.constant 1.000000e+00 : f32
    %536 = vector.broadcast %cst_79 : f32 to vector<1x32xf32>
    %537 = arith.addf %536, %535 : vector<1x32xf32>
    %538 = arith.divf %536, %537 : vector<1x32xf32>
    %539 = vector.extract_strided_slice %516 {offsets = [0, 32], sizes = [1, 32], strides = [1, 1]} : vector<1x96xf32> to vector<1x32xf32>
    %540 = arith.addf %526, %539 : vector<1x32xf32>
    %541 = arith.negf %540 : vector<1x32xf32>
    %542 = math.exp %541 : vector<1x32xf32>
    %cst_80 = arith.constant 1.000000e+00 : f32
    %543 = vector.broadcast %cst_80 : f32 to vector<1x32xf32>
    %544 = arith.addf %543, %542 : vector<1x32xf32>
    %545 = arith.divf %543, %544 : vector<1x32xf32>
    %546 = vector.extract_strided_slice %516 {offsets = [0, 64], sizes = [1, 32], strides = [1, 1]} : vector<1x96xf32> to vector<1x32xf32>
    %547 = arith.mulf %538, %546 : vector<1x32xf32>
    %548 = arith.addf %531, %547 : vector<1x32xf32>
    %549 = math.tanh %548 : vector<1x32xf32>
    %cst_81 = arith.constant 1.000000e+00 : f32
    %550 = vector.broadcast %cst_81 : f32 to vector<1x32xf32>
    %551 = arith.subf %550, %545 : vector<1x32xf32>
    %552 = arith.mulf %551, %549 : vector<1x32xf32>
    %553 = arith.mulf %545, %512 : vector<1x32xf32>
    %554 = arith.addf %552, %553 : vector<1x32xf32>
    %555 = vector.extract_strided_slice %554 {offsets = [0, 0], sizes = [1, 16], strides = [1, 1]} : vector<1x32xf32> to vector<1x16xf32>
    %556 = vector.extract_strided_slice %554 {offsets = [0, 16], sizes = [1, 16], strides = [1, 1]} : vector<1x32xf32> to vector<1x16xf32>
    %cst_82 = arith.constant dense<0.000000e+00> : vector<1x96xf32>
    %557 = tpu.matmul %554, %50, %cst_82 {dimension_numbers = #tpu.dot_dimension_numbers<[1], [0], [0], [1], [0, 0, 1, 1], [], []>} : vector<1x32xf32>, vector<32x96xf32>, vector<1x96xf32> -> vector<1x96xf32>
    %558 = arith.addf %557, %51 : vector<1x96xf32>
    %559 = vector.extract_strided_slice %48 {offsets = [0, 12, 0], sizes = [1, 1, 16], strides = [1, 1, 1]} : vector<1x16x48xf32> to vector<1x1x16xf32>
    %560 = vector.shape_cast %559 : vector<1x1x16xf32> to vector<1x16xf32>
    %561 = vector.extract_strided_slice %49 {offsets = [0, 3, 0], sizes = [1, 1, 16], strides = [1, 1, 1]} : vector<1x16x48xf32> to vector<1x1x16xf32>
    %562 = vector.shape_cast %561 : vector<1x1x16xf32> to vector<1x16xf32>
    %563 = tpu.concatenate %560, %562 in 1 : vector<1x16xf32>, vector<1x16xf32> -> vector<1x32xf32>
    %564 = vector.extract_strided_slice %48 {offsets = [0, 12, 16], sizes = [1, 1, 16], strides = [1, 1, 1]} : vector<1x16x48xf32> to vector<1x1x16xf32>
    %565 = vector.shape_cast %564 : vector<1x1x16xf32> to vector<1x16xf32>
    %566 = vector.extract_strided_slice %49 {offsets = [0, 3, 16], sizes = [1, 1, 16], strides = [1, 1, 1]} : vector<1x16x48xf32> to vector<1x1x16xf32>
    %567 = vector.shape_cast %566 : vector<1x1x16xf32> to vector<1x16xf32>
    %568 = tpu.concatenate %565, %567 in 1 : vector<1x16xf32>, vector<1x16xf32> -> vector<1x32xf32>
    %569 = vector.extract_strided_slice %48 {offsets = [0, 12, 32], sizes = [1, 1, 16], strides = [1, 1, 1]} : vector<1x16x48xf32> to vector<1x1x16xf32>
    %570 = vector.shape_cast %569 : vector<1x1x16xf32> to vector<1x16xf32>
    %571 = vector.extract_strided_slice %49 {offsets = [0, 3, 32], sizes = [1, 1, 16], strides = [1, 1, 1]} : vector<1x16x48xf32> to vector<1x1x16xf32>
    %572 = vector.shape_cast %571 : vector<1x1x16xf32> to vector<1x16xf32>
    %573 = tpu.concatenate %570, %572 in 1 : vector<1x16xf32>, vector<1x16xf32> -> vector<1x32xf32>
    %574 = vector.extract_strided_slice %558 {offsets = [0, 0], sizes = [1, 32], strides = [1, 1]} : vector<1x96xf32> to vector<1x32xf32>
    %575 = arith.addf %563, %574 : vector<1x32xf32>
    %576 = arith.negf %575 : vector<1x32xf32>
    %577 = math.exp %576 : vector<1x32xf32>
    %cst_83 = arith.constant 1.000000e+00 : f32
    %578 = vector.broadcast %cst_83 : f32 to vector<1x32xf32>
    %579 = arith.addf %578, %577 : vector<1x32xf32>
    %580 = arith.divf %578, %579 : vector<1x32xf32>
    %581 = vector.extract_strided_slice %558 {offsets = [0, 32], sizes = [1, 32], strides = [1, 1]} : vector<1x96xf32> to vector<1x32xf32>
    %582 = arith.addf %568, %581 : vector<1x32xf32>
    %583 = arith.negf %582 : vector<1x32xf32>
    %584 = math.exp %583 : vector<1x32xf32>
    %cst_84 = arith.constant 1.000000e+00 : f32
    %585 = vector.broadcast %cst_84 : f32 to vector<1x32xf32>
    %586 = arith.addf %585, %584 : vector<1x32xf32>
    %587 = arith.divf %585, %586 : vector<1x32xf32>
    %588 = vector.extract_strided_slice %558 {offsets = [0, 64], sizes = [1, 32], strides = [1, 1]} : vector<1x96xf32> to vector<1x32xf32>
    %589 = arith.mulf %580, %588 : vector<1x32xf32>
    %590 = arith.addf %573, %589 : vector<1x32xf32>
    %591 = math.tanh %590 : vector<1x32xf32>
    %cst_85 = arith.constant 1.000000e+00 : f32
    %592 = vector.broadcast %cst_85 : f32 to vector<1x32xf32>
    %593 = arith.subf %592, %587 : vector<1x32xf32>
    %594 = arith.mulf %593, %591 : vector<1x32xf32>
    %595 = arith.mulf %587, %554 : vector<1x32xf32>
    %596 = arith.addf %594, %595 : vector<1x32xf32>
    %597 = vector.extract_strided_slice %596 {offsets = [0, 0], sizes = [1, 16], strides = [1, 1]} : vector<1x32xf32> to vector<1x16xf32>
    %598 = vector.extract_strided_slice %596 {offsets = [0, 16], sizes = [1, 16], strides = [1, 1]} : vector<1x32xf32> to vector<1x16xf32>
    %cst_86 = arith.constant dense<0.000000e+00> : vector<1x96xf32>
    %599 = tpu.matmul %596, %50, %cst_86 {dimension_numbers = #tpu.dot_dimension_numbers<[1], [0], [0], [1], [0, 0, 1, 1], [], []>} : vector<1x32xf32>, vector<32x96xf32>, vector<1x96xf32> -> vector<1x96xf32>
    %600 = arith.addf %599, %51 : vector<1x96xf32>
    %601 = vector.extract_strided_slice %48 {offsets = [0, 13, 0], sizes = [1, 1, 16], strides = [1, 1, 1]} : vector<1x16x48xf32> to vector<1x1x16xf32>
    %602 = vector.shape_cast %601 : vector<1x1x16xf32> to vector<1x16xf32>
    %603 = vector.extract_strided_slice %49 {offsets = [0, 2, 0], sizes = [1, 1, 16], strides = [1, 1, 1]} : vector<1x16x48xf32> to vector<1x1x16xf32>
    %604 = vector.shape_cast %603 : vector<1x1x16xf32> to vector<1x16xf32>
    %605 = tpu.concatenate %602, %604 in 1 : vector<1x16xf32>, vector<1x16xf32> -> vector<1x32xf32>
    %606 = vector.extract_strided_slice %48 {offsets = [0, 13, 16], sizes = [1, 1, 16], strides = [1, 1, 1]} : vector<1x16x48xf32> to vector<1x1x16xf32>
    %607 = vector.shape_cast %606 : vector<1x1x16xf32> to vector<1x16xf32>
    %608 = vector.extract_strided_slice %49 {offsets = [0, 2, 16], sizes = [1, 1, 16], strides = [1, 1, 1]} : vector<1x16x48xf32> to vector<1x1x16xf32>
    %609 = vector.shape_cast %608 : vector<1x1x16xf32> to vector<1x16xf32>
    %610 = tpu.concatenate %607, %609 in 1 : vector<1x16xf32>, vector<1x16xf32> -> vector<1x32xf32>
    %611 = vector.extract_strided_slice %48 {offsets = [0, 13, 32], sizes = [1, 1, 16], strides = [1, 1, 1]} : vector<1x16x48xf32> to vector<1x1x16xf32>
    %612 = vector.shape_cast %611 : vector<1x1x16xf32> to vector<1x16xf32>
    %613 = vector.extract_strided_slice %49 {offsets = [0, 2, 32], sizes = [1, 1, 16], strides = [1, 1, 1]} : vector<1x16x48xf32> to vector<1x1x16xf32>
    %614 = vector.shape_cast %613 : vector<1x1x16xf32> to vector<1x16xf32>
    %615 = tpu.concatenate %612, %614 in 1 : vector<1x16xf32>, vector<1x16xf32> -> vector<1x32xf32>
    %616 = vector.extract_strided_slice %600 {offsets = [0, 0], sizes = [1, 32], strides = [1, 1]} : vector<1x96xf32> to vector<1x32xf32>
    %617 = arith.addf %605, %616 : vector<1x32xf32>
    %618 = arith.negf %617 : vector<1x32xf32>
    %619 = math.exp %618 : vector<1x32xf32>
    %cst_87 = arith.constant 1.000000e+00 : f32
    %620 = vector.broadcast %cst_87 : f32 to vector<1x32xf32>
    %621 = arith.addf %620, %619 : vector<1x32xf32>
    %622 = arith.divf %620, %621 : vector<1x32xf32>
    %623 = vector.extract_strided_slice %600 {offsets = [0, 32], sizes = [1, 32], strides = [1, 1]} : vector<1x96xf32> to vector<1x32xf32>
    %624 = arith.addf %610, %623 : vector<1x32xf32>
    %625 = arith.negf %624 : vector<1x32xf32>
    %626 = math.exp %625 : vector<1x32xf32>
    %cst_88 = arith.constant 1.000000e+00 : f32
    %627 = vector.broadcast %cst_88 : f32 to vector<1x32xf32>
    %628 = arith.addf %627, %626 : vector<1x32xf32>
    %629 = arith.divf %627, %628 : vector<1x32xf32>
    %630 = vector.extract_strided_slice %600 {offsets = [0, 64], sizes = [1, 32], strides = [1, 1]} : vector<1x96xf32> to vector<1x32xf32>
    %631 = arith.mulf %622, %630 : vector<1x32xf32>
    %632 = arith.addf %615, %631 : vector<1x32xf32>
    %633 = math.tanh %632 : vector<1x32xf32>
    %cst_89 = arith.constant 1.000000e+00 : f32
    %634 = vector.broadcast %cst_89 : f32 to vector<1x32xf32>
    %635 = arith.subf %634, %629 : vector<1x32xf32>
    %636 = arith.mulf %635, %633 : vector<1x32xf32>
    %637 = arith.mulf %629, %596 : vector<1x32xf32>
    %638 = arith.addf %636, %637 : vector<1x32xf32>
    %639 = vector.extract_strided_slice %638 {offsets = [0, 0], sizes = [1, 16], strides = [1, 1]} : vector<1x32xf32> to vector<1x16xf32>
    %640 = vector.extract_strided_slice %638 {offsets = [0, 16], sizes = [1, 16], strides = [1, 1]} : vector<1x32xf32> to vector<1x16xf32>
    %cst_90 = arith.constant dense<0.000000e+00> : vector<1x96xf32>
    %641 = tpu.matmul %638, %50, %cst_90 {dimension_numbers = #tpu.dot_dimension_numbers<[1], [0], [0], [1], [0, 0, 1, 1], [], []>} : vector<1x32xf32>, vector<32x96xf32>, vector<1x96xf32> -> vector<1x96xf32>
    %642 = arith.addf %641, %51 : vector<1x96xf32>
    %643 = vector.extract_strided_slice %48 {offsets = [0, 14, 0], sizes = [1, 1, 16], strides = [1, 1, 1]} : vector<1x16x48xf32> to vector<1x1x16xf32>
    %644 = vector.shape_cast %643 : vector<1x1x16xf32> to vector<1x16xf32>
    %645 = vector.extract_strided_slice %49 {offsets = [0, 1, 0], sizes = [1, 1, 16], strides = [1, 1, 1]} : vector<1x16x48xf32> to vector<1x1x16xf32>
    %646 = vector.shape_cast %645 : vector<1x1x16xf32> to vector<1x16xf32>
    %647 = tpu.concatenate %644, %646 in 1 : vector<1x16xf32>, vector<1x16xf32> -> vector<1x32xf32>
    %648 = vector.extract_strided_slice %48 {offsets = [0, 14, 16], sizes = [1, 1, 16], strides = [1, 1, 1]} : vector<1x16x48xf32> to vector<1x1x16xf32>
    %649 = vector.shape_cast %648 : vector<1x1x16xf32> to vector<1x16xf32>
    %650 = vector.extract_strided_slice %49 {offsets = [0, 1, 16], sizes = [1, 1, 16], strides = [1, 1, 1]} : vector<1x16x48xf32> to vector<1x1x16xf32>
    %651 = vector.shape_cast %650 : vector<1x1x16xf32> to vector<1x16xf32>
    %652 = tpu.concatenate %649, %651 in 1 : vector<1x16xf32>, vector<1x16xf32> -> vector<1x32xf32>
    %653 = vector.extract_strided_slice %48 {offsets = [0, 14, 32], sizes = [1, 1, 16], strides = [1, 1, 1]} : vector<1x16x48xf32> to vector<1x1x16xf32>
    %654 = vector.shape_cast %653 : vector<1x1x16xf32> to vector<1x16xf32>
    %655 = vector.extract_strided_slice %49 {offsets = [0, 1, 32], sizes = [1, 1, 16], strides = [1, 1, 1]} : vector<1x16x48xf32> to vector<1x1x16xf32>
    %656 = vector.shape_cast %655 : vector<1x1x16xf32> to vector<1x16xf32>
    %657 = tpu.concatenate %654, %656 in 1 : vector<1x16xf32>, vector<1x16xf32> -> vector<1x32xf32>
    %658 = vector.extract_strided_slice %642 {offsets = [0, 0], sizes = [1, 32], strides = [1, 1]} : vector<1x96xf32> to vector<1x32xf32>
    %659 = arith.addf %647, %658 : vector<1x32xf32>
    %660 = arith.negf %659 : vector<1x32xf32>
    %661 = math.exp %660 : vector<1x32xf32>
    %cst_91 = arith.constant 1.000000e+00 : f32
    %662 = vector.broadcast %cst_91 : f32 to vector<1x32xf32>
    %663 = arith.addf %662, %661 : vector<1x32xf32>
    %664 = arith.divf %662, %663 : vector<1x32xf32>
    %665 = vector.extract_strided_slice %642 {offsets = [0, 32], sizes = [1, 32], strides = [1, 1]} : vector<1x96xf32> to vector<1x32xf32>
    %666 = arith.addf %652, %665 : vector<1x32xf32>
    %667 = arith.negf %666 : vector<1x32xf32>
    %668 = math.exp %667 : vector<1x32xf32>
    %cst_92 = arith.constant 1.000000e+00 : f32
    %669 = vector.broadcast %cst_92 : f32 to vector<1x32xf32>
    %670 = arith.addf %669, %668 : vector<1x32xf32>
    %671 = arith.divf %669, %670 : vector<1x32xf32>
    %672 = vector.extract_strided_slice %642 {offsets = [0, 64], sizes = [1, 32], strides = [1, 1]} : vector<1x96xf32> to vector<1x32xf32>
    %673 = arith.mulf %664, %672 : vector<1x32xf32>
    %674 = arith.addf %657, %673 : vector<1x32xf32>
    %675 = math.tanh %674 : vector<1x32xf32>
    %cst_93 = arith.constant 1.000000e+00 : f32
    %676 = vector.broadcast %cst_93 : f32 to vector<1x32xf32>
    %677 = arith.subf %676, %671 : vector<1x32xf32>
    %678 = arith.mulf %677, %675 : vector<1x32xf32>
    %679 = arith.mulf %671, %638 : vector<1x32xf32>
    %680 = arith.addf %678, %679 : vector<1x32xf32>
    %681 = vector.extract_strided_slice %680 {offsets = [0, 0], sizes = [1, 16], strides = [1, 1]} : vector<1x32xf32> to vector<1x16xf32>
    %682 = vector.extract_strided_slice %680 {offsets = [0, 16], sizes = [1, 16], strides = [1, 1]} : vector<1x32xf32> to vector<1x16xf32>
    %cst_94 = arith.constant dense<0.000000e+00> : vector<1x96xf32>
    %683 = tpu.matmul %680, %50, %cst_94 {dimension_numbers = #tpu.dot_dimension_numbers<[1], [0], [0], [1], [0, 0, 1, 1], [], []>} : vector<1x32xf32>, vector<32x96xf32>, vector<1x96xf32> -> vector<1x96xf32>
    %684 = arith.addf %683, %51 : vector<1x96xf32>
    %685 = vector.extract_strided_slice %48 {offsets = [0, 15, 0], sizes = [1, 1, 16], strides = [1, 1, 1]} : vector<1x16x48xf32> to vector<1x1x16xf32>
    %686 = vector.shape_cast %685 : vector<1x1x16xf32> to vector<1x16xf32>
    %687 = vector.extract_strided_slice %49 {offsets = [0, 0, 0], sizes = [1, 1, 16], strides = [1, 1, 1]} : vector<1x16x48xf32> to vector<1x1x16xf32>
    %688 = vector.shape_cast %687 : vector<1x1x16xf32> to vector<1x16xf32>
    %689 = tpu.concatenate %686, %688 in 1 : vector<1x16xf32>, vector<1x16xf32> -> vector<1x32xf32>
    %690 = vector.extract_strided_slice %48 {offsets = [0, 15, 16], sizes = [1, 1, 16], strides = [1, 1, 1]} : vector<1x16x48xf32> to vector<1x1x16xf32>
    %691 = vector.shape_cast %690 : vector<1x1x16xf32> to vector<1x16xf32>
    %692 = vector.extract_strided_slice %49 {offsets = [0, 0, 16], sizes = [1, 1, 16], strides = [1, 1, 1]} : vector<1x16x48xf32> to vector<1x1x16xf32>
    %693 = vector.shape_cast %692 : vector<1x1x16xf32> to vector<1x16xf32>
    %694 = tpu.concatenate %691, %693 in 1 : vector<1x16xf32>, vector<1x16xf32> -> vector<1x32xf32>
    %695 = vector.extract_strided_slice %48 {offsets = [0, 15, 32], sizes = [1, 1, 16], strides = [1, 1, 1]} : vector<1x16x48xf32> to vector<1x1x16xf32>
    %696 = vector.shape_cast %695 : vector<1x1x16xf32> to vector<1x16xf32>
    %697 = vector.extract_strided_slice %49 {offsets = [0, 0, 32], sizes = [1, 1, 16], strides = [1, 1, 1]} : vector<1x16x48xf32> to vector<1x1x16xf32>
    %698 = vector.shape_cast %697 : vector<1x1x16xf32> to vector<1x16xf32>
    %699 = tpu.concatenate %696, %698 in 1 : vector<1x16xf32>, vector<1x16xf32> -> vector<1x32xf32>
    %700 = vector.extract_strided_slice %684 {offsets = [0, 0], sizes = [1, 32], strides = [1, 1]} : vector<1x96xf32> to vector<1x32xf32>
    %701 = arith.addf %689, %700 : vector<1x32xf32>
    %702 = arith.negf %701 : vector<1x32xf32>
    %703 = math.exp %702 : vector<1x32xf32>
    %cst_95 = arith.constant 1.000000e+00 : f32
    %704 = vector.broadcast %cst_95 : f32 to vector<1x32xf32>
    %705 = arith.addf %704, %703 : vector<1x32xf32>
    %706 = arith.divf %704, %705 : vector<1x32xf32>
    %707 = vector.extract_strided_slice %684 {offsets = [0, 32], sizes = [1, 32], strides = [1, 1]} : vector<1x96xf32> to vector<1x32xf32>
    %708 = arith.addf %694, %707 : vector<1x32xf32>
    %709 = arith.negf %708 : vector<1x32xf32>
    %710 = math.exp %709 : vector<1x32xf32>
    %cst_96 = arith.constant 1.000000e+00 : f32
    %711 = vector.broadcast %cst_96 : f32 to vector<1x32xf32>
    %712 = arith.addf %711, %710 : vector<1x32xf32>
    %713 = arith.divf %711, %712 : vector<1x32xf32>
    %714 = vector.extract_strided_slice %684 {offsets = [0, 64], sizes = [1, 32], strides = [1, 1]} : vector<1x96xf32> to vector<1x32xf32>
    %715 = arith.mulf %706, %714 : vector<1x32xf32>
    %716 = arith.addf %699, %715 : vector<1x32xf32>
    %717 = math.tanh %716 : vector<1x32xf32>
    %cst_97 = arith.constant 1.000000e+00 : f32
    %718 = vector.broadcast %cst_97 : f32 to vector<1x32xf32>
    %719 = arith.subf %718, %713 : vector<1x32xf32>
    %720 = arith.mulf %719, %717 : vector<1x32xf32>
    %721 = arith.mulf %713, %680 : vector<1x32xf32>
    %722 = arith.addf %720, %721 : vector<1x32xf32>
    %723 = vector.extract_strided_slice %722 {offsets = [0, 0], sizes = [1, 16], strides = [1, 1]} : vector<1x32xf32> to vector<1x16xf32>
    %724 = vector.extract_strided_slice %722 {offsets = [0, 16], sizes = [1, 16], strides = [1, 1]} : vector<1x32xf32> to vector<1x16xf32>
    %725 = vector.shape_cast %93 : vector<1x16xf32> to vector<1x1x16xf32>
    %726 = vector.shape_cast %135 : vector<1x16xf32> to vector<1x1x16xf32>
    %727 = vector.shape_cast %177 : vector<1x16xf32> to vector<1x1x16xf32>
    %728 = vector.shape_cast %219 : vector<1x16xf32> to vector<1x1x16xf32>
    %729 = vector.shape_cast %261 : vector<1x16xf32> to vector<1x1x16xf32>
    %730 = vector.shape_cast %303 : vector<1x16xf32> to vector<1x1x16xf32>
    %731 = vector.shape_cast %345 : vector<1x16xf32> to vector<1x1x16xf32>
    %732 = vector.shape_cast %387 : vector<1x16xf32> to vector<1x1x16xf32>
    %733 = vector.shape_cast %429 : vector<1x16xf32> to vector<1x1x16xf32>
    %734 = vector.shape_cast %471 : vector<1x16xf32> to vector<1x1x16xf32>
    %735 = vector.shape_cast %513 : vector<1x16xf32> to vector<1x1x16xf32>
    %736 = vector.shape_cast %555 : vector<1x16xf32> to vector<1x1x16xf32>
    %737 = vector.shape_cast %597 : vector<1x16xf32> to vector<1x1x16xf32>
    %738 = vector.shape_cast %639 : vector<1x16xf32> to vector<1x1x16xf32>
    %739 = vector.shape_cast %681 : vector<1x16xf32> to vector<1x1x16xf32>
    %740 = vector.shape_cast %723 : vector<1x16xf32> to vector<1x1x16xf32>
    %741 = tpu.concatenate %725, %726, %727, %728, %729, %730, %731, %732, %733, %734, %735, %736, %737, %738, %739, %740 in 1 : vector<1x1x16xf32>, vector<1x1x16xf32>, vector<1x1x16xf32>, vector<1x1x16xf32>, vector<1x1x16xf32>, vector<1x1x16xf32>, vector<1x1x16xf32>, vector<1x1x16xf32>, vector<1x1x16xf32>, vector<1x1x16xf32>, vector<1x1x16xf32>, vector<1x1x16xf32>, vector<1x1x16xf32>, vector<1x1x16xf32>, vector<1x1x16xf32>, vector<1x1x16xf32> -> vector<1x16x16xf32>
    %742 = vector.shape_cast %724 : vector<1x16xf32> to vector<1x1x16xf32>
    %743 = vector.shape_cast %682 : vector<1x16xf32> to vector<1x1x16xf32>
    %744 = vector.shape_cast %640 : vector<1x16xf32> to vector<1x1x16xf32>
    %745 = vector.shape_cast %598 : vector<1x16xf32> to vector<1x1x16xf32>
    %746 = vector.shape_cast %556 : vector<1x16xf32> to vector<1x1x16xf32>
    %747 = vector.shape_cast %514 : vector<1x16xf32> to vector<1x1x16xf32>
    %748 = vector.shape_cast %472 : vector<1x16xf32> to vector<1x1x16xf32>
    %749 = vector.shape_cast %430 : vector<1x16xf32> to vector<1x1x16xf32>
    %750 = vector.shape_cast %388 : vector<1x16xf32> to vector<1x1x16xf32>
    %751 = vector.shape_cast %346 : vector<1x16xf32> to vector<1x1x16xf32>
    %752 = vector.shape_cast %304 : vector<1x16xf32> to vector<1x1x16xf32>
    %753 = vector.shape_cast %262 : vector<1x16xf32> to vector<1x1x16xf32>
    %754 = vector.shape_cast %220 : vector<1x16xf32> to vector<1x1x16xf32>
    %755 = vector.shape_cast %178 : vector<1x16xf32> to vector<1x1x16xf32>
    %756 = vector.shape_cast %136 : vector<1x16xf32> to vector<1x1x16xf32>
    %757 = vector.shape_cast %94 : vector<1x16xf32> to vector<1x1x16xf32>
    %758 = tpu.concatenate %742, %743, %744, %745, %746, %747, %748, %749, %750, %751, %752, %753, %754, %755, %756, %757 in 1 : vector<1x1x16xf32>, vector<1x1x16xf32>, vector<1x1x16xf32>, vector<1x1x16xf32>, vector<1x1x16xf32>, vector<1x1x16xf32>, vector<1x1x16xf32>, vector<1x1x16xf32>, vector<1x1x16xf32>, vector<1x1x16xf32>, vector<1x1x16xf32>, vector<1x1x16xf32>, vector<1x1x16xf32>, vector<1x1x16xf32>, vector<1x1x16xf32>, vector<1x1x16xf32> -> vector<1x16x16xf32>
    %759 = tpu.concatenate %741, %758 in 2 : vector<1x16x16xf32>, vector<1x16x16xf32> -> vector<1x16x32xf32>
    %760 = vector.shape_cast %759 : vector<1x16x32xf32> to vector<16x32xf32>
    %c0_98 = arith.constant 0 : index
    %c0_99 = arith.constant 0 : index
    %761 = vector.load %arg12[%c0_98, %c0_99] : memref<32x16xf32, #tpu.memory_space<vmem>>, vector<32x16xf32>
    %cst_100 = arith.constant dense<0.000000e+00> : vector<16x16xf32>
    %762 = tpu.matmul %760, %761, %cst_100 {dimension_numbers = #tpu.dot_dimension_numbers<[1], [0], [0], [1], [0, 0, 1, 1], [], []>} : vector<16x32xf32>, vector<32x16xf32>, vector<16x16xf32> -> vector<16x16xf32>
    %c0_101 = arith.constant 0 : index
    %c0_102 = arith.constant 0 : index
    %763 = vector.load %arg13[%c0_101, %c0_102] : memref<1x16xf32, #tpu.memory_space<vmem>>, vector<1x16xf32>
    %764 = vector.broadcast %763 : vector<1x16xf32> to vector<16x16xf32>
    %765 = arith.addf %762, %764 : vector<16x16xf32>
    %766 = vector.extract_strided_slice %765 {offsets = [0, 0], sizes = [16, 8], strides = [1, 1]} : vector<16x16xf32> to vector<16x8xf32>
    %767 = vector.shape_cast %766 : vector<16x8xf32> to vector<1x16x8xf32>
    %c0_103 = arith.constant 0 : index
    %c0_104 = arith.constant 0 : index
    %c0_105 = arith.constant 0 : index
    %768 = vector.load %arg25[%c0_103, %c0_104, %c0_105] : memref<1x16x8xf32, #tpu.memory_space<vmem>>, vector<1x16x8xf32>
    tpu.vector_store %arg25[%c0_103, %c0_104, %c0_105], %767 {strides = array<i32>} : memref<1x16x8xf32, #tpu.memory_space<vmem>>, vector<1x16x8xf32>,
    %769 = vector.extract_strided_slice %765 {offsets = [0, 8], sizes = [16, 8], strides = [1, 1]} : vector<16x16xf32> to vector<16x8xf32>
    %770 = vector.shape_cast %769 : vector<16x8xf32> to vector<1x16x8xf32>
    %c0_106 = arith.constant 0 : index
    %c0_107 = arith.constant 0 : index
    %c0_108 = arith.constant 0 : index
    %771 = vector.load %arg26[%c0_106, %c0_107, %c0_108] : memref<1x16x8xf32, #tpu.memory_space<vmem>>, vector<1x16x8xf32>
    tpu.vector_store %arg26[%c0_106, %c0_107, %c0_108], %770 {strides = array<i32>} : memref<1x16x8xf32, #tpu.memory_space<vmem>>, vector<1x16x8xf32>,
    %c0_109 = arith.constant 0 : index
    %c0_110 = arith.constant 0 : index
    %772 = vector.load %arg14[%c0_109, %c0_110] : memref<8x32xf32, #tpu.memory_space<vmem>>, vector<8x32xf32>
    %cst_111 = arith.constant dense<0.000000e+00> : vector<16x32xf32>
    %773 = tpu.matmul %766, %772, %cst_111 {dimension_numbers = #tpu.dot_dimension_numbers<[1], [0], [0], [1], [0, 0, 1, 1], [], []>} : vector<16x8xf32>, vector<8x32xf32>, vector<16x32xf32> -> vector<16x32xf32>
    %c0_112 = arith.constant 0 : index
    %c0_113 = arith.constant 0 : index
    %774 = vector.load %arg15[%c0_112, %c0_113] : memref<1x32xf32, #tpu.memory_space<vmem>>, vector<1x32xf32>
    %775 = vector.broadcast %774 : vector<1x32xf32> to vector<16x32xf32>
    %776 = arith.addf %773, %775 : vector<16x32xf32>
    %c0_114 = arith.constant 0 : index
    %c0_115 = arith.constant 0 : index
    %777 = vector.load %arg16[%c0_114, %c0_115] : memref<32x96xf32, #tpu.memory_space<vmem>>, vector<32x96xf32>
    %cst_116 = arith.constant dense<0.000000e+00> : vector<16x96xf32>
    %778 = tpu.matmul %776, %777, %cst_116 {dimension_numbers = #tpu.dot_dimension_numbers<[1], [0], [0], [1], [0, 0, 1, 1], [], []>} : vector<16x32xf32>, vector<32x96xf32>, vector<16x96xf32> -> vector<16x96xf32>
    %c0_117 = arith.constant 0 : index
    %c0_118 = arith.constant 0 : index
    %779 = vector.load %arg17[%c0_117, %c0_118] : memref<1x96xf32, #tpu.memory_space<vmem>>, vector<1x96xf32>
    %780 = vector.broadcast %779 : vector<1x96xf32> to vector<16x96xf32>
    %781 = arith.addf %778, %780 : vector<16x96xf32>
    %782 = vector.shape_cast %781 : vector<16x96xf32> to vector<1x16x96xf32>
    %c0_119 = arith.constant 0 : index
    %c0_120 = arith.constant 0 : index
    %783 = vector.load %arg18[%c0_119, %c0_120] : memref<32x96xf32, #tpu.memory_space<vmem>>, vector<32x96xf32>
    %c0_121 = arith.constant 0 : index
    %c0_122 = arith.constant 0 : index
    %784 = vector.load %arg19[%c0_121, %c0_122] : memref<1x96xf32, #tpu.memory_space<vmem>>, vector<1x96xf32>
    %cst_123 = arith.constant 0.000000e+00 : f32
    %785 = vector.broadcast %cst_123 : f32 to vector<1x32xf32>
    %cst_124 = arith.constant dense<0.000000e+00> : vector<1x96xf32>
    %786 = tpu.matmul %785, %783, %cst_124 {dimension_numbers = #tpu.dot_dimension_numbers<[1], [0], [0], [1], [0, 0, 1, 1], [], []>} : vector<1x32xf32>, vector<32x96xf32>, vector<1x96xf32> -> vector<1x96xf32>
    %787 = arith.addf %786, %784 : vector<1x96xf32>
    %788 = vector.extract_strided_slice %782 {offsets = [0, 0, 0], sizes = [1, 1, 96], strides = [1, 1, 1]} : vector<1x16x96xf32> to vector<1x1x96xf32>
    %789 = vector.shape_cast %788 : vector<1x1x96xf32> to vector<1x96xf32>
    %790 = vector.extract_strided_slice %789 {offsets = [0, 0], sizes = [1, 32], strides = [1, 1]} : vector<1x96xf32> to vector<1x32xf32>
    %791 = vector.extract_strided_slice %787 {offsets = [0, 0], sizes = [1, 32], strides = [1, 1]} : vector<1x96xf32> to vector<1x32xf32>
    %792 = arith.addf %790, %791 : vector<1x32xf32>
    %793 = arith.negf %792 : vector<1x32xf32>
    %794 = math.exp %793 : vector<1x32xf32>
    %cst_125 = arith.constant 1.000000e+00 : f32
    %795 = vector.broadcast %cst_125 : f32 to vector<1x32xf32>
    %796 = arith.addf %795, %794 : vector<1x32xf32>
    %797 = arith.divf %795, %796 : vector<1x32xf32>
    %798 = vector.extract_strided_slice %789 {offsets = [0, 32], sizes = [1, 32], strides = [1, 1]} : vector<1x96xf32> to vector<1x32xf32>
    %799 = vector.extract_strided_slice %787 {offsets = [0, 32], sizes = [1, 32], strides = [1, 1]} : vector<1x96xf32> to vector<1x32xf32>
    %800 = arith.addf %798, %799 : vector<1x32xf32>
    %801 = arith.negf %800 : vector<1x32xf32>
    %802 = math.exp %801 : vector<1x32xf32>
    %cst_126 = arith.constant 1.000000e+00 : f32
    %803 = vector.broadcast %cst_126 : f32 to vector<1x32xf32>
    %804 = arith.addf %803, %802 : vector<1x32xf32>
    %805 = arith.divf %803, %804 : vector<1x32xf32>
    %806 = vector.extract_strided_slice %789 {offsets = [0, 64], sizes = [1, 32], strides = [1, 1]} : vector<1x96xf32> to vector<1x32xf32>
    %807 = vector.extract_strided_slice %787 {offsets = [0, 64], sizes = [1, 32], strides = [1, 1]} : vector<1x96xf32> to vector<1x32xf32>
    %808 = arith.mulf %797, %807 : vector<1x32xf32>
    %809 = arith.addf %806, %808 : vector<1x32xf32>
    %810 = math.tanh %809 : vector<1x32xf32>
    %cst_127 = arith.constant 1.000000e+00 : f32
    %811 = vector.broadcast %cst_127 : f32 to vector<1x32xf32>
    %812 = arith.subf %811, %805 : vector<1x32xf32>
    %813 = arith.mulf %812, %810 : vector<1x32xf32>
    %814 = arith.mulf %805, %785 : vector<1x32xf32>
    %815 = arith.addf %813, %814 : vector<1x32xf32>
    %cst_128 = arith.constant dense<0.000000e+00> : vector<1x96xf32>
    %816 = tpu.matmul %815, %783, %cst_128 {dimension_numbers = #tpu.dot_dimension_numbers<[1], [0], [0], [1], [0, 0, 1, 1], [], []>} : vector<1x32xf32>, vector<32x96xf32>, vector<1x96xf32> -> vector<1x96xf32>
    %817 = arith.addf %816, %784 : vector<1x96xf32>
    %818 = vector.extract_strided_slice %782 {offsets = [0, 1, 0], sizes = [1, 1, 96], strides = [1, 1, 1]} : vector<1x16x96xf32> to vector<1x1x96xf32>
    %819 = vector.shape_cast %818 : vector<1x1x96xf32> to vector<1x96xf32>
    %820 = vector.extract_strided_slice %819 {offsets = [0, 0], sizes = [1, 32], strides = [1, 1]} : vector<1x96xf32> to vector<1x32xf32>
    %821 = vector.extract_strided_slice %817 {offsets = [0, 0], sizes = [1, 32], strides = [1, 1]} : vector<1x96xf32> to vector<1x32xf32>
    %822 = arith.addf %820, %821 : vector<1x32xf32>
    %823 = arith.negf %822 : vector<1x32xf32>
    %824 = math.exp %823 : vector<1x32xf32>
    %cst_129 = arith.constant 1.000000e+00 : f32
    %825 = vector.broadcast %cst_129 : f32 to vector<1x32xf32>
    %826 = arith.addf %825, %824 : vector<1x32xf32>
    %827 = arith.divf %825, %826 : vector<1x32xf32>
    %828 = vector.extract_strided_slice %819 {offsets = [0, 32], sizes = [1, 32], strides = [1, 1]} : vector<1x96xf32> to vector<1x32xf32>
    %829 = vector.extract_strided_slice %817 {offsets = [0, 32], sizes = [1, 32], strides = [1, 1]} : vector<1x96xf32> to vector<1x32xf32>
    %830 = arith.addf %828, %829 : vector<1x32xf32>
    %831 = arith.negf %830 : vector<1x32xf32>
    %832 = math.exp %831 : vector<1x32xf32>
    %cst_130 = arith.constant 1.000000e+00 : f32
    %833 = vector.broadcast %cst_130 : f32 to vector<1x32xf32>
    %834 = arith.addf %833, %832 : vector<1x32xf32>
    %835 = arith.divf %833, %834 : vector<1x32xf32>
    %836 = vector.extract_strided_slice %819 {offsets = [0, 64], sizes = [1, 32], strides = [1, 1]} : vector<1x96xf32> to vector<1x32xf32>
    %837 = vector.extract_strided_slice %817 {offsets = [0, 64], sizes = [1, 32], strides = [1, 1]} : vector<1x96xf32> to vector<1x32xf32>
    %838 = arith.mulf %827, %837 : vector<1x32xf32>
    %839 = arith.addf %836, %838 : vector<1x32xf32>
    %840 = math.tanh %839 : vector<1x32xf32>
    %cst_131 = arith.constant 1.000000e+00 : f32
    %841 = vector.broadcast %cst_131 : f32 to vector<1x32xf32>
    %842 = arith.subf %841, %835 : vector<1x32xf32>
    %843 = arith.mulf %842, %840 : vector<1x32xf32>
    %844 = arith.mulf %835, %815 : vector<1x32xf32>
    %845 = arith.addf %843, %844 : vector<1x32xf32>
    %cst_132 = arith.constant dense<0.000000e+00> : vector<1x96xf32>
    %846 = tpu.matmul %845, %783, %cst_132 {dimension_numbers = #tpu.dot_dimension_numbers<[1], [0], [0], [1], [0, 0, 1, 1], [], []>} : vector<1x32xf32>, vector<32x96xf32>, vector<1x96xf32> -> vector<1x96xf32>
    %847 = arith.addf %846, %784 : vector<1x96xf32>
    %848 = vector.extract_strided_slice %782 {offsets = [0, 2, 0], sizes = [1, 1, 96], strides = [1, 1, 1]} : vector<1x16x96xf32> to vector<1x1x96xf32>
    %849 = vector.shape_cast %848 : vector<1x1x96xf32> to vector<1x96xf32>
    %850 = vector.extract_strided_slice %849 {offsets = [0, 0], sizes = [1, 32], strides = [1, 1]} : vector<1x96xf32> to vector<1x32xf32>
    %851 = vector.extract_strided_slice %847 {offsets = [0, 0], sizes = [1, 32], strides = [1, 1]} : vector<1x96xf32> to vector<1x32xf32>
    %852 = arith.addf %850, %851 : vector<1x32xf32>
    %853 = arith.negf %852 : vector<1x32xf32>
    %854 = math.exp %853 : vector<1x32xf32>
    %cst_133 = arith.constant 1.000000e+00 : f32
    %855 = vector.broadcast %cst_133 : f32 to vector<1x32xf32>
    %856 = arith.addf %855, %854 : vector<1x32xf32>
    %857 = arith.divf %855, %856 : vector<1x32xf32>
    %858 = vector.extract_strided_slice %849 {offsets = [0, 32], sizes = [1, 32], strides = [1, 1]} : vector<1x96xf32> to vector<1x32xf32>
    %859 = vector.extract_strided_slice %847 {offsets = [0, 32], sizes = [1, 32], strides = [1, 1]} : vector<1x96xf32> to vector<1x32xf32>
    %860 = arith.addf %858, %859 : vector<1x32xf32>
    %861 = arith.negf %860 : vector<1x32xf32>
    %862 = math.exp %861 : vector<1x32xf32>
    %cst_134 = arith.constant 1.000000e+00 : f32
    %863 = vector.broadcast %cst_134 : f32 to vector<1x32xf32>
    %864 = arith.addf %863, %862 : vector<1x32xf32>
    %865 = arith.divf %863, %864 : vector<1x32xf32>
    %866 = vector.extract_strided_slice %849 {offsets = [0, 64], sizes = [1, 32], strides = [1, 1]} : vector<1x96xf32> to vector<1x32xf32>
    %867 = vector.extract_strided_slice %847 {offsets = [0, 64], sizes = [1, 32], strides = [1, 1]} : vector<1x96xf32> to vector<1x32xf32>
    %868 = arith.mulf %857, %867 : vector<1x32xf32>
    %869 = arith.addf %866, %868 : vector<1x32xf32>
    %870 = math.tanh %869 : vector<1x32xf32>
    %cst_135 = arith.constant 1.000000e+00 : f32
    %871 = vector.broadcast %cst_135 : f32 to vector<1x32xf32>
    %872 = arith.subf %871, %865 : vector<1x32xf32>
    %873 = arith.mulf %872, %870 : vector<1x32xf32>
    %874 = arith.mulf %865, %845 : vector<1x32xf32>
    %875 = arith.addf %873, %874 : vector<1x32xf32>
    %cst_136 = arith.constant dense<0.000000e+00> : vector<1x96xf32>
    %876 = tpu.matmul %875, %783, %cst_136 {dimension_numbers = #tpu.dot_dimension_numbers<[1], [0], [0], [1], [0, 0, 1, 1], [], []>} : vector<1x32xf32>, vector<32x96xf32>, vector<1x96xf32> -> vector<1x96xf32>
    %877 = arith.addf %876, %784 : vector<1x96xf32>
    %878 = vector.extract_strided_slice %782 {offsets = [0, 3, 0], sizes = [1, 1, 96], strides = [1, 1, 1]} : vector<1x16x96xf32> to vector<1x1x96xf32>
    %879 = vector.shape_cast %878 : vector<1x1x96xf32> to vector<1x96xf32>
    %880 = vector.extract_strided_slice %879 {offsets = [0, 0], sizes = [1, 32], strides = [1, 1]} : vector<1x96xf32> to vector<1x32xf32>
    %881 = vector.extract_strided_slice %877 {offsets = [0, 0], sizes = [1, 32], strides = [1, 1]} : vector<1x96xf32> to vector<1x32xf32>
    %882 = arith.addf %880, %881 : vector<1x32xf32>
    %883 = arith.negf %882 : vector<1x32xf32>
    %884 = math.exp %883 : vector<1x32xf32>
    %cst_137 = arith.constant 1.000000e+00 : f32
    %885 = vector.broadcast %cst_137 : f32 to vector<1x32xf32>
    %886 = arith.addf %885, %884 : vector<1x32xf32>
    %887 = arith.divf %885, %886 : vector<1x32xf32>
    %888 = vector.extract_strided_slice %879 {offsets = [0, 32], sizes = [1, 32], strides = [1, 1]} : vector<1x96xf32> to vector<1x32xf32>
    %889 = vector.extract_strided_slice %877 {offsets = [0, 32], sizes = [1, 32], strides = [1, 1]} : vector<1x96xf32> to vector<1x32xf32>
    %890 = arith.addf %888, %889 : vector<1x32xf32>
    %891 = arith.negf %890 : vector<1x32xf32>
    %892 = math.exp %891 : vector<1x32xf32>
    %cst_138 = arith.constant 1.000000e+00 : f32
    %893 = vector.broadcast %cst_138 : f32 to vector<1x32xf32>
    %894 = arith.addf %893, %892 : vector<1x32xf32>
    %895 = arith.divf %893, %894 : vector<1x32xf32>
    %896 = vector.extract_strided_slice %879 {offsets = [0, 64], sizes = [1, 32], strides = [1, 1]} : vector<1x96xf32> to vector<1x32xf32>
    %897 = vector.extract_strided_slice %877 {offsets = [0, 64], sizes = [1, 32], strides = [1, 1]} : vector<1x96xf32> to vector<1x32xf32>
    %898 = arith.mulf %887, %897 : vector<1x32xf32>
    %899 = arith.addf %896, %898 : vector<1x32xf32>
    %900 = math.tanh %899 : vector<1x32xf32>
    %cst_139 = arith.constant 1.000000e+00 : f32
    %901 = vector.broadcast %cst_139 : f32 to vector<1x32xf32>
    %902 = arith.subf %901, %895 : vector<1x32xf32>
    %903 = arith.mulf %902, %900 : vector<1x32xf32>
    %904 = arith.mulf %895, %875 : vector<1x32xf32>
    %905 = arith.addf %903, %904 : vector<1x32xf32>
    %cst_140 = arith.constant dense<0.000000e+00> : vector<1x96xf32>
    %906 = tpu.matmul %905, %783, %cst_140 {dimension_numbers = #tpu.dot_dimension_numbers<[1], [0], [0], [1], [0, 0, 1, 1], [], []>} : vector<1x32xf32>, vector<32x96xf32>, vector<1x96xf32> -> vector<1x96xf32>
    %907 = arith.addf %906, %784 : vector<1x96xf32>
    %908 = vector.extract_strided_slice %782 {offsets = [0, 4, 0], sizes = [1, 1, 96], strides = [1, 1, 1]} : vector<1x16x96xf32> to vector<1x1x96xf32>
    %909 = vector.shape_cast %908 : vector<1x1x96xf32> to vector<1x96xf32>
    %910 = vector.extract_strided_slice %909 {offsets = [0, 0], sizes = [1, 32], strides = [1, 1]} : vector<1x96xf32> to vector<1x32xf32>
    %911 = vector.extract_strided_slice %907 {offsets = [0, 0], sizes = [1, 32], strides = [1, 1]} : vector<1x96xf32> to vector<1x32xf32>
    %912 = arith.addf %910, %911 : vector<1x32xf32>
    %913 = arith.negf %912 : vector<1x32xf32>
    %914 = math.exp %913 : vector<1x32xf32>
    %cst_141 = arith.constant 1.000000e+00 : f32
    %915 = vector.broadcast %cst_141 : f32 to vector<1x32xf32>
    %916 = arith.addf %915, %914 : vector<1x32xf32>
    %917 = arith.divf %915, %916 : vector<1x32xf32>
    %918 = vector.extract_strided_slice %909 {offsets = [0, 32], sizes = [1, 32], strides = [1, 1]} : vector<1x96xf32> to vector<1x32xf32>
    %919 = vector.extract_strided_slice %907 {offsets = [0, 32], sizes = [1, 32], strides = [1, 1]} : vector<1x96xf32> to vector<1x32xf32>
    %920 = arith.addf %918, %919 : vector<1x32xf32>
    %921 = arith.negf %920 : vector<1x32xf32>
    %922 = math.exp %921 : vector<1x32xf32>
    %cst_142 = arith.constant 1.000000e+00 : f32
    %923 = vector.broadcast %cst_142 : f32 to vector<1x32xf32>
    %924 = arith.addf %923, %922 : vector<1x32xf32>
    %925 = arith.divf %923, %924 : vector<1x32xf32>
    %926 = vector.extract_strided_slice %909 {offsets = [0, 64], sizes = [1, 32], strides = [1, 1]} : vector<1x96xf32> to vector<1x32xf32>
    %927 = vector.extract_strided_slice %907 {offsets = [0, 64], sizes = [1, 32], strides = [1, 1]} : vector<1x96xf32> to vector<1x32xf32>
    %928 = arith.mulf %917, %927 : vector<1x32xf32>
    %929 = arith.addf %926, %928 : vector<1x32xf32>
    %930 = math.tanh %929 : vector<1x32xf32>
    %cst_143 = arith.constant 1.000000e+00 : f32
    %931 = vector.broadcast %cst_143 : f32 to vector<1x32xf32>
    %932 = arith.subf %931, %925 : vector<1x32xf32>
    %933 = arith.mulf %932, %930 : vector<1x32xf32>
    %934 = arith.mulf %925, %905 : vector<1x32xf32>
    %935 = arith.addf %933, %934 : vector<1x32xf32>
    %cst_144 = arith.constant dense<0.000000e+00> : vector<1x96xf32>
    %936 = tpu.matmul %935, %783, %cst_144 {dimension_numbers = #tpu.dot_dimension_numbers<[1], [0], [0], [1], [0, 0, 1, 1], [], []>} : vector<1x32xf32>, vector<32x96xf32>, vector<1x96xf32> -> vector<1x96xf32>
    %937 = arith.addf %936, %784 : vector<1x96xf32>
    %938 = vector.extract_strided_slice %782 {offsets = [0, 5, 0], sizes = [1, 1, 96], strides = [1, 1, 1]} : vector<1x16x96xf32> to vector<1x1x96xf32>
    %939 = vector.shape_cast %938 : vector<1x1x96xf32> to vector<1x96xf32>
    %940 = vector.extract_strided_slice %939 {offsets = [0, 0], sizes = [1, 32], strides = [1, 1]} : vector<1x96xf32> to vector<1x32xf32>
    %941 = vector.extract_strided_slice %937 {offsets = [0, 0], sizes = [1, 32], strides = [1, 1]} : vector<1x96xf32> to vector<1x32xf32>
    %942 = arith.addf %940, %941 : vector<1x32xf32>
    %943 = arith.negf %942 : vector<1x32xf32>
    %944 = math.exp %943 : vector<1x32xf32>
    %cst_145 = arith.constant 1.000000e+00 : f32
    %945 = vector.broadcast %cst_145 : f32 to vector<1x32xf32>
    %946 = arith.addf %945, %944 : vector<1x32xf32>
    %947 = arith.divf %945, %946 : vector<1x32xf32>
    %948 = vector.extract_strided_slice %939 {offsets = [0, 32], sizes = [1, 32], strides = [1, 1]} : vector<1x96xf32> to vector<1x32xf32>
    %949 = vector.extract_strided_slice %937 {offsets = [0, 32], sizes = [1, 32], strides = [1, 1]} : vector<1x96xf32> to vector<1x32xf32>
    %950 = arith.addf %948, %949 : vector<1x32xf32>
    %951 = arith.negf %950 : vector<1x32xf32>
    %952 = math.exp %951 : vector<1x32xf32>
    %cst_146 = arith.constant 1.000000e+00 : f32
    %953 = vector.broadcast %cst_146 : f32 to vector<1x32xf32>
    %954 = arith.addf %953, %952 : vector<1x32xf32>
    %955 = arith.divf %953, %954 : vector<1x32xf32>
    %956 = vector.extract_strided_slice %939 {offsets = [0, 64], sizes = [1, 32], strides = [1, 1]} : vector<1x96xf32> to vector<1x32xf32>
    %957 = vector.extract_strided_slice %937 {offsets = [0, 64], sizes = [1, 32], strides = [1, 1]} : vector<1x96xf32> to vector<1x32xf32>
    %958 = arith.mulf %947, %957 : vector<1x32xf32>
    %959 = arith.addf %956, %958 : vector<1x32xf32>
    %960 = math.tanh %959 : vector<1x32xf32>
    %cst_147 = arith.constant 1.000000e+00 : f32
    %961 = vector.broadcast %cst_147 : f32 to vector<1x32xf32>
    %962 = arith.subf %961, %955 : vector<1x32xf32>
    %963 = arith.mulf %962, %960 : vector<1x32xf32>
    %964 = arith.mulf %955, %935 : vector<1x32xf32>
    %965 = arith.addf %963, %964 : vector<1x32xf32>
    %cst_148 = arith.constant dense<0.000000e+00> : vector<1x96xf32>
    %966 = tpu.matmul %965, %783, %cst_148 {dimension_numbers = #tpu.dot_dimension_numbers<[1], [0], [0], [1], [0, 0, 1, 1], [], []>} : vector<1x32xf32>, vector<32x96xf32>, vector<1x96xf32> -> vector<1x96xf32>
    %967 = arith.addf %966, %784 : vector<1x96xf32>
    %968 = vector.extract_strided_slice %782 {offsets = [0, 6, 0], sizes = [1, 1, 96], strides = [1, 1, 1]} : vector<1x16x96xf32> to vector<1x1x96xf32>
    %969 = vector.shape_cast %968 : vector<1x1x96xf32> to vector<1x96xf32>
    %970 = vector.extract_strided_slice %969 {offsets = [0, 0], sizes = [1, 32], strides = [1, 1]} : vector<1x96xf32> to vector<1x32xf32>
    %971 = vector.extract_strided_slice %967 {offsets = [0, 0], sizes = [1, 32], strides = [1, 1]} : vector<1x96xf32> to vector<1x32xf32>
    %972 = arith.addf %970, %971 : vector<1x32xf32>
    %973 = arith.negf %972 : vector<1x32xf32>
    %974 = math.exp %973 : vector<1x32xf32>
    %cst_149 = arith.constant 1.000000e+00 : f32
    %975 = vector.broadcast %cst_149 : f32 to vector<1x32xf32>
    %976 = arith.addf %975, %974 : vector<1x32xf32>
    %977 = arith.divf %975, %976 : vector<1x32xf32>
    %978 = vector.extract_strided_slice %969 {offsets = [0, 32], sizes = [1, 32], strides = [1, 1]} : vector<1x96xf32> to vector<1x32xf32>
    %979 = vector.extract_strided_slice %967 {offsets = [0, 32], sizes = [1, 32], strides = [1, 1]} : vector<1x96xf32> to vector<1x32xf32>
    %980 = arith.addf %978, %979 : vector<1x32xf32>
    %981 = arith.negf %980 : vector<1x32xf32>
    %982 = math.exp %981 : vector<1x32xf32>
    %cst_150 = arith.constant 1.000000e+00 : f32
    %983 = vector.broadcast %cst_150 : f32 to vector<1x32xf32>
    %984 = arith.addf %983, %982 : vector<1x32xf32>
    %985 = arith.divf %983, %984 : vector<1x32xf32>
    %986 = vector.extract_strided_slice %969 {offsets = [0, 64], sizes = [1, 32], strides = [1, 1]} : vector<1x96xf32> to vector<1x32xf32>
    %987 = vector.extract_strided_slice %967 {offsets = [0, 64], sizes = [1, 32], strides = [1, 1]} : vector<1x96xf32> to vector<1x32xf32>
    %988 = arith.mulf %977, %987 : vector<1x32xf32>
    %989 = arith.addf %986, %988 : vector<1x32xf32>
    %990 = math.tanh %989 : vector<1x32xf32>
    %cst_151 = arith.constant 1.000000e+00 : f32
    %991 = vector.broadcast %cst_151 : f32 to vector<1x32xf32>
    %992 = arith.subf %991, %985 : vector<1x32xf32>
    %993 = arith.mulf %992, %990 : vector<1x32xf32>
    %994 = arith.mulf %985, %965 : vector<1x32xf32>
    %995 = arith.addf %993, %994 : vector<1x32xf32>
    %cst_152 = arith.constant dense<0.000000e+00> : vector<1x96xf32>
    %996 = tpu.matmul %995, %783, %cst_152 {dimension_numbers = #tpu.dot_dimension_numbers<[1], [0], [0], [1], [0, 0, 1, 1], [], []>} : vector<1x32xf32>, vector<32x96xf32>, vector<1x96xf32> -> vector<1x96xf32>
    %997 = arith.addf %996, %784 : vector<1x96xf32>
    %998 = vector.extract_strided_slice %782 {offsets = [0, 7, 0], sizes = [1, 1, 96], strides = [1, 1, 1]} : vector<1x16x96xf32> to vector<1x1x96xf32>
    %999 = vector.shape_cast %998 : vector<1x1x96xf32> to vector<1x96xf32>
    %1000 = vector.extract_strided_slice %999 {offsets = [0, 0], sizes = [1, 32], strides = [1, 1]} : vector<1x96xf32> to vector<1x32xf32>
    %1001 = vector.extract_strided_slice %997 {offsets = [0, 0], sizes = [1, 32], strides = [1, 1]} : vector<1x96xf32> to vector<1x32xf32>
    %1002 = arith.addf %1000, %1001 : vector<1x32xf32>
    %1003 = arith.negf %1002 : vector<1x32xf32>
    %1004 = math.exp %1003 : vector<1x32xf32>
    %cst_153 = arith.constant 1.000000e+00 : f32
    %1005 = vector.broadcast %cst_153 : f32 to vector<1x32xf32>
    %1006 = arith.addf %1005, %1004 : vector<1x32xf32>
    %1007 = arith.divf %1005, %1006 : vector<1x32xf32>
    %1008 = vector.extract_strided_slice %999 {offsets = [0, 32], sizes = [1, 32], strides = [1, 1]} : vector<1x96xf32> to vector<1x32xf32>
    %1009 = vector.extract_strided_slice %997 {offsets = [0, 32], sizes = [1, 32], strides = [1, 1]} : vector<1x96xf32> to vector<1x32xf32>
    %1010 = arith.addf %1008, %1009 : vector<1x32xf32>
    %1011 = arith.negf %1010 : vector<1x32xf32>
    %1012 = math.exp %1011 : vector<1x32xf32>
    %cst_154 = arith.constant 1.000000e+00 : f32
    %1013 = vector.broadcast %cst_154 : f32 to vector<1x32xf32>
    %1014 = arith.addf %1013, %1012 : vector<1x32xf32>
    %1015 = arith.divf %1013, %1014 : vector<1x32xf32>
    %1016 = vector.extract_strided_slice %999 {offsets = [0, 64], sizes = [1, 32], strides = [1, 1]} : vector<1x96xf32> to vector<1x32xf32>
    %1017 = vector.extract_strided_slice %997 {offsets = [0, 64], sizes = [1, 32], strides = [1, 1]} : vector<1x96xf32> to vector<1x32xf32>
    %1018 = arith.mulf %1007, %1017 : vector<1x32xf32>
    %1019 = arith.addf %1016, %1018 : vector<1x32xf32>
    %1020 = math.tanh %1019 : vector<1x32xf32>
    %cst_155 = arith.constant 1.000000e+00 : f32
    %1021 = vector.broadcast %cst_155 : f32 to vector<1x32xf32>
    %1022 = arith.subf %1021, %1015 : vector<1x32xf32>
    %1023 = arith.mulf %1022, %1020 : vector<1x32xf32>
    %1024 = arith.mulf %1015, %995 : vector<1x32xf32>
    %1025 = arith.addf %1023, %1024 : vector<1x32xf32>
    %cst_156 = arith.constant dense<0.000000e+00> : vector<1x96xf32>
    %1026 = tpu.matmul %1025, %783, %cst_156 {dimension_numbers = #tpu.dot_dimension_numbers<[1], [0], [0], [1], [0, 0, 1, 1], [], []>} : vector<1x32xf32>, vector<32x96xf32>, vector<1x96xf32> -> vector<1x96xf32>
    %1027 = arith.addf %1026, %784 : vector<1x96xf32>
    %1028 = vector.extract_strided_slice %782 {offsets = [0, 8, 0], sizes = [1, 1, 96], strides = [1, 1, 1]} : vector<1x16x96xf32> to vector<1x1x96xf32>
    %1029 = vector.shape_cast %1028 : vector<1x1x96xf32> to vector<1x96xf32>
    %1030 = vector.extract_strided_slice %1029 {offsets = [0, 0], sizes = [1, 32], strides = [1, 1]} : vector<1x96xf32> to vector<1x32xf32>
    %1031 = vector.extract_strided_slice %1027 {offsets = [0, 0], sizes = [1, 32], strides = [1, 1]} : vector<1x96xf32> to vector<1x32xf32>
    %1032 = arith.addf %1030, %1031 : vector<1x32xf32>
    %1033 = arith.negf %1032 : vector<1x32xf32>
    %1034 = math.exp %1033 : vector<1x32xf32>
    %cst_157 = arith.constant 1.000000e+00 : f32
    %1035 = vector.broadcast %cst_157 : f32 to vector<1x32xf32>
    %1036 = arith.addf %1035, %1034 : vector<1x32xf32>
    %1037 = arith.divf %1035, %1036 : vector<1x32xf32>
    %1038 = vector.extract_strided_slice %1029 {offsets = [0, 32], sizes = [1, 32], strides = [1, 1]} : vector<1x96xf32> to vector<1x32xf32>
    %1039 = vector.extract_strided_slice %1027 {offsets = [0, 32], sizes = [1, 32], strides = [1, 1]} : vector<1x96xf32> to vector<1x32xf32>
    %1040 = arith.addf %1038, %1039 : vector<1x32xf32>
    %1041 = arith.negf %1040 : vector<1x32xf32>
    %1042 = math.exp %1041 : vector<1x32xf32>
    %cst_158 = arith.constant 1.000000e+00 : f32
    %1043 = vector.broadcast %cst_158 : f32 to vector<1x32xf32>
    %1044 = arith.addf %1043, %1042 : vector<1x32xf32>
    %1045 = arith.divf %1043, %1044 : vector<1x32xf32>
    %1046 = vector.extract_strided_slice %1029 {offsets = [0, 64], sizes = [1, 32], strides = [1, 1]} : vector<1x96xf32> to vector<1x32xf32>
    %1047 = vector.extract_strided_slice %1027 {offsets = [0, 64], sizes = [1, 32], strides = [1, 1]} : vector<1x96xf32> to vector<1x32xf32>
    %1048 = arith.mulf %1037, %1047 : vector<1x32xf32>
    %1049 = arith.addf %1046, %1048 : vector<1x32xf32>
    %1050 = math.tanh %1049 : vector<1x32xf32>
    %cst_159 = arith.constant 1.000000e+00 : f32
    %1051 = vector.broadcast %cst_159 : f32 to vector<1x32xf32>
    %1052 = arith.subf %1051, %1045 : vector<1x32xf32>
    %1053 = arith.mulf %1052, %1050 : vector<1x32xf32>
    %1054 = arith.mulf %1045, %1025 : vector<1x32xf32>
    %1055 = arith.addf %1053, %1054 : vector<1x32xf32>
    %cst_160 = arith.constant dense<0.000000e+00> : vector<1x96xf32>
    %1056 = tpu.matmul %1055, %783, %cst_160 {dimension_numbers = #tpu.dot_dimension_numbers<[1], [0], [0], [1], [0, 0, 1, 1], [], []>} : vector<1x32xf32>, vector<32x96xf32>, vector<1x96xf32> -> vector<1x96xf32>
    %1057 = arith.addf %1056, %784 : vector<1x96xf32>
    %1058 = vector.extract_strided_slice %782 {offsets = [0, 9, 0], sizes = [1, 1, 96], strides = [1, 1, 1]} : vector<1x16x96xf32> to vector<1x1x96xf32>
    %1059 = vector.shape_cast %1058 : vector<1x1x96xf32> to vector<1x96xf32>
    %1060 = vector.extract_strided_slice %1059 {offsets = [0, 0], sizes = [1, 32], strides = [1, 1]} : vector<1x96xf32> to vector<1x32xf32>
    %1061 = vector.extract_strided_slice %1057 {offsets = [0, 0], sizes = [1, 32], strides = [1, 1]} : vector<1x96xf32> to vector<1x32xf32>
    %1062 = arith.addf %1060, %1061 : vector<1x32xf32>
    %1063 = arith.negf %1062 : vector<1x32xf32>
    %1064 = math.exp %1063 : vector<1x32xf32>
    %cst_161 = arith.constant 1.000000e+00 : f32
    %1065 = vector.broadcast %cst_161 : f32 to vector<1x32xf32>
    %1066 = arith.addf %1065, %1064 : vector<1x32xf32>
    %1067 = arith.divf %1065, %1066 : vector<1x32xf32>
    %1068 = vector.extract_strided_slice %1059 {offsets = [0, 32], sizes = [1, 32], strides = [1, 1]} : vector<1x96xf32> to vector<1x32xf32>
    %1069 = vector.extract_strided_slice %1057 {offsets = [0, 32], sizes = [1, 32], strides = [1, 1]} : vector<1x96xf32> to vector<1x32xf32>
    %1070 = arith.addf %1068, %1069 : vector<1x32xf32>
    %1071 = arith.negf %1070 : vector<1x32xf32>
    %1072 = math.exp %1071 : vector<1x32xf32>
    %cst_162 = arith.constant 1.000000e+00 : f32
    %1073 = vector.broadcast %cst_162 : f32 to vector<1x32xf32>
    %1074 = arith.addf %1073, %1072 : vector<1x32xf32>
    %1075 = arith.divf %1073, %1074 : vector<1x32xf32>
    %1076 = vector.extract_strided_slice %1059 {offsets = [0, 64], sizes = [1, 32], strides = [1, 1]} : vector<1x96xf32> to vector<1x32xf32>
    %1077 = vector.extract_strided_slice %1057 {offsets = [0, 64], sizes = [1, 32], strides = [1, 1]} : vector<1x96xf32> to vector<1x32xf32>
    %1078 = arith.mulf %1067, %1077 : vector<1x32xf32>
    %1079 = arith.addf %1076, %1078 : vector<1x32xf32>
    %1080 = math.tanh %1079 : vector<1x32xf32>
    %cst_163 = arith.constant 1.000000e+00 : f32
    %1081 = vector.broadcast %cst_163 : f32 to vector<1x32xf32>
    %1082 = arith.subf %1081, %1075 : vector<1x32xf32>
    %1083 = arith.mulf %1082, %1080 : vector<1x32xf32>
    %1084 = arith.mulf %1075, %1055 : vector<1x32xf32>
    %1085 = arith.addf %1083, %1084 : vector<1x32xf32>
    %cst_164 = arith.constant dense<0.000000e+00> : vector<1x96xf32>
    %1086 = tpu.matmul %1085, %783, %cst_164 {dimension_numbers = #tpu.dot_dimension_numbers<[1], [0], [0], [1], [0, 0, 1, 1], [], []>} : vector<1x32xf32>, vector<32x96xf32>, vector<1x96xf32> -> vector<1x96xf32>
    %1087 = arith.addf %1086, %784 : vector<1x96xf32>
    %1088 = vector.extract_strided_slice %782 {offsets = [0, 10, 0], sizes = [1, 1, 96], strides = [1, 1, 1]} : vector<1x16x96xf32> to vector<1x1x96xf32>
    %1089 = vector.shape_cast %1088 : vector<1x1x96xf32> to vector<1x96xf32>
    %1090 = vector.extract_strided_slice %1089 {offsets = [0, 0], sizes = [1, 32], strides = [1, 1]} : vector<1x96xf32> to vector<1x32xf32>
    %1091 = vector.extract_strided_slice %1087 {offsets = [0, 0], sizes = [1, 32], strides = [1, 1]} : vector<1x96xf32> to vector<1x32xf32>
    %1092 = arith.addf %1090, %1091 : vector<1x32xf32>
    %1093 = arith.negf %1092 : vector<1x32xf32>
    %1094 = math.exp %1093 : vector<1x32xf32>
    %cst_165 = arith.constant 1.000000e+00 : f32
    %1095 = vector.broadcast %cst_165 : f32 to vector<1x32xf32>
    %1096 = arith.addf %1095, %1094 : vector<1x32xf32>
    %1097 = arith.divf %1095, %1096 : vector<1x32xf32>
    %1098 = vector.extract_strided_slice %1089 {offsets = [0, 32], sizes = [1, 32], strides = [1, 1]} : vector<1x96xf32> to vector<1x32xf32>
    %1099 = vector.extract_strided_slice %1087 {offsets = [0, 32], sizes = [1, 32], strides = [1, 1]} : vector<1x96xf32> to vector<1x32xf32>
    %1100 = arith.addf %1098, %1099 : vector<1x32xf32>
    %1101 = arith.negf %1100 : vector<1x32xf32>
    %1102 = math.exp %1101 : vector<1x32xf32>
    %cst_166 = arith.constant 1.000000e+00 : f32
    %1103 = vector.broadcast %cst_166 : f32 to vector<1x32xf32>
    %1104 = arith.addf %1103, %1102 : vector<1x32xf32>
    %1105 = arith.divf %1103, %1104 : vector<1x32xf32>
    %1106 = vector.extract_strided_slice %1089 {offsets = [0, 64], sizes = [1, 32], strides = [1, 1]} : vector<1x96xf32> to vector<1x32xf32>
    %1107 = vector.extract_strided_slice %1087 {offsets = [0, 64], sizes = [1, 32], strides = [1, 1]} : vector<1x96xf32> to vector<1x32xf32>
    %1108 = arith.mulf %1097, %1107 : vector<1x32xf32>
    %1109 = arith.addf %1106, %1108 : vector<1x32xf32>
    %1110 = math.tanh %1109 : vector<1x32xf32>
    %cst_167 = arith.constant 1.000000e+00 : f32
    %1111 = vector.broadcast %cst_167 : f32 to vector<1x32xf32>
    %1112 = arith.subf %1111, %1105 : vector<1x32xf32>
    %1113 = arith.mulf %1112, %1110 : vector<1x32xf32>
    %1114 = arith.mulf %1105, %1085 : vector<1x32xf32>
    %1115 = arith.addf %1113, %1114 : vector<1x32xf32>
    %cst_168 = arith.constant dense<0.000000e+00> : vector<1x96xf32>
    %1116 = tpu.matmul %1115, %783, %cst_168 {dimension_numbers = #tpu.dot_dimension_numbers<[1], [0], [0], [1], [0, 0, 1, 1], [], []>} : vector<1x32xf32>, vector<32x96xf32>, vector<1x96xf32> -> vector<1x96xf32>
    %1117 = arith.addf %1116, %784 : vector<1x96xf32>
    %1118 = vector.extract_strided_slice %782 {offsets = [0, 11, 0], sizes = [1, 1, 96], strides = [1, 1, 1]} : vector<1x16x96xf32> to vector<1x1x96xf32>
    %1119 = vector.shape_cast %1118 : vector<1x1x96xf32> to vector<1x96xf32>
    %1120 = vector.extract_strided_slice %1119 {offsets = [0, 0], sizes = [1, 32], strides = [1, 1]} : vector<1x96xf32> to vector<1x32xf32>
    %1121 = vector.extract_strided_slice %1117 {offsets = [0, 0], sizes = [1, 32], strides = [1, 1]} : vector<1x96xf32> to vector<1x32xf32>
    %1122 = arith.addf %1120, %1121 : vector<1x32xf32>
    %1123 = arith.negf %1122 : vector<1x32xf32>
    %1124 = math.exp %1123 : vector<1x32xf32>
    %cst_169 = arith.constant 1.000000e+00 : f32
    %1125 = vector.broadcast %cst_169 : f32 to vector<1x32xf32>
    %1126 = arith.addf %1125, %1124 : vector<1x32xf32>
    %1127 = arith.divf %1125, %1126 : vector<1x32xf32>
    %1128 = vector.extract_strided_slice %1119 {offsets = [0, 32], sizes = [1, 32], strides = [1, 1]} : vector<1x96xf32> to vector<1x32xf32>
    %1129 = vector.extract_strided_slice %1117 {offsets = [0, 32], sizes = [1, 32], strides = [1, 1]} : vector<1x96xf32> to vector<1x32xf32>
    %1130 = arith.addf %1128, %1129 : vector<1x32xf32>
    %1131 = arith.negf %1130 : vector<1x32xf32>
    %1132 = math.exp %1131 : vector<1x32xf32>
    %cst_170 = arith.constant 1.000000e+00 : f32
    %1133 = vector.broadcast %cst_170 : f32 to vector<1x32xf32>
    %1134 = arith.addf %1133, %1132 : vector<1x32xf32>
    %1135 = arith.divf %1133, %1134 : vector<1x32xf32>
    %1136 = vector.extract_strided_slice %1119 {offsets = [0, 64], sizes = [1, 32], strides = [1, 1]} : vector<1x96xf32> to vector<1x32xf32>
    %1137 = vector.extract_strided_slice %1117 {offsets = [0, 64], sizes = [1, 32], strides = [1, 1]} : vector<1x96xf32> to vector<1x32xf32>
    %1138 = arith.mulf %1127, %1137 : vector<1x32xf32>
    %1139 = arith.addf %1136, %1138 : vector<1x32xf32>
    %1140 = math.tanh %1139 : vector<1x32xf32>
    %cst_171 = arith.constant 1.000000e+00 : f32
    %1141 = vector.broadcast %cst_171 : f32 to vector<1x32xf32>
    %1142 = arith.subf %1141, %1135 : vector<1x32xf32>
    %1143 = arith.mulf %1142, %1140 : vector<1x32xf32>
    %1144 = arith.mulf %1135, %1115 : vector<1x32xf32>
    %1145 = arith.addf %1143, %1144 : vector<1x32xf32>
    %cst_172 = arith.constant dense<0.000000e+00> : vector<1x96xf32>
    %1146 = tpu.matmul %1145, %783, %cst_172 {dimension_numbers = #tpu.dot_dimension_numbers<[1], [0], [0], [1], [0, 0, 1, 1], [], []>} : vector<1x32xf32>, vector<32x96xf32>, vector<1x96xf32> -> vector<1x96xf32>
    %1147 = arith.addf %1146, %784 : vector<1x96xf32>
    %1148 = vector.extract_strided_slice %782 {offsets = [0, 12, 0], sizes = [1, 1, 96], strides = [1, 1, 1]} : vector<1x16x96xf32> to vector<1x1x96xf32>
    %1149 = vector.shape_cast %1148 : vector<1x1x96xf32> to vector<1x96xf32>
    %1150 = vector.extract_strided_slice %1149 {offsets = [0, 0], sizes = [1, 32], strides = [1, 1]} : vector<1x96xf32> to vector<1x32xf32>
    %1151 = vector.extract_strided_slice %1147 {offsets = [0, 0], sizes = [1, 32], strides = [1, 1]} : vector<1x96xf32> to vector<1x32xf32>
    %1152 = arith.addf %1150, %1151 : vector<1x32xf32>
    %1153 = arith.negf %1152 : vector<1x32xf32>
    %1154 = math.exp %1153 : vector<1x32xf32>
    %cst_173 = arith.constant 1.000000e+00 : f32
    %1155 = vector.broadcast %cst_173 : f32 to vector<1x32xf32>
    %1156 = arith.addf %1155, %1154 : vector<1x32xf32>
    %1157 = arith.divf %1155, %1156 : vector<1x32xf32>
    %1158 = vector.extract_strided_slice %1149 {offsets = [0, 32], sizes = [1, 32], strides = [1, 1]} : vector<1x96xf32> to vector<1x32xf32>
    %1159 = vector.extract_strided_slice %1147 {offsets = [0, 32], sizes = [1, 32], strides = [1, 1]} : vector<1x96xf32> to vector<1x32xf32>
    %1160 = arith.addf %1158, %1159 : vector<1x32xf32>
    %1161 = arith.negf %1160 : vector<1x32xf32>
    %1162 = math.exp %1161 : vector<1x32xf32>
    %cst_174 = arith.constant 1.000000e+00 : f32
    %1163 = vector.broadcast %cst_174 : f32 to vector<1x32xf32>
    %1164 = arith.addf %1163, %1162 : vector<1x32xf32>
    %1165 = arith.divf %1163, %1164 : vector<1x32xf32>
    %1166 = vector.extract_strided_slice %1149 {offsets = [0, 64], sizes = [1, 32], strides = [1, 1]} : vector<1x96xf32> to vector<1x32xf32>
    %1167 = vector.extract_strided_slice %1147 {offsets = [0, 64], sizes = [1, 32], strides = [1, 1]} : vector<1x96xf32> to vector<1x32xf32>
    %1168 = arith.mulf %1157, %1167 : vector<1x32xf32>
    %1169 = arith.addf %1166, %1168 : vector<1x32xf32>
    %1170 = math.tanh %1169 : vector<1x32xf32>
    %cst_175 = arith.constant 1.000000e+00 : f32
    %1171 = vector.broadcast %cst_175 : f32 to vector<1x32xf32>
    %1172 = arith.subf %1171, %1165 : vector<1x32xf32>
    %1173 = arith.mulf %1172, %1170 : vector<1x32xf32>
    %1174 = arith.mulf %1165, %1145 : vector<1x32xf32>
    %1175 = arith.addf %1173, %1174 : vector<1x32xf32>
    %cst_176 = arith.constant dense<0.000000e+00> : vector<1x96xf32>
    %1176 = tpu.matmul %1175, %783, %cst_176 {dimension_numbers = #tpu.dot_dimension_numbers<[1], [0], [0], [1], [0, 0, 1, 1], [], []>} : vector<1x32xf32>, vector<32x96xf32>, vector<1x96xf32> -> vector<1x96xf32>
    %1177 = arith.addf %1176, %784 : vector<1x96xf32>
    %1178 = vector.extract_strided_slice %782 {offsets = [0, 13, 0], sizes = [1, 1, 96], strides = [1, 1, 1]} : vector<1x16x96xf32> to vector<1x1x96xf32>
    %1179 = vector.shape_cast %1178 : vector<1x1x96xf32> to vector<1x96xf32>
    %1180 = vector.extract_strided_slice %1179 {offsets = [0, 0], sizes = [1, 32], strides = [1, 1]} : vector<1x96xf32> to vector<1x32xf32>
    %1181 = vector.extract_strided_slice %1177 {offsets = [0, 0], sizes = [1, 32], strides = [1, 1]} : vector<1x96xf32> to vector<1x32xf32>
    %1182 = arith.addf %1180, %1181 : vector<1x32xf32>
    %1183 = arith.negf %1182 : vector<1x32xf32>
    %1184 = math.exp %1183 : vector<1x32xf32>
    %cst_177 = arith.constant 1.000000e+00 : f32
    %1185 = vector.broadcast %cst_177 : f32 to vector<1x32xf32>
    %1186 = arith.addf %1185, %1184 : vector<1x32xf32>
    %1187 = arith.divf %1185, %1186 : vector<1x32xf32>
    %1188 = vector.extract_strided_slice %1179 {offsets = [0, 32], sizes = [1, 32], strides = [1, 1]} : vector<1x96xf32> to vector<1x32xf32>
    %1189 = vector.extract_strided_slice %1177 {offsets = [0, 32], sizes = [1, 32], strides = [1, 1]} : vector<1x96xf32> to vector<1x32xf32>
    %1190 = arith.addf %1188, %1189 : vector<1x32xf32>
    %1191 = arith.negf %1190 : vector<1x32xf32>
    %1192 = math.exp %1191 : vector<1x32xf32>
    %cst_178 = arith.constant 1.000000e+00 : f32
    %1193 = vector.broadcast %cst_178 : f32 to vector<1x32xf32>
    %1194 = arith.addf %1193, %1192 : vector<1x32xf32>
    %1195 = arith.divf %1193, %1194 : vector<1x32xf32>
    %1196 = vector.extract_strided_slice %1179 {offsets = [0, 64], sizes = [1, 32], strides = [1, 1]} : vector<1x96xf32> to vector<1x32xf32>
    %1197 = vector.extract_strided_slice %1177 {offsets = [0, 64], sizes = [1, 32], strides = [1, 1]} : vector<1x96xf32> to vector<1x32xf32>
    %1198 = arith.mulf %1187, %1197 : vector<1x32xf32>
    %1199 = arith.addf %1196, %1198 : vector<1x32xf32>
    %1200 = math.tanh %1199 : vector<1x32xf32>
    %cst_179 = arith.constant 1.000000e+00 : f32
    %1201 = vector.broadcast %cst_179 : f32 to vector<1x32xf32>
    %1202 = arith.subf %1201, %1195 : vector<1x32xf32>
    %1203 = arith.mulf %1202, %1200 : vector<1x32xf32>
    %1204 = arith.mulf %1195, %1175 : vector<1x32xf32>
    %1205 = arith.addf %1203, %1204 : vector<1x32xf32>
    %cst_180 = arith.constant dense<0.000000e+00> : vector<1x96xf32>
    %1206 = tpu.matmul %1205, %783, %cst_180 {dimension_numbers = #tpu.dot_dimension_numbers<[1], [0], [0], [1], [0, 0, 1, 1], [], []>} : vector<1x32xf32>, vector<32x96xf32>, vector<1x96xf32> -> vector<1x96xf32>
    %1207 = arith.addf %1206, %784 : vector<1x96xf32>
    %1208 = vector.extract_strided_slice %782 {offsets = [0, 14, 0], sizes = [1, 1, 96], strides = [1, 1, 1]} : vector<1x16x96xf32> to vector<1x1x96xf32>
    %1209 = vector.shape_cast %1208 : vector<1x1x96xf32> to vector<1x96xf32>
    %1210 = vector.extract_strided_slice %1209 {offsets = [0, 0], sizes = [1, 32], strides = [1, 1]} : vector<1x96xf32> to vector<1x32xf32>
    %1211 = vector.extract_strided_slice %1207 {offsets = [0, 0], sizes = [1, 32], strides = [1, 1]} : vector<1x96xf32> to vector<1x32xf32>
    %1212 = arith.addf %1210, %1211 : vector<1x32xf32>
    %1213 = arith.negf %1212 : vector<1x32xf32>
    %1214 = math.exp %1213 : vector<1x32xf32>
    %cst_181 = arith.constant 1.000000e+00 : f32
    %1215 = vector.broadcast %cst_181 : f32 to vector<1x32xf32>
    %1216 = arith.addf %1215, %1214 : vector<1x32xf32>
    %1217 = arith.divf %1215, %1216 : vector<1x32xf32>
    %1218 = vector.extract_strided_slice %1209 {offsets = [0, 32], sizes = [1, 32], strides = [1, 1]} : vector<1x96xf32> to vector<1x32xf32>
    %1219 = vector.extract_strided_slice %1207 {offsets = [0, 32], sizes = [1, 32], strides = [1, 1]} : vector<1x96xf32> to vector<1x32xf32>
    %1220 = arith.addf %1218, %1219 : vector<1x32xf32>
    %1221 = arith.negf %1220 : vector<1x32xf32>
    %1222 = math.exp %1221 : vector<1x32xf32>
    %cst_182 = arith.constant 1.000000e+00 : f32
    %1223 = vector.broadcast %cst_182 : f32 to vector<1x32xf32>
    %1224 = arith.addf %1223, %1222 : vector<1x32xf32>
    %1225 = arith.divf %1223, %1224 : vector<1x32xf32>
    %1226 = vector.extract_strided_slice %1209 {offsets = [0, 64], sizes = [1, 32], strides = [1, 1]} : vector<1x96xf32> to vector<1x32xf32>
    %1227 = vector.extract_strided_slice %1207 {offsets = [0, 64], sizes = [1, 32], strides = [1, 1]} : vector<1x96xf32> to vector<1x32xf32>
    %1228 = arith.mulf %1217, %1227 : vector<1x32xf32>
    %1229 = arith.addf %1226, %1228 : vector<1x32xf32>
    %1230 = math.tanh %1229 : vector<1x32xf32>
    %cst_183 = arith.constant 1.000000e+00 : f32
    %1231 = vector.broadcast %cst_183 : f32 to vector<1x32xf32>
    %1232 = arith.subf %1231, %1225 : vector<1x32xf32>
    %1233 = arith.mulf %1232, %1230 : vector<1x32xf32>
    %1234 = arith.mulf %1225, %1205 : vector<1x32xf32>
    %1235 = arith.addf %1233, %1234 : vector<1x32xf32>
    %cst_184 = arith.constant dense<0.000000e+00> : vector<1x96xf32>
    %1236 = tpu.matmul %1235, %783, %cst_184 {dimension_numbers = #tpu.dot_dimension_numbers<[1], [0], [0], [1], [0, 0, 1, 1], [], []>} : vector<1x32xf32>, vector<32x96xf32>, vector<1x96xf32> -> vector<1x96xf32>
    %1237 = arith.addf %1236, %784 : vector<1x96xf32>
    %1238 = vector.extract_strided_slice %782 {offsets = [0, 15, 0], sizes = [1, 1, 96], strides = [1, 1, 1]} : vector<1x16x96xf32> to vector<1x1x96xf32>
    %1239 = vector.shape_cast %1238 : vector<1x1x96xf32> to vector<1x96xf32>
    %1240 = vector.extract_strided_slice %1239 {offsets = [0, 0], sizes = [1, 32], strides = [1, 1]} : vector<1x96xf32> to vector<1x32xf32>
    %1241 = vector.extract_strided_slice %1237 {offsets = [0, 0], sizes = [1, 32], strides = [1, 1]} : vector<1x96xf32> to vector<1x32xf32>
    %1242 = arith.addf %1240, %1241 : vector<1x32xf32>
    %1243 = arith.negf %1242 : vector<1x32xf32>
    %1244 = math.exp %1243 : vector<1x32xf32>
    %cst_185 = arith.constant 1.000000e+00 : f32
    %1245 = vector.broadcast %cst_185 : f32 to vector<1x32xf32>
    %1246 = arith.addf %1245, %1244 : vector<1x32xf32>
    %1247 = arith.divf %1245, %1246 : vector<1x32xf32>
    %1248 = vector.extract_strided_slice %1239 {offsets = [0, 32], sizes = [1, 32], strides = [1, 1]} : vector<1x96xf32> to vector<1x32xf32>
    %1249 = vector.extract_strided_slice %1237 {offsets = [0, 32], sizes = [1, 32], strides = [1, 1]} : vector<1x96xf32> to vector<1x32xf32>
    %1250 = arith.addf %1248, %1249 : vector<1x32xf32>
    %1251 = arith.negf %1250 : vector<1x32xf32>
    %1252 = math.exp %1251 : vector<1x32xf32>
    %cst_186 = arith.constant 1.000000e+00 : f32
    %1253 = vector.broadcast %cst_186 : f32 to vector<1x32xf32>
    %1254 = arith.addf %1253, %1252 : vector<1x32xf32>
    %1255 = arith.divf %1253, %1254 : vector<1x32xf32>
    %1256 = vector.extract_strided_slice %1239 {offsets = [0, 64], sizes = [1, 32], strides = [1, 1]} : vector<1x96xf32> to vector<1x32xf32>
    %1257 = vector.extract_strided_slice %1237 {offsets = [0, 64], sizes = [1, 32], strides = [1, 1]} : vector<1x96xf32> to vector<1x32xf32>
    %1258 = arith.mulf %1247, %1257 : vector<1x32xf32>
    %1259 = arith.addf %1256, %1258 : vector<1x32xf32>
    %1260 = math.tanh %1259 : vector<1x32xf32>
    %cst_187 = arith.constant 1.000000e+00 : f32
    %1261 = vector.broadcast %cst_187 : f32 to vector<1x32xf32>
    %1262 = arith.subf %1261, %1255 : vector<1x32xf32>
    %1263 = arith.mulf %1262, %1260 : vector<1x32xf32>
    %1264 = arith.mulf %1255, %1235 : vector<1x32xf32>
    %1265 = arith.addf %1263, %1264 : vector<1x32xf32>
    %1266 = vector.shape_cast %815 : vector<1x32xf32> to vector<1x1x32xf32>
    %1267 = vector.shape_cast %845 : vector<1x32xf32> to vector<1x1x32xf32>
    %1268 = vector.shape_cast %875 : vector<1x32xf32> to vector<1x1x32xf32>
    %1269 = vector.shape_cast %905 : vector<1x32xf32> to vector<1x1x32xf32>
    %1270 = vector.shape_cast %935 : vector<1x32xf32> to vector<1x1x32xf32>
    %1271 = vector.shape_cast %965 : vector<1x32xf32> to vector<1x1x32xf32>
    %1272 = vector.shape_cast %995 : vector<1x32xf32> to vector<1x1x32xf32>
    %1273 = vector.shape_cast %1025 : vector<1x32xf32> to vector<1x1x32xf32>
    %1274 = vector.shape_cast %1055 : vector<1x32xf32> to vector<1x1x32xf32>
    %1275 = vector.shape_cast %1085 : vector<1x32xf32> to vector<1x1x32xf32>
    %1276 = vector.shape_cast %1115 : vector<1x32xf32> to vector<1x1x32xf32>
    %1277 = vector.shape_cast %1145 : vector<1x32xf32> to vector<1x1x32xf32>
    %1278 = vector.shape_cast %1175 : vector<1x32xf32> to vector<1x1x32xf32>
    %1279 = vector.shape_cast %1205 : vector<1x32xf32> to vector<1x1x32xf32>
    %1280 = vector.shape_cast %1235 : vector<1x32xf32> to vector<1x1x32xf32>
    %1281 = vector.shape_cast %1265 : vector<1x32xf32> to vector<1x1x32xf32>
    %1282 = tpu.concatenate %1266, %1267, %1268, %1269, %1270, %1271, %1272, %1273, %1274, %1275, %1276, %1277, %1278, %1279, %1280, %1281 in 1 : vector<1x1x32xf32>, vector<1x1x32xf32>, vector<1x1x32xf32>, vector<1x1x32xf32>, vector<1x1x32xf32>, vector<1x1x32xf32>, vector<1x1x32xf32>, vector<1x1x32xf32>, vector<1x1x32xf32>, vector<1x1x32xf32>, vector<1x1x32xf32>, vector<1x1x32xf32>, vector<1x1x32xf32>, vector<1x1x32xf32>, vector<1x1x32xf32>, vector<1x1x32xf32> -> vector<1x16x32xf32>
    %1283 = vector.shape_cast %1282 : vector<1x16x32xf32> to vector<16x32xf32>
    %c0_188 = arith.constant 0 : index
    %c0_189 = arith.constant 0 : index
    %1284 = vector.load %arg20[%c0_188, %c0_189] : memref<32x32xf32, #tpu.memory_space<vmem>>, vector<32x32xf32>
    %cst_190 = arith.constant dense<0.000000e+00> : vector<16x32xf32>
    %1285 = tpu.matmul %1283, %1284, %cst_190 {dimension_numbers = #tpu.dot_dimension_numbers<[1], [0], [0], [1], [0, 0, 1, 1], [], []>} : vector<16x32xf32>, vector<32x32xf32>, vector<16x32xf32> -> vector<16x32xf32>
    %c0_191 = arith.constant 0 : index
    %c0_192 = arith.constant 0 : index
    %1286 = vector.load %arg21[%c0_191, %c0_192] : memref<1x32xf32, #tpu.memory_space<vmem>>, vector<1x32xf32>
    %1287 = vector.broadcast %1286 : vector<1x32xf32> to vector<16x32xf32>
    %1288 = arith.addf %1285, %1287 : vector<16x32xf32>
    %cst_193 = arith.constant 0.000000e+00 : f32
    %1289 = vector.broadcast %cst_193 : f32 to vector<16x32xf32>
    %1290 = arith.maximumf %1288, %1289 : vector<16x32xf32>
    %1291 = vector.shape_cast %1290 : vector<16x32xf32> to vector<1x16x32xf32>
    %c0_194 = arith.constant 0 : index
    %c0_195 = arith.constant 0 : index
    %1292 = vector.load %arg22[%c0_194, %c0_195] : memref<1x32xf32, #tpu.memory_space<vmem>>, vector<1x32xf32>
    %1293 = vector.shape_cast %1292 : vector<1x32xf32> to vector<1x1x32xf32>
    %1294 = vector.broadcast %1293 : vector<1x1x32xf32> to vector<1x16x32xf32>
    %1295 = arith.mulf %1291, %1294 : vector<1x16x32xf32>
    %cst_196 = arith.constant dense<0.000000e+00> : vector<1x16xf32>
    %1296 = vector.multi_reduction <add>, %1295, %cst_196 [2] : vector<1x16x32xf32> to vector<1x16xf32>
    %c0_197 = arith.constant 0 : index
    %c0_198 = arith.constant 0 : index
    %1297 = vector.load %arg23[%c0_197, %c0_198] : memref<1x1xf32, #tpu.memory_space<vmem>>, vector<1x1xf32>
    %1298 = vector.broadcast %1297 : vector<1x1xf32> to vector<1x16xf32>
    %1299 = arith.addf %1296, %1298 : vector<1x16xf32>
    %1300 = vector.shape_cast %1299 : vector<1x16xf32> to vector<1x1x16xf32>
    %c0_199 = arith.constant 0 : index
    %c0_200 = arith.constant 0 : index
    %c0_201 = arith.constant 0 : index
    %1301 = vector.load %arg24[%c0_199, %c0_200, %c0_201] : memref<1x1x16xf32, #tpu.memory_space<vmem>>, vector<1x1x16xf32>
    tpu.vector_store %arg24[%c0_199, %c0_200, %c0_201], %1300 {strides = array<i32>} : memref<1x1x16xf32, #tpu.memory_space<vmem>>, vector<1x1x16xf32>,
    return
  }
  func.func @transform_0(%arg0: i32) -> (i32, i32, i32) {
    %c0_i32 = arith.constant 0 : i32
    %c0_i32_0 = arith.constant 0 : i32
    %c0_i32_1 = arith.constant 0 : i32
    return %arg0, %c0_i32, %c0_i32_0 : i32, i32, i32
  }
  func.func @transform_1(%arg0: i32) -> (i32, i32) {
    %c0_i32 = arith.constant 0 : i32
    %c0_i32_0 = arith.constant 0 : i32
    %c0_i32_1 = arith.constant 0 : i32
    return %c0_i32, %c0_i32_0 : i32, i32
  }
  func.func @transform_2(%arg0: i32) -> (i32, i32) {
    %c0_i32 = arith.constant 0 : i32
    %c0_i32_0 = arith.constant 0 : i32
    %c0_i32_1 = arith.constant 0 : i32
    return %c0_i32, %c0_i32_0 : i32, i32
  }
  func.func @transform_3(%arg0: i32) -> (i32, i32) {
    %c0_i32 = arith.constant 0 : i32
    %c0_i32_0 = arith.constant 0 : i32
    %c0_i32_1 = arith.constant 0 : i32
    return %c0_i32, %c0_i32_0 : i32, i32
  }
  func.func @transform_4(%arg0: i32) -> (i32, i32) {
    %c0_i32 = arith.constant 0 : i32
    %c0_i32_0 = arith.constant 0 : i32
    %c0_i32_1 = arith.constant 0 : i32
    return %c0_i32, %c0_i32_0 : i32, i32
  }
  func.func @transform_5(%arg0: i32) -> (i32, i32) {
    %c0_i32 = arith.constant 0 : i32
    %c0_i32_0 = arith.constant 0 : i32
    %c0_i32_1 = arith.constant 0 : i32
    return %c0_i32, %c0_i32_0 : i32, i32
  }
  func.func @transform_6(%arg0: i32) -> (i32, i32) {
    %c0_i32 = arith.constant 0 : i32
    %c0_i32_0 = arith.constant 0 : i32
    %c0_i32_1 = arith.constant 0 : i32
    return %c0_i32, %c0_i32_0 : i32, i32
  }
  func.func @transform_7(%arg0: i32) -> (i32, i32) {
    %c0_i32 = arith.constant 0 : i32
    %c0_i32_0 = arith.constant 0 : i32
    %c0_i32_1 = arith.constant 0 : i32
    return %c0_i32, %c0_i32_0 : i32, i32
  }
  func.func @transform_8(%arg0: i32) -> (i32, i32) {
    %c0_i32 = arith.constant 0 : i32
    %c0_i32_0 = arith.constant 0 : i32
    %c0_i32_1 = arith.constant 0 : i32
    return %c0_i32, %c0_i32_0 : i32, i32
  }
  func.func @transform_9(%arg0: i32) -> (i32, i32) {
    %c0_i32 = arith.constant 0 : i32
    %c0_i32_0 = arith.constant 0 : i32
    %c0_i32_1 = arith.constant 0 : i32
    return %c0_i32, %c0_i32_0 : i32, i32
  }
  func.func @transform_10(%arg0: i32) -> (i32, i32) {
    %c0_i32 = arith.constant 0 : i32
    %c0_i32_0 = arith.constant 0 : i32
    %c0_i32_1 = arith.constant 0 : i32
    return %c0_i32, %c0_i32_0 : i32, i32
  }
  func.func @transform_11(%arg0: i32) -> (i32, i32) {
    %c0_i32 = arith.constant 0 : i32
    %c0_i32_0 = arith.constant 0 : i32
    %c0_i32_1 = arith.constant 0 : i32
    return %c0_i32, %c0_i32_0 : i32, i32
  }
  func.func @transform_12(%arg0: i32) -> (i32, i32) {
    %c0_i32 = arith.constant 0 : i32
    %c0_i32_0 = arith.constant 0 : i32
    %c0_i32_1 = arith.constant 0 : i32
    return %c0_i32, %c0_i32_0 : i32, i32
  }
  func.func @transform_13(%arg0: i32) -> (i32, i32) {
    %c0_i32 = arith.constant 0 : i32
    %c0_i32_0 = arith.constant 0 : i32
    %c0_i32_1 = arith.constant 0 : i32
    return %c0_i32, %c0_i32_0 : i32, i32
  }
  func.func @transform_14(%arg0: i32) -> (i32, i32) {
    %c0_i32 = arith.constant 0 : i32
    %c0_i32_0 = arith.constant 0 : i32
    %c0_i32_1 = arith.constant 0 : i32
    return %c0_i32, %c0_i32_0 : i32, i32
  }
  func.func @transform_15(%arg0: i32) -> (i32, i32) {
    %c0_i32 = arith.constant 0 : i32
    %c0_i32_0 = arith.constant 0 : i32
    %c0_i32_1 = arith.constant 0 : i32
    return %c0_i32, %c0_i32_0 : i32, i32
  }
  func.func @transform_16(%arg0: i32) -> (i32, i32) {
    %c0_i32 = arith.constant 0 : i32
    %c0_i32_0 = arith.constant 0 : i32
    %c0_i32_1 = arith.constant 0 : i32
    return %c0_i32, %c0_i32_0 : i32, i32
  }
  func.func @transform_17(%arg0: i32) -> (i32, i32) {
    %c0_i32 = arith.constant 0 : i32
    %c0_i32_0 = arith.constant 0 : i32
    %c0_i32_1 = arith.constant 0 : i32
    return %c0_i32, %c0_i32_0 : i32, i32
  }
  func.func @transform_18(%arg0: i32) -> (i32, i32) {
    %c0_i32 = arith.constant 0 : i32
    %c0_i32_0 = arith.constant 0 : i32
    %c0_i32_1 = arith.constant 0 : i32
    return %c0_i32, %c0_i32_0 : i32, i32
  }
  func.func @transform_19(%arg0: i32) -> (i32, i32) {
    %c0_i32 = arith.constant 0 : i32
    %c0_i32_0 = arith.constant 0 : i32
    %c0_i32_1 = arith.constant 0 : i32
    return %c0_i32, %c0_i32_0 : i32, i32
  }
  func.func @transform_20(%arg0: i32) -> (i32, i32) {
    %c0_i32 = arith.constant 0 : i32
    %c0_i32_0 = arith.constant 0 : i32
    %c0_i32_1 = arith.constant 0 : i32
    return %c0_i32, %c0_i32_0 : i32, i32
  }
  func.func @transform_21(%arg0: i32) -> (i32, i32) {
    %c0_i32 = arith.constant 0 : i32
    %c0_i32_0 = arith.constant 0 : i32
    %c0_i32_1 = arith.constant 0 : i32
    return %c0_i32, %c0_i32_0 : i32, i32
  }
  func.func @transform_22(%arg0: i32) -> (i32, i32) {
    %c0_i32 = arith.constant 0 : i32
    %c0_i32_0 = arith.constant 0 : i32
    %c0_i32_1 = arith.constant 0 : i32
    return %c0_i32, %c0_i32_0 : i32, i32
  }
  func.func @transform_23(%arg0: i32) -> (i32, i32, i32) {
    %c0_i32 = arith.constant 0 : i32
    %c0_i32_0 = arith.constant 0 : i32
    %c0_i32_1 = arith.constant 0 : i32
    return %arg0, %c0_i32, %c0_i32_0 : i32, i32, i32
  }
  func.func @transform_24(%arg0: i32) -> (i32, i32, i32) {
    %c0_i32 = arith.constant 0 : i32
    %c0_i32_0 = arith.constant 0 : i32
    %c0_i32_1 = arith.constant 0 : i32
    return %arg0, %c0_i32, %c0_i32_0 : i32, i32, i32
  }
  func.func @transform_25(%arg0: i32) -> (i32, i32, i32) {
    %c0_i32 = arith.constant 0 : i32
    %c0_i32_0 = arith.constant 0 : i32
    %c0_i32_1 = arith.constant 0 : i32
    return %arg0, %c0_i32, %c0_i32_0 : i32, i32, i32
  }
}

</mosaic_0001>

<llo_original>
// kernel: vcd_forward.1
$region0: #{vcd_forward.1}
  #allocation0 [shape = 'u32[]', space=smem, size = 0x4, offset = 0x4, fixed_abs, tag = 'smem constant byte address 0x4 - core index']
  #allocation1 [shape = 'u32[144,128]{1,0:T(1,128)}', space=vmem, size = 0x12000, scoped, tag = 'internal scratch']
  #allocation2 [shape = 'f32[1,1]{1,0:T(1,128)S(1)}', space=vmem, size = 0x200, scoped, tag = 'scoped memory for vcd_forward.1']
  %s0 = inlined_call_operand.vmem [shape: f32[2,16,8], index: 0, kind: input, shape index: {}]
  %s1 = inlined_call_operand.vmem [shape: f32[8,16], index: 1, kind: input, shape index: {}]
  %s2 = inlined_call_operand.vmem [shape: f32[1,16], index: 2, kind: input, shape index: {}]
  %s3 = inlined_call_operand.vmem [shape: f32[8,16], index: 3, kind: input, shape index: {}]
  %s4 = inlined_call_operand.vmem [shape: f32[1,16], index: 4, kind: input, shape index: {}]
  %s5 = inlined_call_operand.vmem [shape: f32[8,16], index: 5, kind: input, shape index: {}]
  %s6 = inlined_call_operand.vmem [shape: f32[1,16], index: 6, kind: input, shape index: {}]
  %s7 = inlined_call_operand.vmem [shape: f32[32,96], index: 7, kind: input, shape index: {}]
  %s8 = inlined_call_operand.vmem [shape: f32[1,96], index: 8, kind: input, shape index: {}]
  %s9 = inlined_call_operand.vmem [shape: f32[32,96], index: 9, kind: input, shape index: {}]
  %s10 = inlined_call_operand.vmem [shape: f32[1,96], index: 10, kind: input, shape index: {}]
  %s11 = inlined_call_operand.vmem [shape: f32[32,16], index: 11, kind: input, shape index: {}]
  %s12 = inlined_call_operand.vmem [shape: f32[1,16], index: 12, kind: input, shape index: {}]
  %s13 = inlined_call_operand.vmem [shape: f32[8,32], index: 13, kind: input, shape index: {}]
  %s14 = inlined_call_operand.vmem [shape: f32[1,32], index: 14, kind: input, shape index: {}]
  %s15 = inlined_call_operand.vmem [shape: f32[32,96], index: 15, kind: input, shape index: {}]
  %s16 = inlined_call_operand.vmem [shape: f32[1,96], index: 16, kind: input, shape index: {}]
  %s17 = inlined_call_operand.vmem [shape: f32[32,96], index: 17, kind: input, shape index: {}]
  %s18 = inlined_call_operand.vmem [shape: f32[1,96], index: 18, kind: input, shape index: {}]
  %s19 = inlined_call_operand.vmem [shape: f32[32,32], index: 19, kind: input, shape index: {}]
  %s20 = inlined_call_operand.vmem [shape: f32[1,32], index: 20, kind: input, shape index: {}]
  %s21 = inlined_call_operand.vmem [shape: f32[1,32], index: 21, kind: input, shape index: {}]
  %s22 = inlined_call_operand.<no memory space> [shape: f32[1,1], index: 22, kind: input, shape index: {}]
  %s23 = inlined_call_operand.hbm [shape: f32[2,1,16], index: 23, kind: output, shape index: {0}]
  %s24 = inlined_call_operand.vmem [shape: f32[2,16,8], index: 24, kind: output, shape index: {1}]
  %s25 = inlined_call_operand.vmem [shape: f32[2,16,8], index: 25, kind: output, shape index: {2}]
  %26 = xla_tuple %s23, %s24, %s25
  %s27 = sld [smem:[#allocation0]]
  $region141: #{vcd_forward.1} parent=0
    _
  %s29 = ssub.s32 1, %s27
  %s30 = scalar_select 0, %s29, %s27
  %v31 = vstv %s22
  %32 = vst [vmem:[#allocation2] sm:$0x1] %v31
  $region1: #{vcd_forward.1} parent=0
    #allocation3 [shape = 'u8[1024]{0}', space=vmem, size = 0x400, scoped, tag = 'output window, operand 0']
    #allocation4 [shape = 's32[2]{0}', space=sflag, size = 0x8, scoped, tag = 'scoped memory for vcd_forward.1']
    %33 = vsyncpa [#allocation4], 0
    %s34 = scalar_lea.sflag [#allocation4], 1
    %35 = vsyncpa %s34, 0
    loop: start=0, step=1, limit=4
    $region2: #{vcd_forward.1} parent=1 // loop_pre_header
      _
    $region3: #{vcd_forward.1} parent=1 // loop_header
      %s37 = sphi 0, %s41
      %p38 = scmp.ge.s32.totalorder %s37, 4
      %s47 = sphi 0, %s49
      %s50 = sphi 0, %s47
      %s51 = sphi 0, %s50
      %s67 = sphi 0, %s51
      %s71 = sphi 0, %s71
      %s73 = sphi 0, %s71
      %s74 = sphi 0, %s73
      %s88 = sphi 0, %s74
      %s92 = sphi 0, %s92
      %s94 = sphi 0, %s92
      %s95 = sphi 0, %s94
      %s109 = sphi 0, %s95
      %s113 = sphi 0, %s113
      %s115 = sphi 0, %s113
      %s116 = sphi 0, %s115
      %s130 = sphi 0, %s116
      %s134 = sphi 0, %s134
      %s136 = sphi 0, %s134
      %s137 = sphi 0, %s136
      %s151 = sphi 0, %s137
      %s155 = sphi 0, %s155
      %s157 = sphi 0, %s155
      %s158 = sphi 0, %s157
      %s172 = sphi 0, %s158
      %s176 = sphi 0, %s176
      %s178 = sphi 0, %s176
      %s179 = sphi 0, %s178
      %s193 = sphi 0, %s179
      %s197 = sphi 0, %s197
      %s199 = sphi 0, %s197
      %s200 = sphi 0, %s199
      %s214 = sphi 0, %s200
      %s218 = sphi 0, %s218
      %s220 = sphi 0, %s218
      %s221 = sphi 0, %s220
      %s235 = sphi 0, %s221
      %s239 = sphi 0, %s239
      %s241 = sphi 0, %s239
      %s242 = sphi 0, %s241
      %s256 = sphi 0, %s242
      %s260 = sphi 0, %s260
      %s262 = sphi 0, %s260
      %s263 = sphi 0, %s262
      %s277 = sphi 0, %s263
      %s281 = sphi 0, %s281
      %s283 = sphi 0, %s281
      %s284 = sphi 0, %s283
      %s298 = sphi 0, %s284
      %s302 = sphi 0, %s302
      %s304 = sphi 0, %s302
      %s305 = sphi 0, %s304
      %s319 = sphi 0, %s305
      %s323 = sphi 0, %s323
      %s325 = sphi 0, %s323
      %s326 = sphi 0, %s325
      %s340 = sphi 0, %s326
      %s344 = sphi 0, %s344
      %s346 = sphi 0, %s344
      %s347 = sphi 0, %s346
      %s361 = sphi 0, %s347
      %s365 = sphi 0, %s365
      %s367 = sphi 0, %s365
      %s368 = sphi 0, %s367
      %s382 = sphi 0, %s368
      %s386 = sphi 0, %s386
      %s388 = sphi 0, %s386
      %s389 = sphi 0, %s388
      %s403 = sphi 0, %s389
      %s407 = sphi 0, %s407
      %s409 = sphi 0, %s407
      %s410 = sphi 0, %s409
      %s424 = sphi 0, %s410
      %s428 = sphi 0, %s428
      %s430 = sphi 0, %s428
      %s431 = sphi 0, %s430
      %s445 = sphi 0, %s431
      %s449 = sphi 0, %s449
      %s451 = sphi 0, %s449
      %s452 = sphi 0, %s451
      %s466 = sphi 0, %s452
      %s470 = sphi 0, %s470
      %s472 = sphi 0, %s470
      %s473 = sphi 0, %s472
      %s487 = sphi 0, %s473
      %s491 = sphi 0, %s491
      %s493 = sphi 0, %s491
      %s494 = sphi 0, %s493
      %s508 = sphi 0, %s494
      %s512 = sphi 0, %s512
      %s514 = sphi 0, %s512
      %s515 = sphi 0, %s514
      %s529 = sphi 0, %s515
      %s535 = sphi 0, %s537
      %s538 = sphi 0, %s535
      %s539 = sphi 0, %s538
      %s555 = sphi 0, %s539
      %s561 = sphi 0, %s563
      %s564 = sphi 0, %s561
      %s565 = sphi 0, %s564
      %s581 = sphi 0, %s565
      %s587 = sphi 0, %s589
      %s590 = sphi 0, %s587
      %s591 = sphi 0, %s590
      %s607 = sphi 0, %s591
    $region4: #{vcd_forward.1} parent=1 // loop_header_branch
      %40 = sbr.rel (%p38) target = $region8
    $region5: #{vcd_forward.1} parent=1 // loop_body
      %s42 = ssub.s32 %s37, 1
      %s43 = ssub.s32 %s37, 2
      %s44 = sadd.s32 %s37, 1
      %s45 = ssub.s32 %s37, %s44
      %p46 = scmp.eq.s32.totalorder %s45, 0
      %s48 = sadd.s32 %s47, 1
      %s49 = scalar_select %p46, %s47, %s48
      %p52 = pneg %p46
      %p53 = scmp.eq.s32.totalorder %s37, 1
      %p54 = por %p52, %p53
      %p55 = scmp.ne.s32.totalorder %s47, %s50
      %p56 = scmp.eq.s32.totalorder %s37, 0
      %p57 = por %p55, %p56
      %p58 = scmp.ne.s32.totalorder %s47, %s50
      %p59 = scmp.eq.s32.totalorder %s42, 1
      %p60 = por %p58, %p59
      %p61 = scmp.ne.s32.totalorder %s50, %s51
      %p62 = scmp.eq.s32.totalorder %s42, 0
      %p63 = por %p61, %p62
      %p64 = scmp.ne.s32.totalorder %s50, %s51
      %p65 = scmp.eq.s32.totalorder %s43, 1
      %p66 = por %p64, %p65
      %p68 = scmp.ne.s32.totalorder %s51, %s67
      %p69 = scmp.eq.s32.totalorder %s43, 0
      %p70 = por %p68, %p69
      %s72 = sadd.s32 %s71, 1
      %p75 = scmp.eq.s32.totalorder %s37, 1
      %p76 = scmp.ne.s32.totalorder %s71, %s73
      %p77 = scmp.eq.s32.totalorder %s37, 0
      %p78 = por %p76, %p77
      %p79 = scmp.ne.s32.totalorder %s71, %s73
      %p80 = scmp.eq.s32.totalorder %s42, 1
      %p81 = por %p79, %p80
      %p82 = scmp.ne.s32.totalorder %s73, %s74
      %p83 = scmp.eq.s32.totalorder %s42, 0
      %p84 = por %p82, %p83
      %p85 = scmp.ne.s32.totalorder %s73, %s74
      %p86 = scmp.eq.s32.totalorder %s43, 1
      %p87 = por %p85, %p86
      %p89 = scmp.ne.s32.totalorder %s74, %s88
      %p90 = scmp.eq.s32.totalorder %s43, 0
      %p91 = por %p89, %p90
      %s93 = sadd.s32 %s92, 1
      %p96 = scmp.eq.s32.totalorder %s37, 1
      %p97 = scmp.ne.s32.totalorder %s92, %s94
      %p98 = scmp.eq.s32.totalorder %s37, 0
      %p99 = por %p97, %p98
      %p100 = scmp.ne.s32.totalorder %s92, %s94
      %p101 = scmp.eq.s32.totalorder %s42, 1
      %p102 = por %p100, %p101
      %p103 = scmp.ne.s32.totalorder %s94, %s95
      %p104 = scmp.eq.s32.totalorder %s42, 0
      %p105 = por %p103, %p104
      %p106 = scmp.ne.s32.totalorder %s94, %s95
      %p107 = scmp.eq.s32.totalorder %s43, 1
      %p108 = por %p106, %p107
      %p110 = scmp.ne.s32.totalorder %s95, %s109
      %p111 = scmp.eq.s32.totalorder %s43, 0
      %p112 = por %p110, %p111
      %s114 = sadd.s32 %s113, 1
      %p117 = scmp.eq.s32.totalorder %s37, 1
      %p118 = scmp.ne.s32.totalorder %s113, %s115
      %p119 = scmp.eq.s32.totalorder %s37, 0
      %p120 = por %p118, %p119
      %p121 = scmp.ne.s32.totalorder %s113, %s115
      %p122 = scmp.eq.s32.totalorder %s42, 1
      %p123 = por %p121, %p122
      %p124 = scmp.ne.s32.totalorder %s115, %s116
      %p125 = scmp.eq.s32.totalorder %s42, 0
      %p126 = por %p124, %p125
      %p127 = scmp.ne.s32.totalorder %s115, %s116
      %p128 = scmp.eq.s32.totalorder %s43, 1
      %p129 = por %p127, %p128
      %p131 = scmp.ne.s32.totalorder %s116, %s130
      %p132 = scmp.eq.s32.totalorder %s43, 0
      %p133 = por %p131, %p132
      %s135 = sadd.s32 %s134, 1
      %p138 = scmp.eq.s32.totalorder %s37, 1
      %p139 = scmp.ne.s32.totalorder %s134, %s136
      %p140 = scmp.eq.s32.totalorder %s37, 0
      %p141 = por %p139, %p140
      %p142 = scmp.ne.s32.totalorder %s134, %s136
      %p143 = scmp.eq.s32.totalorder %s42, 1
      %p144 = por %p142, %p143
      %p145 = scmp.ne.s32.totalorder %s136, %s137
      %p146 = scmp.eq.s32.totalorder %s42, 0
      %p147 = por %p145, %p146
      %p148 = scmp.ne.s32.totalorder %s136, %s137
      %p149 = scmp.eq.s32.totalorder %s43, 1
      %p150 = por %p148, %p149
      %p152 = scmp.ne.s32.totalorder %s137, %s151
      %p153 = scmp.eq.s32.totalorder %s43, 0
      %p154 = por %p152, %p153
      %s156 = sadd.s32 %s155, 1
      %p159 = scmp.eq.s32.totalorder %s37, 1
      %p160 = scmp.ne.s32.totalorder %s155, %s157
      %p161 = scmp.eq.s32.totalorder %s37, 0
      %p162 = por %p160, %p161
      %p163 = scmp.ne.s32.totalorder %s155, %s157
      %p164 = scmp.eq.s32.totalorder %s42, 1
      %p165 = por %p163, %p164
      %p166 = scmp.ne.s32.totalorder %s157, %s158
      %p167 = scmp.eq.s32.totalorder %s42, 0
      %p168 = por %p166, %p167
      %p169 = scmp.ne.s32.totalorder %s157, %s158
      %p170 = scmp.eq.s32.totalorder %s43, 1
      %p171 = por %p169, %p170
      %p173 = scmp.ne.s32.totalorder %s158, %s172
      %p174 = scmp.eq.s32.totalorder %s43, 0
      %p175 = por %p173, %p174
      %s177 = sadd.s32 %s176, 1
      %p180 = scmp.eq.s32.totalorder %s37, 1
      %p181 = scmp.ne.s32.totalorder %s176, %s178
      %p182 = scmp.eq.s32.totalorder %s37, 0
      %p183 = por %p181, %p182
      %p184 = scmp.ne.s32.totalorder %s176, %s178
      %p185 = scmp.eq.s32.totalorder %s42, 1
      %p186 = por %p184, %p185
      %p187 = scmp.ne.s32.totalorder %s178, %s179
      %p188 = scmp.eq.s32.totalorder %s42, 0
      %p189 = por %p187, %p188
      %p190 = scmp.ne.s32.totalorder %s178, %s179
      %p191 = scmp.eq.s32.totalorder %s43, 1
      %p192 = por %p190, %p191
      %p194 = scmp.ne.s32.totalorder %s179, %s193
      %p195 = scmp.eq.s32.totalorder %s43, 0
      %p196 = por %p194, %p195
      %s198 = sadd.s32 %s197, 1
      %p201 = scmp.eq.s32.totalorder %s37, 1
      %p202 = scmp.ne.s32.totalorder %s197, %s199
      %p203 = scmp.eq.s32.totalorder %s37, 0
      %p204 = por %p202, %p203
      %p205 = scmp.ne.s32.totalorder %s197, %s199
      %p206 = scmp.eq.s32.totalorder %s42, 1
      %p207 = por %p205, %p206
      %p208 = scmp.ne.s32.totalorder %s199, %s200
      %p209 = scmp.eq.s32.totalorder %s42, 0
      %p210 = por %p208, %p209
      %p211 = scmp.ne.s32.totalorder %s199, %s200
      %p212 = scmp.eq.s32.totalorder %s43, 1
      %p213 = por %p211, %p212
      %p215 = scmp.ne.s32.totalorder %s200, %s214
      %p216 = scmp.eq.s32.totalorder %s43, 0
      %p217 = por %p215, %p216
      %s219 = sadd.s32 %s218, 1
      %p222 = scmp.eq.s32.totalorder %s37, 1
      %p223 = scmp.ne.s32.totalorder %s218, %s220
      %p224 = scmp.eq.s32.totalorder %s37, 0
      %p225 = por %p223, %p224
      %p226 = scmp.ne.s32.totalorder %s218, %s220
      %p227 = scmp.eq.s32.totalorder %s42, 1
      %p228 = por %p226, %p227
      %p229 = scmp.ne.s32.totalorder %s220, %s221
      %p230 = scmp.eq.s32.totalorder %s42, 0
      %p231 = por %p229, %p230
      %p232 = scmp.ne.s32.totalorder %s220, %s221
      %p233 = scmp.eq.s32.totalorder %s43, 1
      %p234 = por %p232, %p233
      %p236 = scmp.ne.s32.totalorder %s221, %s235
      %p237 = scmp.eq.s32.totalorder %s43, 0
      %p238 = por %p236, %p237
      %s240 = sadd.s32 %s239, 1
      %p243 = scmp.eq.s32.totalorder %s37, 1
      %p244 = scmp.ne.s32.totalorder %s239, %s241
      %p245 = scmp.eq.s32.totalorder %s37, 0
      %p246 = por %p244, %p245
      %p247 = scmp.ne.s32.totalorder %s239, %s241
      %p248 = scmp.eq.s32.totalorder %s42, 1
      %p249 = por %p247, %p248
      %p250 = scmp.ne.s32.totalorder %s241, %s242
      %p251 = scmp.eq.s32.totalorder %s42, 0
      %p252 = por %p250, %p251
      %p253 = scmp.ne.s32.totalorder %s241, %s242
      %p254 = scmp.eq.s32.totalorder %s43, 1
      %p255 = por %p253, %p254
      %p257 = scmp.ne.s32.totalorder %s242, %s256
      %p258 = scmp.eq.s32.totalorder %s43, 0
      %p259 = por %p257, %p258
      %s261 = sadd.s32 %s260, 1
      %p264 = scmp.eq.s32.totalorder %s37, 1
      %p265 = scmp.ne.s32.totalorder %s260, %s262
      %p266 = scmp.eq.s32.totalorder %s37, 0
      %p267 = por %p265, %p266
      %p268 = scmp.ne.s32.totalorder %s260, %s262
      %p269 = scmp.eq.s32.totalorder %s42, 1
      %p270 = por %p268, %p269
      %p271 = scmp.ne.s32.totalorder %s262, %s263
      %p272 = scmp.eq.s32.totalorder %s42, 0
      %p273 = por %p271, %p272
      %p274 = scmp.ne.s32.totalorder %s262, %s263
      %p275 = scmp.eq.s32.totalorder %s43, 1
      %p276 = por %p274, %p275
      %p278 = scmp.ne.s32.totalorder %s263, %s277
      %p279 = scmp.eq.s32.totalorder %s43, 0
      %p280 = por %p278, %p279
      %s282 = sadd.s32 %s281, 1
      %p285 = scmp.eq.s32.totalorder %s37, 1
      %p286 = scmp.ne.s32.totalorder %s281, %s283
      %p287 = scmp.eq.s32.totalorder %s37, 0
      %p288 = por %p286, %p287
      %p289 = scmp.ne.s32.totalorder %s281, %s283
      %p290 = scmp.eq.s32.totalorder %s42, 1
      %p291 = por %p289, %p290
      %p292 = scmp.ne.s32.totalorder %s283, %s284
      %p293 = scmp.eq.s32.totalorder %s42, 0
      %p294 = por %p292, %p293
      %p295 = scmp.ne.s32.totalorder %s283, %s284
      %p296 = scmp.eq.s32.totalorder %s43, 1
      %p297 = por %p295, %p296
      %p299 = scmp.ne.s32.totalorder %s284, %s298
      %p300 = scmp.eq.s32.totalorder %s43, 0
      %p301 = por %p299, %p300
      %s303 = sadd.s32 %s302, 1
      %p306 = scmp.eq.s32.totalorder %s37, 1
      %p307 = scmp.ne.s32.totalorder %s302, %s304
      %p308 = scmp.eq.s32.totalorder %s37, 0
      %p309 = por %p307, %p308
      %p310 = scmp.ne.s32.totalorder %s302, %s304
      %p311 = scmp.eq.s32.totalorder %s42, 1
      %p312 = por %p310, %p311
      %p313 = scmp.ne.s32.totalorder %s304, %s305
      %p314 = scmp.eq.s32.totalorder %s42, 0
      %p315 = por %p313, %p314
      %p316 = scmp.ne.s32.totalorder %s304, %s305
      %p317 = scmp.eq.s32.totalorder %s43, 1
      %p318 = por %p316, %p317
      %p320 = scmp.ne.s32.totalorder %s305, %s319
      %p321 = scmp.eq.s32.totalorder %s43, 0
      %p322 = por %p320, %p321
      %s324 = sadd.s32 %s323, 1
      %p327 = scmp.eq.s32.totalorder %s37, 1
      %p328 = scmp.ne.s32.totalorder %s323, %s325
      %p329 = scmp.eq.s32.totalorder %s37, 0
      %p330 = por %p328, %p329
      %p331 = scmp.ne.s32.totalorder %s323, %s325
      %p332 = scmp.eq.s32.totalorder %s42, 1
      %p333 = por %p331, %p332
      %p334 = scmp.ne.s32.totalorder %s325, %s326
      %p335 = scmp.eq.s32.totalorder %s42, 0
      %p336 = por %p334, %p335
      %p337 = scmp.ne.s32.totalorder %s325, %s326
      %p338 = scmp.eq.s32.totalorder %s43, 1
      %p339 = por %p337, %p338
      %p341 = scmp.ne.s32.totalorder %s326, %s340
      %p342 = scmp.eq.s32.totalorder %s43, 0
      %p343 = por %p341, %p342
      %s345 = sadd.s32 %s344, 1
      %p348 = scmp.eq.s32.totalorder %s37, 1
      %p349 = scmp.ne.s32.totalorder %s344, %s346
      %p350 = scmp.eq.s32.totalorder %s37, 0
      %p351 = por %p349, %p350
      %p352 = scmp.ne.s32.totalorder %s344, %s346
      %p353 = scmp.eq.s32.totalorder %s42, 1
      %p354 = por %p352, %p353
      %p355 = scmp.ne.s32.totalorder %s346, %s347
      %p356 = scmp.eq.s32.totalorder %s42, 0
      %p357 = por %p355, %p356
      %p358 = scmp.ne.s32.totalorder %s346, %s347
      %p359 = scmp.eq.s32.totalorder %s43, 1
      %p360 = por %p358, %p359
      %p362 = scmp.ne.s32.totalorder %s347, %s361
      %p363 = scmp.eq.s32.totalorder %s43, 0
      %p364 = por %p362, %p363
      %s366 = sadd.s32 %s365, 1
      %p369 = scmp.eq.s32.totalorder %s37, 1
      %p370 = scmp.ne.s32.totalorder %s365, %s367
      %p371 = scmp.eq.s32.totalorder %s37, 0
      %p372 = por %p370, %p371
      %p373 = scmp.ne.s32.totalorder %s365, %s367
      %p374 = scmp.eq.s32.totalorder %s42, 1
      %p375 = por %p373, %p374
      %p376 = scmp.ne.s32.totalorder %s367, %s368
      %p377 = scmp.eq.s32.totalorder %s42, 0
      %p378 = por %p376, %p377
      %p379 = scmp.ne.s32.totalorder %s367, %s368
      %p380 = scmp.eq.s32.totalorder %s43, 1
      %p381 = por %p379, %p380
      %p383 = scmp.ne.s32.totalorder %s368, %s382
      %p384 = scmp.eq.s32.totalorder %s43, 0
      %p385 = por %p383, %p384
      %s387 = sadd.s32 %s386, 1
      %p390 = scmp.eq.s32.totalorder %s37, 1
      %p391 = scmp.ne.s32.totalorder %s386, %s388
      %p392 = scmp.eq.s32.totalorder %s37, 0
      %p393 = por %p391, %p392
      %p394 = scmp.ne.s32.totalorder %s386, %s388
      %p395 = scmp.eq.s32.totalorder %s42, 1
      %p396 = por %p394, %p395
      %p397 = scmp.ne.s32.totalorder %s388, %s389
      %p398 = scmp.eq.s32.totalorder %s42, 0
      %p399 = por %p397, %p398
      %p400 = scmp.ne.s32.totalorder %s388, %s389
      %p401 = scmp.eq.s32.totalorder %s43, 1
      %p402 = por %p400, %p401
      %p404 = scmp.ne.s32.totalorder %s389, %s403
      %p405 = scmp.eq.s32.totalorder %s43, 0
      %p406 = por %p404, %p405
      %s408 = sadd.s32 %s407, 1
      %p411 = scmp.eq.s32.totalorder %s37, 1
      %p412 = scmp.ne.s32.totalorder %s407, %s409
      %p413 = scmp.eq.s32.totalorder %s37, 0
      %p414 = por %p412, %p413
      %p415 = scmp.ne.s32.totalorder %s407, %s409
      %p416 = scmp.eq.s32.totalorder %s42, 1
      %p417 = por %p415, %p416
      %p418 = scmp.ne.s32.totalorder %s409, %s410
      %p419 = scmp.eq.s32.totalorder %s42, 0
      %p420 = por %p418, %p419
      %p421 = scmp.ne.s32.totalorder %s409, %s410
      %p422 = scmp.eq.s32.totalorder %s43, 1
      %p423 = por %p421, %p422
      %p425 = scmp.ne.s32.totalorder %s410, %s424
      %p426 = scmp.eq.s32.totalorder %s43, 0
      %p427 = por %p425, %p426
      %s429 = sadd.s32 %s428, 1
      %p432 = scmp.eq.s32.totalorder %s37, 1
      %p433 = scmp.ne.s32.totalorder %s428, %s430
      %p434 = scmp.eq.s32.totalorder %s37, 0
      %p435 = por %p433, %p434
      %p436 = scmp.ne.s32.totalorder %s428, %s430
      %p437 = scmp.eq.s32.totalorder %s42, 1
      %p438 = por %p436, %p437
      %p439 = scmp.ne.s32.totalorder %s430, %s431
      %p440 = scmp.eq.s32.totalorder %s42, 0
      %p441 = por %p439, %p440
      %p442 = scmp.ne.s32.totalorder %s430, %s431
      %p443 = scmp.eq.s32.totalorder %s43, 1
      %p444 = por %p442, %p443
      %p446 = scmp.ne.s32.totalorder %s431, %s445
      %p447 = scmp.eq.s32.totalorder %s43, 0
      %p448 = por %p446, %p447
      %s450 = sadd.s32 %s449, 1
      %p453 = scmp.eq.s32.totalorder %s37, 1
      %p454 = scmp.ne.s32.totalorder %s449, %s451
      %p455 = scmp.eq.s32.totalorder %s37, 0
      %p456 = por %p454, %p455
      %p457 = scmp.ne.s32.totalorder %s449, %s451
      %p458 = scmp.eq.s32.totalorder %s42, 1
      %p459 = por %p457, %p458
      %p460 = scmp.ne.s32.totalorder %s451, %s452
      %p461 = scmp.eq.s32.totalorder %s42, 0
      %p462 = por %p460, %p461
      %p463 = scmp.ne.s32.totalorder %s451, %s452
      %p464 = scmp.eq.s32.totalorder %s43, 1
      %p465 = por %p463, %p464
      %p467 = scmp.ne.s32.totalorder %s452, %s466
      %p468 = scmp.eq.s32.totalorder %s43, 0
      %p469 = por %p467, %p468
      %s471 = sadd.s32 %s470, 1
      %p474 = scmp.eq.s32.totalorder %s37, 1
      %p475 = scmp.ne.s32.totalorder %s470, %s472
      %p476 = scmp.eq.s32.totalorder %s37, 0
      %p477 = por %p475, %p476
      %p478 = scmp.ne.s32.totalorder %s470, %s472
      %p479 = scmp.eq.s32.totalorder %s42, 1
      %p480 = por %p478, %p479
      %p481 = scmp.ne.s32.totalorder %s472, %s473
      %p482 = scmp.eq.s32.totalorder %s42, 0
      %p483 = por %p481, %p482
      %p484 = scmp.ne.s32.totalorder %s472, %s473
      %p485 = scmp.eq.s32.totalorder %s43, 1
      %p486 = por %p484, %p485
      %p488 = scmp.ne.s32.totalorder %s473, %s487
      %p489 = scmp.eq.s32.totalorder %s43, 0
      %p490 = por %p488, %p489
      %s492 = sadd.s32 %s491, 1
      %p495 = scmp.eq.s32.totalorder %s37, 1
      %p496 = scmp.ne.s32.totalorder %s491, %s493
      %p497 = scmp.eq.s32.totalorder %s37, 0
      %p498 = por %p496, %p497
      %p499 = scmp.ne.s32.totalorder %s491, %s493
      %p500 = scmp.eq.s32.totalorder %s42, 1
      %p501 = por %p499, %p500
      %p502 = scmp.ne.s32.totalorder %s493, %s494
      %p503 = scmp.eq.s32.totalorder %s42, 0
      %p504 = por %p502, %p503
      %p505 = scmp.ne.s32.totalorder %s493, %s494
      %p506 = scmp.eq.s32.totalorder %s43, 1
      %p507 = por %p505, %p506
      %p509 = scmp.ne.s32.totalorder %s494, %s508
      %p510 = scmp.eq.s32.totalorder %s43, 0
      %p511 = por %p509, %p510
      %s513 = sadd.s32 %s512, 1
      %p516 = scmp.eq.s32.totalorder %s37, 1
      %p517 = scmp.ne.s32.totalorder %s512, %s514
      %p518 = scmp.eq.s32.totalorder %s37, 0
      %p519 = por %p517, %p518
      %p520 = scmp.ne.s32.totalorder %s512, %s514
      %p521 = scmp.eq.s32.totalorder %s42, 1
      %p522 = por %p520, %p521
      %p523 = scmp.ne.s32.totalorder %s514, %s515
      %p524 = scmp.eq.s32.totalorder %s42, 0
      %p525 = por %p523, %p524
      %p526 = scmp.ne.s32.totalorder %s514, %s515
      %p527 = scmp.eq.s32.totalorder %s43, 1
      %p528 = por %p526, %p527
      %p530 = scmp.ne.s32.totalorder %s515, %s529
      %p531 = scmp.eq.s32.totalorder %s43, 0
      %p532 = por %p530, %p531
      %s533 = ssub.s32 %s37, %s44
      %p534 = scmp.eq.s32.totalorder %s533, 0
      %s536 = sadd.s32 %s535, 1
      %s537 = scalar_select %p534, %s535, %s536
      %p540 = pneg %p534
      %p541 = scmp.eq.s32.totalorder %s37, 1
      %p542 = por %p540, %p541
      %p543 = scmp.ne.s32.totalorder %s535, %s538
      %p544 = scmp.eq.s32.totalorder %s37, 0
      %p545 = por %p543, %p544
      %p546 = scmp.ne.s32.totalorder %s535, %s538
      %p547 = scmp.eq.s32.totalorder %s42, 1
      %p548 = por %p546, %p547
      %p549 = scmp.ne.s32.totalorder %s538, %s539
      %p550 = scmp.eq.s32.totalorder %s42, 0
      %p551 = por %p549, %p550
      %p552 = scmp.ne.s32.totalorder %s538, %s539
      %p553 = scmp.eq.s32.totalorder %s43, 1
      %p554 = por %p552, %p553
      %p556 = scmp.ne.s32.totalorder %s539, %s555
      %p557 = scmp.eq.s32.totalorder %s43, 0
      %p558 = por %p556, %p557
      %s559 = ssub.s32 %s37, %s44
      %p560 = scmp.eq.s32.totalorder %s559, 0
      %s562 = sadd.s32 %s561, 1
      %s563 = scalar_select %p560, %s561, %s562
      %p566 = pneg %p560
      %p567 = scmp.eq.s32.totalorder %s37, 1
      %p568 = por %p566, %p567
      %p569 = scmp.ne.s32.totalorder %s561, %s564
      %p570 = scmp.eq.s32.totalorder %s37, 0
      %p571 = por %p569, %p570
      %p572 = scmp.ne.s32.totalorder %s561, %s564
      %p573 = scmp.eq.s32.totalorder %s42, 1
      %p574 = por %p572, %p573
      %p575 = scmp.ne.s32.totalorder %s564, %s565
      %p576 = scmp.eq.s32.totalorder %s42, 0
      %p577 = por %p575, %p576
      %p578 = scmp.ne.s32.totalorder %s564, %s565
      %p579 = scmp.eq.s32.totalorder %s43, 1
      %p580 = por %p578, %p579
      %p582 = scmp.ne.s32.totalorder %s565, %s581
      %p583 = scmp.eq.s32.totalorder %s43, 0
      %p584 = por %p582, %p583
      %s585 = ssub.s32 %s37, %s44
      %p586 = scmp.eq.s32.totalorder %s585, 0
      %s588 = sadd.s32 %s587, 1
      %s589 = scalar_select %p586, %s587, %s588
      %p592 = pneg %p586
      %p593 = scmp.eq.s32.totalorder %s37, 1
      %p594 = por %p592, %p593
      %p595 = scmp.ne.s32.totalorder %s587, %s590
      %p596 = scmp.eq.s32.totalorder %s37, 0
      %p597 = por %p595, %p596
      %p598 = scmp.ne.s32.totalorder %s587, %s590
      %p599 = scmp.eq.s32.totalorder %s42, 1
      %p600 = por %p598, %p599
      %p601 = scmp.ne.s32.totalorder %s590, %s591
      %p602 = scmp.eq.s32.totalorder %s42, 0
      %p603 = por %p601, %p602
      %p604 = scmp.ne.s32.totalorder %s590, %s591
      %p605 = scmp.eq.s32.totalorder %s43, 1
      %p606 = por %p604, %p605
      %p608 = scmp.ne.s32.totalorder %s591, %s607
      %p609 = scmp.eq.s32.totalorder %s43, 0
      %p610 = por %p608, %p609
      %p611 = scmp.le.s32.totalorder 1, %s37
      %p612 = scmp.lt.s32.totalorder %s37, 3
      %p613 = pnand %p611, %p612
      %p614 = pneg %p613
      // Predicated region
      $region9: #{vcd_forward.1} parent=5 // pred_check
        _
      $region10: #{vcd_forward.1} parent=5 // pred_check_branch
        %616 = sbr.rel (%p613) target = $region12
      $region11: #{vcd_forward.1} parent=5 // pred_region
        %s617 = ssub.s32 %s37, 1
        // Predicated region
        $region13: #{vcd_forward.1} parent=11 // pred_check
          %p618 = pneg %p84
        $region14: #{vcd_forward.1} parent=11 // pred_check_branch
          %620 = sbr.rel (%p618) target = $region16
        $region15: #{vcd_forward.1} parent=11 // pred_region
          _
        $region16: #{vcd_forward.1} parent=11 // pred_fallthru
          _
        // Predicated region
        $region17: #{vcd_forward.1} parent=11 // pred_check
          %p621 = pneg %p105
        $region18: #{vcd_forward.1} parent=11 // pred_check_branch
          %623 = sbr.rel (%p621) target = $region20
        $region19: #{vcd_forward.1} parent=11 // pred_region
          _
        $region20: #{vcd_forward.1} parent=11 // pred_fallthru
          _
        // Predicated region
        $region21: #{vcd_forward.1} parent=11 // pred_check
          %p624 = pneg %p126
        $region22: #{vcd_forward.1} parent=11 // pred_check_branch
          %626 = sbr.rel (%p624) target = $region24
        $region23: #{vcd_forward.1} parent=11 // pred_region
          _
        $region24: #{vcd_forward.1} parent=11 // pred_fallthru
          _
        // Predicated region
        $region25: #{vcd_forward.1} parent=11 // pred_check
          %p627 = pneg %p147
        $region26: #{vcd_forward.1} parent=11 // pred_check_branch
          %629 = sbr.rel (%p627) target = $region28
        $region27: #{vcd_forward.1} parent=11 // pred_region
          _
        $region28: #{vcd_forward.1} parent=11 // pred_fallthru
          _
        // Predicated region
        $region29: #{vcd_forward.1} parent=11 // pred_check
          %p630 = pneg %p168
        $region30: #{vcd_forward.1} parent=11 // pred_check_branch
          %632 = sbr.rel (%p630) target = $region32
        $region31: #{vcd_forward.1} parent=11 // pred_region
          _
        $region32: #{vcd_forward.1} parent=11 // pred_fallthru
          _
        // Predicated region
        $region33: #{vcd_forward.1} parent=11 // pred_check
          %p633 = pneg %p189
        $region34: #{vcd_forward.1} parent=11 // pred_check_branch
          %635 = sbr.rel (%p633) target = $region36
        $region35: #{vcd_forward.1} parent=11 // pred_region
          _
        $region36: #{vcd_forward.1} parent=11 // pred_fallthru
          _
        // Predicated region
        $region37: #{vcd_forward.1} parent=11 // pred_check
          %p636 = pneg %p210
        $region38: #{vcd_forward.1} parent=11 // pred_check_branch
          %638 = sbr.rel (%p636) target = $region40
        $region39: #{vcd_forward.1} parent=11 // pred_region
          _
        $region40: #{vcd_forward.1} parent=11 // pred_fallthru
          _
        // Predicated region
        $region41: #{vcd_forward.1} parent=11 // pred_check
          %p639 = pneg %p231
        $region42: #{vcd_forward.1} parent=11 // pred_check_branch
          %641 = sbr.rel (%p639) target = $region44
        $region43: #{vcd_forward.1} parent=11 // pred_region
          _
        $region44: #{vcd_forward.1} parent=11 // pred_fallthru
          _
        // Predicated region
        $region45: #{vcd_forward.1} parent=11 // pred_check
          %p642 = pneg %p252
        $region46: #{vcd_forward.1} parent=11 // pred_check_branch
          %644 = sbr.rel (%p642) target = $region48
        $region47: #{vcd_forward.1} parent=11 // pred_region
          _
        $region48: #{vcd_forward.1} parent=11 // pred_fallthru
          _
        // Predicated region
        $region49: #{vcd_forward.1} parent=11 // pred_check
          %p645 = pneg %p273
        $region50: #{vcd_forward.1} parent=11 // pred_check_branch
          %647 = sbr.rel (%p645) target = $region52
        $region51: #{vcd_forward.1} parent=11 // pred_region
          _
        $region52: #{vcd_forward.1} parent=11 // pred_fallthru
          _
        // Predicated region
        $region53: #{vcd_forward.1} parent=11 // pred_check
          %p648 = pneg %p294
        $region54: #{vcd_forward.1} parent=11 // pred_check_branch
          %650 = sbr.rel (%p648) target = $region56
        $region55: #{vcd_forward.1} parent=11 // pred_region
          _
        $region56: #{vcd_forward.1} parent=11 // pred_fallthru
          _
        // Predicated region
        $region57: #{vcd_forward.1} parent=11 // pred_check
          %p651 = pneg %p315
        $region58: #{vcd_forward.1} parent=11 // pred_check_branch
          %653 = sbr.rel (%p651) target = $region60
        $region59: #{vcd_forward.1} parent=11 // pred_region
          _
        $region60: #{vcd_forward.1} parent=11 // pred_fallthru
          _
        // Predicated region
        $region61: #{vcd_forward.1} parent=11 // pred_check
          %p654 = pneg %p336
        $region62: #{vcd_forward.1} parent=11 // pred_check_branch
          %656 = sbr.rel (%p654) target = $region64
        $region63: #{vcd_forward.1} parent=11 // pred_region
          _
        $region64: #{vcd_forward.1} parent=11 // pred_fallthru
          _
        // Predicated region
        $region65: #{vcd_forward.1} parent=11 // pred_check
          %p657 = pneg %p357
        $region66: #{vcd_forward.1} parent=11 // pred_check_branch
          %659 = sbr.rel (%p657) target = $region68
        $region67: #{vcd_forward.1} parent=11 // pred_region
          _
        $region68: #{vcd_forward.1} parent=11 // pred_fallthru
          _
        // Predicated region
        $region69: #{vcd_forward.1} parent=11 // pred_check
          %p660 = pneg %p378
        $region70: #{vcd_forward.1} parent=11 // pred_check_branch
          %662 = sbr.rel (%p660) target = $region72
        $region71: #{vcd_forward.1} parent=11 // pred_region
          _
        $region72: #{vcd_forward.1} parent=11 // pred_fallthru
          _
        // Predicated region
        $region73: #{vcd_forward.1} parent=11 // pred_check
          %p663 = pneg %p399
        $region74: #{vcd_forward.1} parent=11 // pred_check_branch
          %665 = sbr.rel (%p663) target = $region76
        $region75: #{vcd_forward.1} parent=11 // pred_region
          _
        $region76: #{vcd_forward.1} parent=11 // pred_fallthru
          _
        // Predicated region
        $region77: #{vcd_forward.1} parent=11 // pred_check
          %p666 = pneg %p420
        $region78: #{vcd_forward.1} parent=11 // pred_check_branch
          %668 = sbr.rel (%p666) target = $region80
        $region79: #{vcd_forward.1} parent=11 // pred_region
          _
        $region80: #{vcd_forward.1} parent=11 // pred_fallthru
          _
        // Predicated region
        $region81: #{vcd_forward.1} parent=11 // pred_check
          %p669 = pneg %p441
        $region82: #{vcd_forward.1} parent=11 // pred_check_branch
          %671 = sbr.rel (%p669) target = $region84
        $region83: #{vcd_forward.1} parent=11 // pred_region
          _
        $region84: #{vcd_forward.1} parent=11 // pred_fallthru
          _
        // Predicated region
        $region85: #{vcd_forward.1} parent=11 // pred_check
          %p672 = pneg %p462
        $region86: #{vcd_forward.1} parent=11 // pred_check_branch
          %674 = sbr.rel (%p672) target = $region88
        $region87: #{vcd_forward.1} parent=11 // pred_region
          _
        $region88: #{vcd_forward.1} parent=11 // pred_fallthru
          _
        // Predicated region
        $region89: #{vcd_forward.1} parent=11 // pred_check
          %p675 = pneg %p483
        $region90: #{vcd_forward.1} parent=11 // pred_check_branch
          %677 = sbr.rel (%p675) target = $region92
        $region91: #{vcd_forward.1} parent=11 // pred_region
          _
        $region92: #{vcd_forward.1} parent=11 // pred_fallthru
          _
        // Predicated region
        $region93: #{vcd_forward.1} parent=11 // pred_check
          %p678 = pneg %p504
        $region94: #{vcd_forward.1} parent=11 // pred_check_branch
          %680 = sbr.rel (%p678) target = $region96
        $region95: #{vcd_forward.1} parent=11 // pred_region
          _
        $region96: #{vcd_forward.1} parent=11 // pred_fallthru
          _
        // Predicated region
        $region97: #{vcd_forward.1} parent=11 // pred_check
          %p681 = pneg %p525
        $region98: #{vcd_forward.1} parent=11 // pred_check_branch
          %683 = sbr.rel (%p681) target = $region100
        $region99: #{vcd_forward.1} parent=11 // pred_region
          _
        $region100: #{vcd_forward.1} parent=11 // pred_fallthru
          _
      $region12: #{vcd_forward.1} parent=5 // pred_fallthru
        _
      %p684 = scmp.lt.s32.totalorder %s37, 2
      // Predicated region
      $region101: #{vcd_forward.1} parent=5 // pred_check
        %p685 = pneg %p684
      $region102: #{vcd_forward.1} parent=5 // pred_check_branch
        %687 = sbr.rel (%p685) target = $region104
      $region103: #{vcd_forward.1} parent=5 // pred_region
        // Predicated region
        $region105: #{vcd_forward.1} parent=103 // pred_check
          %p688 = pneg %p57
        $region106: #{vcd_forward.1} parent=103 // pred_check_branch
          %690 = sbr.rel (%p688) target = $region108
        $region107: #{vcd_forward.1} parent=103 // pred_region
          %p691 = scmp.lt.s32.totalorder %s37, 1
          %s692 = scalar_select %p691, %s37, 1
          %s693 = smul.addr %s692, 2
          %s694 = smul.addr %s693, 8
          %s695 = scalar_lea.vmem %s0, %s694
        $region108: #{vcd_forward.1} parent=103 // pred_fallthru
          _
      $region104: #{vcd_forward.1} parent=5 // pred_fallthru
        _
      %p696 = scmp.le.s32.totalorder 1, %s37
      %p697 = scmp.lt.s32.totalorder %s37, 3
      %p698 = pnand %p696, %p697
      %p699 = pneg %p698
      // Predicated region
      $region109: #{vcd_forward.1} parent=5 // pred_check
        _
      $region110: #{vcd_forward.1} parent=5 // pred_check_branch
        %701 = sbr.rel (%p698) target = $region112
      $region111: #{vcd_forward.1} parent=5 // pred_region
        %s702 = ssub.s32 %s37, 1
        %p703 = scmp.lt.s32.totalorder %s42, 1
        %s704 = scalar_select %p703, %s42, 1
        %s705 = smul.addr %s704, 2
        %s706 = smul.addr %s705, 8
        %s707 = scalar_lea.vmem %s0, %s706
        %p708 = pneg %p63
        %p709 = pneg %p60
        %p710 = pneg %p84
        %p711 = pneg %p81
        %p712 = pneg %p105
        %p713 = pneg %p102
        %p714 = pneg %p126
        %p715 = pneg %p123
        %p716 = pneg %p147
        %p717 = pneg %p144
        %p718 = pneg %p168
        %p719 = pneg %p165
        %p720 = pneg %p189
        %p721 = pneg %p186
        %p722 = pneg %p210
        %p723 = pneg %p207
        %p724 = pneg %p231
        %p725 = pneg %p228
        %p726 = pneg %p252
        %p727 = pneg %p249
        %p728 = pneg %p273
        %p729 = pneg %p270
        %p730 = pneg %p294
        %p731 = pneg %p291
        %p732 = pneg %p315
        %p733 = pneg %p312
        %p734 = pneg %p336
        %p735 = pneg %p333
        %p736 = pneg %p357
        %p737 = pneg %p354
        %p738 = pneg %p378
        %p739 = pneg %p375
        %p740 = pneg %p399
        %p741 = pneg %p396
        %p742 = pneg %p420
        %p743 = pneg %p417
        %p744 = pneg %p441
        %p745 = pneg %p438
        %p746 = pneg %p462
        %p747 = pneg %p459
        %p748 = pneg %p483
        %p749 = pneg %p480
        %p750 = pneg %p504
        %p751 = pneg %p501
        %p752 = pneg %p525
        %p753 = pneg %p522
        %p754 = pneg %p551
        %p755 = pneg %p548
        %s756 = sand.u32 %s538, 1
        %s757 = scalar_lea.sflag [#allocation4], %s756
        %s758 = sand.u32 %s538, 1
        %s759 = scalar_lea.vmem [#allocation3], %s758
        %p760 = pneg %p577
        %p761 = pneg %p574
        %p762 = scmp.lt.s32.totalorder %s42, 1
        %s763 = scalar_select %p762, %s42, 1
        %s764 = smul.addr %s763, 2
        %s765 = smul.addr %s764, 8
        %s766 = scalar_lea.vmem %s24, %s765
        %p767 = pneg %p603
        %p768 = pneg %p600
        %p769 = scmp.lt.s32.totalorder %s42, 1
        %s770 = scalar_select %p769, %s42, 1
        %s771 = smul.addr %s770, 2
        %s772 = smul.addr %s771, 8
        %s773 = scalar_lea.vmem %s25, %s772
        %p774 = scmp.lt.s32.totalorder %s42, 1
        %s775 = scalar_select %p774, %s42, 1
        %s776 = smul.addr %s775, 2
        %s777 = smul.addr %s776, 8
        %s778 = scalar_lea.vmem %s0, %s777
        %p779 = scmp.lt.s32.totalorder %s42, 1
        %s780 = scalar_select %p779, %s42, 1
        %s781 = smul.addr %s780, 2
        %s782 = smul.addr %s781, 8
        %s783 = scalar_lea.vmem %s24, %s782
        %p784 = scmp.lt.s32.totalorder %s42, 1
        %s785 = scalar_select %p784, %s42, 1
        %s786 = smul.addr %s785, 2
        %s787 = smul.addr %s786, 8
        %s788 = scalar_lea.vmem %s25, %s787
        %v789 = vld [vmem:[%s778] sm:$0xff]
        %v790 = vld [vmem:[%s778 + $0x8] sm:$0xff]
        %v791 = vld [vmem:[%s1] sm:$0xff]
        %v792 = vld [vmem:[%s2] sm:$0x1]
        %v794 = vlaneseq
        %v795 = vshrl.u32 %v794, 7
        %v796 = vsub.s32 0, %v795
        %v797 = vrot.slane %v792, %v796
        %vm799 = vcmask 64512
        %v801 = vsel %vm799, %v789, 0
        %v804 = vsel %vm799, %v790, 0
        %806 = vmatprep.subr.mxu0 0.0
        %807 = vmatpush1.msra.mxu0 %v791
        %808 = vmatprep.subr.mxu0 0.0
        %809 = vmatpush1.msra.mxu0 0.0
        %810 = vmatprep.subr.mxu0 0.0
        %811 = vmatpush1.msra.mxu0 0.0
        %812 = vmatprep.subr.mxu0 0.0
        %813 = vmatpush1.msra.mxu0 0.0
        %814 = vmatprep.subr.mxu0 0.0
        %815 = vmatpush1.msra.mxu0 0.0
        %816 = vmatprep.subr.mxu0 0.0
        %817 = vmatpush1.msra.mxu0 0.0
        %818 = vmatprep.subr.mxu0 0.0
        %819 = vmatpush1.msra.mxu0 0.0
        %820 = vmatprep.subr.mxu0 0.0
        %821 = vmatpush1.msra.mxu0 0.0
        %822 = vmatprep.subr.mxu0 0.0
        %823 = vmatpush1.msra.mxu0 0.0
        %824 = vmatprep.subr.mxu0 0.0
        %825 = vmatpush1.msra.mxu0 0.0
        %826 = vmatprep.subr.mxu0 0.0
        %827 = vmatpush1.msra.mxu0 0.0
        %828 = vmatprep.subr.mxu0 0.0
        %829 = vmatpush1.msra.mxu0 0.0
        %830 = vmatprep.subr.mxu0 0.0
        %831 = vmatpush1.msra.mxu0 0.0
        %832 = vmatprep.subr.mxu0 0.0
        %833 = vmatpush1.msra.mxu0 0.0
        %834 = vmatprep.subr.mxu0 0.0
        %835 = vmatpush1.msra.mxu0 0.0
        %836 = vmatprep.subr.mxu0 0.0
        %837 = vmatpush1.msra.mxu0 0.0
        %838 = vmatprep.subr.mxu0 0.0
        %839 = vmatpush1.msra.mxu0 0.0
        %840 = vmatprep.subr.mxu0 0.0
        %841 = vmatpush1.msra.mxu0 0.0
        %842 = vmatprep.subr.mxu0 0.0
        %843 = vmatpush1.msra.mxu0 0.0
        %844 = vmatprep.subr.mxu0 0.0
        %845 = vmatpush1.msra.mxu0 0.0
        %846 = vmatprep.subr.mxu0 0.0
        %847 = vmatpush1.msra.mxu0 0.0
        %848 = vmatprep.subr.mxu0 0.0
        %849 = vmatpush1.msra.mxu0 0.0
        %850 = vmatprep.subr.mxu0 0.0
        %851 = vmatpush1.msra.mxu0 0.0
        %852 = vmatprep.subr.mxu0 0.0
        %853 = vmatpush1.msra.mxu0 0.0
        %854 = vmatprep.subr.mxu0 0.0
        %855 = vmatpush1.msra.mxu0 0.0
        %856 = vmatprep.subr.mxu0 0.0
        %857 = vmatpush1.msra.mxu0 0.0
        %858 = vmatprep.subr.mxu0 0.0
        %859 = vmatpush1.msra.mxu0 0.0
        %860 = vmatprep.subr.mxu0 0.0
        %861 = vmatpush1.msra.mxu0 0.0
        %862 = vmatprep.subr.mxu0 0.0
        %863 = vmatpush1.msra.mxu0 0.0
        %864 = vmatprep.subr.mxu0 0.0
        %865 = vmatpush1.msra.mxu0 0.0
        %866 = vmatprep.subr.mxu0 0.0
        %867 = vmatpush1.msra.mxu0 0.0
        %868 = vmatprep.subr.mxu0 0.0
        %869 = vmatpush1.msra.mxu0 0.0
        %870 = vmatprep.mubr.f32.mxu0 0.0
        %871 = vmatmul.mubr.f32.gmra.mrb[0].mxu0 %v801
        %v872 = vpop.f32.mrb[0].mxu0
        %v873 = vadd.f32 %v797, %v872
        %v874 = vpop.f32.mrb[0].mxu0
        %875 = vmatprep.mubr.f32.mxu0 0.0
        %876 = vmatmul.mubr.f32.gmra.mrb[0].mxu0 %v804
        %v877 = vpop.f32.mrb[0].mxu0
        %v878 = vadd.f32 %v797, %v877
        %v879 = vpop.f32.mrb[0].mxu0
        %880 = vdwg.mxu0
        %v881 = vmax.f32 %v873, 0.0
        %v882 = vmax.f32 %v878, 0.0
        %v883 = vld [vmem:[%s3] sm:$0xff]
        %v884 = vld [vmem:[%s4] sm:$0x1]
        %v886 = vlaneseq
        %v887 = vshrl.u32 %v886, 7
        %v888 = vsub.s32 0, %v887
        %v889 = vrot.slane %v884, %v888
        %891 = vmatprep.subr.mxu0 0.0
        %892 = vmatpush1.msra.mxu0 %v883
        %893 = vmatprep.subr.mxu0 0.0
        %894 = vmatpush1.msra.mxu0 0.0
        %895 = vmatprep.subr.mxu0 0.0
        %896 = vmatpush1.msra.mxu0 0.0
        %897 = vmatprep.subr.mxu0 0.0
        %898 = vmatpush1.msra.mxu0 0.0
        %899 = vmatprep.subr.mxu0 0.0
        %900 = vmatpush1.msra.mxu0 0.0
        %901 = vmatprep.subr.mxu0 0.0
        %902 = vmatpush1.msra.mxu0 0.0
        %903 = vmatprep.subr.mxu0 0.0
        %904 = vmatpush1.msra.mxu0 0.0
        %905 = vmatprep.subr.mxu0 0.0
        %906 = vmatpush1.msra.mxu0 0.0
        %907 = vmatprep.subr.mxu0 0.0
        %908 = vmatpush1.msra.mxu0 0.0
        %909 = vmatprep.subr.mxu0 0.0
        %910 = vmatpush1.msra.mxu0 0.0
        %911 = vmatprep.subr.mxu0 0.0
        %912 = vmatpush1.msra.mxu0 0.0
        %913 = vmatprep.subr.mxu0 0.0
        %914 = vmatpush1.msra.mxu0 0.0
        %915 = vmatprep.subr.mxu0 0.0
        %916 = vmatpush1.msra.mxu0 0.0
        %917 = vmatprep.subr.mxu0 0.0
        %918 = vmatpush1.msra.mxu0 0.0
        %919 = vmatprep.subr.mxu0 0.0
        %920 = vmatpush1.msra.mxu0 0.0
        %921 = vmatprep.subr.mxu0 0.0
        %922 = vmatpush1.msra.mxu0 0.0
        %923 = vmatprep.subr.mxu0 0.0
        %924 = vmatpush1.msra.mxu0 0.0
        %925 = vmatprep.subr.mxu0 0.0
        %926 = vmatpush1.msra.mxu0 0.0
        %927 = vmatprep.subr.mxu0 0.0
        %928 = vmatpush1.msra.mxu0 0.0
        %929 = vmatprep.subr.mxu0 0.0
        %930 = vmatpush1.msra.mxu0 0.0
        %931 = vmatprep.subr.mxu0 0.0
        %932 = vmatpush1.msra.mxu0 0.0
        %933 = vmatprep.subr.mxu0 0.0
        %934 = vmatpush1.msra.mxu0 0.0
        %935 = vmatprep.subr.mxu0 0.0
        %936 = vmatpush1.msra.mxu0 0.0
        %937 = vmatprep.subr.mxu0 0.0
        %938 = vmatpush1.msra.mxu0 0.0
        %939 = vmatprep.subr.mxu0 0.0
        %940 = vmatpush1.msra.mxu0 0.0
        %941 = vmatprep.subr.mxu0 0.0
        %942 = vmatpush1.msra.mxu0 0.0
        %943 = vmatprep.subr.mxu0 0.0
        %944 = vmatpush1.msra.mxu0 0.0
        %945 = vmatprep.subr.mxu0 0.0
        %946 = vmatpush1.msra.mxu0 0.0
        %947 = vmatprep.subr.mxu0 0.0
        %948 = vmatpush1.msra.mxu0 0.0
        %949 = vmatprep.subr.mxu0 0.0
        %950 = vmatpush1.msra.mxu0 0.0
        %951 = vmatprep.subr.mxu0 0.0
        %952 = vmatpush1.msra.mxu0 0.0
        %953 = vmatprep.subr.mxu0 0.0
        %954 = vmatpush1.msra.mxu0 0.0
        %955 = vmatprep.mubr.f32.mxu0 0.0
        %956 = vmatmul.mubr.f32.gmra.mrb[0].mxu0 %v801
        %v957 = vpop.f32.mrb[0].mxu0
        %v958 = vadd.f32 %v889, %v957
        %v959 = vpop.f32.mrb[0].mxu0
        %960 = vmatprep.mubr.f32.mxu0 0.0
        %961 = vmatmul.mubr.f32.gmra.mrb[0].mxu0 %v804
        %v962 = vpop.f32.mrb[0].mxu0
        %v963 = vadd.f32 %v889, %v962
        %v964 = vpop.f32.mrb[0].mxu0
        %965 = vdwg.mxu0
        %v966 = vmax.f32 %v958, 0.0
        %v967 = vmax.f32 %v963, 0.0
        %v968 = vld [vmem:[%s5] sm:$0xff]
        %v969 = vld [vmem:[%s6] sm:$0x1]
        %v971 = vlaneseq
        %v972 = vshrl.u32 %v971, 7
        %v973 = vsub.s32 0, %v972
        %v974 = vrot.slane %v969, %v973
        %976 = vmatprep.subr.mxu0 0.0
        %977 = vmatpush1.msra.mxu0 %v968
        %978 = vmatprep.subr.mxu0 0.0
        %979 = vmatpush1.msra.mxu0 0.0
        %980 = vmatprep.subr.mxu0 0.0
        %981 = vmatpush1.msra.mxu0 0.0
        %982 = vmatprep.subr.mxu0 0.0
        %983 = vmatpush1.msra.mxu0 0.0
        %984 = vmatprep.subr.mxu0 0.0
        %985 = vmatpush1.msra.mxu0 0.0
        %986 = vmatprep.subr.mxu0 0.0
        %987 = vmatpush1.msra.mxu0 0.0
        %988 = vmatprep.subr.mxu0 0.0
        %989 = vmatpush1.msra.mxu0 0.0
        %990 = vmatprep.subr.mxu0 0.0
        %991 = vmatpush1.msra.mxu0 0.0
        %992 = vmatprep.subr.mxu0 0.0
        %993 = vmatpush1.msra.mxu0 0.0
        %994 = vmatprep.subr.mxu0 0.0
        %995 = vmatpush1.msra.mxu0 0.0
        %996 = vmatprep.subr.mxu0 0.0
        %997 = vmatpush1.msra.mxu0 0.0
        %998 = vmatprep.subr.mxu0 0.0
        %999 = vmatpush1.msra.mxu0 0.0
        %1000 = vmatprep.subr.mxu0 0.0
        %1001 = vmatpush1.msra.mxu0 0.0
        %1002 = vmatprep.subr.mxu0 0.0
        %1003 = vmatpush1.msra.mxu0 0.0
        %1004 = vmatprep.subr.mxu0 0.0
        %1005 = vmatpush1.msra.mxu0 0.0
        %1006 = vmatprep.subr.mxu0 0.0
        %1007 = vmatpush1.msra.mxu0 0.0
        %1008 = vmatprep.subr.mxu0 0.0
        %1009 = vmatpush1.msra.mxu0 0.0
        %1010 = vmatprep.subr.mxu0 0.0
        %1011 = vmatpush1.msra.mxu0 0.0
        %1012 = vmatprep.subr.mxu0 0.0
        %1013 = vmatpush1.msra.mxu0 0.0
        %1014 = vmatprep.subr.mxu0 0.0
        %1015 = vmatpush1.msra.mxu0 0.0
        %1016 = vmatprep.subr.mxu0 0.0
        %1017 = vmatpush1.msra.mxu0 0.0
        %1018 = vmatprep.subr.mxu0 0.0
        %1019 = vmatpush1.msra.mxu0 0.0
        %1020 = vmatprep.subr.mxu0 0.0
        %1021 = vmatpush1.msra.mxu0 0.0
        %1022 = vmatprep.subr.mxu0 0.0
        %1023 = vmatpush1.msra.mxu0 0.0
        %1024 = vmatprep.subr.mxu0 0.0
        %1025 = vmatpush1.msra.mxu0 0.0
        %1026 = vmatprep.subr.mxu0 0.0
        %1027 = vmatpush1.msra.mxu0 0.0
        %1028 = vmatprep.subr.mxu0 0.0
        %1029 = vmatpush1.msra.mxu0 0.0
        %1030 = vmatprep.subr.mxu0 0.0
        %1031 = vmatpush1.msra.mxu0 0.0
        %1032 = vmatprep.subr.mxu0 0.0
        %1033 = vmatpush1.msra.mxu0 0.0
        %1034 = vmatprep.subr.mxu0 0.0
        %1035 = vmatpush1.msra.mxu0 0.0
        %1036 = vmatprep.subr.mxu0 0.0
        %1037 = vmatpush1.msra.mxu0 0.0
        %1038 = vmatprep.subr.mxu0 0.0
        %1039 = vmatpush1.msra.mxu0 0.0
        %1040 = vmatprep.mubr.f32.mxu0 0.0
        %1041 = vmatmul.mubr.f32.gmra.mrb[0].mxu0 %v801
        %v1042 = vpop.f32.mrb[0].mxu0
        %v1043 = vadd.f32 %v974, %v1042
        %v1044 = vpop.f32.mrb[0].mxu0
        %1045 = vmatprep.mubr.f32.mxu0 0.0
        %1046 = vmatmul.mubr.f32.gmra.mrb[0].mxu0 %v804
        %v1047 = vpop.f32.mrb[0].mxu0
        %v1048 = vadd.f32 %v974, %v1047
        %v1049 = vpop.f32.mrb[0].mxu0
        %1050 = vdwg.mxu0
        %v1051 = vmax.f32 %v1043, 0.0
        %v1052 = vmax.f32 %v1048, 0.0
        %vm1053 = vcmask 130048
        %v1055 = vsel %vm1053, %v881, 0
        %v1058 = vsel %vm1053, %v882, 0
        %v1061 = vsel %vm1053, %v966, 0
        %v1064 = vsel %vm1053, %v967, 0
        %1066 = vmatprep.subr.mxu0 0.0
        %1067 = vmatpush1.xpose.msra.mxu0 %v1061
        %1068 = vmatprep.subr.mxu0 0.0
        %1069 = vmatpush1.xpose.msra.mxu0 %v1064
        %1070 = vmatprep.subr.mxu0 0.0
        %1071 = vmatpush1.xpose.msra.mxu0 0.0
        %1072 = vmatprep.subr.mxu0 0.0
        %1073 = vmatpush1.xpose.msra.mxu0 0.0
        %1074 = vmatprep.subr.mxu0 0.0
        %1075 = vmatpush1.xpose.msra.mxu0 0.0
        %1076 = vmatprep.subr.mxu0 0.0
        %1077 = vmatpush1.xpose.msra.mxu0 0.0
        %1078 = vmatprep.subr.mxu0 0.0
        %1079 = vmatpush1.xpose.msra.mxu0 0.0
        %1080 = vmatprep.subr.mxu0 0.0
        %1081 = vmatpush1.xpose.msra.mxu0 0.0
        %1082 = vmatprep.subr.mxu0 0.0
        %1083 = vmatpush1.xpose.msra.mxu0 0.0
        %1084 = vmatprep.subr.mxu0 0.0
        %1085 = vmatpush1.xpose.msra.mxu0 0.0
        %1086 = vmatprep.subr.mxu0 0.0
        %1087 = vmatpush1.xpose.msra.mxu0 0.0
        %1088 = vmatprep.subr.mxu0 0.0
        %1089 = vmatpush1.xpose.msra.mxu0 0.0
        %1090 = vmatprep.subr.mxu0 0.0
        %1091 = vmatpush1.xpose.msra.mxu0 0.0
        %1092 = vmatprep.subr.mxu0 0.0
        %1093 = vmatpush1.xpose.msra.mxu0 0.0
        %1094 = vmatprep.subr.mxu0 0.0
        %1095 = vmatpush1.xpose.msra.mxu0 0.0
        %1096 = vmatprep.subr.mxu0 0.0
        %1097 = vmatpush1.xpose.msra.mxu0 0.0
        %1098 = vmatprep.subr.mxu0 0.0
        %1099 = vmatpush1.xpose.msra.mxu0 0.0
        %1100 = vmatprep.subr.mxu0 0.0
        %1101 = vmatpush1.xpose.msra.mxu0 0.0
        %1102 = vmatprep.subr.mxu0 0.0
        %1103 = vmatpush1.xpose.msra.mxu0 0.0
        %1104 = vmatprep.subr.mxu0 0.0
        %1105 = vmatpush1.xpose.msra.mxu0 0.0
        %1106 = vmatprep.subr.mxu0 0.0
        %1107 = vmatpush1.xpose.msra.mxu0 0.0
        %1108 = vmatprep.subr.mxu0 0.0
        %1109 = vmatpush1.xpose.msra.mxu0 0.0
        %1110 = vmatprep.subr.mxu0 0.0
        %1111 = vmatpush1.xpose.msra.mxu0 0.0
        %1112 = vmatprep.subr.mxu0 0.0
        %1113 = vmatpush1.xpose.msra.mxu0 0.0
        %1114 = vmatprep.subr.mxu0 0.0
        %1115 = vmatpush1.xpose.msra.mxu0 0.0
        %1116 = vmatprep.subr.mxu0 0.0
        %1117 = vmatpush1.xpose.msra.mxu0 0.0
        %1118 = vmatprep.subr.mxu0 0.0
        %1119 = vmatpush1.xpose.msra.mxu0 0.0
        %1120 = vmatprep.subr.mxu0 0.0
        %1121 = vmatpush1.xpose.msra.mxu0 0.0
        %1122 = vmatprep.subr.mxu0 0.0
        %1123 = vmatpush1.xpose.msra.mxu0 0.0
        %1124 = vmatprep.subr.mxu0 0.0
        %1125 = vmatpush1.xpose.msra.mxu0 0.0
        %1126 = vmatprep.subr.mxu0 0.0
        %1127 = vmatpush1.xpose.msra.mxu0 0.0
        %1128 = vmatprep.subr.mxu0 0.0
        %1129 = vmatpush1.xpose.msra.mxu0 0.0
        %1130 = vmatprep.mubr.f32.mxu0 0.0
        %1131 = vmatmul.mubr.f32.gmra.mrb[0].mxu0 %v1055
        %v1132 = vpop.f32.mrb[0].mxu0
        %v1133 = vadd.f32 0.0, %v1132
        %v1134 = vpop.f32.mrb[0].mxu0
        %1135 = vmatprep.mubr.f32.mxu0 0.0
        %1136 = vmatmul.mubr.f32.gmra.mrb[0].mxu0 %v1058
        %v1137 = vpop.f32.mrb[0].mxu0
        %v1138 = vadd.f32 0.0, %v1137
        %v1139 = vpop.f32.mrb[0].mxu0
        %1140 = vdwg.mxu0
        %v1141 = vmul.f32 %v1133, 0.25
        %v1142 = vmul.f32 %v1138, 0.25
        %v1143 = vsel %vm1053, %v1141, -inf
        %1144 = vmax.xlane.f32.xlu0 %v1143
        %v1145 = vpop.xlane.xlu0 %1144
        %v1146 = vsel %vm1053, %v1142, -inf
        %1147 = vmax.xlane.f32.xlu0 %v1146
        %v1148 = vpop.xlane.xlu0 %1147
        %v1149 = vsub.f32 %v1141, %v1145
        %v1150 = vsub.f32 %v1142, %v1148
        %v1151 = vmul.f32 %v1149, 1.442695
        %v1152 = vpow.pop %v1151
        %v1153 = vmul.f32 %v1150, 1.442695
        %v1154 = vpow.pop %v1153
        %v1155 = vsel %vm1053, %v1152, 0.0
        %1156 = vadd.xlane.f32.xlu0 %v1155
        %v1157 = vpop.xlane.xlu0 %1156
        %v1158 = vsel %vm1053, %v1154, 0.0
        %1159 = vadd.xlane.f32.xlu0 %v1158
        %v1160 = vpop.xlane.xlu0 %1159
        %v1161 = vrcp.pop %v1157
        %v1162 = vrcp.pop %v1160
        %v1163 = vmul.f32 %v1152, %v1161
        %v1164 = vmul.f32 %v1154, %v1162
        %v1166 = vsel %vm1053, %v1163, 0
        %v1169 = vsel %vm1053, %v1164, 0
        %1171 = vmatprep.subr.mxu0 0.0
        %1172 = vmatpush1.msra.mxu0 %v1051
        %1173 = vmatprep.subr.mxu0 0.0
        %1174 = vmatpush1.msra.mxu0 %v1052
        %1175 = vmatprep.subr.mxu0 0.0
        %1176 = vmatpush1.msra.mxu0 0.0
        %1177 = vmatprep.subr.mxu0 0.0
        %1178 = vmatpush1.msra.mxu0 0.0
        %1179 = vmatprep.subr.mxu0 0.0
        %1180 = vmatpush1.msra.mxu0 0.0
        %1181 = vmatprep.subr.mxu0 0.0
        %1182 = vmatpush1.msra.mxu0 0.0
        %1183 = vmatprep.subr.mxu0 0.0
        %1184 = vmatpush1.msra.mxu0 0.0
        %1185 = vmatprep.subr.mxu0 0.0
        %1186 = vmatpush1.msra.mxu0 0.0
        %1187 = vmatprep.subr.mxu0 0.0
        %1188 = vmatpush1.msra.mxu0 0.0
        %1189 = vmatprep.subr.mxu0 0.0
        %1190 = vmatpush1.msra.mxu0 0.0
        %1191 = vmatprep.subr.mxu0 0.0
        %1192 = vmatpush1.msra.mxu0 0.0
        %1193 = vmatprep.subr.mxu0 0.0
        %1194 = vmatpush1.msra.mxu0 0.0
        %1195 = vmatprep.subr.mxu0 0.0
        %1196 = vmatpush1.msra.mxu0 0.0
        %1197 = vmatprep.subr.mxu0 0.0
        %1198 = vmatpush1.msra.mxu0 0.0
        %1199 = vmatprep.subr.mxu0 0.0
        %1200 = vmatpush1.msra.mxu0 0.0
        %1201 = vmatprep.subr.mxu0 0.0
        %1202 = vmatpush1.msra.mxu0 0.0
        %1203 = vmatprep.subr.mxu0 0.0
        %1204 = vmatpush1.msra.mxu0 0.0
        %1205 = vmatprep.subr.mxu0 0.0
        %1206 = vmatpush1.msra.mxu0 0.0
        %1207 = vmatprep.subr.mxu0 0.0
        %1208 = vmatpush1.msra.mxu0 0.0
        %1209 = vmatprep.subr.mxu0 0.0
        %1210 = vmatpush1.msra.mxu0 0.0
        %1211 = vmatprep.subr.mxu0 0.0
        %1212 = vmatpush1.msra.mxu0 0.0
        %1213 = vmatprep.subr.mxu0 0.0
        %1214 = vmatpush1.msra.mxu0 0.0
        %1215 = vmatprep.subr.mxu0 0.0
        %1216 = vmatpush1.msra.mxu0 0.0
        %1217 = vmatprep.subr.mxu0 0.0
        %1218 = vmatpush1.msra.mxu0 0.0
        %1219 = vmatprep.subr.mxu0 0.0
        %1220 = vmatpush1.msra.mxu0 0.0
        %1221 = vmatprep.subr.mxu0 0.0
        %1222 = vmatpush1.msra.mxu0 0.0
        %1223 = vmatprep.subr.mxu0 0.0
        %1224 = vmatpush1.msra.mxu0 0.0
        %1225 = vmatprep.subr.mxu0 0.0
        %1226 = vmatpush1.msra.mxu0 0.0
        %1227 = vmatprep.subr.mxu0 0.0
        %1228 = vmatpush1.msra.mxu0 0.0
        %1229 = vmatprep.subr.mxu0 0.0
        %1230 = vmatpush1.msra.mxu0 0.0
        %1231 = vmatprep.subr.mxu0 0.0
        %1232 = vmatpush1.msra.mxu0 0.0
        %1233 = vmatprep.subr.mxu0 0.0
        %1234 = vmatpush1.msra.mxu0 0.0
        %1235 = vmatprep.mubr.f32.mxu0 0.0
        %1236 = vmatmul.mubr.f32.gmra.mrb[0].mxu0 %v1166
        %v1237 = vpop.f32.mrb[0].mxu0
        %v1238 = vadd.f32 0.0, %v1237
        %v1239 = vpop.f32.mrb[0].mxu0
        %1240 = vmatprep.mubr.f32.mxu0 0.0
        %1241 = vmatmul.mubr.f32.gmra.mrb[0].mxu0 %v1169
        %v1242 = vpop.f32.mrb[0].mxu0
        %v1243 = vadd.f32 0.0, %v1242
        %v1244 = vpop.f32.mrb[0].mxu0
        %1245 = vdwg.mxu0
        %1248 = vrot.lane.b32.xlu0 %v1238, 16
        %v1249 = vpop.permute.xlu0 %1248
        %1250 = vrot.lane.b32.xlu0 %v1243, 16
        %v1251 = vpop.permute.xlu0 %1250
        %v1254 = vsel %vm1053, %v881, %v1249
        %v1255 = vsel %vm1053, %v882, %v1251
        %v1256 = vld [vmem:[%s7] sm:$0xff]
        %v1257 = vld [vmem:[%s7 + $0x8] sm:$0xff]
        %v1258 = vld [vmem:[%s7 + $0x10] sm:$0xff]
        %v1259 = vld [vmem:[%s7 + $0x18] sm:$0xff]
        %v1260 = vld [vmem:[%s8] sm:$0x1]
        %v1262 = vlaneseq
        %v1263 = vshrl.u32 %v1262, 7
        %v1264 = vsub.s32 0, %v1263
        %v1265 = vrot.slane %v1260, %v1264
        %vm1267 = vcmask 261120
        %v1269 = vsel %vm1267, %v1254, 0
        %v1272 = vsel %vm1267, %v1255, 0
        %1274 = vmatprep.subr.mxu0 0.0
        %1275 = vmatpush1.msra.mxu0 %v1256
        %1276 = vmatprep.subr.mxu0 0.0
        %1277 = vmatpush1.msra.mxu0 %v1257
        %1278 = vmatprep.subr.mxu0 0.0
        %1279 = vmatpush1.msra.mxu0 %v1258
        %1280 = vmatprep.subr.mxu0 0.0
        %1281 = vmatpush1.msra.mxu0 %v1259
        %1282 = vmatprep.subr.mxu0 0.0
        %1283 = vmatpush1.msra.mxu0 0.0
        %1284 = vmatprep.subr.mxu0 0.0
        %1285 = vmatpush1.msra.mxu0 0.0
        %1286 = vmatprep.subr.mxu0 0.0
        %1287 = vmatpush1.msra.mxu0 0.0
        %1288 = vmatprep.subr.mxu0 0.0
        %1289 = vmatpush1.msra.mxu0 0.0
        %1290 = vmatprep.subr.mxu0 0.0
        %1291 = vmatpush1.msra.mxu0 0.0
        %1292 = vmatprep.subr.mxu0 0.0
        %1293 = vmatpush1.msra.mxu0 0.0
        %1294 = vmatprep.subr.mxu0 0.0
        %1295 = vmatpush1.msra.mxu0 0.0
        %1296 = vmatprep.subr.mxu0 0.0
        %1297 = vmatpush1.msra.mxu0 0.0
        %1298 = vmatprep.subr.mxu0 0.0
        %1299 = vmatpush1.msra.mxu0 0.0
        %1300 = vmatprep.subr.mxu0 0.0
        %1301 = vmatpush1.msra.mxu0 0.0
        %1302 = vmatprep.subr.mxu0 0.0
        %1303 = vmatpush1.msra.mxu0 0.0
        %1304 = vmatprep.subr.mxu0 0.0
        %1305 = vmatpush1.msra.mxu0 0.0
        %1306 = vmatprep.subr.mxu0 0.0
        %1307 = vmatpush1.msra.mxu0 0.0
        %1308 = vmatprep.subr.mxu0 0.0
        %1309 = vmatpush1.msra.mxu0 0.0
        %1310 = vmatprep.subr.mxu0 0.0
        %1311 = vmatpush1.msra.mxu0 0.0
        %1312 = vmatprep.subr.mxu0 0.0
        %1313 = vmatpush1.msra.mxu0 0.0
        %1314 = vmatprep.subr.mxu0 0.0
        %1315 = vmatpush1.msra.mxu0 0.0
        %1316 = vmatprep.subr.mxu0 0.0
        %1317 = vmatpush1.msra.mxu0 0.0
        %1318 = vmatprep.subr.mxu0 0.0
        %1319 = vmatpush1.msra.mxu0 0.0
        %1320 = vmatprep.subr.mxu0 0.0
        %1321 = vmatpush1.msra.mxu0 0.0
        %1322 = vmatprep.subr.mxu0 0.0
        %1323 = vmatpush1.msra.mxu0 0.0
        %1324 = vmatprep.subr.mxu0 0.0
        %1325 = vmatpush1.msra.mxu0 0.0
        %1326 = vmatprep.subr.mxu0 0.0
        %1327 = vmatpush1.msra.mxu0 0.0
        %1328 = vmatprep.subr.mxu0 0.0
        %1329 = vmatpush1.msra.mxu0 0.0
        %1330 = vmatprep.subr.mxu0 0.0
        %1331 = vmatpush1.msra.mxu0 0.0
        %1332 = vmatprep.subr.mxu0 0.0
        %1333 = vmatpush1.msra.mxu0 0.0
        %1334 = vmatprep.subr.mxu0 0.0
        %1335 = vmatpush1.msra.mxu0 0.0
        %1336 = vmatprep.subr.mxu0 0.0
        %1337 = vmatpush1.msra.mxu0 0.0
        %1338 = vmatprep.mubr.f32.mxu0 0.0
        %1339 = vmatmul.mubr.f32.gmra.mrb[0].mxu0 %v1269
        %v1340 = vpop.f32.mrb[0].mxu0
        %v1341 = vadd.f32 %v1265, %v1340
        %v1342 = vpop.f32.mrb[0].mxu0
        %1343 = vmatprep.mubr.f32.mxu0 0.0
        %1344 = vmatmul.mubr.f32.gmra.mrb[0].mxu0 %v1272
        %v1345 = vpop.f32.mrb[0].mxu0
        %v1346 = vadd.f32 %v1265, %v1345
        %v1347 = vpop.f32.mrb[0].mxu0
        %1348 = vdwg.mxu0
        %v1349 = vld [vmem:[%s9] sm:$0xff]
        %v1350 = vld [vmem:[%s9 + $0x8] sm:$0xff]
        %v1351 = vld [vmem:[%s9 + $0x10] sm:$0xff]
        %v1352 = vld [vmem:[%s9 + $0x18] sm:$0xff]
        %v1353 = vld [vmem:[%s10] sm:$0x1]
        %v1355 = vsel %vm1267, 0.0, 0
        %1357 = vmatprep.subr.mxu0 0.0
        %1358 = vmatpush1.msra.mxu0 %v1349
        %1359 = vmatprep.subr.mxu0 0.0
        %1360 = vmatpush1.msra.mxu0 %v1350
        %1361 = vmatprep.subr.mxu0 0.0
        %1362 = vmatpush1.msra.mxu0 %v1351
        %1363 = vmatprep.subr.mxu0 0.0
        %1364 = vmatpush1.msra.mxu0 %v1352
        %1365 = vmatprep.subr.mxu0 0.0
        %1366 = vmatpush1.msra.mxu0 0.0
        %1367 = vmatprep.subr.mxu0 0.0
        %1368 = vmatpush1.msra.mxu0 0.0
        %1369 = vmatprep.subr.mxu0 0.0
        %1370 = vmatpush1.msra.mxu0 0.0
        %1371 = vmatprep.subr.mxu0 0.0
        %1372 = vmatpush1.msra.mxu0 0.0
        %1373 = vmatprep.subr.mxu0 0.0
        %1374 = vmatpush1.msra.mxu0 0.0
        %1375 = vmatprep.subr.mxu0 0.0
        %1376 = vmatpush1.msra.mxu0 0.0
        %1377 = vmatprep.subr.mxu0 0.0
        %1378 = vmatpush1.msra.mxu0 0.0
        %1379 = vmatprep.subr.mxu0 0.0
        %1380 = vmatpush1.msra.mxu0 0.0
        %1381 = vmatprep.subr.mxu0 0.0
        %1382 = vmatpush1.msra.mxu0 0.0
        %1383 = vmatprep.subr.mxu0 0.0
        %1384 = vmatpush1.msra.mxu0 0.0
        %1385 = vmatprep.subr.mxu0 0.0
        %1386 = vmatpush1.msra.mxu0 0.0
        %1387 = vmatprep.subr.mxu0 0.0
        %1388 = vmatpush1.msra.mxu0 0.0
        %1389 = vmatprep.subr.mxu0 0.0
        %1390 = vmatpush1.msra.mxu0 0.0
        %1391 = vmatprep.subr.mxu0 0.0
        %1392 = vmatpush1.msra.mxu0 0.0
        %1393 = vmatprep.subr.mxu0 0.0
        %1394 = vmatpush1.msra.mxu0 0.0
        %1395 = vmatprep.subr.mxu0 0.0
        %1396 = vmatpush1.msra.mxu0 0.0
        %1397 = vmatprep.subr.mxu0 0.0
        %1398 = vmatpush1.msra.mxu0 0.0
        %1399 = vmatprep.subr.mxu0 0.0
        %1400 = vmatpush1.msra.mxu0 0.0
        %1401 = vmatprep.subr.mxu0 0.0
        %1402 = vmatpush1.msra.mxu0 0.0
        %1403 = vmatprep.subr.mxu0 0.0
        %1404 = vmatpush1.msra.mxu0 0.0
        %1405 = vmatprep.subr.mxu0 0.0
        %1406 = vmatpush1.msra.mxu0 0.0
        %1407 = vmatprep.subr.mxu0 0.0
        %1408 = vmatpush1.msra.mxu0 0.0
        %1409 = vmatprep.subr.mxu0 0.0
        %1410 = vmatpush1.msra.mxu0 0.0
        %1411 = vmatprep.subr.mxu0 0.0
        %1412 = vmatpush1.msra.mxu0 0.0
        %1413 = vmatprep.subr.mxu0 0.0
        %1414 = vmatpush1.msra.mxu0 0.0
        %1415 = vmatprep.subr.mxu0 0.0
        %1416 = vmatpush1.msra.mxu0 0.0
        %1417 = vmatprep.subr.mxu0 0.0
        %1418 = vmatpush1.msra.mxu0 0.0
        %1419 = vmatprep.subr.mxu0 0.0
        %1420 = vmatpush1.msra.mxu0 0.0
        %1421 = vmatprep.mubr.f32.mxu0 0.0
        %1422 = vmatmul.mubr.f32.gmra.mrb[0].mxu0 %v1355
        %v1423 = vpop.f32.mrb[0].mxu0
        %v1424 = vadd.f32 %v1353, %v1423
        %v1425 = vpop.f32.mrb[0].mxu0
        %1426 = vdwg.mxu0
        %v1428 = vrot.slane %v1346, 7
        %1429 = vrot.lane.b32.xlu0 %v1428, 96
        %v1430 = vpop.permute.xlu0 %1429
        %v1432 = vsel %vm1053, %v1341, %v1430
        %1434 = vrot.lane.b32.xlu0 %v1341, 112
        %v1435 = vpop.permute.xlu0 %1434
        %1437 = vrot.lane.b32.xlu0 %v1428, 80
        %v1438 = vpop.permute.xlu0 %1437
        %v1440 = vsel %vm1053, %v1435, %v1438
        %1441 = vrot.lane.b32.xlu0 %v1341, 96
        %v1442 = vpop.permute.xlu0 %1441
        %1444 = vrot.lane.b32.xlu0 %v1428, 64
        %v1445 = vpop.permute.xlu0 %1444
        %v1447 = vsel %vm1053, %v1442, %v1445
        %v1448 = vadd.f32 %v1432, %v1424
        %v1449 = vxor.u32 %v1448, 2147483648
        %v1450 = vmul.f32 %v1449, 1.442695
        %v1451 = vpow.pop %v1450
        %v1452 = vadd.f32 %v1451, 1.0
        %v1453 = vrcp.pop %v1452
        %v1454 = vmul.f32 1.0, %v1453
        %1456 = vrot.lane.b32.xlu0 %v1424, 96
        %v1457 = vpop.permute.xlu0 %1456
        %v1459 = vadd.f32 %v1440, %v1457
        %v1460 = vxor.u32 %v1459, 2147483648
        %v1461 = vmul.f32 %v1460, 1.442695
        %v1462 = vpow.pop %v1461
        %v1463 = vadd.f32 %v1462, 1.0
        %v1464 = vrcp.pop %v1463
        %v1465 = vmul.f32 1.0, %v1464
        %1466 = vrot.lane.b32.xlu0 %v1424, 64
        %v1467 = vpop.permute.xlu0 %1466
        %v1469 = vmul.f32 %v1454, %v1467
        %v1470 = vadd.f32 %v1447, %v1469
        %v1471 = vtanh.pop %v1470
        %v1472 = vsub.f32 1.0, %v1465
        %v1473 = vmul.f32 %v1472, %v1471
        %v1474 = vmul.f32 %v1465, 0.0
        %v1475 = vadd.f32 %v1473, %v1474
        %v1477 = vsel %vm1267, %v1475, 0
        %1479 = vmatprep.subr.mxu0 0.0
        %1480 = vmatpush1.msra.mxu0 %v1349
        %1481 = vmatprep.subr.mxu0 0.0
        %1482 = vmatpush1.msra.mxu0 %v1350
        %1483 = vmatprep.subr.mxu0 0.0
        %1484 = vmatpush1.msra.mxu0 %v1351
        %1485 = vmatprep.subr.mxu0 0.0
        %1486 = vmatpush1.msra.mxu0 %v1352
        %1487 = vmatprep.subr.mxu0 0.0
        %1488 = vmatpush1.msra.mxu0 0.0
        %1489 = vmatprep.subr.mxu0 0.0
        %1490 = vmatpush1.msra.mxu0 0.0
        %1491 = vmatprep.subr.mxu0 0.0
        %1492 = vmatpush1.msra.mxu0 0.0
        %1493 = vmatprep.subr.mxu0 0.0
        %1494 = vmatpush1.msra.mxu0 0.0
        %1495 = vmatprep.subr.mxu0 0.0
        %1496 = vmatpush1.msra.mxu0 0.0
        %1497 = vmatprep.subr.mxu0 0.0
        %1498 = vmatpush1.msra.mxu0 0.0
        %1499 = vmatprep.subr.mxu0 0.0
        %1500 = vmatpush1.msra.mxu0 0.0
        %1501 = vmatprep.subr.mxu0 0.0
        %1502 = vmatpush1.msra.mxu0 0.0
        %1503 = vmatprep.subr.mxu0 0.0
        %1504 = vmatpush1.msra.mxu0 0.0
        %1505 = vmatprep.subr.mxu0 0.0
        %1506 = vmatpush1.msra.mxu0 0.0
        %1507 = vmatprep.subr.mxu0 0.0
        %1508 = vmatpush1.msra.mxu0 0.0
        %1509 = vmatprep.subr.mxu0 0.0
        %1510 = vmatpush1.msra.mxu0 0.0
        %1511 = vmatprep.subr.mxu0 0.0
        %1512 = vmatpush1.msra.mxu0 0.0
        %1513 = vmatprep.subr.mxu0 0.0
        %1514 = vmatpush1.msra.mxu0 0.0
        %1515 = vmatprep.subr.mxu0 0.0
        %1516 = vmatpush1.msra.mxu0 0.0
        %1517 = vmatprep.subr.mxu0 0.0
        %1518 = vmatpush1.msra.mxu0 0.0
        %1519 = vmatprep.subr.mxu0 0.0
        %1520 = vmatpush1.msra.mxu0 0.0
        %1521 = vmatprep.subr.mxu0 0.0
        %1522 = vmatpush1.msra.mxu0 0.0
        %1523 = vmatprep.subr.mxu0 0.0
        %1524 = vmatpush1.msra.mxu0 0.0
        %1525 = vmatprep.subr.mxu0 0.0
        %1526 = vmatpush1.msra.mxu0 0.0
        %1527 = vmatprep.subr.mxu0 0.0
        %1528 = vmatpush1.msra.mxu0 0.0
        %1529 = vmatprep.subr.mxu0 0.0
        %1530 = vmatpush1.msra.mxu0 0.0
        %1531 = vmatprep.subr.mxu0 0.0
        %1532 = vmatpush1.msra.mxu0 0.0
        %1533 = vmatprep.subr.mxu0 0.0
        %1534 = vmatpush1.msra.mxu0 0.0
        %1535 = vmatprep.subr.mxu0 0.0
        %1536 = vmatpush1.msra.mxu0 0.0
        %1537 = vmatprep.subr.mxu0 0.0
        %1538 = vmatpush1.msra.mxu0 0.0
        %1539 = vmatprep.subr.mxu0 0.0
        %1540 = vmatpush1.msra.mxu0 0.0
        %1541 = vmatprep.subr.mxu0 0.0
        %1542 = vmatpush1.msra.mxu0 0.0
        %1543 = vmatprep.mubr.f32.mxu0 0.0
        %1544 = vmatmul.mubr.f32.gmra.mrb[0].mxu0 %v1477
        %v1545 = vpop.f32.mrb[0].mxu0
        %v1546 = vadd.f32 %v1353, %v1545
        %v1547 = vpop.f32.mrb[0].mxu0
        %1548 = vdwg.mxu0
        %v1549 = vrot.slane %v1346, 5
        %1550 = vrot.lane.b32.xlu0 %v1549, 96
        %v1551 = vpop.permute.xlu0 %1550
        %v1553 = vsel %vm1053, %v1341, %v1551
        %1554 = vrot.lane.b32.xlu0 %v1549, 80
        %v1555 = vpop.permute.xlu0 %1554
        %v1557 = vsel %vm1053, %v1435, %v1555
        %1558 = vrot.lane.b32.xlu0 %v1549, 64
        %v1559 = vpop.permute.xlu0 %1558
        %v1561 = vsel %vm1053, %v1442, %v1559
        %v1563 = vrot.slane %v1546, 7
        %v1565 = vadd.f32 %v1553, %v1563
        %v1566 = vxor.u32 %v1565, 2147483648
        %v1567 = vmul.f32 %v1566, 1.442695
        %v1568 = vpow.pop %v1567
        %v1569 = vadd.f32 %v1568, 1.0
        %v1570 = vrcp.pop %v1569
        %v1571 = vmul.f32 1.0, %v1570
        %1572 = vrot.lane.b32.xlu0 %v1563, 96
        %v1573 = vpop.permute.xlu0 %1572
        %v1575 = vadd.f32 %v1557, %v1573
        %v1576 = vxor.u32 %v1575, 2147483648
        %v1577 = vmul.f32 %v1576, 1.442695
        %v1578 = vpow.pop %v1577
        %v1579 = vadd.f32 %v1578, 1.0
        %v1580 = vrcp.pop %v1579
        %v1581 = vmul.f32 1.0, %v1580
        %1582 = vrot.lane.b32.xlu0 %v1563, 64
        %v1583 = vpop.permute.xlu0 %1582
        %v1585 = vmul.f32 %v1571, %v1583
        %v1586 = vadd.f32 %v1561, %v1585
        %v1587 = vtanh.pop %v1586
        %v1588 = vsub.f32 1.0, %v1581
        %v1589 = vmul.f32 %v1588, %v1587
        %v1590 = vrot.slane %v1475, 7
        %v1592 = vmul.f32 %v1581, %v1590
        %v1593 = vadd.f32 %v1589, %v1592
        %v1595 = vrot.slane %v1593, 1
        %v1596 = vsel %vm1267, %v1595, 0
        %1598 = vmatprep.subr.mxu0 0.0
        %1599 = vmatpush1.msra.mxu0 %v1349
        %1600 = vmatprep.subr.mxu0 0.0
        %1601 = vmatpush1.msra.mxu0 %v1350
        %1602 = vmatprep.subr.mxu0 0.0
        %1603 = vmatpush1.msra.mxu0 %v1351
        %1604 = vmatprep.subr.mxu0 0.0
        %1605 = vmatpush1.msra.mxu0 %v1352
        %1606 = vmatprep.subr.mxu0 0.0
        %1607 = vmatpush1.msra.mxu0 0.0
        %1608 = vmatprep.subr.mxu0 0.0
        %1609 = vmatpush1.msra.mxu0 0.0
        %1610 = vmatprep.subr.mxu0 0.0
        %1611 = vmatpush1.msra.mxu0 0.0
        %1612 = vmatprep.subr.mxu0 0.0
        %1613 = vmatpush1.msra.mxu0 0.0
        %1614 = vmatprep.subr.mxu0 0.0
        %1615 = vmatpush1.msra.mxu0 0.0
        %1616 = vmatprep.subr.mxu0 0.0
        %1617 = vmatpush1.msra.mxu0 0.0
        %1618 = vmatprep.subr.mxu0 0.0
        %1619 = vmatpush1.msra.mxu0 0.0
        %1620 = vmatprep.subr.mxu0 0.0
        %1621 = vmatpush1.msra.mxu0 0.0
        %1622 = vmatprep.subr.mxu0 0.0
        %1623 = vmatpush1.msra.mxu0 0.0
        %1624 = vmatprep.subr.mxu0 0.0
        %1625 = vmatpush1.msra.mxu0 0.0
        %1626 = vmatprep.subr.mxu0 0.0
        %1627 = vmatpush1.msra.mxu0 0.0
        %1628 = vmatprep.subr.mxu0 0.0
        %1629 = vmatpush1.msra.mxu0 0.0
        %1630 = vmatprep.subr.mxu0 0.0
        %1631 = vmatpush1.msra.mxu0 0.0
        %1632 = vmatprep.subr.mxu0 0.0
        %1633 = vmatpush1.msra.mxu0 0.0
        %1634 = vmatprep.subr.mxu0 0.0
        %1635 = vmatpush1.msra.mxu0 0.0
        %1636 = vmatprep.subr.mxu0 0.0
        %1637 = vmatpush1.msra.mxu0 0.0
        %1638 = vmatprep.subr.mxu0 0.0
        %1639 = vmatpush1.msra.mxu0 0.0
        %1640 = vmatprep.subr.mxu0 0.0
        %1641 = vmatpush1.msra.mxu0 0.0
        %1642 = vmatprep.subr.mxu0 0.0
        %1643 = vmatpush1.msra.mxu0 0.0
        %1644 = vmatprep.subr.mxu0 0.0
        %1645 = vmatpush1.msra.mxu0 0.0
        %1646 = vmatprep.subr.mxu0 0.0
        %1647 = vmatpush1.msra.mxu0 0.0
        %1648 = vmatprep.subr.mxu0 0.0
        %1649 = vmatpush1.msra.mxu0 0.0
        %1650 = vmatprep.subr.mxu0 0.0
        %1651 = vmatpush1.msra.mxu0 0.0
        %1652 = vmatprep.subr.mxu0 0.0
        %1653 = vmatpush1.msra.mxu0 0.0
        %1654 = vmatprep.subr.mxu0 0.0
        %1655 = vmatpush1.msra.mxu0 0.0
        %1656 = vmatprep.subr.mxu0 0.0
        %1657 = vmatpush1.msra.mxu0 0.0
        %1658 = vmatprep.subr.mxu0 0.0
        %1659 = vmatpush1.msra.mxu0 0.0
        %1660 = vmatprep.subr.mxu0 0.0
        %1661 = vmatpush1.msra.mxu0 0.0
        %1662 = vmatprep.mubr.f32.mxu0 0.0
        %1663 = vmatmul.mubr.f32.gmra.mrb[0].mxu0 %v1596
        %v1664 = vpop.f32.mrb[0].mxu0
        %v1665 = vadd.f32 %v1353, %v1664
        %v1666 = vpop.f32.mrb[0].mxu0
        %1667 = vdwg.mxu0
        %v1668 = vrot.slane %v1346, 3
        %1669 = vrot.lane.b32.xlu0 %v1668, 96
        %v1670 = vpop.permute.xlu0 %1669
        %v1672 = vsel %vm1053, %v1341, %v1670
        %1673 = vrot.lane.b32.xlu0 %v1668, 80
        %v1674 = vpop.permute.xlu0 %1673
        %v1676 = vsel %vm1053, %v1435, %v1674
        %1677 = vrot.lane.b32.xlu0 %v1668, 64
        %v1678 = vpop.permute.xlu0 %1677
        %v1680 = vsel %vm1053, %v1442, %v1678
        %v1682 = vrot.slane %v1665, 6
        %v1684 = vadd.f32 %v1672, %v1682
        %v1685 = vxor.u32 %v1684, 2147483648
        %v1686 = vmul.f32 %v1685, 1.442695
        %v1687 = vpow.pop %v1686
        %v1688 = vadd.f32 %v1687, 1.0
        %v1689 = vrcp.pop %v1688
        %v1690 = vmul.f32 1.0, %v1689
        %1691 = vrot.lane.b32.xlu0 %v1682, 96
        %v1692 = vpop.permute.xlu0 %1691
        %v1694 = vadd.f32 %v1676, %v1692
        %v1695 = vxor.u32 %v1694, 2147483648
        %v1696 = vmul.f32 %v1695, 1.442695
        %v1697 = vpow.pop %v1696
        %v1698 = vadd.f32 %v1697, 1.0
        %v1699 = vrcp.pop %v1698
        %v1700 = vmul.f32 1.0, %v1699
        %1701 = vrot.lane.b32.xlu0 %v1682, 64
        %v1702 = vpop.permute.xlu0 %1701
        %v1704 = vmul.f32 %v1690, %v1702
        %v1705 = vadd.f32 %v1680, %v1704
        %v1706 = vtanh.pop %v1705
        %v1707 = vsub.f32 1.0, %v1700
        %v1708 = vmul.f32 %v1707, %v1706
        %v1709 = vrot.slane %v1593, 7
        %v1711 = vmul.f32 %v1700, %v1709
        %v1712 = vadd.f32 %v1708, %v1711
        %v1714 = vrot.slane %v1712, 2
        %v1715 = vsel %vm1267, %v1714, 0
        %1717 = vmatprep.subr.mxu0 0.0
        %1718 = vmatpush1.msra.mxu0 %v1349
        %1719 = vmatprep.subr.mxu0 0.0
        %1720 = vmatpush1.msra.mxu0 %v1350
        %1721 = vmatprep.subr.mxu0 0.0
        %1722 = vmatpush1.msra.mxu0 %v1351
        %1723 = vmatprep.subr.mxu0 0.0
        %1724 = vmatpush1.msra.mxu0 %v1352
        %1725 = vmatprep.subr.mxu0 0.0
        %1726 = vmatpush1.msra.mxu0 0.0
        %1727 = vmatprep.subr.mxu0 0.0
        %1728 = vmatpush1.msra.mxu0 0.0
        %1729 = vmatprep.subr.mxu0 0.0
        %1730 = vmatpush1.msra.mxu0 0.0
        %1731 = vmatprep.subr.mxu0 0.0
        %1732 = vmatpush1.msra.mxu0 0.0
        %1733 = vmatprep.subr.mxu0 0.0
        %1734 = vmatpush1.msra.mxu0 0.0
        %1735 = vmatprep.subr.mxu0 0.0
        %1736 = vmatpush1.msra.mxu0 0.0
        %1737 = vmatprep.subr.mxu0 0.0
        %1738 = vmatpush1.msra.mxu0 0.0
        %1739 = vmatprep.subr.mxu0 0.0
        %1740 = vmatpush1.msra.mxu0 0.0
        %1741 = vmatprep.subr.mxu0 0.0
        %1742 = vmatpush1.msra.mxu0 0.0
        %1743 = vmatprep.subr.mxu0 0.0
        %1744 = vmatpush1.msra.mxu0 0.0
        %1745 = vmatprep.subr.mxu0 0.0
        %1746 = vmatpush1.msra.mxu0 0.0
        %1747 = vmatprep.subr.mxu0 0.0
        %1748 = vmatpush1.msra.mxu0 0.0
        %1749 = vmatprep.subr.mxu0 0.0
        %1750 = vmatpush1.msra.mxu0 0.0
        %1751 = vmatprep.subr.mxu0 0.0
        %1752 = vmatpush1.msra.mxu0 0.0
        %1753 = vmatprep.subr.mxu0 0.0
        %1754 = vmatpush1.msra.mxu0 0.0
        %1755 = vmatprep.subr.mxu0 0.0
        %1756 = vmatpush1.msra.mxu0 0.0
        %1757 = vmatprep.subr.mxu0 0.0
        %1758 = vmatpush1.msra.mxu0 0.0
        %1759 = vmatprep.subr.mxu0 0.0
        %1760 = vmatpush1.msra.mxu0 0.0
        %1761 = vmatprep.subr.mxu0 0.0
        %1762 = vmatpush1.msra.mxu0 0.0
        %1763 = vmatprep.subr.mxu0 0.0
        %1764 = vmatpush1.msra.mxu0 0.0
        %1765 = vmatprep.subr.mxu0 0.0
        %1766 = vmatpush1.msra.mxu0 0.0
        %1767 = vmatprep.subr.mxu0 0.0
        %1768 = vmatpush1.msra.mxu0 0.0
        %1769 = vmatprep.subr.mxu0 0.0
        %1770 = vmatpush1.msra.mxu0 0.0
        %1771 = vmatprep.subr.mxu0 0.0
        %1772 = vmatpush1.msra.mxu0 0.0
        %1773 = vmatprep.subr.mxu0 0.0
        %1774 = vmatpush1.msra.mxu0 0.0
        %1775 = vmatprep.subr.mxu0 0.0
        %1776 = vmatpush1.msra.mxu0 0.0
        %1777 = vmatprep.subr.mxu0 0.0
        %1778 = vmatpush1.msra.mxu0 0.0
        %1779 = vmatprep.subr.mxu0 0.0
        %1780 = vmatpush1.msra.mxu0 0.0
        %1781 = vmatprep.mubr.f32.mxu0 0.0
        %1782 = vmatmul.mubr.f32.gmra.mrb[0].mxu0 %v1715
        %v1783 = vpop.f32.mrb[0].mxu0
        %v1784 = vadd.f32 %v1353, %v1783
        %v1785 = vpop.f32.mrb[0].mxu0
        %1786 = vdwg.mxu0
        %v1787 = vrot.slane %v1346, 1
        %1788 = vrot.lane.b32.xlu0 %v1787, 96
        %v1789 = vpop.permute.xlu0 %1788
        %v1791 = vsel %vm1053, %v1341, %v1789
        %1792 = vrot.lane.b32.xlu0 %v1787, 80
        %v1793 = vpop.permute.xlu0 %1792
        %v1795 = vsel %vm1053, %v1435, %v1793
        %1796 = vrot.lane.b32.xlu0 %v1787, 64
        %v1797 = vpop.permute.xlu0 %1796
        %v1799 = vsel %vm1053, %v1442, %v1797
        %v1801 = vrot.slane %v1784, 5
        %v1803 = vadd.f32 %v1791, %v1801
        %v1804 = vxor.u32 %v1803, 2147483648
        %v1805 = vmul.f32 %v1804, 1.442695
        %v1806 = vpow.pop %v1805
        %v1807 = vadd.f32 %v1806, 1.0
        %v1808 = vrcp.pop %v1807
        %v1809 = vmul.f32 1.0, %v1808
        %1810 = vrot.lane.b32.xlu0 %v1801, 96
        %v1811 = vpop.permute.xlu0 %1810
        %v1813 = vadd.f32 %v1795, %v1811
        %v1814 = vxor.u32 %v1813, 2147483648
        %v1815 = vmul.f32 %v1814, 1.442695
        %v1816 = vpow.pop %v1815
        %v1817 = vadd.f32 %v1816, 1.0
        %v1818 = vrcp.pop %v1817
        %v1819 = vmul.f32 1.0, %v1818
        %1820 = vrot.lane.b32.xlu0 %v1801, 64
        %v1821 = vpop.permute.xlu0 %1820
        %v1823 = vmul.f32 %v1809, %v1821
        %v1824 = vadd.f32 %v1799, %v1823
        %v1825 = vtanh.pop %v1824
        %v1826 = vsub.f32 1.0, %v1819
        %v1827 = vmul.f32 %v1826, %v1825
        %v1828 = vrot.slane %v1712, 7
        %v1830 = vmul.f32 %v1819, %v1828
        %v1831 = vadd.f32 %v1827, %v1830
        %v1833 = vrot.slane %v1831, 3
        %v1834 = vsel %vm1267, %v1833, 0
        %1836 = vmatprep.subr.mxu0 0.0
        %1837 = vmatpush1.msra.mxu0 %v1349
        %1838 = vmatprep.subr.mxu0 0.0
        %1839 = vmatpush1.msra.mxu0 %v1350
        %1840 = vmatprep.subr.mxu0 0.0
        %1841 = vmatpush1.msra.mxu0 %v1351
        %1842 = vmatprep.subr.mxu0 0.0
        %1843 = vmatpush1.msra.mxu0 %v1352
        %1844 = vmatprep.subr.mxu0 0.0
        %1845 = vmatpush1.msra.mxu0 0.0
        %1846 = vmatprep.subr.mxu0 0.0
        %1847 = vmatpush1.msra.mxu0 0.0
        %1848 = vmatprep.subr.mxu0 0.0
        %1849 = vmatpush1.msra.mxu0 0.0
        %1850 = vmatprep.subr.mxu0 0.0
        %1851 = vmatpush1.msra.mxu0 0.0
        %1852 = vmatprep.subr.mxu0 0.0
        %1853 = vmatpush1.msra.mxu0 0.0
        %1854 = vmatprep.subr.mxu0 0.0
        %1855 = vmatpush1.msra.mxu0 0.0
        %1856 = vmatprep.subr.mxu0 0.0
        %1857 = vmatpush1.msra.mxu0 0.0
        %1858 = vmatprep.subr.mxu0 0.0
        %1859 = vmatpush1.msra.mxu0 0.0
        %1860 = vmatprep.subr.mxu0 0.0
        %1861 = vmatpush1.msra.mxu0 0.0
        %1862 = vmatprep.subr.mxu0 0.0
        %1863 = vmatpush1.msra.mxu0 0.0
        %1864 = vmatprep.subr.mxu0 0.0
        %1865 = vmatpush1.msra.mxu0 0.0
        %1866 = vmatprep.subr.mxu0 0.0
        %1867 = vmatpush1.msra.mxu0 0.0
        %1868 = vmatprep.subr.mxu0 0.0
        %1869 = vmatpush1.msra.mxu0 0.0
        %1870 = vmatprep.subr.mxu0 0.0
        %1871 = vmatpush1.msra.mxu0 0.0
        %1872 = vmatprep.subr.mxu0 0.0
        %1873 = vmatpush1.msra.mxu0 0.0
        %1874 = vmatprep.subr.mxu0 0.0
        %1875 = vmatpush1.msra.mxu0 0.0
        %1876 = vmatprep.subr.mxu0 0.0
        %1877 = vmatpush1.msra.mxu0 0.0
        %1878 = vmatprep.subr.mxu0 0.0
        %1879 = vmatpush1.msra.mxu0 0.0
        %1880 = vmatprep.subr.mxu0 0.0
        %1881 = vmatpush1.msra.mxu0 0.0
        %1882 = vmatprep.subr.mxu0 0.0
        %1883 = vmatpush1.msra.mxu0 0.0
        %1884 = vmatprep.subr.mxu0 0.0
        %1885 = vmatpush1.msra.mxu0 0.0
        %1886 = vmatprep.subr.mxu0 0.0
        %1887 = vmatpush1.msra.mxu0 0.0
        %1888 = vmatprep.subr.mxu0 0.0
        %1889 = vmatpush1.msra.mxu0 0.0
        %1890 = vmatprep.subr.mxu0 0.0
        %1891 = vmatpush1.msra.mxu0 0.0
        %1892 = vmatprep.subr.mxu0 0.0
        %1893 = vmatpush1.msra.mxu0 0.0
        %1894 = vmatprep.subr.mxu0 0.0
        %1895 = vmatpush1.msra.mxu0 0.0
        %1896 = vmatprep.subr.mxu0 0.0
        %1897 = vmatpush1.msra.mxu0 0.0
        %1898 = vmatprep.subr.mxu0 0.0
        %1899 = vmatpush1.msra.mxu0 0.0
        %1900 = vmatprep.mubr.f32.mxu0 0.0
        %1901 = vmatmul.mubr.f32.gmra.mrb[0].mxu0 %v1834
        %v1902 = vpop.f32.mrb[0].mxu0
        %v1903 = vadd.f32 %v1353, %v1902
        %v1904 = vpop.f32.mrb[0].mxu0
        %1905 = vdwg.mxu0
        %v1907 = vrot.slane %v1903, 4
        %v1909 = vadd.f32 %v1432, %v1907
        %v1910 = vxor.u32 %v1909, 2147483648
        %v1911 = vmul.f32 %v1910, 1.442695
        %v1912 = vpow.pop %v1911
        %v1913 = vadd.f32 %v1912, 1.0
        %v1914 = vrcp.pop %v1913
        %v1915 = vmul.f32 1.0, %v1914
        %1916 = vrot.lane.b32.xlu0 %v1907, 96
        %v1917 = vpop.permute.xlu0 %1916
        %v1919 = vadd.f32 %v1440, %v1917
        %v1920 = vxor.u32 %v1919, 2147483648
        %v1921 = vmul.f32 %v1920, 1.442695
        %v1922 = vpow.pop %v1921
        %v1923 = vadd.f32 %v1922, 1.0
        %v1924 = vrcp.pop %v1923
        %v1925 = vmul.f32 1.0, %v1924
        %1926 = vrot.lane.b32.xlu0 %v1907, 64
        %v1927 = vpop.permute.xlu0 %1926
        %v1929 = vmul.f32 %v1915, %v1927
        %v1930 = vadd.f32 %v1447, %v1929
        %v1931 = vtanh.pop %v1930
        %v1932 = vsub.f32 1.0, %v1925
        %v1933 = vmul.f32 %v1932, %v1931
        %v1934 = vrot.slane %v1831, 7
        %v1936 = vmul.f32 %v1925, %v1934
        %v1937 = vadd.f32 %v1933, %v1936
        %v1939 = vrot.slane %v1937, 4
        %v1940 = vsel %vm1267, %v1939, 0
        %1942 = vmatprep.subr.mxu0 0.0
        %1943 = vmatpush1.msra.mxu0 %v1349
        %1944 = vmatprep.subr.mxu0 0.0
        %1945 = vmatpush1.msra.mxu0 %v1350
        %1946 = vmatprep.subr.mxu0 0.0
        %1947 = vmatpush1.msra.mxu0 %v1351
        %1948 = vmatprep.subr.mxu0 0.0
        %1949 = vmatpush1.msra.mxu0 %v1352
        %1950 = vmatprep.subr.mxu0 0.0
        %1951 = vmatpush1.msra.mxu0 0.0
        %1952 = vmatprep.subr.mxu0 0.0
        %1953 = vmatpush1.msra.mxu0 0.0
        %1954 = vmatprep.subr.mxu0 0.0
        %1955 = vmatpush1.msra.mxu0 0.0
        %1956 = vmatprep.subr.mxu0 0.0
        %1957 = vmatpush1.msra.mxu0 0.0
        %1958 = vmatprep.subr.mxu0 0.0
        %1959 = vmatpush1.msra.mxu0 0.0
        %1960 = vmatprep.subr.mxu0 0.0
        %1961 = vmatpush1.msra.mxu0 0.0
        %1962 = vmatprep.subr.mxu0 0.0
        %1963 = vmatpush1.msra.mxu0 0.0
        %1964 = vmatprep.subr.mxu0 0.0
        %1965 = vmatpush1.msra.mxu0 0.0
        %1966 = vmatprep.subr.mxu0 0.0
        %1967 = vmatpush1.msra.mxu0 0.0
        %1968 = vmatprep.subr.mxu0 0.0
        %1969 = vmatpush1.msra.mxu0 0.0
        %1970 = vmatprep.subr.mxu0 0.0
        %1971 = vmatpush1.msra.mxu0 0.0
        %1972 = vmatprep.subr.mxu0 0.0
        %1973 = vmatpush1.msra.mxu0 0.0
        %1974 = vmatprep.subr.mxu0 0.0
        %1975 = vmatpush1.msra.mxu0 0.0
        %1976 = vmatprep.subr.mxu0 0.0
        %1977 = vmatpush1.msra.mxu0 0.0
        %1978 = vmatprep.subr.mxu0 0.0
        %1979 = vmatpush1.msra.mxu0 0.0
        %1980 = vmatprep.subr.mxu0 0.0
        %1981 = vmatpush1.msra.mxu0 0.0
        %1982 = vmatprep.subr.mxu0 0.0
        %1983 = vmatpush1.msra.mxu0 0.0
        %1984 = vmatprep.subr.mxu0 0.0
        %1985 = vmatpush1.msra.mxu0 0.0
        %1986 = vmatprep.subr.mxu0 0.0
        %1987 = vmatpush1.msra.mxu0 0.0
        %1988 = vmatprep.subr.mxu0 0.0
        %1989 = vmatpush1.msra.mxu0 0.0
        %1990 = vmatprep.subr.mxu0 0.0
        %1991 = vmatpush1.msra.mxu0 0.0
        %1992 = vmatprep.subr.mxu0 0.0
        %1993 = vmatpush1.msra.mxu0 0.0
        %1994 = vmatprep.subr.mxu0 0.0
        %1995 = vmatpush1.msra.mxu0 0.0
        %1996 = vmatprep.subr.mxu0 0.0
        %1997 = vmatpush1.msra.mxu0 0.0
        %1998 = vmatprep.subr.mxu0 0.0
        %1999 = vmatpush1.msra.mxu0 0.0
        %2000 = vmatprep.subr.mxu0 0.0
        %2001 = vmatpush1.msra.mxu0 0.0
        %2002 = vmatprep.subr.mxu0 0.0
        %2003 = vmatpush1.msra.mxu0 0.0
        %2004 = vmatprep.subr.mxu0 0.0
        %2005 = vmatpush1.msra.mxu0 0.0
        %2006 = vmatprep.mubr.f32.mxu0 0.0
        %2007 = vmatmul.mubr.f32.gmra.mrb[0].mxu0 %v1940
        %v2008 = vpop.f32.mrb[0].mxu0
        %v2009 = vadd.f32 %v1353, %v2008
        %v2010 = vpop.f32.mrb[0].mxu0
        %2011 = vdwg.mxu0
        %v2013 = vrot.slane %v2009, 3
        %v2015 = vadd.f32 %v1553, %v2013
        %v2016 = vxor.u32 %v2015, 2147483648
        %v2017 = vmul.f32 %v2016, 1.442695
        %v2018 = vpow.pop %v2017
        %v2019 = vadd.f32 %v2018, 1.0
        %v2020 = vrcp.pop %v2019
        %v2021 = vmul.f32 1.0, %v2020
        %2022 = vrot.lane.b32.xlu0 %v2013, 96
        %v2023 = vpop.permute.xlu0 %2022
        %v2025 = vadd.f32 %v1557, %v2023
        %v2026 = vxor.u32 %v2025, 2147483648
        %v2027 = vmul.f32 %v2026, 1.442695
        %v2028 = vpow.pop %v2027
        %v2029 = vadd.f32 %v2028, 1.0
        %v2030 = vrcp.pop %v2029
        %v2031 = vmul.f32 1.0, %v2030
        %2032 = vrot.lane.b32.xlu0 %v2013, 64
        %v2033 = vpop.permute.xlu0 %2032
        %v2035 = vmul.f32 %v2021, %v2033
        %v2036 = vadd.f32 %v1561, %v2035
        %v2037 = vtanh.pop %v2036
        %v2038 = vsub.f32 1.0, %v2031
        %v2039 = vmul.f32 %v2038, %v2037
        %v2040 = vrot.slane %v1937, 7
        %v2042 = vmul.f32 %v2031, %v2040
        %v2043 = vadd.f32 %v2039, %v2042
        %v2045 = vrot.slane %v2043, 5
        %v2046 = vsel %vm1267, %v2045, 0
        %2048 = vmatprep.subr.mxu0 0.0
        %2049 = vmatpush1.msra.mxu0 %v1349
        %2050 = vmatprep.subr.mxu0 0.0
        %2051 = vmatpush1.msra.mxu0 %v1350
        %2052 = vmatprep.subr.mxu0 0.0
        %2053 = vmatpush1.msra.mxu0 %v1351
        %2054 = vmatprep.subr.mxu0 0.0
        %2055 = vmatpush1.msra.mxu0 %v1352
        %2056 = vmatprep.subr.mxu0 0.0
        %2057 = vmatpush1.msra.mxu0 0.0
        %2058 = vmatprep.subr.mxu0 0.0
        %2059 = vmatpush1.msra.mxu0 0.0
        %2060 = vmatprep.subr.mxu0 0.0
        %2061 = vmatpush1.msra.mxu0 0.0
        %2062 = vmatprep.subr.mxu0 0.0
        %2063 = vmatpush1.msra.mxu0 0.0
        %2064 = vmatprep.subr.mxu0 0.0
        %2065 = vmatpush1.msra.mxu0 0.0
        %2066 = vmatprep.subr.mxu0 0.0
        %2067 = vmatpush1.msra.mxu0 0.0
        %2068 = vmatprep.subr.mxu0 0.0
        %2069 = vmatpush1.msra.mxu0 0.0
        %2070 = vmatprep.subr.mxu0 0.0
        %2071 = vmatpush1.msra.mxu0 0.0
        %2072 = vmatprep.subr.mxu0 0.0
        %2073 = vmatpush1.msra.mxu0 0.0
        %2074 = vmatprep.subr.mxu0 0.0
        %2075 = vmatpush1.msra.mxu0 0.0
        %2076 = vmatprep.subr.mxu0 0.0
        %2077 = vmatpush1.msra.mxu0 0.0
        %2078 = vmatprep.subr.mxu0 0.0
        %2079 = vmatpush1.msra.mxu0 0.0
        %2080 = vmatprep.subr.mxu0 0.0
        %2081 = vmatpush1.msra.mxu0 0.0
        %2082 = vmatprep.subr.mxu0 0.0
        %2083 = vmatpush1.msra.mxu0 0.0
        %2084 = vmatprep.subr.mxu0 0.0
        %2085 = vmatpush1.msra.mxu0 0.0
        %2086 = vmatprep.subr.mxu0 0.0
        %2087 = vmatpush1.msra.mxu0 0.0
        %2088 = vmatprep.subr.mxu0 0.0
        %2089 = vmatpush1.msra.mxu0 0.0
        %2090 = vmatprep.subr.mxu0 0.0
        %2091 = vmatpush1.msra.mxu0 0.0
        %2092 = vmatprep.subr.mxu0 0.0
        %2093 = vmatpush1.msra.mxu0 0.0
        %2094 = vmatprep.subr.mxu0 0.0
        %2095 = vmatpush1.msra.mxu0 0.0
        %2096 = vmatprep.subr.mxu0 0.0
        %2097 = vmatpush1.msra.mxu0 0.0
        %2098 = vmatprep.subr.mxu0 0.0
        %2099 = vmatpush1.msra.mxu0 0.0
        %2100 = vmatprep.subr.mxu0 0.0
        %2101 = vmatpush1.msra.mxu0 0.0
        %2102 = vmatprep.subr.mxu0 0.0
        %2103 = vmatpush1.msra.mxu0 0.0
        %2104 = vmatprep.subr.mxu0 0.0
        %2105 = vmatpush1.msra.mxu0 0.0
        %2106 = vmatprep.subr.mxu0 0.0
        %2107 = vmatpush1.msra.mxu0 0.0
        %2108 = vmatprep.subr.mxu0 0.0
        %2109 = vmatpush1.msra.mxu0 0.0
        %2110 = vmatprep.subr.mxu0 0.0
        %2111 = vmatpush1.msra.mxu0 0.0
        %2112 = vmatprep.mubr.f32.mxu0 0.0
        %2113 = vmatmul.mubr.f32.gmra.mrb[0].mxu0 %v2046
        %v2114 = vpop.f32.mrb[0].mxu0
        %v2115 = vadd.f32 %v1353, %v2114
        %v2116 = vpop.f32.mrb[0].mxu0
        %2117 = vdwg.mxu0
        %v2119 = vrot.slane %v2115, 2
        %v2121 = vadd.f32 %v1672, %v2119
        %v2122 = vxor.u32 %v2121, 2147483648
        %v2123 = vmul.f32 %v2122, 1.442695
        %v2124 = vpow.pop %v2123
        %v2125 = vadd.f32 %v2124, 1.0
        %v2126 = vrcp.pop %v2125
        %v2127 = vmul.f32 1.0, %v2126
        %2128 = vrot.lane.b32.xlu0 %v2119, 96
        %v2129 = vpop.permute.xlu0 %2128
        %v2131 = vadd.f32 %v1676, %v2129
        %v2132 = vxor.u32 %v2131, 2147483648
        %v2133 = vmul.f32 %v2132, 1.442695
        %v2134 = vpow.pop %v2133
        %v2135 = vadd.f32 %v2134, 1.0
        %v2136 = vrcp.pop %v2135
        %v2137 = vmul.f32 1.0, %v2136
        %2138 = vrot.lane.b32.xlu0 %v2119, 64
        %v2139 = vpop.permute.xlu0 %2138
        %v2141 = vmul.f32 %v2127, %v2139
        %v2142 = vadd.f32 %v1680, %v2141
        %v2143 = vtanh.pop %v2142
        %v2144 = vsub.f32 1.0, %v2137
        %v2145 = vmul.f32 %v2144, %v2143
        %v2146 = vrot.slane %v2043, 7
        %v2148 = vmul.f32 %v2137, %v2146
        %v2149 = vadd.f32 %v2145, %v2148
        %v2151 = vrot.slane %v2149, 6
        %v2152 = vsel %vm1267, %v2151, 0
        %2154 = vmatprep.subr.mxu0 0.0
        %2155 = vmatpush1.msra.mxu0 %v1349
        %2156 = vmatprep.subr.mxu0 0.0
        %2157 = vmatpush1.msra.mxu0 %v1350
        %2158 = vmatprep.subr.mxu0 0.0
        %2159 = vmatpush1.msra.mxu0 %v1351
        %2160 = vmatprep.subr.mxu0 0.0
        %2161 = vmatpush1.msra.mxu0 %v1352
        %2162 = vmatprep.subr.mxu0 0.0
        %2163 = vmatpush1.msra.mxu0 0.0
        %2164 = vmatprep.subr.mxu0 0.0
        %2165 = vmatpush1.msra.mxu0 0.0
        %2166 = vmatprep.subr.mxu0 0.0
        %2167 = vmatpush1.msra.mxu0 0.0
        %2168 = vmatprep.subr.mxu0 0.0
        %2169 = vmatpush1.msra.mxu0 0.0
        %2170 = vmatprep.subr.mxu0 0.0
        %2171 = vmatpush1.msra.mxu0 0.0
        %2172 = vmatprep.subr.mxu0 0.0
        %2173 = vmatpush1.msra.mxu0 0.0
        %2174 = vmatprep.subr.mxu0 0.0
        %2175 = vmatpush1.msra.mxu0 0.0
        %2176 = vmatprep.subr.mxu0 0.0
        %2177 = vmatpush1.msra.mxu0 0.0
        %2178 = vmatprep.subr.mxu0 0.0
        %2179 = vmatpush1.msra.mxu0 0.0
        %2180 = vmatprep.subr.mxu0 0.0
        %2181 = vmatpush1.msra.mxu0 0.0
        %2182 = vmatprep.subr.mxu0 0.0
        %2183 = vmatpush1.msra.mxu0 0.0
        %2184 = vmatprep.subr.mxu0 0.0
        %2185 = vmatpush1.msra.mxu0 0.0
        %2186 = vmatprep.subr.mxu0 0.0
        %2187 = vmatpush1.msra.mxu0 0.0
        %2188 = vmatprep.subr.mxu0 0.0
        %2189 = vmatpush1.msra.mxu0 0.0
        %2190 = vmatprep.subr.mxu0 0.0
        %2191 = vmatpush1.msra.mxu0 0.0
        %2192 = vmatprep.subr.mxu0 0.0
        %2193 = vmatpush1.msra.mxu0 0.0
        %2194 = vmatprep.subr.mxu0 0.0
        %2195 = vmatpush1.msra.mxu0 0.0
        %2196 = vmatprep.subr.mxu0 0.0
        %2197 = vmatpush1.msra.mxu0 0.0
        %2198 = vmatprep.subr.mxu0 0.0
        %2199 = vmatpush1.msra.mxu0 0.0
        %2200 = vmatprep.subr.mxu0 0.0
        %2201 = vmatpush1.msra.mxu0 0.0
        %2202 = vmatprep.subr.mxu0 0.0
        %2203 = vmatpush1.msra.mxu0 0.0
        %2204 = vmatprep.subr.mxu0 0.0
        %2205 = vmatpush1.msra.mxu0 0.0
        %2206 = vmatprep.subr.mxu0 0.0
        %2207 = vmatpush1.msra.mxu0 0.0
        %2208 = vmatprep.subr.mxu0 0.0
        %2209 = vmatpush1.msra.mxu0 0.0
        %2210 = vmatprep.subr.mxu0 0.0
        %2211 = vmatpush1.msra.mxu0 0.0
        %2212 = vmatprep.subr.mxu0 0.0
        %2213 = vmatpush1.msra.mxu0 0.0
        %2214 = vmatprep.subr.mxu0 0.0
        %2215 = vmatpush1.msra.mxu0 0.0
        %2216 = vmatprep.subr.mxu0 0.0
        %2217 = vmatpush1.msra.mxu0 0.0
        %2218 = vmatprep.mubr.f32.mxu0 0.0
        %2219 = vmatmul.mubr.f32.gmra.mrb[0].mxu0 %v2152
        %v2220 = vpop.f32.mrb[0].mxu0
        %v2221 = vadd.f32 %v1353, %v2220
        %v2222 = vpop.f32.mrb[0].mxu0
        %2223 = vdwg.mxu0
        %v2225 = vrot.slane %v2221, 1
        %v2227 = vadd.f32 %v1791, %v2225
        %v2228 = vxor.u32 %v2227, 2147483648
        %v2229 = vmul.f32 %v2228, 1.442695
        %v2230 = vpow.pop %v2229
        %v2231 = vadd.f32 %v2230, 1.0
        %v2232 = vrcp.pop %v2231
        %v2233 = vmul.f32 1.0, %v2232
        %2234 = vrot.lane.b32.xlu0 %v2225, 96
        %v2235 = vpop.permute.xlu0 %2234
        %v2237 = vadd.f32 %v1795, %v2235
        %v2238 = vxor.u32 %v2237, 2147483648
        %v2239 = vmul.f32 %v2238, 1.442695
        %v2240 = vpow.pop %v2239
        %v2241 = vadd.f32 %v2240, 1.0
        %v2242 = vrcp.pop %v2241
        %v2243 = vmul.f32 1.0, %v2242
        %2244 = vrot.lane.b32.xlu0 %v2225, 64
        %v2245 = vpop.permute.xlu0 %2244
        %v2247 = vmul.f32 %v2233, %v2245
        %v2248 = vadd.f32 %v1799, %v2247
        %v2249 = vtanh.pop %v2248
        %v2250 = vsub.f32 1.0, %v2243
        %v2251 = vmul.f32 %v2250, %v2249
        %v2252 = vrot.slane %v2149, 7
        %v2254 = vmul.f32 %v2243, %v2252
        %v2255 = vadd.f32 %v2251, %v2254
        %v2257 = vrot.slane %v2255, 7
        %v2258 = vsel %vm1267, %v2257, 0
        %2260 = vmatprep.subr.mxu0 0.0
        %2261 = vmatpush1.msra.mxu0 %v1349
        %2262 = vmatprep.subr.mxu0 0.0
        %2263 = vmatpush1.msra.mxu0 %v1350
        %2264 = vmatprep.subr.mxu0 0.0
        %2265 = vmatpush1.msra.mxu0 %v1351
        %2266 = vmatprep.subr.mxu0 0.0
        %2267 = vmatpush1.msra.mxu0 %v1352
        %2268 = vmatprep.subr.mxu0 0.0
        %2269 = vmatpush1.msra.mxu0 0.0
        %2270 = vmatprep.subr.mxu0 0.0
        %2271 = vmatpush1.msra.mxu0 0.0
        %2272 = vmatprep.subr.mxu0 0.0
        %2273 = vmatpush1.msra.mxu0 0.0
        %2274 = vmatprep.subr.mxu0 0.0
        %2275 = vmatpush1.msra.mxu0 0.0
        %2276 = vmatprep.subr.mxu0 0.0
        %2277 = vmatpush1.msra.mxu0 0.0
        %2278 = vmatprep.subr.mxu0 0.0
        %2279 = vmatpush1.msra.mxu0 0.0
        %2280 = vmatprep.subr.mxu0 0.0
        %2281 = vmatpush1.msra.mxu0 0.0
        %2282 = vmatprep.subr.mxu0 0.0
        %2283 = vmatpush1.msra.mxu0 0.0
        %2284 = vmatprep.subr.mxu0 0.0
        %2285 = vmatpush1.msra.mxu0 0.0
        %2286 = vmatprep.subr.mxu0 0.0
        %2287 = vmatpush1.msra.mxu0 0.0
        %2288 = vmatprep.subr.mxu0 0.0
        %2289 = vmatpush1.msra.mxu0 0.0
        %2290 = vmatprep.subr.mxu0 0.0
        %2291 = vmatpush1.msra.mxu0 0.0
        %2292 = vmatprep.subr.mxu0 0.0
        %2293 = vmatpush1.msra.mxu0 0.0
        %2294 = vmatprep.subr.mxu0 0.0
        %2295 = vmatpush1.msra.mxu0 0.0
        %2296 = vmatprep.subr.mxu0 0.0
        %2297 = vmatpush1.msra.mxu0 0.0
        %2298 = vmatprep.subr.mxu0 0.0
        %2299 = vmatpush1.msra.mxu0 0.0
        %2300 = vmatprep.subr.mxu0 0.0
        %2301 = vmatpush1.msra.mxu0 0.0
        %2302 = vmatprep.subr.mxu0 0.0
        %2303 = vmatpush1.msra.mxu0 0.0
        %2304 = vmatprep.subr.mxu0 0.0
        %2305 = vmatpush1.msra.mxu0 0.0
        %2306 = vmatprep.subr.mxu0 0.0
        %2307 = vmatpush1.msra.mxu0 0.0
        %2308 = vmatprep.subr.mxu0 0.0
        %2309 = vmatpush1.msra.mxu0 0.0
        %2310 = vmatprep.subr.mxu0 0.0
        %2311 = vmatpush1.msra.mxu0 0.0
        %2312 = vmatprep.subr.mxu0 0.0
        %2313 = vmatpush1.msra.mxu0 0.0
        %2314 = vmatprep.subr.mxu0 0.0
        %2315 = vmatpush1.msra.mxu0 0.0
        %2316 = vmatprep.subr.mxu0 0.0
        %2317 = vmatpush1.msra.mxu0 0.0
        %2318 = vmatprep.subr.mxu0 0.0
        %2319 = vmatpush1.msra.mxu0 0.0
        %2320 = vmatprep.subr.mxu0 0.0
        %2321 = vmatpush1.msra.mxu0 0.0
        %2322 = vmatprep.subr.mxu0 0.0
        %2323 = vmatpush1.msra.mxu0 0.0
        %2324 = vmatprep.mubr.f32.mxu0 0.0
        %2325 = vmatmul.mubr.f32.gmra.mrb[0].mxu0 %v2258
        %v2326 = vpop.f32.mrb[0].mxu0
        %v2327 = vadd.f32 %v1353, %v2326
        %v2328 = vpop.f32.mrb[0].mxu0
        %2329 = vdwg.mxu0
        %v2330 = vrot.slane %v1341, 7
        %2331 = vrot.lane.b32.xlu0 %v2330, 96
        %v2332 = vpop.permute.xlu0 %2331
        %v2334 = vsel %vm1053, %v1346, %v2332
        %2335 = vrot.lane.b32.xlu0 %v1346, 112
        %v2336 = vpop.permute.xlu0 %2335
        %2338 = vrot.lane.b32.xlu0 %v2330, 80
        %v2339 = vpop.permute.xlu0 %2338
        %v2341 = vsel %vm1053, %v2336, %v2339
        %2342 = vrot.lane.b32.xlu0 %v1346, 96
        %v2343 = vpop.permute.xlu0 %2342
        %2345 = vrot.lane.b32.xlu0 %v2330, 64
        %v2346 = vpop.permute.xlu0 %2345
        %v2348 = vsel %vm1053, %v2343, %v2346
        %v2349 = vadd.f32 %v2334, %v2327
        %v2350 = vxor.u32 %v2349, 2147483648
        %v2351 = vmul.f32 %v2350, 1.442695
        %v2352 = vpow.pop %v2351
        %v2353 = vadd.f32 %v2352, 1.0
        %v2354 = vrcp.pop %v2353
        %v2355 = vmul.f32 1.0, %v2354
        %2357 = vrot.lane.b32.xlu0 %v2327, 96
        %v2358 = vpop.permute.xlu0 %2357
        %v2360 = vadd.f32 %v2341, %v2358
        %v2361 = vxor.u32 %v2360, 2147483648
        %v2362 = vmul.f32 %v2361, 1.442695
        %v2363 = vpow.pop %v2362
        %v2364 = vadd.f32 %v2363, 1.0
        %v2365 = vrcp.pop %v2364
        %v2366 = vmul.f32 1.0, %v2365
        %2367 = vrot.lane.b32.xlu0 %v2327, 64
        %v2368 = vpop.permute.xlu0 %2367
        %v2370 = vmul.f32 %v2355, %v2368
        %v2371 = vadd.f32 %v2348, %v2370
        %v2372 = vtanh.pop %v2371
        %v2373 = vsub.f32 1.0, %v2366
        %v2374 = vmul.f32 %v2373, %v2372
        %v2376 = vmul.f32 %v2366, %v2257
        %v2377 = vadd.f32 %v2374, %v2376
        %v2379 = vsel %vm1267, %v2377, 0
        %2381 = vmatprep.subr.mxu0 0.0
        %2382 = vmatpush1.msra.mxu0 %v1349
        %2383 = vmatprep.subr.mxu0 0.0
        %2384 = vmatpush1.msra.mxu0 %v1350
        %2385 = vmatprep.subr.mxu0 0.0
        %2386 = vmatpush1.msra.mxu0 %v1351
        %2387 = vmatprep.subr.mxu0 0.0
        %2388 = vmatpush1.msra.mxu0 %v1352
        %2389 = vmatprep.subr.mxu0 0.0
        %2390 = vmatpush1.msra.mxu0 0.0
        %2391 = vmatprep.subr.mxu0 0.0
        %2392 = vmatpush1.msra.mxu0 0.0
        %2393 = vmatprep.subr.mxu0 0.0
        %2394 = vmatpush1.msra.mxu0 0.0
        %2395 = vmatprep.subr.mxu0 0.0
        %2396 = vmatpush1.msra.mxu0 0.0
        %2397 = vmatprep.subr.mxu0 0.0
        %2398 = vmatpush1.msra.mxu0 0.0
        %2399 = vmatprep.subr.mxu0 0.0
        %2400 = vmatpush1.msra.mxu0 0.0
        %2401 = vmatprep.subr.mxu0 0.0
        %2402 = vmatpush1.msra.mxu0 0.0
        %2403 = vmatprep.subr.mxu0 0.0
        %2404 = vmatpush1.msra.mxu0 0.0
        %2405 = vmatprep.subr.mxu0 0.0
        %2406 = vmatpush1.msra.mxu0 0.0
        %2407 = vmatprep.subr.mxu0 0.0
        %2408 = vmatpush1.msra.mxu0 0.0
        %2409 = vmatprep.subr.mxu0 0.0
        %2410 = vmatpush1.msra.mxu0 0.0
        %2411 = vmatprep.subr.mxu0 0.0
        %2412 = vmatpush1.msra.mxu0 0.0
        %2413 = vmatprep.subr.mxu0 0.0
        %2414 = vmatpush1.msra.mxu0 0.0
        %2415 = vmatprep.subr.mxu0 0.0
        %2416 = vmatpush1.msra.mxu0 0.0
        %2417 = vmatprep.subr.mxu0 0.0
        %2418 = vmatpush1.msra.mxu0 0.0
        %2419 = vmatprep.subr.mxu0 0.0
        %2420 = vmatpush1.msra.mxu0 0.0
        %2421 = vmatprep.subr.mxu0 0.0
        %2422 = vmatpush1.msra.mxu0 0.0
        %2423 = vmatprep.subr.mxu0 0.0
        %2424 = vmatpush1.msra.mxu0 0.0
        %2425 = vmatprep.subr.mxu0 0.0
        %2426 = vmatpush1.msra.mxu0 0.0
        %2427 = vmatprep.subr.mxu0 0.0
        %2428 = vmatpush1.msra.mxu0 0.0
        %2429 = vmatprep.subr.mxu0 0.0
        %2430 = vmatpush1.msra.mxu0 0.0
        %2431 = vmatprep.subr.mxu0 0.0
        %2432 = vmatpush1.msra.mxu0 0.0
        %2433 = vmatprep.subr.mxu0 0.0
        %2434 = vmatpush1.msra.mxu0 0.0
        %2435 = vmatprep.subr.mxu0 0.0
        %2436 = vmatpush1.msra.mxu0 0.0
        %2437 = vmatprep.subr.mxu0 0.0
        %2438 = vmatpush1.msra.mxu0 0.0
        %2439 = vmatprep.subr.mxu0 0.0
        %2440 = vmatpush1.msra.mxu0 0.0
        %2441 = vmatprep.subr.mxu0 0.0
        %2442 = vmatpush1.msra.mxu0 0.0
        %2443 = vmatprep.subr.mxu0 0.0
        %2444 = vmatpush1.msra.mxu0 0.0
        %2445 = vmatprep.mubr.f32.mxu0 0.0
        %2446 = vmatmul.mubr.f32.gmra.mrb[0].mxu0 %v2379
        %v2447 = vpop.f32.mrb[0].mxu0
        %v2448 = vadd.f32 %v1353, %v2447
        %v2449 = vpop.f32.mrb[0].mxu0
        %2450 = vdwg.mxu0
        %v2451 = vrot.slane %v1341, 5
        %2452 = vrot.lane.b32.xlu0 %v2451, 96
        %v2453 = vpop.permute.xlu0 %2452
        %v2455 = vsel %vm1053, %v1346, %v2453
        %2456 = vrot.lane.b32.xlu0 %v2451, 80
        %v2457 = vpop.permute.xlu0 %2456
        %v2459 = vsel %vm1053, %v2336, %v2457
        %2460 = vrot.lane.b32.xlu0 %v2451, 64
        %v2461 = vpop.permute.xlu0 %2460
        %v2463 = vsel %vm1053, %v2343, %v2461
        %v2465 = vrot.slane %v2448, 7
        %v2467 = vadd.f32 %v2455, %v2465
        %v2468 = vxor.u32 %v2467, 2147483648
        %v2469 = vmul.f32 %v2468, 1.442695
        %v2470 = vpow.pop %v2469
        %v2471 = vadd.f32 %v2470, 1.0
        %v2472 = vrcp.pop %v2471
        %v2473 = vmul.f32 1.0, %v2472
        %2474 = vrot.lane.b32.xlu0 %v2465, 96
        %v2475 = vpop.permute.xlu0 %2474
        %v2477 = vadd.f32 %v2459, %v2475
        %v2478 = vxor.u32 %v2477, 2147483648
        %v2479 = vmul.f32 %v2478, 1.442695
        %v2480 = vpow.pop %v2479
        %v2481 = vadd.f32 %v2480, 1.0
        %v2482 = vrcp.pop %v2481
        %v2483 = vmul.f32 1.0, %v2482
        %2484 = vrot.lane.b32.xlu0 %v2465, 64
        %v2485 = vpop.permute.xlu0 %2484
        %v2487 = vmul.f32 %v2473, %v2485
        %v2488 = vadd.f32 %v2463, %v2487
        %v2489 = vtanh.pop %v2488
        %v2490 = vsub.f32 1.0, %v2483
        %v2491 = vmul.f32 %v2490, %v2489
        %v2492 = vrot.slane %v2377, 7
        %v2494 = vmul.f32 %v2483, %v2492
        %v2495 = vadd.f32 %v2491, %v2494
        %v2497 = vrot.slane %v2495, 1
        %v2498 = vsel %vm1267, %v2497, 0
        %2500 = vmatprep.subr.mxu0 0.0
        %2501 = vmatpush1.msra.mxu0 %v1349
        %2502 = vmatprep.subr.mxu0 0.0
        %2503 = vmatpush1.msra.mxu0 %v1350
        %2504 = vmatprep.subr.mxu0 0.0
        %2505 = vmatpush1.msra.mxu0 %v1351
        %2506 = vmatprep.subr.mxu0 0.0
        %2507 = vmatpush1.msra.mxu0 %v1352
        %2508 = vmatprep.subr.mxu0 0.0
        %2509 = vmatpush1.msra.mxu0 0.0
        %2510 = vmatprep.subr.mxu0 0.0
        %2511 = vmatpush1.msra.mxu0 0.0
        %2512 = vmatprep.subr.mxu0 0.0
        %2513 = vmatpush1.msra.mxu0 0.0
        %2514 = vmatprep.subr.mxu0 0.0
        %2515 = vmatpush1.msra.mxu0 0.0
        %2516 = vmatprep.subr.mxu0 0.0
        %2517 = vmatpush1.msra.mxu0 0.0
        %2518 = vmatprep.subr.mxu0 0.0
        %2519 = vmatpush1.msra.mxu0 0.0
        %2520 = vmatprep.subr.mxu0 0.0
        %2521 = vmatpush1.msra.mxu0 0.0
        %2522 = vmatprep.subr.mxu0 0.0
        %2523 = vmatpush1.msra.mxu0 0.0
        %2524 = vmatprep.subr.mxu0 0.0
        %2525 = vmatpush1.msra.mxu0 0.0
        %2526 = vmatprep.subr.mxu0 0.0
        %2527 = vmatpush1.msra.mxu0 0.0
        %2528 = vmatprep.subr.mxu0 0.0
        %2529 = vmatpush1.msra.mxu0 0.0
        %2530 = vmatprep.subr.mxu0 0.0
        %2531 = vmatpush1.msra.mxu0 0.0
        %2532 = vmatprep.subr.mxu0 0.0
        %2533 = vmatpush1.msra.mxu0 0.0
        %2534 = vmatprep.subr.mxu0 0.0
        %2535 = vmatpush1.msra.mxu0 0.0
        %2536 = vmatprep.subr.mxu0 0.0
        %2537 = vmatpush1.msra.mxu0 0.0
        %2538 = vmatprep.subr.mxu0 0.0
        %2539 = vmatpush1.msra.mxu0 0.0
        %2540 = vmatprep.subr.mxu0 0.0
        %2541 = vmatpush1.msra.mxu0 0.0
        %2542 = vmatprep.subr.mxu0 0.0
        %2543 = vmatpush1.msra.mxu0 0.0
        %2544 = vmatprep.subr.mxu0 0.0
        %2545 = vmatpush1.msra.mxu0 0.0
        %2546 = vmatprep.subr.mxu0 0.0
        %2547 = vmatpush1.msra.mxu0 0.0
        %2548 = vmatprep.subr.mxu0 0.0
        %2549 = vmatpush1.msra.mxu0 0.0
        %2550 = vmatprep.subr.mxu0 0.0
        %2551 = vmatpush1.msra.mxu0 0.0
        %2552 = vmatprep.subr.mxu0 0.0
        %2553 = vmatpush1.msra.mxu0 0.0
        %2554 = vmatprep.subr.mxu0 0.0
        %2555 = vmatpush1.msra.mxu0 0.0
        %2556 = vmatprep.subr.mxu0 0.0
        %2557 = vmatpush1.msra.mxu0 0.0
        %2558 = vmatprep.subr.mxu0 0.0
        %2559 = vmatpush1.msra.mxu0 0.0
        %2560 = vmatprep.subr.mxu0 0.0
        %2561 = vmatpush1.msra.mxu0 0.0
        %2562 = vmatprep.subr.mxu0 0.0
        %2563 = vmatpush1.msra.mxu0 0.0
        %2564 = vmatprep.mubr.f32.mxu0 0.0
        %2565 = vmatmul.mubr.f32.gmra.mrb[0].mxu0 %v2498
        %v2566 = vpop.f32.mrb[0].mxu0
        %v2567 = vadd.f32 %v1353, %v2566
        %v2568 = vpop.f32.mrb[0].mxu0
        %2569 = vdwg.mxu0
        %v2570 = vrot.slane %v1341, 3
        %2571 = vrot.lane.b32.xlu0 %v2570, 96
        %v2572 = vpop.permute.xlu0 %2571
        %v2574 = vsel %vm1053, %v1346, %v2572
        %2575 = vrot.lane.b32.xlu0 %v2570, 80
        %v2576 = vpop.permute.xlu0 %2575
        %v2578 = vsel %vm1053, %v2336, %v2576
        %2579 = vrot.lane.b32.xlu0 %v2570, 64
        %v2580 = vpop.permute.xlu0 %2579
        %v2582 = vsel %vm1053, %v2343, %v2580
        %v2584 = vrot.slane %v2567, 6
        %v2586 = vadd.f32 %v2574, %v2584
        %v2587 = vxor.u32 %v2586, 2147483648
        %v2588 = vmul.f32 %v2587, 1.442695
        %v2589 = vpow.pop %v2588
        %v2590 = vadd.f32 %v2589, 1.0
        %v2591 = vrcp.pop %v2590
        %v2592 = vmul.f32 1.0, %v2591
        %2593 = vrot.lane.b32.xlu0 %v2584, 96
        %v2594 = vpop.permute.xlu0 %2593
        %v2596 = vadd.f32 %v2578, %v2594
        %v2597 = vxor.u32 %v2596, 2147483648
        %v2598 = vmul.f32 %v2597, 1.442695
        %v2599 = vpow.pop %v2598
        %v2600 = vadd.f32 %v2599, 1.0
        %v2601 = vrcp.pop %v2600
        %v2602 = vmul.f32 1.0, %v2601
        %2603 = vrot.lane.b32.xlu0 %v2584, 64
        %v2604 = vpop.permute.xlu0 %2603
        %v2606 = vmul.f32 %v2592, %v2604
        %v2607 = vadd.f32 %v2582, %v2606
        %v2608 = vtanh.pop %v2607
        %v2609 = vsub.f32 1.0, %v2602
        %v2610 = vmul.f32 %v2609, %v2608
        %v2611 = vrot.slane %v2495, 7
        %v2613 = vmul.f32 %v2602, %v2611
        %v2614 = vadd.f32 %v2610, %v2613
        %v2616 = vrot.slane %v2614, 2
        %v2617 = vsel %vm1267, %v2616, 0
        %2619 = vmatprep.subr.mxu0 0.0
        %2620 = vmatpush1.msra.mxu0 %v1349
        %2621 = vmatprep.subr.mxu0 0.0
        %2622 = vmatpush1.msra.mxu0 %v1350
        %2623 = vmatprep.subr.mxu0 0.0
        %2624 = vmatpush1.msra.mxu0 %v1351
        %2625 = vmatprep.subr.mxu0 0.0
        %2626 = vmatpush1.msra.mxu0 %v1352
        %2627 = vmatprep.subr.mxu0 0.0
        %2628 = vmatpush1.msra.mxu0 0.0
        %2629 = vmatprep.subr.mxu0 0.0
        %2630 = vmatpush1.msra.mxu0 0.0
        %2631 = vmatprep.subr.mxu0 0.0
        %2632 = vmatpush1.msra.mxu0 0.0
        %2633 = vmatprep.subr.mxu0 0.0
        %2634 = vmatpush1.msra.mxu0 0.0
        %2635 = vmatprep.subr.mxu0 0.0
        %2636 = vmatpush1.msra.mxu0 0.0
        %2637 = vmatprep.subr.mxu0 0.0
        %2638 = vmatpush1.msra.mxu0 0.0
        %2639 = vmatprep.subr.mxu0 0.0
        %2640 = vmatpush1.msra.mxu0 0.0
        %2641 = vmatprep.subr.mxu0 0.0
        %2642 = vmatpush1.msra.mxu0 0.0
        %2643 = vmatprep.subr.mxu0 0.0
        %2644 = vmatpush1.msra.mxu0 0.0
        %2645 = vmatprep.subr.mxu0 0.0
        %2646 = vmatpush1.msra.mxu0 0.0
        %2647 = vmatprep.subr.mxu0 0.0
        %2648 = vmatpush1.msra.mxu0 0.0
        %2649 = vmatprep.subr.mxu0 0.0
        %2650 = vmatpush1.msra.mxu0 0.0
        %2651 = vmatprep.subr.mxu0 0.0
        %2652 = vmatpush1.msra.mxu0 0.0
        %2653 = vmatprep.subr.mxu0 0.0
        %2654 = vmatpush1.msra.mxu0 0.0
        %2655 = vmatprep.subr.mxu0 0.0
        %2656 = vmatpush1.msra.mxu0 0.0
        %2657 = vmatprep.subr.mxu0 0.0
        %2658 = vmatpush1.msra.mxu0 0.0
        %2659 = vmatprep.subr.mxu0 0.0
        %2660 = vmatpush1.msra.mxu0 0.0
        %2661 = vmatprep.subr.mxu0 0.0
        %2662 = vmatpush1.msra.mxu0 0.0
        %2663 = vmatprep.subr.mxu0 0.0
        %2664 = vmatpush1.msra.mxu0 0.0
        %2665 = vmatprep.subr.mxu0 0.0
        %2666 = vmatpush1.msra.mxu0 0.0
        %2667 = vmatprep.subr.mxu0 0.0
        %2668 = vmatpush1.msra.mxu0 0.0
        %2669 = vmatprep.subr.mxu0 0.0
        %2670 = vmatpush1.msra.mxu0 0.0
        %2671 = vmatprep.subr.mxu0 0.0
        %2672 = vmatpush1.msra.mxu0 0.0
        %2673 = vmatprep.subr.mxu0 0.0
        %2674 = vmatpush1.msra.mxu0 0.0
        %2675 = vmatprep.subr.mxu0 0.0
        %2676 = vmatpush1.msra.mxu0 0.0
        %2677 = vmatprep.subr.mxu0 0.0
        %2678 = vmatpush1.msra.mxu0 0.0
        %2679 = vmatprep.subr.mxu0 0.0
        %2680 = vmatpush1.msra.mxu0 0.0
        %2681 = vmatprep.subr.mxu0 0.0
        %2682 = vmatpush1.msra.mxu0 0.0
        %2683 = vmatprep.mubr.f32.mxu0 0.0
        %2684 = vmatmul.mubr.f32.gmra.mrb[0].mxu0 %v2617
        %v2685 = vpop.f32.mrb[0].mxu0
        %v2686 = vadd.f32 %v1353, %v2685
        %v2687 = vpop.f32.mrb[0].mxu0
        %2688 = vdwg.mxu0
        %v2689 = vrot.slane %v1341, 1
        %2690 = vrot.lane.b32.xlu0 %v2689, 96
        %v2691 = vpop.permute.xlu0 %2690
        %v2693 = vsel %vm1053, %v1346, %v2691
        %2694 = vrot.lane.b32.xlu0 %v2689, 80
        %v2695 = vpop.permute.xlu0 %2694
        %v2697 = vsel %vm1053, %v2336, %v2695
        %2698 = vrot.lane.b32.xlu0 %v2689, 64
        %v2699 = vpop.permute.xlu0 %2698
        %v2701 = vsel %vm1053, %v2343, %v2699
        %v2703 = vrot.slane %v2686, 5
        %v2705 = vadd.f32 %v2693, %v2703
        %v2706 = vxor.u32 %v2705, 2147483648
        %v2707 = vmul.f32 %v2706, 1.442695
        %v2708 = vpow.pop %v2707
        %v2709 = vadd.f32 %v2708, 1.0
        %v2710 = vrcp.pop %v2709
        %v2711 = vmul.f32 1.0, %v2710
        %2712 = vrot.lane.b32.xlu0 %v2703, 96
        %v2713 = vpop.permute.xlu0 %2712
        %v2715 = vadd.f32 %v2697, %v2713
        %v2716 = vxor.u32 %v2715, 2147483648
        %v2717 = vmul.f32 %v2716, 1.442695
        %v2718 = vpow.pop %v2717
        %v2719 = vadd.f32 %v2718, 1.0
        %v2720 = vrcp.pop %v2719
        %v2721 = vmul.f32 1.0, %v2720
        %2722 = vrot.lane.b32.xlu0 %v2703, 64
        %v2723 = vpop.permute.xlu0 %2722
        %v2725 = vmul.f32 %v2711, %v2723
        %v2726 = vadd.f32 %v2701, %v2725
        %v2727 = vtanh.pop %v2726
        %v2728 = vsub.f32 1.0, %v2721
        %v2729 = vmul.f32 %v2728, %v2727
        %v2730 = vrot.slane %v2614, 7
        %v2732 = vmul.f32 %v2721, %v2730
        %v2733 = vadd.f32 %v2729, %v2732
        %v2735 = vrot.slane %v2733, 3
        %v2736 = vsel %vm1267, %v2735, 0
        %2738 = vmatprep.subr.mxu0 0.0
        %2739 = vmatpush1.msra.mxu0 %v1349
        %2740 = vmatprep.subr.mxu0 0.0
        %2741 = vmatpush1.msra.mxu0 %v1350
        %2742 = vmatprep.subr.mxu0 0.0
        %2743 = vmatpush1.msra.mxu0 %v1351
        %2744 = vmatprep.subr.mxu0 0.0
        %2745 = vmatpush1.msra.mxu0 %v1352
        %2746 = vmatprep.subr.mxu0 0.0
        %2747 = vmatpush1.msra.mxu0 0.0
        %2748 = vmatprep.subr.mxu0 0.0
        %2749 = vmatpush1.msra.mxu0 0.0
        %2750 = vmatprep.subr.mxu0 0.0
        %2751 = vmatpush1.msra.mxu0 0.0
        %2752 = vmatprep.subr.mxu0 0.0
        %2753 = vmatpush1.msra.mxu0 0.0
        %2754 = vmatprep.subr.mxu0 0.0
        %2755 = vmatpush1.msra.mxu0 0.0
        %2756 = vmatprep.subr.mxu0 0.0
        %2757 = vmatpush1.msra.mxu0 0.0
        %2758 = vmatprep.subr.mxu0 0.0
        %2759 = vmatpush1.msra.mxu0 0.0
        %2760 = vmatprep.subr.mxu0 0.0
        %2761 = vmatpush1.msra.mxu0 0.0
        %2762 = vmatprep.subr.mxu0 0.0
        %2763 = vmatpush1.msra.mxu0 0.0
        %2764 = vmatprep.subr.mxu0 0.0
        %2765 = vmatpush1.msra.mxu0 0.0
        %2766 = vmatprep.subr.mxu0 0.0
        %2767 = vmatpush1.msra.mxu0 0.0
        %2768 = vmatprep.subr.mxu0 0.0
        %2769 = vmatpush1.msra.mxu0 0.0
        %2770 = vmatprep.subr.mxu0 0.0
        %2771 = vmatpush1.msra.mxu0 0.0
        %2772 = vmatprep.subr.mxu0 0.0
        %2773 = vmatpush1.msra.mxu0 0.0
        %2774 = vmatprep.subr.mxu0 0.0
        %2775 = vmatpush1.msra.mxu0 0.0
        %2776 = vmatprep.subr.mxu0 0.0
        %2777 = vmatpush1.msra.mxu0 0.0
        %2778 = vmatprep.subr.mxu0 0.0
        %2779 = vmatpush1.msra.mxu0 0.0
        %2780 = vmatprep.subr.mxu0 0.0
        %2781 = vmatpush1.msra.mxu0 0.0
        %2782 = vmatprep.subr.mxu0 0.0
        %2783 = vmatpush1.msra.mxu0 0.0
        %2784 = vmatprep.subr.mxu0 0.0
        %2785 = vmatpush1.msra.mxu0 0.0
        %2786 = vmatprep.subr.mxu0 0.0
        %2787 = vmatpush1.msra.mxu0 0.0
        %2788 = vmatprep.subr.mxu0 0.0
        %2789 = vmatpush1.msra.mxu0 0.0
        %2790 = vmatprep.subr.mxu0 0.0
        %2791 = vmatpush1.msra.mxu0 0.0
        %2792 = vmatprep.subr.mxu0 0.0
        %2793 = vmatpush1.msra.mxu0 0.0
        %2794 = vmatprep.subr.mxu0 0.0
        %2795 = vmatpush1.msra.mxu0 0.0
        %2796 = vmatprep.subr.mxu0 0.0
        %2797 = vmatpush1.msra.mxu0 0.0
        %2798 = vmatprep.subr.mxu0 0.0
        %2799 = vmatpush1.msra.mxu0 0.0
        %2800 = vmatprep.subr.mxu0 0.0
        %2801 = vmatpush1.msra.mxu0 0.0
        %2802 = vmatprep.mubr.f32.mxu0 0.0
        %2803 = vmatmul.mubr.f32.gmra.mrb[0].mxu0 %v2736
        %v2804 = vpop.f32.mrb[0].mxu0
        %v2805 = vadd.f32 %v1353, %v2804
        %v2806 = vpop.f32.mrb[0].mxu0
        %2807 = vdwg.mxu0
        %v2809 = vrot.slane %v2805, 4
        %v2811 = vadd.f32 %v2334, %v2809
        %v2812 = vxor.u32 %v2811, 2147483648
        %v2813 = vmul.f32 %v2812, 1.442695
        %v2814 = vpow.pop %v2813
        %v2815 = vadd.f32 %v2814, 1.0
        %v2816 = vrcp.pop %v2815
        %v2817 = vmul.f32 1.0, %v2816
        %2818 = vrot.lane.b32.xlu0 %v2809, 96
        %v2819 = vpop.permute.xlu0 %2818
        %v2821 = vadd.f32 %v2341, %v2819
        %v2822 = vxor.u32 %v2821, 2147483648
        %v2823 = vmul.f32 %v2822, 1.442695
        %v2824 = vpow.pop %v2823
        %v2825 = vadd.f32 %v2824, 1.0
        %v2826 = vrcp.pop %v2825
        %v2827 = vmul.f32 1.0, %v2826
        %2828 = vrot.lane.b32.xlu0 %v2809, 64
        %v2829 = vpop.permute.xlu0 %2828
        %v2831 = vmul.f32 %v2817, %v2829
        %v2832 = vadd.f32 %v2348, %v2831
        %v2833 = vtanh.pop %v2832
        %v2834 = vsub.f32 1.0, %v2827
        %v2835 = vmul.f32 %v2834, %v2833
        %v2836 = vrot.slane %v2733, 7
        %v2838 = vmul.f32 %v2827, %v2836
        %v2839 = vadd.f32 %v2835, %v2838
        %v2841 = vrot.slane %v2839, 4
        %v2842 = vsel %vm1267, %v2841, 0
        %2844 = vmatprep.subr.mxu0 0.0
        %2845 = vmatpush1.msra.mxu0 %v1349
        %2846 = vmatprep.subr.mxu0 0.0
        %2847 = vmatpush1.msra.mxu0 %v1350
        %2848 = vmatprep.subr.mxu0 0.0
        %2849 = vmatpush1.msra.mxu0 %v1351
        %2850 = vmatprep.subr.mxu0 0.0
        %2851 = vmatpush1.msra.mxu0 %v1352
        %2852 = vmatprep.subr.mxu0 0.0
        %2853 = vmatpush1.msra.mxu0 0.0
        %2854 = vmatprep.subr.mxu0 0.0
        %2855 = vmatpush1.msra.mxu0 0.0
        %2856 = vmatprep.subr.mxu0 0.0
        %2857 = vmatpush1.msra.mxu0 0.0
        %2858 = vmatprep.subr.mxu0 0.0
        %2859 = vmatpush1.msra.mxu0 0.0
        %2860 = vmatprep.subr.mxu0 0.0
        %2861 = vmatpush1.msra.mxu0 0.0
        %2862 = vmatprep.subr.mxu0 0.0
        %2863 = vmatpush1.msra.mxu0 0.0
        %2864 = vmatprep.subr.mxu0 0.0
        %2865 = vmatpush1.msra.mxu0 0.0
        %2866 = vmatprep.subr.mxu0 0.0
        %2867 = vmatpush1.msra.mxu0 0.0
        %2868 = vmatprep.subr.mxu0 0.0
        %2869 = vmatpush1.msra.mxu0 0.0
        %2870 = vmatprep.subr.mxu0 0.0
        %2871 = vmatpush1.msra.mxu0 0.0
        %2872 = vmatprep.subr.mxu0 0.0
        %2873 = vmatpush1.msra.mxu0 0.0
        %2874 = vmatprep.subr.mxu0 0.0
        %2875 = vmatpush1.msra.mxu0 0.0
        %2876 = vmatprep.subr.mxu0 0.0
        %2877 = vmatpush1.msra.mxu0 0.0
        %2878 = vmatprep.subr.mxu0 0.0
        %2879 = vmatpush1.msra.mxu0 0.0
        %2880 = vmatprep.subr.mxu0 0.0
        %2881 = vmatpush1.msra.mxu0 0.0
        %2882 = vmatprep.subr.mxu0 0.0
        %2883 = vmatpush1.msra.mxu0 0.0
        %2884 = vmatprep.subr.mxu0 0.0
        %2885 = vmatpush1.msra.mxu0 0.0
        %2886 = vmatprep.subr.mxu0 0.0
        %2887 = vmatpush1.msra.mxu0 0.0
        %2888 = vmatprep.subr.mxu0 0.0
        %2889 = vmatpush1.msra.mxu0 0.0
        %2890 = vmatprep.subr.mxu0 0.0
        %2891 = vmatpush1.msra.mxu0 0.0
        %2892 = vmatprep.subr.mxu0 0.0
        %2893 = vmatpush1.msra.mxu0 0.0
        %2894 = vmatprep.subr.mxu0 0.0
        %2895 = vmatpush1.msra.mxu0 0.0
        %2896 = vmatprep.subr.mxu0 0.0
        %2897 = vmatpush1.msra.mxu0 0.0
        %2898 = vmatprep.subr.mxu0 0.0
        %2899 = vmatpush1.msra.mxu0 0.0
        %2900 = vmatprep.subr.mxu0 0.0
        %2901 = vmatpush1.msra.mxu0 0.0
        %2902 = vmatprep.subr.mxu0 0.0
        %2903 = vmatpush1.msra.mxu0 0.0
        %2904 = vmatprep.subr.mxu0 0.0
        %2905 = vmatpush1.msra.mxu0 0.0
        %2906 = vmatprep.subr.mxu0 0.0
        %2907 = vmatpush1.msra.mxu0 0.0
        %2908 = vmatprep.mubr.f32.mxu0 0.0
        %2909 = vmatmul.mubr.f32.gmra.mrb[0].mxu0 %v2842
        %v2910 = vpop.f32.mrb[0].mxu0
        %v2911 = vadd.f32 %v1353, %v2910
        %v2912 = vpop.f32.mrb[0].mxu0
        %2913 = vdwg.mxu0
        %v2915 = vrot.slane %v2911, 3
        %v2917 = vadd.f32 %v2455, %v2915
        %v2918 = vxor.u32 %v2917, 2147483648
        %v2919 = vmul.f32 %v2918, 1.442695
        %v2920 = vpow.pop %v2919
        %v2921 = vadd.f32 %v2920, 1.0
        %v2922 = vrcp.pop %v2921
        %v2923 = vmul.f32 1.0, %v2922
        %2924 = vrot.lane.b32.xlu0 %v2915, 96
        %v2925 = vpop.permute.xlu0 %2924
        %v2927 = vadd.f32 %v2459, %v2925
        %v2928 = vxor.u32 %v2927, 2147483648
        %v2929 = vmul.f32 %v2928, 1.442695
        %v2930 = vpow.pop %v2929
        %v2931 = vadd.f32 %v2930, 1.0
        %v2932 = vrcp.pop %v2931
        %v2933 = vmul.f32 1.0, %v2932
        %2934 = vrot.lane.b32.xlu0 %v2915, 64
        %v2935 = vpop.permute.xlu0 %2934
        %v2937 = vmul.f32 %v2923, %v2935
        %v2938 = vadd.f32 %v2463, %v2937
        %v2939 = vtanh.pop %v2938
        %v2940 = vsub.f32 1.0, %v2933
        %v2941 = vmul.f32 %v2940, %v2939
        %v2942 = vrot.slane %v2839, 7
        %v2944 = vmul.f32 %v2933, %v2942
        %v2945 = vadd.f32 %v2941, %v2944
        %v2947 = vrot.slane %v2945, 5
        %v2948 = vsel %vm1267, %v2947, 0
        %2950 = vmatprep.subr.mxu0 0.0
        %2951 = vmatpush1.msra.mxu0 %v1349
        %2952 = vmatprep.subr.mxu0 0.0
        %2953 = vmatpush1.msra.mxu0 %v1350
        %2954 = vmatprep.subr.mxu0 0.0
        %2955 = vmatpush1.msra.mxu0 %v1351
        %2956 = vmatprep.subr.mxu0 0.0
        %2957 = vmatpush1.msra.mxu0 %v1352
        %2958 = vmatprep.subr.mxu0 0.0
        %2959 = vmatpush1.msra.mxu0 0.0
        %2960 = vmatprep.subr.mxu0 0.0
        %2961 = vmatpush1.msra.mxu0 0.0
        %2962 = vmatprep.subr.mxu0 0.0
        %2963 = vmatpush1.msra.mxu0 0.0
        %2964 = vmatprep.subr.mxu0 0.0
        %2965 = vmatpush1.msra.mxu0 0.0
        %2966 = vmatprep.subr.mxu0 0.0
        %2967 = vmatpush1.msra.mxu0 0.0
        %2968 = vmatprep.subr.mxu0 0.0
        %2969 = vmatpush1.msra.mxu0 0.0
        %2970 = vmatprep.subr.mxu0 0.0
        %2971 = vmatpush1.msra.mxu0 0.0
        %2972 = vmatprep.subr.mxu0 0.0
        %2973 = vmatpush1.msra.mxu0 0.0
        %2974 = vmatprep.subr.mxu0 0.0
        %2975 = vmatpush1.msra.mxu0 0.0
        %2976 = vmatprep.subr.mxu0 0.0
        %2977 = vmatpush1.msra.mxu0 0.0
        %2978 = vmatprep.subr.mxu0 0.0
        %2979 = vmatpush1.msra.mxu0 0.0
        %2980 = vmatprep.subr.mxu0 0.0
        %2981 = vmatpush1.msra.mxu0 0.0
        %2982 = vmatprep.subr.mxu0 0.0
        %2983 = vmatpush1.msra.mxu0 0.0
        %2984 = vmatprep.subr.mxu0 0.0
        %2985 = vmatpush1.msra.mxu0 0.0
        %2986 = vmatprep.subr.mxu0 0.0
        %2987 = vmatpush1.msra.mxu0 0.0
        %2988 = vmatprep.subr.mxu0 0.0
        %2989 = vmatpush1.msra.mxu0 0.0
        %2990 = vmatprep.subr.mxu0 0.0
        %2991 = vmatpush1.msra.mxu0 0.0
        %2992 = vmatprep.subr.mxu0 0.0
        %2993 = vmatpush1.msra.mxu0 0.0
        %2994 = vmatprep.subr.mxu0 0.0
        %2995 = vmatpush1.msra.mxu0 0.0
        %2996 = vmatprep.subr.mxu0 0.0
        %2997 = vmatpush1.msra.mxu0 0.0
        %2998 = vmatprep.subr.mxu0 0.0
        %2999 = vmatpush1.msra.mxu0 0.0
        %3000 = vmatprep.subr.mxu0 0.0
        %3001 = vmatpush1.msra.mxu0 0.0
        %3002 = vmatprep.subr.mxu0 0.0
        %3003 = vmatpush1.msra.mxu0 0.0
        %3004 = vmatprep.subr.mxu0 0.0
        %3005 = vmatpush1.msra.mxu0 0.0
        %3006 = vmatprep.subr.mxu0 0.0
        %3007 = vmatpush1.msra.mxu0 0.0
        %3008 = vmatprep.subr.mxu0 0.0
        %3009 = vmatpush1.msra.mxu0 0.0
        %3010 = vmatprep.subr.mxu0 0.0
        %3011 = vmatpush1.msra.mxu0 0.0
        %3012 = vmatprep.subr.mxu0 0.0
        %3013 = vmatpush1.msra.mxu0 0.0
        %3014 = vmatprep.mubr.f32.mxu0 0.0
        %3015 = vmatmul.mubr.f32.gmra.mrb[0].mxu0 %v2948
        %v3016 = vpop.f32.mrb[0].mxu0
        %v3017 = vadd.f32 %v1353, %v3016
        %v3018 = vpop.f32.mrb[0].mxu0
        %3019 = vdwg.mxu0
        %v3021 = vrot.slane %v3017, 2
        %v3023 = vadd.f32 %v2574, %v3021
        %v3024 = vxor.u32 %v3023, 2147483648
        %v3025 = vmul.f32 %v3024, 1.442695
        %v3026 = vpow.pop %v3025
        %v3027 = vadd.f32 %v3026, 1.0
        %v3028 = vrcp.pop %v3027
        %v3029 = vmul.f32 1.0, %v3028
        %3030 = vrot.lane.b32.xlu0 %v3021, 96
        %v3031 = vpop.permute.xlu0 %3030
        %v3033 = vadd.f32 %v2578, %v3031
        %v3034 = vxor.u32 %v3033, 2147483648
        %v3035 = vmul.f32 %v3034, 1.442695
        %v3036 = vpow.pop %v3035
        %v3037 = vadd.f32 %v3036, 1.0
        %v3038 = vrcp.pop %v3037
        %v3039 = vmul.f32 1.0, %v3038
        %3040 = vrot.lane.b32.xlu0 %v3021, 64
        %v3041 = vpop.permute.xlu0 %3040
        %v3043 = vmul.f32 %v3029, %v3041
        %v3044 = vadd.f32 %v2582, %v3043
        %v3045 = vtanh.pop %v3044
        %v3046 = vsub.f32 1.0, %v3039
        %v3047 = vmul.f32 %v3046, %v3045
        %v3048 = vrot.slane %v2945, 7
        %v3050 = vmul.f32 %v3039, %v3048
        %v3051 = vadd.f32 %v3047, %v3050
        %v3053 = vrot.slane %v3051, 6
        %v3054 = vsel %vm1267, %v3053, 0
        %3056 = vmatprep.subr.mxu0 0.0
        %3057 = vmatpush1.msra.mxu0 %v1349
        %3058 = vmatprep.subr.mxu0 0.0
        %3059 = vmatpush1.msra.mxu0 %v1350
        %3060 = vmatprep.subr.mxu0 0.0
        %3061 = vmatpush1.msra.mxu0 %v1351
        %3062 = vmatprep.subr.mxu0 0.0
        %3063 = vmatpush1.msra.mxu0 %v1352
        %3064 = vmatprep.subr.mxu0 0.0
        %3065 = vmatpush1.msra.mxu0 0.0
        %3066 = vmatprep.subr.mxu0 0.0
        %3067 = vmatpush1.msra.mxu0 0.0
        %3068 = vmatprep.subr.mxu0 0.0
        %3069 = vmatpush1.msra.mxu0 0.0
        %3070 = vmatprep.subr.mxu0 0.0
        %3071 = vmatpush1.msra.mxu0 0.0
        %3072 = vmatprep.subr.mxu0 0.0
        %3073 = vmatpush1.msra.mxu0 0.0
        %3074 = vmatprep.subr.mxu0 0.0
        %3075 = vmatpush1.msra.mxu0 0.0
        %3076 = vmatprep.subr.mxu0 0.0
        %3077 = vmatpush1.msra.mxu0 0.0
        %3078 = vmatprep.subr.mxu0 0.0
        %3079 = vmatpush1.msra.mxu0 0.0
        %3080 = vmatprep.subr.mxu0 0.0
        %3081 = vmatpush1.msra.mxu0 0.0
        %3082 = vmatprep.subr.mxu0 0.0
        %3083 = vmatpush1.msra.mxu0 0.0
        %3084 = vmatprep.subr.mxu0 0.0
        %3085 = vmatpush1.msra.mxu0 0.0
        %3086 = vmatprep.subr.mxu0 0.0
        %3087 = vmatpush1.msra.mxu0 0.0
        %3088 = vmatprep.subr.mxu0 0.0
        %3089 = vmatpush1.msra.mxu0 0.0
        %3090 = vmatprep.subr.mxu0 0.0
        %3091 = vmatpush1.msra.mxu0 0.0
        %3092 = vmatprep.subr.mxu0 0.0
        %3093 = vmatpush1.msra.mxu0 0.0
        %3094 = vmatprep.subr.mxu0 0.0
        %3095 = vmatpush1.msra.mxu0 0.0
        %3096 = vmatprep.subr.mxu0 0.0
        %3097 = vmatpush1.msra.mxu0 0.0
        %3098 = vmatprep.subr.mxu0 0.0
        %3099 = vmatpush1.msra.mxu0 0.0
        %3100 = vmatprep.subr.mxu0 0.0
        %3101 = vmatpush1.msra.mxu0 0.0
        %3102 = vmatprep.subr.mxu0 0.0
        %3103 = vmatpush1.msra.mxu0 0.0
        %3104 = vmatprep.subr.mxu0 0.0
        %3105 = vmatpush1.msra.mxu0 0.0
        %3106 = vmatprep.subr.mxu0 0.0
        %3107 = vmatpush1.msra.mxu0 0.0
        %3108 = vmatprep.subr.mxu0 0.0
        %3109 = vmatpush1.msra.mxu0 0.0
        %3110 = vmatprep.subr.mxu0 0.0
        %3111 = vmatpush1.msra.mxu0 0.0
        %3112 = vmatprep.subr.mxu0 0.0
        %3113 = vmatpush1.msra.mxu0 0.0
        %3114 = vmatprep.subr.mxu0 0.0
        %3115 = vmatpush1.msra.mxu0 0.0
        %3116 = vmatprep.subr.mxu0 0.0
        %3117 = vmatpush1.msra.mxu0 0.0
        %3118 = vmatprep.subr.mxu0 0.0
        %3119 = vmatpush1.msra.mxu0 0.0
        %3120 = vmatprep.mubr.f32.mxu0 0.0
        %3121 = vmatmul.mubr.f32.gmra.mrb[0].mxu0 %v3054
        %v3122 = vpop.f32.mrb[0].mxu0
        %v3123 = vadd.f32 %v1353, %v3122
        %v3124 = vpop.f32.mrb[0].mxu0
        %3125 = vdwg.mxu0
        %v3127 = vrot.slane %v3123, 1
        %v3129 = vadd.f32 %v2693, %v3127
        %v3130 = vxor.u32 %v3129, 2147483648
        %v3131 = vmul.f32 %v3130, 1.442695
        %v3132 = vpow.pop %v3131
        %v3133 = vadd.f32 %v3132, 1.0
        %v3134 = vrcp.pop %v3133
        %v3135 = vmul.f32 1.0, %v3134
        %3136 = vrot.lane.b32.xlu0 %v3127, 96
        %v3137 = vpop.permute.xlu0 %3136
        %v3139 = vadd.f32 %v2697, %v3137
        %v3140 = vxor.u32 %v3139, 2147483648
        %v3141 = vmul.f32 %v3140, 1.442695
        %v3142 = vpow.pop %v3141
        %v3143 = vadd.f32 %v3142, 1.0
        %v3144 = vrcp.pop %v3143
        %v3145 = vmul.f32 1.0, %v3144
        %3146 = vrot.lane.b32.xlu0 %v3127, 64
        %v3147 = vpop.permute.xlu0 %3146
        %v3149 = vmul.f32 %v3135, %v3147
        %v3150 = vadd.f32 %v2701, %v3149
        %v3151 = vtanh.pop %v3150
        %v3152 = vsub.f32 1.0, %v3145
        %v3153 = vmul.f32 %v3152, %v3151
        %v3154 = vrot.slane %v3051, 7
        %v3156 = vmul.f32 %v3145, %v3154
        %v3157 = vadd.f32 %v3153, %v3156
        %vm3158 = vcmask 1040384
        %v3159 = vsel %vm3158, %v1475, %v1593
        %vm3160 = vcmask 1041408
        %v3161 = vsel %vm3160, %v3159, %v1712
        %vm3162 = vcmask 1042432
        %v3163 = vsel %vm3162, %v3161, %v1831
        %vm3164 = vcmask 1043456
        %v3165 = vsel %vm3164, %v3163, %v1937
        %vm3166 = vcmask 1044480
        %v3167 = vsel %vm3166, %v3165, %v2043
        %vm3168 = vcmask 1045504
        %v3169 = vsel %vm3168, %v3167, %v2149
        %vm3170 = vcmask 1046528
        %v3171 = vsel %vm3170, %v3169, %v2255
        %v3172 = vsel %vm3158, %v2377, %v2495
        %v3173 = vsel %vm3160, %v3172, %v2614
        %v3174 = vsel %vm3162, %v3173, %v2733
        %v3175 = vsel %vm3164, %v3174, %v2839
        %v3176 = vsel %vm3166, %v3175, %v2945
        %v3177 = vsel %vm3168, %v3176, %v3051
        %v3178 = vsel %vm3170, %v3177, %v3157
        %v3180 = vrot.slane %v3157, 7
        %v3182 = vrot.slane %v3051, 5
        %v3184 = vrot.slane %v2945, 3
        %v3186 = vrot.slane %v2839, 1
        %v3188 = vrot.slane %v2614, 5
        %v3190 = vrot.slane %v2495, 3
        %v3192 = vrot.slane %v2377, 1
        %v3194 = vrot.slane %v2149, 5
        %v3196 = vrot.slane %v2043, 3
        %v3198 = vrot.slane %v1937, 1
        %v3200 = vrot.slane %v1712, 5
        %v3202 = vrot.slane %v1593, 3
        %v3204 = vrot.slane %v1475, 1
        %v3206 = vsel %vm3158, %v3180, %v3182
        %v3207 = vsel %vm3160, %v3206, %v3184
        %v3208 = vsel %vm3162, %v3207, %v3186
        %v3209 = vsel %vm3164, %v3208, %v2836
        %v3210 = vsel %vm3166, %v3209, %v3188
        %v3211 = vsel %vm3168, %v3210, %v3190
        %v3212 = vsel %vm3170, %v3211, %v3192
        %v3213 = vsel %vm3158, %v2257, %v3194
        %v3214 = vsel %vm3160, %v3213, %v3196
        %v3215 = vsel %vm3162, %v3214, %v3198
        %v3216 = vsel %vm3164, %v3215, %v1934
        %v3217 = vsel %vm3166, %v3216, %v3200
        %v3218 = vsel %vm3168, %v3217, %v3202
        %v3219 = vsel %vm3170, %v3218, %v3204
        %v3220 = vsel %vm1053, %v3171, %v3212
        %v3221 = vsel %vm1053, %v3178, %v3219
        %v3222 = vld [vmem:[%s11] sm:$0xff]
        %v3223 = vld [vmem:[%s11 + $0x8] sm:$0xff]
        %v3224 = vld [vmem:[%s11 + $0x10] sm:$0xff]
        %v3225 = vld [vmem:[%s11 + $0x18] sm:$0xff]
        %v3226 = vld [vmem:[%s12] sm:$0x1]
        %v3228 = vlaneseq
        %v3229 = vshrl.u32 %v3228, 7
        %v3230 = vsub.s32 0, %v3229
        %v3231 = vrot.slane %v3226, %v3230
        %v3234 = vsel %vm1267, %v3220, 0
        %v3237 = vsel %vm1267, %v3221, 0
        %3239 = vmatprep.subr.mxu0 0.0
        %3240 = vmatpush1.msra.mxu0 %v3222
        %3241 = vmatprep.subr.mxu0 0.0
        %3242 = vmatpush1.msra.mxu0 %v3223
        %3243 = vmatprep.subr.mxu0 0.0
        %3244 = vmatpush1.msra.mxu0 %v3224
        %3245 = vmatprep.subr.mxu0 0.0
        %3246 = vmatpush1.msra.mxu0 %v3225
        %3247 = vmatprep.subr.mxu0 0.0
        %3248 = vmatpush1.msra.mxu0 0.0
        %3249 = vmatprep.subr.mxu0 0.0
        %3250 = vmatpush1.msra.mxu0 0.0
        %3251 = vmatprep.subr.mxu0 0.0
        %3252 = vmatpush1.msra.mxu0 0.0
        %3253 = vmatprep.subr.mxu0 0.0
        %3254 = vmatpush1.msra.mxu0 0.0
        %3255 = vmatprep.subr.mxu0 0.0
        %3256 = vmatpush1.msra.mxu0 0.0
        %3257 = vmatprep.subr.mxu0 0.0
        %3258 = vmatpush1.msra.mxu0 0.0
        %3259 = vmatprep.subr.mxu0 0.0
        %3260 = vmatpush1.msra.mxu0 0.0
        %3261 = vmatprep.subr.mxu0 0.0
        %3262 = vmatpush1.msra.mxu0 0.0
        %3263 = vmatprep.subr.mxu0 0.0
        %3264 = vmatpush1.msra.mxu0 0.0
        %3265 = vmatprep.subr.mxu0 0.0
        %3266 = vmatpush1.msra.mxu0 0.0
        %3267 = vmatprep.subr.mxu0 0.0
        %3268 = vmatpush1.msra.mxu0 0.0
        %3269 = vmatprep.subr.mxu0 0.0
        %3270 = vmatpush1.msra.mxu0 0.0
        %3271 = vmatprep.subr.mxu0 0.0
        %3272 = vmatpush1.msra.mxu0 0.0
        %3273 = vmatprep.subr.mxu0 0.0
        %3274 = vmatpush1.msra.mxu0 0.0
        %3275 = vmatprep.subr.mxu0 0.0
        %3276 = vmatpush1.msra.mxu0 0.0
        %3277 = vmatprep.subr.mxu0 0.0
        %3278 = vmatpush1.msra.mxu0 0.0
        %3279 = vmatprep.subr.mxu0 0.0
        %3280 = vmatpush1.msra.mxu0 0.0
        %3281 = vmatprep.subr.mxu0 0.0
        %3282 = vmatpush1.msra.mxu0 0.0
        %3283 = vmatprep.subr.mxu0 0.0
        %3284 = vmatpush1.msra.mxu0 0.0
        %3285 = vmatprep.subr.mxu0 0.0
        %3286 = vmatpush1.msra.mxu0 0.0
        %3287 = vmatprep.subr.mxu0 0.0
        %3288 = vmatpush1.msra.mxu0 0.0
        %3289 = vmatprep.subr.mxu0 0.0
        %3290 = vmatpush1.msra.mxu0 0.0
        %3291 = vmatprep.subr.mxu0 0.0
        %3292 = vmatpush1.msra.mxu0 0.0
        %3293 = vmatprep.subr.mxu0 0.0
        %3294 = vmatpush1.msra.mxu0 0.0
        %3295 = vmatprep.subr.mxu0 0.0
        %3296 = vmatpush1.msra.mxu0 0.0
        %3297 = vmatprep.subr.mxu0 0.0
        %3298 = vmatpush1.msra.mxu0 0.0
        %3299 = vmatprep.subr.mxu0 0.0
        %3300 = vmatpush1.msra.mxu0 0.0
        %3301 = vmatprep.subr.mxu0 0.0
        %3302 = vmatpush1.msra.mxu0 0.0
        %3303 = vmatprep.mubr.f32.mxu0 0.0
        %3304 = vmatmul.mubr.f32.gmra.mrb[0].mxu0 %v3234
        %v3305 = vpop.f32.mrb[0].mxu0
        %v3306 = vadd.f32 %v3231, %v3305
        %v3307 = vpop.f32.mrb[0].mxu0
        %3308 = vmatprep.mubr.f32.mxu0 0.0
        %3309 = vmatmul.mubr.f32.gmra.mrb[0].mxu0 %v3237
        %v3310 = vpop.f32.mrb[0].mxu0
        %v3311 = vadd.f32 %v3231, %v3310
        %v3312 = vpop.f32.mrb[0].mxu0
        %3313 = vdwg.mxu0
        %3314 = vst.msk [vmem:[%s783] sm:$0xff] %vm799, %v3306
        %3315 = vst.msk [vmem:[%s783 + $0x8] sm:$0xff] %vm799, %v3311
        %3318 = vrot.lane.b32.xlu0 %v3306, 120
        %v3319 = vpop.permute.xlu0 %3318
        %3320 = vrot.lane.b32.xlu0 %v3311, 120
        %v3321 = vpop.permute.xlu0 %3320
        %3324 = vst.msk [vmem:[%s788] sm:$0xff] %vm799, %v3319
        %3325 = vst.msk [vmem:[%s788 + $0x8] sm:$0xff] %vm799, %v3321
        %v3326 = vld [vmem:[%s13] sm:$0xff]
        %v3327 = vld [vmem:[%s14] sm:$0x1]
        %v3329 = vlaneseq
        %v3330 = vshrl.u32 %v3329, 7
        %v3331 = vsub.s32 0, %v3330
        %v3332 = vrot.slane %v3327, %v3331
        %v3334 = vsel %vm799, %v3306, 0
        %v3336 = vsel %vm799, %v3311, 0
        %3338 = vmatprep.subr.mxu0 0.0
        %3339 = vmatpush1.msra.mxu0 %v3326
        %3340 = vmatprep.subr.mxu0 0.0
        %3341 = vmatpush1.msra.mxu0 0.0
        %3342 = vmatprep.subr.mxu0 0.0
        %3343 = vmatpush1.msra.mxu0 0.0
        %3344 = vmatprep.subr.mxu0 0.0
        %3345 = vmatpush1.msra.mxu0 0.0
        %3346 = vmatprep.subr.mxu0 0.0
        %3347 = vmatpush1.msra.mxu0 0.0
        %3348 = vmatprep.subr.mxu0 0.0
        %3349 = vmatpush1.msra.mxu0 0.0
        %3350 = vmatprep.subr.mxu0 0.0
        %3351 = vmatpush1.msra.mxu0 0.0
        %3352 = vmatprep.subr.mxu0 0.0
        %3353 = vmatpush1.msra.mxu0 0.0
        %3354 = vmatprep.subr.mxu0 0.0
        %3355 = vmatpush1.msra.mxu0 0.0
        %3356 = vmatprep.subr.mxu0 0.0
        %3357 = vmatpush1.msra.mxu0 0.0
        %3358 = vmatprep.subr.mxu0 0.0
        %3359 = vmatpush1.msra.mxu0 0.0
        %3360 = vmatprep.subr.mxu0 0.0
        %3361 = vmatpush1.msra.mxu0 0.0
        %3362 = vmatprep.subr.mxu0 0.0
        %3363 = vmatpush1.msra.mxu0 0.0
        %3364 = vmatprep.subr.mxu0 0.0
        %3365 = vmatpush1.msra.mxu0 0.0
        %3366 = vmatprep.subr.mxu0 0.0
        %3367 = vmatpush1.msra.mxu0 0.0
        %3368 = vmatprep.subr.mxu0 0.0
        %3369 = vmatpush1.msra.mxu0 0.0
        %3370 = vmatprep.subr.mxu0 0.0
        %3371 = vmatpush1.msra.mxu0 0.0
        %3372 = vmatprep.subr.mxu0 0.0
        %3373 = vmatpush1.msra.mxu0 0.0
        %3374 = vmatprep.subr.mxu0 0.0
        %3375 = vmatpush1.msra.mxu0 0.0
        %3376 = vmatprep.subr.mxu0 0.0
        %3377 = vmatpush1.msra.mxu0 0.0
        %3378 = vmatprep.subr.mxu0 0.0
        %3379 = vmatpush1.msra.mxu0 0.0
        %3380 = vmatprep.subr.mxu0 0.0
        %3381 = vmatpush1.msra.mxu0 0.0
        %3382 = vmatprep.subr.mxu0 0.0
        %3383 = vmatpush1.msra.mxu0 0.0
        %3384 = vmatprep.subr.mxu0 0.0
        %3385 = vmatpush1.msra.mxu0 0.0
        %3386 = vmatprep.subr.mxu0 0.0
        %3387 = vmatpush1.msra.mxu0 0.0
        %3388 = vmatprep.subr.mxu0 0.0
        %3389 = vmatpush1.msra.mxu0 0.0
        %3390 = vmatprep.subr.mxu0 0.0
        %3391 = vmatpush1.msra.mxu0 0.0
        %3392 = vmatprep.subr.mxu0 0.0
        %3393 = vmatpush1.msra.mxu0 0.0
        %3394 = vmatprep.subr.mxu0 0.0
        %3395 = vmatpush1.msra.mxu0 0.0
        %3396 = vmatprep.subr.mxu0 0.0
        %3397 = vmatpush1.msra.mxu0 0.0
        %3398 = vmatprep.subr.mxu0 0.0
        %3399 = vmatpush1.msra.mxu0 0.0
        %3400 = vmatprep.subr.mxu0 0.0
        %3401 = vmatpush1.msra.mxu0 0.0
        %3402 = vmatprep.mubr.f32.mxu0 0.0
        %3403 = vmatmul.mubr.f32.gmra.mrb[0].mxu0 %v3334
        %v3404 = vpop.f32.mrb[0].mxu0
        %v3405 = vadd.f32 %v3332, %v3404
        %v3406 = vpop.f32.mrb[0].mxu0
        %3407 = vmatprep.mubr.f32.mxu0 0.0
        %3408 = vmatmul.mubr.f32.gmra.mrb[0].mxu0 %v3336
        %v3409 = vpop.f32.mrb[0].mxu0
        %v3410 = vadd.f32 %v3332, %v3409
        %v3411 = vpop.f32.mrb[0].mxu0
        %3412 = vdwg.mxu0
        %v3413 = vld [vmem:[%s15] sm:$0xff]
        %v3414 = vld [vmem:[%s15 + $0x8] sm:$0xff]
        %v3415 = vld [vmem:[%s15 + $0x10] sm:$0xff]
        %v3416 = vld [vmem:[%s15 + $0x18] sm:$0xff]
        %v3417 = vld [vmem:[%s16] sm:$0x1]
        %v3419 = vlaneseq
        %v3420 = vshrl.u32 %v3419, 7
        %v3421 = vsub.s32 0, %v3420
        %v3422 = vrot.slane %v3417, %v3421
        %v3425 = vsel %vm1267, %v3405, 0
        %v3428 = vsel %vm1267, %v3410, 0
        %3430 = vmatprep.subr.mxu0 0.0
        %3431 = vmatpush1.msra.mxu0 %v3413
        %3432 = vmatprep.subr.mxu0 0.0
        %3433 = vmatpush1.msra.mxu0 %v3414
        %3434 = vmatprep.subr.mxu0 0.0
        %3435 = vmatpush1.msra.mxu0 %v3415
        %3436 = vmatprep.subr.mxu0 0.0
        %3437 = vmatpush1.msra.mxu0 %v3416
        %3438 = vmatprep.subr.mxu0 0.0
        %3439 = vmatpush1.msra.mxu0 0.0
        %3440 = vmatprep.subr.mxu0 0.0
        %3441 = vmatpush1.msra.mxu0 0.0
        %3442 = vmatprep.subr.mxu0 0.0
        %3443 = vmatpush1.msra.mxu0 0.0
        %3444 = vmatprep.subr.mxu0 0.0
        %3445 = vmatpush1.msra.mxu0 0.0
        %3446 = vmatprep.subr.mxu0 0.0
        %3447 = vmatpush1.msra.mxu0 0.0
        %3448 = vmatprep.subr.mxu0 0.0
        %3449 = vmatpush1.msra.mxu0 0.0
        %3450 = vmatprep.subr.mxu0 0.0
        %3451 = vmatpush1.msra.mxu0 0.0
        %3452 = vmatprep.subr.mxu0 0.0
        %3453 = vmatpush1.msra.mxu0 0.0
        %3454 = vmatprep.subr.mxu0 0.0
        %3455 = vmatpush1.msra.mxu0 0.0
        %3456 = vmatprep.subr.mxu0 0.0
        %3457 = vmatpush1.msra.mxu0 0.0
        %3458 = vmatprep.subr.mxu0 0.0
        %3459 = vmatpush1.msra.mxu0 0.0
        %3460 = vmatprep.subr.mxu0 0.0
        %3461 = vmatpush1.msra.mxu0 0.0
        %3462 = vmatprep.subr.mxu0 0.0
        %3463 = vmatpush1.msra.mxu0 0.0
        %3464 = vmatprep.subr.mxu0 0.0
        %3465 = vmatpush1.msra.mxu0 0.0
        %3466 = vmatprep.subr.mxu0 0.0
        %3467 = vmatpush1.msra.mxu0 0.0
        %3468 = vmatprep.subr.mxu0 0.0
        %3469 = vmatpush1.msra.mxu0 0.0
        %3470 = vmatprep.subr.mxu0 0.0
        %3471 = vmatpush1.msra.mxu0 0.0
        %3472 = vmatprep.subr.mxu0 0.0
        %3473 = vmatpush1.msra.mxu0 0.0
        %3474 = vmatprep.subr.mxu0 0.0
        %3475 = vmatpush1.msra.mxu0 0.0
        %3476 = vmatprep.subr.mxu0 0.0
        %3477 = vmatpush1.msra.mxu0 0.0
        %3478 = vmatprep.subr.mxu0 0.0
        %3479 = vmatpush1.msra.mxu0 0.0
        %3480 = vmatprep.subr.mxu0 0.0
        %3481 = vmatpush1.msra.mxu0 0.0
        %3482 = vmatprep.subr.mxu0 0.0
        %3483 = vmatpush1.msra.mxu0 0.0
        %3484 = vmatprep.subr.mxu0 0.0
        %3485 = vmatpush1.msra.mxu0 0.0
        %3486 = vmatprep.subr.mxu0 0.0
        %3487 = vmatpush1.msra.mxu0 0.0
        %3488 = vmatprep.subr.mxu0 0.0
        %3489 = vmatpush1.msra.mxu0 0.0
        %3490 = vmatprep.subr.mxu0 0.0
        %3491 = vmatpush1.msra.mxu0 0.0
        %3492 = vmatprep.subr.mxu0 0.0
        %3493 = vmatpush1.msra.mxu0 0.0
        %3494 = vmatprep.mubr.f32.mxu0 0.0
        %3495 = vmatmul.mubr.f32.gmra.mrb[0].mxu0 %v3425
        %v3496 = vpop.f32.mrb[0].mxu0
        %v3497 = vadd.f32 %v3422, %v3496
        %v3498 = vpop.f32.mrb[0].mxu0
        %3499 = vmatprep.mubr.f32.mxu0 0.0
        %3500 = vmatmul.mubr.f32.gmra.mrb[0].mxu0 %v3428
        %v3501 = vpop.f32.mrb[0].mxu0
        %v3502 = vadd.f32 %v3422, %v3501
        %v3503 = vpop.f32.mrb[0].mxu0
        %3504 = vdwg.mxu0
        %v3505 = vld [vmem:[%s17] sm:$0xff]
        %v3506 = vld [vmem:[%s17 + $0x8] sm:$0xff]
        %v3507 = vld [vmem:[%s17 + $0x10] sm:$0xff]
        %v3508 = vld [vmem:[%s17 + $0x18] sm:$0xff]
        %v3509 = vld [vmem:[%s18] sm:$0x1]
        %3510 = vmatprep.subr.mxu0 0.0
        %3511 = vmatpush1.msra.mxu0 %v3505
        %3512 = vmatprep.subr.mxu0 0.0
        %3513 = vmatpush1.msra.mxu0 %v3506
        %3514 = vmatprep.subr.mxu0 0.0
        %3515 = vmatpush1.msra.mxu0 %v3507
        %3516 = vmatprep.subr.mxu0 0.0
        %3517 = vmatpush1.msra.mxu0 %v3508
        %3518 = vmatprep.subr.mxu0 0.0
        %3519 = vmatpush1.msra.mxu0 0.0
        %3520 = vmatprep.subr.mxu0 0.0
        %3521 = vmatpush1.msra.mxu0 0.0
        %3522 = vmatprep.subr.mxu0 0.0
        %3523 = vmatpush1.msra.mxu0 0.0
        %3524 = vmatprep.subr.mxu0 0.0
        %3525 = vmatpush1.msra.mxu0 0.0
        %3526 = vmatprep.subr.mxu0 0.0
        %3527 = vmatpush1.msra.mxu0 0.0
        %3528 = vmatprep.subr.mxu0 0.0
        %3529 = vmatpush1.msra.mxu0 0.0
        %3530 = vmatprep.subr.mxu0 0.0
        %3531 = vmatpush1.msra.mxu0 0.0
        %3532 = vmatprep.subr.mxu0 0.0
        %3533 = vmatpush1.msra.mxu0 0.0
        %3534 = vmatprep.subr.mxu0 0.0
        %3535 = vmatpush1.msra.mxu0 0.0
        %3536 = vmatprep.subr.mxu0 0.0
        %3537 = vmatpush1.msra.mxu0 0.0
        %3538 = vmatprep.subr.mxu0 0.0
        %3539 = vmatpush1.msra.mxu0 0.0
        %3540 = vmatprep.subr.mxu0 0.0
        %3541 = vmatpush1.msra.mxu0 0.0
        %3542 = vmatprep.subr.mxu0 0.0
        %3543 = vmatpush1.msra.mxu0 0.0
        %3544 = vmatprep.subr.mxu0 0.0
        %3545 = vmatpush1.msra.mxu0 0.0
        %3546 = vmatprep.subr.mxu0 0.0
        %3547 = vmatpush1.msra.mxu0 0.0
        %3548 = vmatprep.subr.mxu0 0.0
        %3549 = vmatpush1.msra.mxu0 0.0
        %3550 = vmatprep.subr.mxu0 0.0
        %3551 = vmatpush1.msra.mxu0 0.0
        %3552 = vmatprep.subr.mxu0 0.0
        %3553 = vmatpush1.msra.mxu0 0.0
        %3554 = vmatprep.subr.mxu0 0.0
        %3555 = vmatpush1.msra.mxu0 0.0
        %3556 = vmatprep.subr.mxu0 0.0
        %3557 = vmatpush1.msra.mxu0 0.0
        %3558 = vmatprep.subr.mxu0 0.0
        %3559 = vmatpush1.msra.mxu0 0.0
        %3560 = vmatprep.subr.mxu0 0.0
        %3561 = vmatpush1.msra.mxu0 0.0
        %3562 = vmatprep.subr.mxu0 0.0
        %3563 = vmatpush1.msra.mxu0 0.0
        %3564 = vmatprep.subr.mxu0 0.0
        %3565 = vmatpush1.msra.mxu0 0.0
        %3566 = vmatprep.subr.mxu0 0.0
        %3567 = vmatpush1.msra.mxu0 0.0
        %3568 = vmatprep.subr.mxu0 0.0
        %3569 = vmatpush1.msra.mxu0 0.0
        %3570 = vmatprep.subr.mxu0 0.0
        %3571 = vmatpush1.msra.mxu0 0.0
        %3572 = vmatprep.subr.mxu0 0.0
        %3573 = vmatpush1.msra.mxu0 0.0
        %3574 = vmatprep.mubr.f32.mxu0 0.0
        %3575 = vmatmul.mubr.f32.gmra.mrb[0].mxu0 %v1355
        %v3576 = vpop.f32.mrb[0].mxu0
        %v3577 = vadd.f32 %v3509, %v3576
        %v3578 = vpop.f32.mrb[0].mxu0
        %3579 = vdwg.mxu0
        %v3580 = vadd.f32 %v3497, %v3577
        %v3581 = vxor.u32 %v3580, 2147483648
        %v3582 = vmul.f32 %v3581, 1.442695
        %v3583 = vpow.pop %v3582
        %v3584 = vadd.f32 %v3583, 1.0
        %v3585 = vrcp.pop %v3584
        %v3586 = vmul.f32 1.0, %v3585
        %3588 = vrot.lane.b32.xlu0 %v3577, 64
        %v3589 = vpop.permute.xlu0 %3588
        %v3591 = vmul.f32 %v3586, %v3589
        %3593 = vrot.lane.b32.xlu0 %v3591, 64
        %v3594 = vpop.permute.xlu0 %3593
        %v3596 = vadd.f32 %v3497, %v3594
        %v3597 = vtanh.pop %v3596
        %v3598 = vsub.f32 1.0, %v3586
        %3600 = vrot.lane.b32.xlu0 %v3597, 96
        %v3601 = vpop.permute.xlu0 %3600
        %v3603 = vmul.f32 %v3598, %v3601
        %v3604 = vmul.f32 %v3586, 0.0
        %v3605 = vadd.f32 %v3603, %v3604
        %3607 = vrot.lane.b32.xlu0 %v3605, 96
        %v3608 = vpop.permute.xlu0 %3607
        %v3609 = vsel %vm1267, %v3608, 0
        %3611 = vmatprep.subr.mxu0 0.0
        %3612 = vmatpush1.msra.mxu0 %v3505
        %3613 = vmatprep.subr.mxu0 0.0
        %3614 = vmatpush1.msra.mxu0 %v3506
        %3615 = vmatprep.subr.mxu0 0.0
        %3616 = vmatpush1.msra.mxu0 %v3507
        %3617 = vmatprep.subr.mxu0 0.0
        %3618 = vmatpush1.msra.mxu0 %v3508
        %3619 = vmatprep.subr.mxu0 0.0
        %3620 = vmatpush1.msra.mxu0 0.0
        %3621 = vmatprep.subr.mxu0 0.0
        %3622 = vmatpush1.msra.mxu0 0.0
        %3623 = vmatprep.subr.mxu0 0.0
        %3624 = vmatpush1.msra.mxu0 0.0
        %3625 = vmatprep.subr.mxu0 0.0
        %3626 = vmatpush1.msra.mxu0 0.0
        %3627 = vmatprep.subr.mxu0 0.0
        %3628 = vmatpush1.msra.mxu0 0.0
        %3629 = vmatprep.subr.mxu0 0.0
        %3630 = vmatpush1.msra.mxu0 0.0
        %3631 = vmatprep.subr.mxu0 0.0
        %3632 = vmatpush1.msra.mxu0 0.0
        %3633 = vmatprep.subr.mxu0 0.0
        %3634 = vmatpush1.msra.mxu0 0.0
        %3635 = vmatprep.subr.mxu0 0.0
        %3636 = vmatpush1.msra.mxu0 0.0
        %3637 = vmatprep.subr.mxu0 0.0
        %3638 = vmatpush1.msra.mxu0 0.0
        %3639 = vmatprep.subr.mxu0 0.0
        %3640 = vmatpush1.msra.mxu0 0.0
        %3641 = vmatprep.subr.mxu0 0.0
        %3642 = vmatpush1.msra.mxu0 0.0
        %3643 = vmatprep.subr.mxu0 0.0
        %3644 = vmatpush1.msra.mxu0 0.0
        %3645 = vmatprep.subr.mxu0 0.0
        %3646 = vmatpush1.msra.mxu0 0.0
        %3647 = vmatprep.subr.mxu0 0.0
        %3648 = vmatpush1.msra.mxu0 0.0
        %3649 = vmatprep.subr.mxu0 0.0
        %3650 = vmatpush1.msra.mxu0 0.0
        %3651 = vmatprep.subr.mxu0 0.0
        %3652 = vmatpush1.msra.mxu0 0.0
        %3653 = vmatprep.subr.mxu0 0.0
        %3654 = vmatpush1.msra.mxu0 0.0
        %3655 = vmatprep.subr.mxu0 0.0
        %3656 = vmatpush1.msra.mxu0 0.0
        %3657 = vmatprep.subr.mxu0 0.0
        %3658 = vmatpush1.msra.mxu0 0.0
        %3659 = vmatprep.subr.mxu0 0.0
        %3660 = vmatpush1.msra.mxu0 0.0
        %3661 = vmatprep.subr.mxu0 0.0
        %3662 = vmatpush1.msra.mxu0 0.0
        %3663 = vmatprep.subr.mxu0 0.0
        %3664 = vmatpush1.msra.mxu0 0.0
        %3665 = vmatprep.subr.mxu0 0.0
        %3666 = vmatpush1.msra.mxu0 0.0
        %3667 = vmatprep.subr.mxu0 0.0
        %3668 = vmatpush1.msra.mxu0 0.0
        %3669 = vmatprep.subr.mxu0 0.0
        %3670 = vmatpush1.msra.mxu0 0.0
        %3671 = vmatprep.subr.mxu0 0.0
        %3672 = vmatpush1.msra.mxu0 0.0
        %3673 = vmatprep.subr.mxu0 0.0
        %3674 = vmatpush1.msra.mxu0 0.0
        %3675 = vmatprep.mubr.f32.mxu0 0.0
        %3676 = vmatmul.mubr.f32.gmra.mrb[0].mxu0 %v3609
        %v3677 = vpop.f32.mrb[0].mxu0
        %v3678 = vadd.f32 %v3509, %v3677
        %v3679 = vpop.f32.mrb[0].mxu0
        %3680 = vdwg.mxu0
        %v3682 = vrot.slane %v3678, 7
        %v3684 = vadd.f32 %v3497, %v3682
        %v3685 = vxor.u32 %v3684, 2147483648
        %v3686 = vmul.f32 %v3685, 1.442695
        %v3687 = vpow.pop %v3686
        %v3688 = vadd.f32 %v3687, 1.0
        %v3689 = vrcp.pop %v3688
        %v3690 = vmul.f32 1.0, %v3689
        %3691 = vrot.lane.b32.xlu0 %v3682, 64
        %v3692 = vpop.permute.xlu0 %3691
        %v3694 = vmul.f32 %v3690, %v3692
        %3696 = vrot.lane.b32.xlu0 %v3694, 64
        %v3697 = vpop.permute.xlu0 %3696
        %v3699 = vadd.f32 %v3497, %v3697
        %v3700 = vtanh.pop %v3699
        %v3701 = vsub.f32 1.0, %v3690
        %3703 = vrot.lane.b32.xlu0 %v3700, 96
        %v3704 = vpop.permute.xlu0 %3703
        %v3706 = vmul.f32 %v3701, %v3704
        %v3707 = vrot.slane %v3605, 7
        %v3709 = vmul.f32 %v3690, %v3707
        %v3710 = vadd.f32 %v3706, %v3709
        %v3712 = vrot.slane %v3710, 1
        %3713 = vrot.lane.b32.xlu0 %v3712, 96
        %v3714 = vpop.permute.xlu0 %3713
        %v3715 = vsel %vm1267, %v3714, 0
        %3717 = vmatprep.subr.mxu0 0.0
        %3718 = vmatpush1.msra.mxu0 %v3505
        %3719 = vmatprep.subr.mxu0 0.0
        %3720 = vmatpush1.msra.mxu0 %v3506
        %3721 = vmatprep.subr.mxu0 0.0
        %3722 = vmatpush1.msra.mxu0 %v3507
        %3723 = vmatprep.subr.mxu0 0.0
        %3724 = vmatpush1.msra.mxu0 %v3508
        %3725 = vmatprep.subr.mxu0 0.0
        %3726 = vmatpush1.msra.mxu0 0.0
        %3727 = vmatprep.subr.mxu0 0.0
        %3728 = vmatpush1.msra.mxu0 0.0
        %3729 = vmatprep.subr.mxu0 0.0
        %3730 = vmatpush1.msra.mxu0 0.0
        %3731 = vmatprep.subr.mxu0 0.0
        %3732 = vmatpush1.msra.mxu0 0.0
        %3733 = vmatprep.subr.mxu0 0.0
        %3734 = vmatpush1.msra.mxu0 0.0
        %3735 = vmatprep.subr.mxu0 0.0
        %3736 = vmatpush1.msra.mxu0 0.0
        %3737 = vmatprep.subr.mxu0 0.0
        %3738 = vmatpush1.msra.mxu0 0.0
        %3739 = vmatprep.subr.mxu0 0.0
        %3740 = vmatpush1.msra.mxu0 0.0
        %3741 = vmatprep.subr.mxu0 0.0
        %3742 = vmatpush1.msra.mxu0 0.0
        %3743 = vmatprep.subr.mxu0 0.0
        %3744 = vmatpush1.msra.mxu0 0.0
        %3745 = vmatprep.subr.mxu0 0.0
        %3746 = vmatpush1.msra.mxu0 0.0
        %3747 = vmatprep.subr.mxu0 0.0
        %3748 = vmatpush1.msra.mxu0 0.0
        %3749 = vmatprep.subr.mxu0 0.0
        %3750 = vmatpush1.msra.mxu0 0.0
        %3751 = vmatprep.subr.mxu0 0.0
        %3752 = vmatpush1.msra.mxu0 0.0
        %3753 = vmatprep.subr.mxu0 0.0
        %3754 = vmatpush1.msra.mxu0 0.0
        %3755 = vmatprep.subr.mxu0 0.0
        %3756 = vmatpush1.msra.mxu0 0.0
        %3757 = vmatprep.subr.mxu0 0.0
        %3758 = vmatpush1.msra.mxu0 0.0
        %3759 = vmatprep.subr.mxu0 0.0
        %3760 = vmatpush1.msra.mxu0 0.0
        %3761 = vmatprep.subr.mxu0 0.0
        %3762 = vmatpush1.msra.mxu0 0.0
        %3763 = vmatprep.subr.mxu0 0.0
        %3764 = vmatpush1.msra.mxu0 0.0
        %3765 = vmatprep.subr.mxu0 0.0
        %3766 = vmatpush1.msra.mxu0 0.0
        %3767 = vmatprep.subr.mxu0 0.0
        %3768 = vmatpush1.msra.mxu0 0.0
        %3769 = vmatprep.subr.mxu0 0.0
        %3770 = vmatpush1.msra.mxu0 0.0
        %3771 = vmatprep.subr.mxu0 0.0
        %3772 = vmatpush1.msra.mxu0 0.0
        %3773 = vmatprep.subr.mxu0 0.0
        %3774 = vmatpush1.msra.mxu0 0.0
        %3775 = vmatprep.subr.mxu0 0.0
        %3776 = vmatpush1.msra.mxu0 0.0
        %3777 = vmatprep.subr.mxu0 0.0
        %3778 = vmatpush1.msra.mxu0 0.0
        %3779 = vmatprep.subr.mxu0 0.0
        %3780 = vmatpush1.msra.mxu0 0.0
        %3781 = vmatprep.mubr.f32.mxu0 0.0
        %3782 = vmatmul.mubr.f32.gmra.mrb[0].mxu0 %v3715
        %v3783 = vpop.f32.mrb[0].mxu0
        %v3784 = vadd.f32 %v3509, %v3783
        %v3785 = vpop.f32.mrb[0].mxu0
        %3786 = vdwg.mxu0
        %v3788 = vrot.slane %v3784, 6
        %v3790 = vadd.f32 %v3497, %v3788
        %v3791 = vxor.u32 %v3790, 2147483648
        %v3792 = vmul.f32 %v3791, 1.442695
        %v3793 = vpow.pop %v3792
        %v3794 = vadd.f32 %v3793, 1.0
        %v3795 = vrcp.pop %v3794
        %v3796 = vmul.f32 1.0, %v3795
        %3797 = vrot.lane.b32.xlu0 %v3788, 64
        %v3798 = vpop.permute.xlu0 %3797
        %v3800 = vmul.f32 %v3796, %v3798
        %3802 = vrot.lane.b32.xlu0 %v3800, 64
        %v3803 = vpop.permute.xlu0 %3802
        %v3805 = vadd.f32 %v3497, %v3803
        %v3806 = vtanh.pop %v3805
        %v3807 = vsub.f32 1.0, %v3796
        %3809 = vrot.lane.b32.xlu0 %v3806, 96
        %v3810 = vpop.permute.xlu0 %3809
        %v3812 = vmul.f32 %v3807, %v3810
        %v3813 = vrot.slane %v3710, 7
        %v3815 = vmul.f32 %v3796, %v3813
        %v3816 = vadd.f32 %v3812, %v3815
        %v3818 = vrot.slane %v3816, 2
        %3819 = vrot.lane.b32.xlu0 %v3818, 96
        %v3820 = vpop.permute.xlu0 %3819
        %v3821 = vsel %vm1267, %v3820, 0
        %3823 = vmatprep.subr.mxu0 0.0
        %3824 = vmatpush1.msra.mxu0 %v3505
        %3825 = vmatprep.subr.mxu0 0.0
        %3826 = vmatpush1.msra.mxu0 %v3506
        %3827 = vmatprep.subr.mxu0 0.0
        %3828 = vmatpush1.msra.mxu0 %v3507
        %3829 = vmatprep.subr.mxu0 0.0
        %3830 = vmatpush1.msra.mxu0 %v3508
        %3831 = vmatprep.subr.mxu0 0.0
        %3832 = vmatpush1.msra.mxu0 0.0
        %3833 = vmatprep.subr.mxu0 0.0
        %3834 = vmatpush1.msra.mxu0 0.0
        %3835 = vmatprep.subr.mxu0 0.0
        %3836 = vmatpush1.msra.mxu0 0.0
        %3837 = vmatprep.subr.mxu0 0.0
        %3838 = vmatpush1.msra.mxu0 0.0
        %3839 = vmatprep.subr.mxu0 0.0
        %3840 = vmatpush1.msra.mxu0 0.0
        %3841 = vmatprep.subr.mxu0 0.0
        %3842 = vmatpush1.msra.mxu0 0.0
        %3843 = vmatprep.subr.mxu0 0.0
        %3844 = vmatpush1.msra.mxu0 0.0
        %3845 = vmatprep.subr.mxu0 0.0
        %3846 = vmatpush1.msra.mxu0 0.0
        %3847 = vmatprep.subr.mxu0 0.0
        %3848 = vmatpush1.msra.mxu0 0.0
        %3849 = vmatprep.subr.mxu0 0.0
        %3850 = vmatpush1.msra.mxu0 0.0
        %3851 = vmatprep.subr.mxu0 0.0
        %3852 = vmatpush1.msra.mxu0 0.0
        %3853 = vmatprep.subr.mxu0 0.0
        %3854 = vmatpush1.msra.mxu0 0.0
        %3855 = vmatprep.subr.mxu0 0.0
        %3856 = vmatpush1.msra.mxu0 0.0
        %3857 = vmatprep.subr.mxu0 0.0
        %3858 = vmatpush1.msra.mxu0 0.0
        %3859 = vmatprep.subr.mxu0 0.0
        %3860 = vmatpush1.msra.mxu0 0.0
        %3861 = vmatprep.subr.mxu0 0.0
        %3862 = vmatpush1.msra.mxu0 0.0
        %3863 = vmatprep.subr.mxu0 0.0
        %3864 = vmatpush1.msra.mxu0 0.0
        %3865 = vmatprep.subr.mxu0 0.0
        %3866 = vmatpush1.msra.mxu0 0.0
        %3867 = vmatprep.subr.mxu0 0.0
        %3868 = vmatpush1.msra.mxu0 0.0
        %3869 = vmatprep.subr.mxu0 0.0
        %3870 = vmatpush1.msra.mxu0 0.0
        %3871 = vmatprep.subr.mxu0 0.0
        %3872 = vmatpush1.msra.mxu0 0.0
        %3873 = vmatprep.subr.mxu0 0.0
        %3874 = vmatpush1.msra.mxu0 0.0
        %3875 = vmatprep.subr.mxu0 0.0
        %3876 = vmatpush1.msra.mxu0 0.0
        %3877 = vmatprep.subr.mxu0 0.0
        %3878 = vmatpush1.msra.mxu0 0.0
        %3879 = vmatprep.subr.mxu0 0.0
        %3880 = vmatpush1.msra.mxu0 0.0
        %3881 = vmatprep.subr.mxu0 0.0
        %3882 = vmatpush1.msra.mxu0 0.0
        %3883 = vmatprep.subr.mxu0 0.0
        %3884 = vmatpush1.msra.mxu0 0.0
        %3885 = vmatprep.subr.mxu0 0.0
        %3886 = vmatpush1.msra.mxu0 0.0
        %3887 = vmatprep.mubr.f32.mxu0 0.0
        %3888 = vmatmul.mubr.f32.gmra.mrb[0].mxu0 %v3821
        %v3889 = vpop.f32.mrb[0].mxu0
        %v3890 = vadd.f32 %v3509, %v3889
        %v3891 = vpop.f32.mrb[0].mxu0
        %3892 = vdwg.mxu0
        %v3894 = vrot.slane %v3890, 5
        %v3896 = vadd.f32 %v3497, %v3894
        %v3897 = vxor.u32 %v3896, 2147483648
        %v3898 = vmul.f32 %v3897, 1.442695
        %v3899 = vpow.pop %v3898
        %v3900 = vadd.f32 %v3899, 1.0
        %v3901 = vrcp.pop %v3900
        %v3902 = vmul.f32 1.0, %v3901
        %3903 = vrot.lane.b32.xlu0 %v3894, 64
        %v3904 = vpop.permute.xlu0 %3903
        %v3906 = vmul.f32 %v3902, %v3904
        %3908 = vrot.lane.b32.xlu0 %v3906, 64
        %v3909 = vpop.permute.xlu0 %3908
        %v3911 = vadd.f32 %v3497, %v3909
        %v3912 = vtanh.pop %v3911
        %v3913 = vsub.f32 1.0, %v3902
        %3915 = vrot.lane.b32.xlu0 %v3912, 96
        %v3916 = vpop.permute.xlu0 %3915
        %v3918 = vmul.f32 %v3913, %v3916
        %v3919 = vrot.slane %v3816, 7
        %v3921 = vmul.f32 %v3902, %v3919
        %v3922 = vadd.f32 %v3918, %v3921
        %v3924 = vrot.slane %v3922, 3
        %3925 = vrot.lane.b32.xlu0 %v3924, 96
        %v3926 = vpop.permute.xlu0 %3925
        %v3927 = vsel %vm1267, %v3926, 0
        %3929 = vmatprep.subr.mxu0 0.0
        %3930 = vmatpush1.msra.mxu0 %v3505
        %3931 = vmatprep.subr.mxu0 0.0
        %3932 = vmatpush1.msra.mxu0 %v3506
        %3933 = vmatprep.subr.mxu0 0.0
        %3934 = vmatpush1.msra.mxu0 %v3507
        %3935 = vmatprep.subr.mxu0 0.0
        %3936 = vmatpush1.msra.mxu0 %v3508
        %3937 = vmatprep.subr.mxu0 0.0
        %3938 = vmatpush1.msra.mxu0 0.0
        %3939 = vmatprep.subr.mxu0 0.0
        %3940 = vmatpush1.msra.mxu0 0.0
        %3941 = vmatprep.subr.mxu0 0.0
        %3942 = vmatpush1.msra.mxu0 0.0
        %3943 = vmatprep.subr.mxu0 0.0
        %3944 = vmatpush1.msra.mxu0 0.0
        %3945 = vmatprep.subr.mxu0 0.0
        %3946 = vmatpush1.msra.mxu0 0.0
        %3947 = vmatprep.subr.mxu0 0.0
        %3948 = vmatpush1.msra.mxu0 0.0
        %3949 = vmatprep.subr.mxu0 0.0
        %3950 = vmatpush1.msra.mxu0 0.0
        %3951 = vmatprep.subr.mxu0 0.0
        %3952 = vmatpush1.msra.mxu0 0.0
        %3953 = vmatprep.subr.mxu0 0.0
        %3954 = vmatpush1.msra.mxu0 0.0
        %3955 = vmatprep.subr.mxu0 0.0
        %3956 = vmatpush1.msra.mxu0 0.0
        %3957 = vmatprep.subr.mxu0 0.0
        %3958 = vmatpush1.msra.mxu0 0.0
        %3959 = vmatprep.subr.mxu0 0.0
        %3960 = vmatpush1.msra.mxu0 0.0
        %3961 = vmatprep.subr.mxu0 0.0
        %3962 = vmatpush1.msra.mxu0 0.0
        %3963 = vmatprep.subr.mxu0 0.0
        %3964 = vmatpush1.msra.mxu0 0.0
        %3965 = vmatprep.subr.mxu0 0.0
        %3966 = vmatpush1.msra.mxu0 0.0
        %3967 = vmatprep.subr.mxu0 0.0
        %3968 = vmatpush1.msra.mxu0 0.0
        %3969 = vmatprep.subr.mxu0 0.0
        %3970 = vmatpush1.msra.mxu0 0.0
        %3971 = vmatprep.subr.mxu0 0.0
        %3972 = vmatpush1.msra.mxu0 0.0
        %3973 = vmatprep.subr.mxu0 0.0
        %3974 = vmatpush1.msra.mxu0 0.0
        %3975 = vmatprep.subr.mxu0 0.0
        %3976 = vmatpush1.msra.mxu0 0.0
        %3977 = vmatprep.subr.mxu0 0.0
        %3978 = vmatpush1.msra.mxu0 0.0
        %3979 = vmatprep.subr.mxu0 0.0
        %3980 = vmatpush1.msra.mxu0 0.0
        %3981 = vmatprep.subr.mxu0 0.0
        %3982 = vmatpush1.msra.mxu0 0.0
        %3983 = vmatprep.subr.mxu0 0.0
        %3984 = vmatpush1.msra.mxu0 0.0
        %3985 = vmatprep.subr.mxu0 0.0
        %3986 = vmatpush1.msra.mxu0 0.0
        %3987 = vmatprep.subr.mxu0 0.0
        %3988 = vmatpush1.msra.mxu0 0.0
        %3989 = vmatprep.subr.mxu0 0.0
        %3990 = vmatpush1.msra.mxu0 0.0
        %3991 = vmatprep.subr.mxu0 0.0
        %3992 = vmatpush1.msra.mxu0 0.0
        %3993 = vmatprep.mubr.f32.mxu0 0.0
        %3994 = vmatmul.mubr.f32.gmra.mrb[0].mxu0 %v3927
        %v3995 = vpop.f32.mrb[0].mxu0
        %v3996 = vadd.f32 %v3509, %v3995
        %v3997 = vpop.f32.mrb[0].mxu0
        %3998 = vdwg.mxu0
        %v4000 = vrot.slane %v3996, 4
        %v4002 = vadd.f32 %v3497, %v4000
        %v4003 = vxor.u32 %v4002, 2147483648
        %v4004 = vmul.f32 %v4003, 1.442695
        %v4005 = vpow.pop %v4004
        %v4006 = vadd.f32 %v4005, 1.0
        %v4007 = vrcp.pop %v4006
        %v4008 = vmul.f32 1.0, %v4007
        %4009 = vrot.lane.b32.xlu0 %v4000, 64
        %v4010 = vpop.permute.xlu0 %4009
        %v4012 = vmul.f32 %v4008, %v4010
        %4014 = vrot.lane.b32.xlu0 %v4012, 64
        %v4015 = vpop.permute.xlu0 %4014
        %v4017 = vadd.f32 %v3497, %v4015
        %v4018 = vtanh.pop %v4017
        %v4019 = vsub.f32 1.0, %v4008
        %4021 = vrot.lane.b32.xlu0 %v4018, 96
        %v4022 = vpop.permute.xlu0 %4021
        %v4024 = vmul.f32 %v4019, %v4022
        %v4025 = vrot.slane %v3922, 7
        %v4027 = vmul.f32 %v4008, %v4025
        %v4028 = vadd.f32 %v4024, %v4027
        %v4030 = vrot.slane %v4028, 4
        %4031 = vrot.lane.b32.xlu0 %v4030, 96
        %v4032 = vpop.permute.xlu0 %4031
        %v4033 = vsel %vm1267, %v4032, 0
        %4035 = vmatprep.subr.mxu0 0.0
        %4036 = vmatpush1.msra.mxu0 %v3505
        %4037 = vmatprep.subr.mxu0 0.0
        %4038 = vmatpush1.msra.mxu0 %v3506
        %4039 = vmatprep.subr.mxu0 0.0
        %4040 = vmatpush1.msra.mxu0 %v3507
        %4041 = vmatprep.subr.mxu0 0.0
        %4042 = vmatpush1.msra.mxu0 %v3508
        %4043 = vmatprep.subr.mxu0 0.0
        %4044 = vmatpush1.msra.mxu0 0.0
        %4045 = vmatprep.subr.mxu0 0.0
        %4046 = vmatpush1.msra.mxu0 0.0
        %4047 = vmatprep.subr.mxu0 0.0
        %4048 = vmatpush1.msra.mxu0 0.0
        %4049 = vmatprep.subr.mxu0 0.0
        %4050 = vmatpush1.msra.mxu0 0.0
        %4051 = vmatprep.subr.mxu0 0.0
        %4052 = vmatpush1.msra.mxu0 0.0
        %4053 = vmatprep.subr.mxu0 0.0
        %4054 = vmatpush1.msra.mxu0 0.0
        %4055 = vmatprep.subr.mxu0 0.0
        %4056 = vmatpush1.msra.mxu0 0.0
        %4057 = vmatprep.subr.mxu0 0.0
        %4058 = vmatpush1.msra.mxu0 0.0
        %4059 = vmatprep.subr.mxu0 0.0
        %4060 = vmatpush1.msra.mxu0 0.0
        %4061 = vmatprep.subr.mxu0 0.0
        %4062 = vmatpush1.msra.mxu0 0.0
        %4063 = vmatprep.subr.mxu0 0.0
        %4064 = vmatpush1.msra.mxu0 0.0
        %4065 = vmatprep.subr.mxu0 0.0
        %4066 = vmatpush1.msra.mxu0 0.0
        %4067 = vmatprep.subr.mxu0 0.0
        %4068 = vmatpush1.msra.mxu0 0.0
        %4069 = vmatprep.subr.mxu0 0.0
        %4070 = vmatpush1.msra.mxu0 0.0
        %4071 = vmatprep.subr.mxu0 0.0
        %4072 = vmatpush1.msra.mxu0 0.0
        %4073 = vmatprep.subr.mxu0 0.0
        %4074 = vmatpush1.msra.mxu0 0.0
        %4075 = vmatprep.subr.mxu0 0.0
        %4076 = vmatpush1.msra.mxu0 0.0
        %4077 = vmatprep.subr.mxu0 0.0
        %4078 = vmatpush1.msra.mxu0 0.0
        %4079 = vmatprep.subr.mxu0 0.0
        %4080 = vmatpush1.msra.mxu0 0.0
        %4081 = vmatprep.subr.mxu0 0.0
        %4082 = vmatpush1.msra.mxu0 0.0
        %4083 = vmatprep.subr.mxu0 0.0
        %4084 = vmatpush1.msra.mxu0 0.0
        %4085 = vmatprep.subr.mxu0 0.0
        %4086 = vmatpush1.msra.mxu0 0.0
        %4087 = vmatprep.subr.mxu0 0.0
        %4088 = vmatpush1.msra.mxu0 0.0
        %4089 = vmatprep.subr.mxu0 0.0
        %4090 = vmatpush1.msra.mxu0 0.0
        %4091 = vmatprep.subr.mxu0 0.0
        %4092 = vmatpush1.msra.mxu0 0.0
        %4093 = vmatprep.subr.mxu0 0.0
        %4094 = vmatpush1.msra.mxu0 0.0
        %4095 = vmatprep.subr.mxu0 0.0
        %4096 = vmatpush1.msra.mxu0 0.0
        %4097 = vmatprep.subr.mxu0 0.0
        %4098 = vmatpush1.msra.mxu0 0.0
        %4099 = vmatprep.mubr.f32.mxu0 0.0
        %4100 = vmatmul.mubr.f32.gmra.mrb[0].mxu0 %v4033
        %v4101 = vpop.f32.mrb[0].mxu0
        %v4102 = vadd.f32 %v3509, %v4101
        %v4103 = vpop.f32.mrb[0].mxu0
        %4104 = vdwg.mxu0
        %v4106 = vrot.slane %v4102, 3
        %v4108 = vadd.f32 %v3497, %v4106
        %v4109 = vxor.u32 %v4108, 2147483648
        %v4110 = vmul.f32 %v4109, 1.442695
        %v4111 = vpow.pop %v4110
        %v4112 = vadd.f32 %v4111, 1.0
        %v4113 = vrcp.pop %v4112
        %v4114 = vmul.f32 1.0, %v4113
        %4115 = vrot.lane.b32.xlu0 %v4106, 64
        %v4116 = vpop.permute.xlu0 %4115
        %v4118 = vmul.f32 %v4114, %v4116
        %4120 = vrot.lane.b32.xlu0 %v4118, 64
        %v4121 = vpop.permute.xlu0 %4120
        %v4123 = vadd.f32 %v3497, %v4121
        %v4124 = vtanh.pop %v4123
        %v4125 = vsub.f32 1.0, %v4114
        %4127 = vrot.lane.b32.xlu0 %v4124, 96
        %v4128 = vpop.permute.xlu0 %4127
        %v4130 = vmul.f32 %v4125, %v4128
        %v4131 = vrot.slane %v4028, 7
        %v4133 = vmul.f32 %v4114, %v4131
        %v4134 = vadd.f32 %v4130, %v4133
        %v4136 = vrot.slane %v4134, 5
        %4137 = vrot.lane.b32.xlu0 %v4136, 96
        %v4138 = vpop.permute.xlu0 %4137
        %v4139 = vsel %vm1267, %v4138, 0
        %4141 = vmatprep.subr.mxu0 0.0
        %4142 = vmatpush1.msra.mxu0 %v3505
        %4143 = vmatprep.subr.mxu0 0.0
        %4144 = vmatpush1.msra.mxu0 %v3506
        %4145 = vmatprep.subr.mxu0 0.0
        %4146 = vmatpush1.msra.mxu0 %v3507
        %4147 = vmatprep.subr.mxu0 0.0
        %4148 = vmatpush1.msra.mxu0 %v3508
        %4149 = vmatprep.subr.mxu0 0.0
        %4150 = vmatpush1.msra.mxu0 0.0
        %4151 = vmatprep.subr.mxu0 0.0
        %4152 = vmatpush1.msra.mxu0 0.0
        %4153 = vmatprep.subr.mxu0 0.0
        %4154 = vmatpush1.msra.mxu0 0.0
        %4155 = vmatprep.subr.mxu0 0.0
        %4156 = vmatpush1.msra.mxu0 0.0
        %4157 = vmatprep.subr.mxu0 0.0
        %4158 = vmatpush1.msra.mxu0 0.0
        %4159 = vmatprep.subr.mxu0 0.0
        %4160 = vmatpush1.msra.mxu0 0.0
        %4161 = vmatprep.subr.mxu0 0.0
        %4162 = vmatpush1.msra.mxu0 0.0
        %4163 = vmatprep.subr.mxu0 0.0
        %4164 = vmatpush1.msra.mxu0 0.0
        %4165 = vmatprep.subr.mxu0 0.0
        %4166 = vmatpush1.msra.mxu0 0.0
        %4167 = vmatprep.subr.mxu0 0.0
        %4168 = vmatpush1.msra.mxu0 0.0
        %4169 = vmatprep.subr.mxu0 0.0
        %4170 = vmatpush1.msra.mxu0 0.0
        %4171 = vmatprep.subr.mxu0 0.0
        %4172 = vmatpush1.msra.mxu0 0.0
        %4173 = vmatprep.subr.mxu0 0.0
        %4174 = vmatpush1.msra.mxu0 0.0
        %4175 = vmatprep.subr.mxu0 0.0
        %4176 = vmatpush1.msra.mxu0 0.0
        %4177 = vmatprep.subr.mxu0 0.0
        %4178 = vmatpush1.msra.mxu0 0.0
        %4179 = vmatprep.subr.mxu0 0.0
        %4180 = vmatpush1.msra.mxu0 0.0
        %4181 = vmatprep.subr.mxu0 0.0
        %4182 = vmatpush1.msra.mxu0 0.0
        %4183 = vmatprep.subr.mxu0 0.0
        %4184 = vmatpush1.msra.mxu0 0.0
        %4185 = vmatprep.subr.mxu0 0.0
        %4186 = vmatpush1.msra.mxu0 0.0
        %4187 = vmatprep.subr.mxu0 0.0
        %4188 = vmatpush1.msra.mxu0 0.0
        %4189 = vmatprep.subr.mxu0 0.0
        %4190 = vmatpush1.msra.mxu0 0.0
        %4191 = vmatprep.subr.mxu0 0.0
        %4192 = vmatpush1.msra.mxu0 0.0
        %4193 = vmatprep.subr.mxu0 0.0
        %4194 = vmatpush1.msra.mxu0 0.0
        %4195 = vmatprep.subr.mxu0 0.0
        %4196 = vmatpush1.msra.mxu0 0.0
        %4197 = vmatprep.subr.mxu0 0.0
        %4198 = vmatpush1.msra.mxu0 0.0
        %4199 = vmatprep.subr.mxu0 0.0
        %4200 = vmatpush1.msra.mxu0 0.0
        %4201 = vmatprep.subr.mxu0 0.0
        %4202 = vmatpush1.msra.mxu0 0.0
        %4203 = vmatprep.subr.mxu0 0.0
        %4204 = vmatpush1.msra.mxu0 0.0
        %4205 = vmatprep.mubr.f32.mxu0 0.0
        %4206 = vmatmul.mubr.f32.gmra.mrb[0].mxu0 %v4139
        %v4207 = vpop.f32.mrb[0].mxu0
        %v4208 = vadd.f32 %v3509, %v4207
        %v4209 = vpop.f32.mrb[0].mxu0
        %4210 = vdwg.mxu0
        %v4212 = vrot.slane %v4208, 2
        %v4214 = vadd.f32 %v3497, %v4212
        %v4215 = vxor.u32 %v4214, 2147483648
        %v4216 = vmul.f32 %v4215, 1.442695
        %v4217 = vpow.pop %v4216
        %v4218 = vadd.f32 %v4217, 1.0
        %v4219 = vrcp.pop %v4218
        %v4220 = vmul.f32 1.0, %v4219
        %4221 = vrot.lane.b32.xlu0 %v4212, 64
        %v4222 = vpop.permute.xlu0 %4221
        %v4224 = vmul.f32 %v4220, %v4222
        %4226 = vrot.lane.b32.xlu0 %v4224, 64
        %v4227 = vpop.permute.xlu0 %4226
        %v4229 = vadd.f32 %v3497, %v4227
        %v4230 = vtanh.pop %v4229
        %v4231 = vsub.f32 1.0, %v4220
        %4233 = vrot.lane.b32.xlu0 %v4230, 96
        %v4234 = vpop.permute.xlu0 %4233
        %v4236 = vmul.f32 %v4231, %v4234
        %v4237 = vrot.slane %v4134, 7
        %v4239 = vmul.f32 %v4220, %v4237
        %v4240 = vadd.f32 %v4236, %v4239
        %v4242 = vrot.slane %v4240, 6
        %4243 = vrot.lane.b32.xlu0 %v4242, 96
        %v4244 = vpop.permute.xlu0 %4243
        %v4245 = vsel %vm1267, %v4244, 0
        %4247 = vmatprep.subr.mxu0 0.0
        %4248 = vmatpush1.msra.mxu0 %v3505
        %4249 = vmatprep.subr.mxu0 0.0
        %4250 = vmatpush1.msra.mxu0 %v3506
        %4251 = vmatprep.subr.mxu0 0.0
        %4252 = vmatpush1.msra.mxu0 %v3507
        %4253 = vmatprep.subr.mxu0 0.0
        %4254 = vmatpush1.msra.mxu0 %v3508
        %4255 = vmatprep.subr.mxu0 0.0
        %4256 = vmatpush1.msra.mxu0 0.0
        %4257 = vmatprep.subr.mxu0 0.0
        %4258 = vmatpush1.msra.mxu0 0.0
        %4259 = vmatprep.subr.mxu0 0.0
        %4260 = vmatpush1.msra.mxu0 0.0
        %4261 = vmatprep.subr.mxu0 0.0
        %4262 = vmatpush1.msra.mxu0 0.0
        %4263 = vmatprep.subr.mxu0 0.0
        %4264 = vmatpush1.msra.mxu0 0.0
        %4265 = vmatprep.subr.mxu0 0.0
        %4266 = vmatpush1.msra.mxu0 0.0
        %4267 = vmatprep.subr.mxu0 0.0
        %4268 = vmatpush1.msra.mxu0 0.0
        %4269 = vmatprep.subr.mxu0 0.0
        %4270 = vmatpush1.msra.mxu0 0.0
        %4271 = vmatprep.subr.mxu0 0.0
        %4272 = vmatpush1.msra.mxu0 0.0
        %4273 = vmatprep.subr.mxu0 0.0
        %4274 = vmatpush1.msra.mxu0 0.0
        %4275 = vmatprep.subr.mxu0 0.0
        %4276 = vmatpush1.msra.mxu0 0.0
        %4277 = vmatprep.subr.mxu0 0.0
        %4278 = vmatpush1.msra.mxu0 0.0
        %4279 = vmatprep.subr.mxu0 0.0
        %4280 = vmatpush1.msra.mxu0 0.0
        %4281 = vmatprep.subr.mxu0 0.0
        %4282 = vmatpush1.msra.mxu0 0.0
        %4283 = vmatprep.subr.mxu0 0.0
        %4284 = vmatpush1.msra.mxu0 0.0
        %4285 = vmatprep.subr.mxu0 0.0
        %4286 = vmatpush1.msra.mxu0 0.0
        %4287 = vmatprep.subr.mxu0 0.0
        %4288 = vmatpush1.msra.mxu0 0.0
        %4289 = vmatprep.subr.mxu0 0.0
        %4290 = vmatpush1.msra.mxu0 0.0
        %4291 = vmatprep.subr.mxu0 0.0
        %4292 = vmatpush1.msra.mxu0 0.0
        %4293 = vmatprep.subr.mxu0 0.0
        %4294 = vmatpush1.msra.mxu0 0.0
        %4295 = vmatprep.subr.mxu0 0.0
        %4296 = vmatpush1.msra.mxu0 0.0
        %4297 = vmatprep.subr.mxu0 0.0
        %4298 = vmatpush1.msra.mxu0 0.0
        %4299 = vmatprep.subr.mxu0 0.0
        %4300 = vmatpush1.msra.mxu0 0.0
        %4301 = vmatprep.subr.mxu0 0.0
        %4302 = vmatpush1.msra.mxu0 0.0
        %4303 = vmatprep.subr.mxu0 0.0
        %4304 = vmatpush1.msra.mxu0 0.0
        %4305 = vmatprep.subr.mxu0 0.0
        %4306 = vmatpush1.msra.mxu0 0.0
        %4307 = vmatprep.subr.mxu0 0.0
        %4308 = vmatpush1.msra.mxu0 0.0
        %4309 = vmatprep.subr.mxu0 0.0
        %4310 = vmatpush1.msra.mxu0 0.0
        %4311 = vmatprep.mubr.f32.mxu0 0.0
        %4312 = vmatmul.mubr.f32.gmra.mrb[0].mxu0 %v4245
        %v4313 = vpop.f32.mrb[0].mxu0
        %v4314 = vadd.f32 %v3509, %v4313
        %v4315 = vpop.f32.mrb[0].mxu0
        %4316 = vdwg.mxu0
        %v4318 = vrot.slane %v4314, 1
        %v4320 = vadd.f32 %v3497, %v4318
        %v4321 = vxor.u32 %v4320, 2147483648
        %v4322 = vmul.f32 %v4321, 1.442695
        %v4323 = vpow.pop %v4322
        %v4324 = vadd.f32 %v4323, 1.0
        %v4325 = vrcp.pop %v4324
        %v4326 = vmul.f32 1.0, %v4325
        %4327 = vrot.lane.b32.xlu0 %v4318, 64
        %v4328 = vpop.permute.xlu0 %4327
        %v4330 = vmul.f32 %v4326, %v4328
        %4332 = vrot.lane.b32.xlu0 %v4330, 64
        %v4333 = vpop.permute.xlu0 %4332
        %v4335 = vadd.f32 %v3497, %v4333
        %v4336 = vtanh.pop %v4335
        %v4337 = vsub.f32 1.0, %v4326
        %4339 = vrot.lane.b32.xlu0 %v4336, 96
        %v4340 = vpop.permute.xlu0 %4339
        %v4342 = vmul.f32 %v4337, %v4340
        %v4343 = vrot.slane %v4240, 7
        %v4345 = vmul.f32 %v4326, %v4343
        %v4346 = vadd.f32 %v4342, %v4345
        %v4348 = vrot.slane %v4346, 7
        %4349 = vrot.lane.b32.xlu0 %v4348, 96
        %v4350 = vpop.permute.xlu0 %4349
        %v4351 = vsel %vm1267, %v4350, 0
        %4353 = vmatprep.subr.mxu0 0.0
        %4354 = vmatpush1.msra.mxu0 %v3505
        %4355 = vmatprep.subr.mxu0 0.0
        %4356 = vmatpush1.msra.mxu0 %v3506
        %4357 = vmatprep.subr.mxu0 0.0
        %4358 = vmatpush1.msra.mxu0 %v3507
        %4359 = vmatprep.subr.mxu0 0.0
        %4360 = vmatpush1.msra.mxu0 %v3508
        %4361 = vmatprep.subr.mxu0 0.0
        %4362 = vmatpush1.msra.mxu0 0.0
        %4363 = vmatprep.subr.mxu0 0.0
        %4364 = vmatpush1.msra.mxu0 0.0
        %4365 = vmatprep.subr.mxu0 0.0
        %4366 = vmatpush1.msra.mxu0 0.0
        %4367 = vmatprep.subr.mxu0 0.0
        %4368 = vmatpush1.msra.mxu0 0.0
        %4369 = vmatprep.subr.mxu0 0.0
        %4370 = vmatpush1.msra.mxu0 0.0
        %4371 = vmatprep.subr.mxu0 0.0
        %4372 = vmatpush1.msra.mxu0 0.0
        %4373 = vmatprep.subr.mxu0 0.0
        %4374 = vmatpush1.msra.mxu0 0.0
        %4375 = vmatprep.subr.mxu0 0.0
        %4376 = vmatpush1.msra.mxu0 0.0
        %4377 = vmatprep.subr.mxu0 0.0
        %4378 = vmatpush1.msra.mxu0 0.0
        %4379 = vmatprep.subr.mxu0 0.0
        %4380 = vmatpush1.msra.mxu0 0.0
        %4381 = vmatprep.subr.mxu0 0.0
        %4382 = vmatpush1.msra.mxu0 0.0
        %4383 = vmatprep.subr.mxu0 0.0
        %4384 = vmatpush1.msra.mxu0 0.0
        %4385 = vmatprep.subr.mxu0 0.0
        %4386 = vmatpush1.msra.mxu0 0.0
        %4387 = vmatprep.subr.mxu0 0.0
        %4388 = vmatpush1.msra.mxu0 0.0
        %4389 = vmatprep.subr.mxu0 0.0
        %4390 = vmatpush1.msra.mxu0 0.0
        %4391 = vmatprep.subr.mxu0 0.0
        %4392 = vmatpush1.msra.mxu0 0.0
        %4393 = vmatprep.subr.mxu0 0.0
        %4394 = vmatpush1.msra.mxu0 0.0
        %4395 = vmatprep.subr.mxu0 0.0
        %4396 = vmatpush1.msra.mxu0 0.0
        %4397 = vmatprep.subr.mxu0 0.0
        %4398 = vmatpush1.msra.mxu0 0.0
        %4399 = vmatprep.subr.mxu0 0.0
        %4400 = vmatpush1.msra.mxu0 0.0
        %4401 = vmatprep.subr.mxu0 0.0
        %4402 = vmatpush1.msra.mxu0 0.0
        %4403 = vmatprep.subr.mxu0 0.0
        %4404 = vmatpush1.msra.mxu0 0.0
        %4405 = vmatprep.subr.mxu0 0.0
        %4406 = vmatpush1.msra.mxu0 0.0
        %4407 = vmatprep.subr.mxu0 0.0
        %4408 = vmatpush1.msra.mxu0 0.0
        %4409 = vmatprep.subr.mxu0 0.0
        %4410 = vmatpush1.msra.mxu0 0.0
        %4411 = vmatprep.subr.mxu0 0.0
        %4412 = vmatpush1.msra.mxu0 0.0
        %4413 = vmatprep.subr.mxu0 0.0
        %4414 = vmatpush1.msra.mxu0 0.0
        %4415 = vmatprep.subr.mxu0 0.0
        %4416 = vmatpush1.msra.mxu0 0.0
        %4417 = vmatprep.mubr.f32.mxu0 0.0
        %4418 = vmatmul.mubr.f32.gmra.mrb[0].mxu0 %v4351
        %v4419 = vpop.f32.mrb[0].mxu0
        %v4420 = vadd.f32 %v3509, %v4419
        %v4421 = vpop.f32.mrb[0].mxu0
        %4422 = vdwg.mxu0
        %v4423 = vadd.f32 %v3502, %v4420
        %v4424 = vxor.u32 %v4423, 2147483648
        %v4425 = vmul.f32 %v4424, 1.442695
        %v4426 = vpow.pop %v4425
        %v4427 = vadd.f32 %v4426, 1.0
        %v4428 = vrcp.pop %v4427
        %v4429 = vmul.f32 1.0, %v4428
        %4431 = vrot.lane.b32.xlu0 %v4420, 64
        %v4432 = vpop.permute.xlu0 %4431
        %v4434 = vmul.f32 %v4429, %v4432
        %4436 = vrot.lane.b32.xlu0 %v4434, 64
        %v4437 = vpop.permute.xlu0 %4436
        %v4439 = vadd.f32 %v3502, %v4437
        %v4440 = vtanh.pop %v4439
        %v4441 = vsub.f32 1.0, %v4429
        %4443 = vrot.lane.b32.xlu0 %v4440, 96
        %v4444 = vpop.permute.xlu0 %4443
        %v4446 = vmul.f32 %v4441, %v4444
        %v4448 = vmul.f32 %v4429, %v4348
        %v4449 = vadd.f32 %v4446, %v4448
        %4451 = vrot.lane.b32.xlu0 %v4449, 96
        %v4452 = vpop.permute.xlu0 %4451
        %v4453 = vsel %vm1267, %v4452, 0
        %4455 = vmatprep.subr.mxu0 0.0
        %4456 = vmatpush1.msra.mxu0 %v3505
        %4457 = vmatprep.subr.mxu0 0.0
        %4458 = vmatpush1.msra.mxu0 %v3506
        %4459 = vmatprep.subr.mxu0 0.0
        %4460 = vmatpush1.msra.mxu0 %v3507
        %4461 = vmatprep.subr.mxu0 0.0
        %4462 = vmatpush1.msra.mxu0 %v3508
        %4463 = vmatprep.subr.mxu0 0.0
        %4464 = vmatpush1.msra.mxu0 0.0
        %4465 = vmatprep.subr.mxu0 0.0
        %4466 = vmatpush1.msra.mxu0 0.0
        %4467 = vmatprep.subr.mxu0 0.0
        %4468 = vmatpush1.msra.mxu0 0.0
        %4469 = vmatprep.subr.mxu0 0.0
        %4470 = vmatpush1.msra.mxu0 0.0
        %4471 = vmatprep.subr.mxu0 0.0
        %4472 = vmatpush1.msra.mxu0 0.0
        %4473 = vmatprep.subr.mxu0 0.0
        %4474 = vmatpush1.msra.mxu0 0.0
        %4475 = vmatprep.subr.mxu0 0.0
        %4476 = vmatpush1.msra.mxu0 0.0
        %4477 = vmatprep.subr.mxu0 0.0
        %4478 = vmatpush1.msra.mxu0 0.0
        %4479 = vmatprep.subr.mxu0 0.0
        %4480 = vmatpush1.msra.mxu0 0.0
        %4481 = vmatprep.subr.mxu0 0.0
        %4482 = vmatpush1.msra.mxu0 0.0
        %4483 = vmatprep.subr.mxu0 0.0
        %4484 = vmatpush1.msra.mxu0 0.0
        %4485 = vmatprep.subr.mxu0 0.0
        %4486 = vmatpush1.msra.mxu0 0.0
        %4487 = vmatprep.subr.mxu0 0.0
        %4488 = vmatpush1.msra.mxu0 0.0
        %4489 = vmatprep.subr.mxu0 0.0
        %4490 = vmatpush1.msra.mxu0 0.0
        %4491 = vmatprep.subr.mxu0 0.0
        %4492 = vmatpush1.msra.mxu0 0.0
        %4493 = vmatprep.subr.mxu0 0.0
        %4494 = vmatpush1.msra.mxu0 0.0
        %4495 = vmatprep.subr.mxu0 0.0
        %4496 = vmatpush1.msra.mxu0 0.0
        %4497 = vmatprep.subr.mxu0 0.0
        %4498 = vmatpush1.msra.mxu0 0.0
        %4499 = vmatprep.subr.mxu0 0.0
        %4500 = vmatpush1.msra.mxu0 0.0
        %4501 = vmatprep.subr.mxu0 0.0
        %4502 = vmatpush1.msra.mxu0 0.0
        %4503 = vmatprep.subr.mxu0 0.0
        %4504 = vmatpush1.msra.mxu0 0.0
        %4505 = vmatprep.subr.mxu0 0.0
        %4506 = vmatpush1.msra.mxu0 0.0
        %4507 = vmatprep.subr.mxu0 0.0
        %4508 = vmatpush1.msra.mxu0 0.0
        %4509 = vmatprep.subr.mxu0 0.0
        %4510 = vmatpush1.msra.mxu0 0.0
        %4511 = vmatprep.subr.mxu0 0.0
        %4512 = vmatpush1.msra.mxu0 0.0
        %4513 = vmatprep.subr.mxu0 0.0
        %4514 = vmatpush1.msra.mxu0 0.0
        %4515 = vmatprep.subr.mxu0 0.0
        %4516 = vmatpush1.msra.mxu0 0.0
        %4517 = vmatprep.subr.mxu0 0.0
        %4518 = vmatpush1.msra.mxu0 0.0
        %4519 = vmatprep.mubr.f32.mxu0 0.0
        %4520 = vmatmul.mubr.f32.gmra.mrb[0].mxu0 %v4453
        %v4521 = vpop.f32.mrb[0].mxu0
        %v4522 = vadd.f32 %v3509, %v4521
        %v4523 = vpop.f32.mrb[0].mxu0
        %4524 = vdwg.mxu0
        %v4526 = vrot.slane %v4522, 7
        %v4528 = vadd.f32 %v3502, %v4526
        %v4529 = vxor.u32 %v4528, 2147483648
        %v4530 = vmul.f32 %v4529, 1.442695
        %v4531 = vpow.pop %v4530
        %v4532 = vadd.f32 %v4531, 1.0
        %v4533 = vrcp.pop %v4532
        %v4534 = vmul.f32 1.0, %v4533
        %4535 = vrot.lane.b32.xlu0 %v4526, 64
        %v4536 = vpop.permute.xlu0 %4535
        %v4538 = vmul.f32 %v4534, %v4536
        %4540 = vrot.lane.b32.xlu0 %v4538, 64
        %v4541 = vpop.permute.xlu0 %4540
        %v4543 = vadd.f32 %v3502, %v4541
        %v4544 = vtanh.pop %v4543
        %v4545 = vsub.f32 1.0, %v4534
        %4547 = vrot.lane.b32.xlu0 %v4544, 96
        %v4548 = vpop.permute.xlu0 %4547
        %v4550 = vmul.f32 %v4545, %v4548
        %v4551 = vrot.slane %v4449, 7
        %v4553 = vmul.f32 %v4534, %v4551
        %v4554 = vadd.f32 %v4550, %v4553
        %v4556 = vrot.slane %v4554, 1
        %4557 = vrot.lane.b32.xlu0 %v4556, 96
        %v4558 = vpop.permute.xlu0 %4557
        %v4559 = vsel %vm1267, %v4558, 0
        %4561 = vmatprep.subr.mxu0 0.0
        %4562 = vmatpush1.msra.mxu0 %v3505
        %4563 = vmatprep.subr.mxu0 0.0
        %4564 = vmatpush1.msra.mxu0 %v3506
        %4565 = vmatprep.subr.mxu0 0.0
        %4566 = vmatpush1.msra.mxu0 %v3507
        %4567 = vmatprep.subr.mxu0 0.0
        %4568 = vmatpush1.msra.mxu0 %v3508
        %4569 = vmatprep.subr.mxu0 0.0
        %4570 = vmatpush1.msra.mxu0 0.0
        %4571 = vmatprep.subr.mxu0 0.0
        %4572 = vmatpush1.msra.mxu0 0.0
        %4573 = vmatprep.subr.mxu0 0.0
        %4574 = vmatpush1.msra.mxu0 0.0
        %4575 = vmatprep.subr.mxu0 0.0
        %4576 = vmatpush1.msra.mxu0 0.0
        %4577 = vmatprep.subr.mxu0 0.0
        %4578 = vmatpush1.msra.mxu0 0.0
        %4579 = vmatprep.subr.mxu0 0.0
        %4580 = vmatpush1.msra.mxu0 0.0
        %4581 = vmatprep.subr.mxu0 0.0
        %4582 = vmatpush1.msra.mxu0 0.0
        %4583 = vmatprep.subr.mxu0 0.0
        %4584 = vmatpush1.msra.mxu0 0.0
        %4585 = vmatprep.subr.mxu0 0.0
        %4586 = vmatpush1.msra.mxu0 0.0
        %4587 = vmatprep.subr.mxu0 0.0
        %4588 = vmatpush1.msra.mxu0 0.0
        %4589 = vmatprep.subr.mxu0 0.0
        %4590 = vmatpush1.msra.mxu0 0.0
        %4591 = vmatprep.subr.mxu0 0.0
        %4592 = vmatpush1.msra.mxu0 0.0
        %4593 = vmatprep.subr.mxu0 0.0
        %4594 = vmatpush1.msra.mxu0 0.0
        %4595 = vmatprep.subr.mxu0 0.0
        %4596 = vmatpush1.msra.mxu0 0.0
        %4597 = vmatprep.subr.mxu0 0.0
        %4598 = vmatpush1.msra.mxu0 0.0
        %4599 = vmatprep.subr.mxu0 0.0
        %4600 = vmatpush1.msra.mxu0 0.0
        %4601 = vmatprep.subr.mxu0 0.0
        %4602 = vmatpush1.msra.mxu0 0.0
        %4603 = vmatprep.subr.mxu0 0.0
        %4604 = vmatpush1.msra.mxu0 0.0
        %4605 = vmatprep.subr.mxu0 0.0
        %4606 = vmatpush1.msra.mxu0 0.0
        %4607 = vmatprep.subr.mxu0 0.0
        %4608 = vmatpush1.msra.mxu0 0.0
        %4609 = vmatprep.subr.mxu0 0.0
        %4610 = vmatpush1.msra.mxu0 0.0
        %4611 = vmatprep.subr.mxu0 0.0
        %4612 = vmatpush1.msra.mxu0 0.0
        %4613 = vmatprep.subr.mxu0 0.0
        %4614 = vmatpush1.msra.mxu0 0.0
        %4615 = vmatprep.subr.mxu0 0.0
        %4616 = vmatpush1.msra.mxu0 0.0
        %4617 = vmatprep.subr.mxu0 0.0
        %4618 = vmatpush1.msra.mxu0 0.0
        %4619 = vmatprep.subr.mxu0 0.0
        %4620 = vmatpush1.msra.mxu0 0.0
        %4621 = vmatprep.subr.mxu0 0.0
        %4622 = vmatpush1.msra.mxu0 0.0
        %4623 = vmatprep.subr.mxu0 0.0
        %4624 = vmatpush1.msra.mxu0 0.0
        %4625 = vmatprep.mubr.f32.mxu0 0.0
        %4626 = vmatmul.mubr.f32.gmra.mrb[0].mxu0 %v4559
        %v4627 = vpop.f32.mrb[0].mxu0
        %v4628 = vadd.f32 %v3509, %v4627
        %v4629 = vpop.f32.mrb[0].mxu0
        %4630 = vdwg.mxu0
        %v4632 = vrot.slane %v4628, 6
        %v4634 = vadd.f32 %v3502, %v4632
        %v4635 = vxor.u32 %v4634, 2147483648
        %v4636 = vmul.f32 %v4635, 1.442695
        %v4637 = vpow.pop %v4636
        %v4638 = vadd.f32 %v4637, 1.0
        %v4639 = vrcp.pop %v4638
        %v4640 = vmul.f32 1.0, %v4639
        %4641 = vrot.lane.b32.xlu0 %v4632, 64
        %v4642 = vpop.permute.xlu0 %4641
        %v4644 = vmul.f32 %v4640, %v4642
        %4646 = vrot.lane.b32.xlu0 %v4644, 64
        %v4647 = vpop.permute.xlu0 %4646
        %v4649 = vadd.f32 %v3502, %v4647
        %v4650 = vtanh.pop %v4649
        %v4651 = vsub.f32 1.0, %v4640
        %4653 = vrot.lane.b32.xlu0 %v4650, 96
        %v4654 = vpop.permute.xlu0 %4653
        %v4656 = vmul.f32 %v4651, %v4654
        %v4657 = vrot.slane %v4554, 7
        %v4659 = vmul.f32 %v4640, %v4657
        %v4660 = vadd.f32 %v4656, %v4659
        %v4662 = vrot.slane %v4660, 2
        %4663 = vrot.lane.b32.xlu0 %v4662, 96
        %v4664 = vpop.permute.xlu0 %4663
        %v4665 = vsel %vm1267, %v4664, 0
        %4667 = vmatprep.subr.mxu0 0.0
        %4668 = vmatpush1.msra.mxu0 %v3505
        %4669 = vmatprep.subr.mxu0 0.0
        %4670 = vmatpush1.msra.mxu0 %v3506
        %4671 = vmatprep.subr.mxu0 0.0
        %4672 = vmatpush1.msra.mxu0 %v3507
        %4673 = vmatprep.subr.mxu0 0.0
        %4674 = vmatpush1.msra.mxu0 %v3508
        %4675 = vmatprep.subr.mxu0 0.0
        %4676 = vmatpush1.msra.mxu0 0.0
        %4677 = vmatprep.subr.mxu0 0.0
        %4678 = vmatpush1.msra.mxu0 0.0
        %4679 = vmatprep.subr.mxu0 0.0
        %4680 = vmatpush1.msra.mxu0 0.0
        %4681 = vmatprep.subr.mxu0 0.0
        %4682 = vmatpush1.msra.mxu0 0.0
        %4683 = vmatprep.subr.mxu0 0.0
        %4684 = vmatpush1.msra.mxu0 0.0
        %4685 = vmatprep.subr.mxu0 0.0
        %4686 = vmatpush1.msra.mxu0 0.0
        %4687 = vmatprep.subr.mxu0 0.0
        %4688 = vmatpush1.msra.mxu0 0.0
        %4689 = vmatprep.subr.mxu0 0.0
        %4690 = vmatpush1.msra.mxu0 0.0
        %4691 = vmatprep.subr.mxu0 0.0
        %4692 = vmatpush1.msra.mxu0 0.0
        %4693 = vmatprep.subr.mxu0 0.0
        %4694 = vmatpush1.msra.mxu0 0.0
        %4695 = vmatprep.subr.mxu0 0.0
        %4696 = vmatpush1.msra.mxu0 0.0
        %4697 = vmatprep.subr.mxu0 0.0
        %4698 = vmatpush1.msra.mxu0 0.0
        %4699 = vmatprep.subr.mxu0 0.0
        %4700 = vmatpush1.msra.mxu0 0.0
        %4701 = vmatprep.subr.mxu0 0.0
        %4702 = vmatpush1.msra.mxu0 0.0
        %4703 = vmatprep.subr.mxu0 0.0
        %4704 = vmatpush1.msra.mxu0 0.0
        %4705 = vmatprep.subr.mxu0 0.0
        %4706 = vmatpush1.msra.mxu0 0.0
        %4707 = vmatprep.subr.mxu0 0.0
        %4708 = vmatpush1.msra.mxu0 0.0
        %4709 = vmatprep.subr.mxu0 0.0
        %4710 = vmatpush1.msra.mxu0 0.0
        %4711 = vmatprep.subr.mxu0 0.0
        %4712 = vmatpush1.msra.mxu0 0.0
        %4713 = vmatprep.subr.mxu0 0.0
        %4714 = vmatpush1.msra.mxu0 0.0
        %4715 = vmatprep.subr.mxu0 0.0
        %4716 = vmatpush1.msra.mxu0 0.0
        %4717 = vmatprep.subr.mxu0 0.0
        %4718 = vmatpush1.msra.mxu0 0.0
        %4719 = vmatprep.subr.mxu0 0.0
        %4720 = vmatpush1.msra.mxu0 0.0
        %4721 = vmatprep.subr.mxu0 0.0
        %4722 = vmatpush1.msra.mxu0 0.0
        %4723 = vmatprep.subr.mxu0 0.0
        %4724 = vmatpush1.msra.mxu0 0.0
        %4725 = vmatprep.subr.mxu0 0.0
        %4726 = vmatpush1.msra.mxu0 0.0
        %4727 = vmatprep.subr.mxu0 0.0
        %4728 = vmatpush1.msra.mxu0 0.0
        %4729 = vmatprep.subr.mxu0 0.0
        %4730 = vmatpush1.msra.mxu0 0.0
        %4731 = vmatprep.mubr.f32.mxu0 0.0
        %4732 = vmatmul.mubr.f32.gmra.mrb[0].mxu0 %v4665
        %v4733 = vpop.f32.mrb[0].mxu0
        %v4734 = vadd.f32 %v3509, %v4733
        %v4735 = vpop.f32.mrb[0].mxu0
        %4736 = vdwg.mxu0
        %v4738 = vrot.slane %v4734, 5
        %v4740 = vadd.f32 %v3502, %v4738
        %v4741 = vxor.u32 %v4740, 2147483648
        %v4742 = vmul.f32 %v4741, 1.442695
        %v4743 = vpow.pop %v4742
        %v4744 = vadd.f32 %v4743, 1.0
        %v4745 = vrcp.pop %v4744
        %v4746 = vmul.f32 1.0, %v4745
        %4747 = vrot.lane.b32.xlu0 %v4738, 64
        %v4748 = vpop.permute.xlu0 %4747
        %v4750 = vmul.f32 %v4746, %v4748
        %4752 = vrot.lane.b32.xlu0 %v4750, 64
        %v4753 = vpop.permute.xlu0 %4752
        %v4755 = vadd.f32 %v3502, %v4753
        %v4756 = vtanh.pop %v4755
        %v4757 = vsub.f32 1.0, %v4746
        %4759 = vrot.lane.b32.xlu0 %v4756, 96
        %v4760 = vpop.permute.xlu0 %4759
        %v4762 = vmul.f32 %v4757, %v4760
        %v4763 = vrot.slane %v4660, 7
        %v4765 = vmul.f32 %v4746, %v4763
        %v4766 = vadd.f32 %v4762, %v4765
        %v4768 = vrot.slane %v4766, 3
        %4769 = vrot.lane.b32.xlu0 %v4768, 96
        %v4770 = vpop.permute.xlu0 %4769
        %v4771 = vsel %vm1267, %v4770, 0
        %4773 = vmatprep.subr.mxu0 0.0
        %4774 = vmatpush1.msra.mxu0 %v3505
        %4775 = vmatprep.subr.mxu0 0.0
        %4776 = vmatpush1.msra.mxu0 %v3506
        %4777 = vmatprep.subr.mxu0 0.0
        %4778 = vmatpush1.msra.mxu0 %v3507
        %4779 = vmatprep.subr.mxu0 0.0
        %4780 = vmatpush1.msra.mxu0 %v3508
        %4781 = vmatprep.subr.mxu0 0.0
        %4782 = vmatpush1.msra.mxu0 0.0
        %4783 = vmatprep.subr.mxu0 0.0
        %4784 = vmatpush1.msra.mxu0 0.0
        %4785 = vmatprep.subr.mxu0 0.0
        %4786 = vmatpush1.msra.mxu0 0.0
        %4787 = vmatprep.subr.mxu0 0.0
        %4788 = vmatpush1.msra.mxu0 0.0
        %4789 = vmatprep.subr.mxu0 0.0
        %4790 = vmatpush1.msra.mxu0 0.0
        %4791 = vmatprep.subr.mxu0 0.0
        %4792 = vmatpush1.msra.mxu0 0.0
        %4793 = vmatprep.subr.mxu0 0.0
        %4794 = vmatpush1.msra.mxu0 0.0
        %4795 = vmatprep.subr.mxu0 0.0
        %4796 = vmatpush1.msra.mxu0 0.0
        %4797 = vmatprep.subr.mxu0 0.0
        %4798 = vmatpush1.msra.mxu0 0.0
        %4799 = vmatprep.subr.mxu0 0.0
        %4800 = vmatpush1.msra.mxu0 0.0
        %4801 = vmatprep.subr.mxu0 0.0
        %4802 = vmatpush1.msra.mxu0 0.0
        %4803 = vmatprep.subr.mxu0 0.0
        %4804 = vmatpush1.msra.mxu0 0.0
        %4805 = vmatprep.subr.mxu0 0.0
        %4806 = vmatpush1.msra.mxu0 0.0
        %4807 = vmatprep.subr.mxu0 0.0
        %4808 = vmatpush1.msra.mxu0 0.0
        %4809 = vmatprep.subr.mxu0 0.0
        %4810 = vmatpush1.msra.mxu0 0.0
        %4811 = vmatprep.subr.mxu0 0.0
        %4812 = vmatpush1.msra.mxu0 0.0
        %4813 = vmatprep.subr.mxu0 0.0
        %4814 = vmatpush1.msra.mxu0 0.0
        %4815 = vmatprep.subr.mxu0 0.0
        %4816 = vmatpush1.msra.mxu0 0.0
        %4817 = vmatprep.subr.mxu0 0.0
        %4818 = vmatpush1.msra.mxu0 0.0
        %4819 = vmatprep.subr.mxu0 0.0
        %4820 = vmatpush1.msra.mxu0 0.0
        %4821 = vmatprep.subr.mxu0 0.0
        %4822 = vmatpush1.msra.mxu0 0.0
        %4823 = vmatprep.subr.mxu0 0.0
        %4824 = vmatpush1.msra.mxu0 0.0
        %4825 = vmatprep.subr.mxu0 0.0
        %4826 = vmatpush1.msra.mxu0 0.0
        %4827 = vmatprep.subr.mxu0 0.0
        %4828 = vmatpush1.msra.mxu0 0.0
        %4829 = vmatprep.subr.mxu0 0.0
        %4830 = vmatpush1.msra.mxu0 0.0
        %4831 = vmatprep.subr.mxu0 0.0
        %4832 = vmatpush1.msra.mxu0 0.0
        %4833 = vmatprep.subr.mxu0 0.0
        %4834 = vmatpush1.msra.mxu0 0.0
        %4835 = vmatprep.subr.mxu0 0.0
        %4836 = vmatpush1.msra.mxu0 0.0
        %4837 = vmatprep.mubr.f32.mxu0 0.0
        %4838 = vmatmul.mubr.f32.gmra.mrb[0].mxu0 %v4771
        %v4839 = vpop.f32.mrb[0].mxu0
        %v4840 = vadd.f32 %v3509, %v4839
        %v4841 = vpop.f32.mrb[0].mxu0
        %4842 = vdwg.mxu0
        %v4844 = vrot.slane %v4840, 4
        %v4846 = vadd.f32 %v3502, %v4844
        %v4847 = vxor.u32 %v4846, 2147483648
        %v4848 = vmul.f32 %v4847, 1.442695
        %v4849 = vpow.pop %v4848
        %v4850 = vadd.f32 %v4849, 1.0
        %v4851 = vrcp.pop %v4850
        %v4852 = vmul.f32 1.0, %v4851
        %4853 = vrot.lane.b32.xlu0 %v4844, 64
        %v4854 = vpop.permute.xlu0 %4853
        %v4856 = vmul.f32 %v4852, %v4854
        %4858 = vrot.lane.b32.xlu0 %v4856, 64
        %v4859 = vpop.permute.xlu0 %4858
        %v4861 = vadd.f32 %v3502, %v4859
        %v4862 = vtanh.pop %v4861
        %v4863 = vsub.f32 1.0, %v4852
        %4865 = vrot.lane.b32.xlu0 %v4862, 96
        %v4866 = vpop.permute.xlu0 %4865
        %v4868 = vmul.f32 %v4863, %v4866
        %v4869 = vrot.slane %v4766, 7
        %v4871 = vmul.f32 %v4852, %v4869
        %v4872 = vadd.f32 %v4868, %v4871
        %v4874 = vrot.slane %v4872, 4
        %4875 = vrot.lane.b32.xlu0 %v4874, 96
        %v4876 = vpop.permute.xlu0 %4875
        %v4877 = vsel %vm1267, %v4876, 0
        %4879 = vmatprep.subr.mxu0 0.0
        %4880 = vmatpush1.msra.mxu0 %v3505
        %4881 = vmatprep.subr.mxu0 0.0
        %4882 = vmatpush1.msra.mxu0 %v3506
        %4883 = vmatprep.subr.mxu0 0.0
        %4884 = vmatpush1.msra.mxu0 %v3507
        %4885 = vmatprep.subr.mxu0 0.0
        %4886 = vmatpush1.msra.mxu0 %v3508
        %4887 = vmatprep.subr.mxu0 0.0
        %4888 = vmatpush1.msra.mxu0 0.0
        %4889 = vmatprep.subr.mxu0 0.0
        %4890 = vmatpush1.msra.mxu0 0.0
        %4891 = vmatprep.subr.mxu0 0.0
        %4892 = vmatpush1.msra.mxu0 0.0
        %4893 = vmatprep.subr.mxu0 0.0
        %4894 = vmatpush1.msra.mxu0 0.0
        %4895 = vmatprep.subr.mxu0 0.0
        %4896 = vmatpush1.msra.mxu0 0.0
        %4897 = vmatprep.subr.mxu0 0.0
        %4898 = vmatpush1.msra.mxu0 0.0
        %4899 = vmatprep.subr.mxu0 0.0
        %4900 = vmatpush1.msra.mxu0 0.0
        %4901 = vmatprep.subr.mxu0 0.0
        %4902 = vmatpush1.msra.mxu0 0.0
        %4903 = vmatprep.subr.mxu0 0.0
        %4904 = vmatpush1.msra.mxu0 0.0
        %4905 = vmatprep.subr.mxu0 0.0
        %4906 = vmatpush1.msra.mxu0 0.0
        %4907 = vmatprep.subr.mxu0 0.0
        %4908 = vmatpush1.msra.mxu0 0.0
        %4909 = vmatprep.subr.mxu0 0.0
        %4910 = vmatpush1.msra.mxu0 0.0
        %4911 = vmatprep.subr.mxu0 0.0
        %4912 = vmatpush1.msra.mxu0 0.0
        %4913 = vmatprep.subr.mxu0 0.0
        %4914 = vmatpush1.msra.mxu0 0.0
        %4915 = vmatprep.subr.mxu0 0.0
        %4916 = vmatpush1.msra.mxu0 0.0
        %4917 = vmatprep.subr.mxu0 0.0
        %4918 = vmatpush1.msra.mxu0 0.0
        %4919 = vmatprep.subr.mxu0 0.0
        %4920 = vmatpush1.msra.mxu0 0.0
        %4921 = vmatprep.subr.mxu0 0.0
        %4922 = vmatpush1.msra.mxu0 0.0
        %4923 = vmatprep.subr.mxu0 0.0
        %4924 = vmatpush1.msra.mxu0 0.0
        %4925 = vmatprep.subr.mxu0 0.0
        %4926 = vmatpush1.msra.mxu0 0.0
        %4927 = vmatprep.subr.mxu0 0.0
        %4928 = vmatpush1.msra.mxu0 0.0
        %4929 = vmatprep.subr.mxu0 0.0
        %4930 = vmatpush1.msra.mxu0 0.0
        %4931 = vmatprep.subr.mxu0 0.0
        %4932 = vmatpush1.msra.mxu0 0.0
        %4933 = vmatprep.subr.mxu0 0.0
        %4934 = vmatpush1.msra.mxu0 0.0
        %4935 = vmatprep.subr.mxu0 0.0
        %4936 = vmatpush1.msra.mxu0 0.0
        %4937 = vmatprep.subr.mxu0 0.0
        %4938 = vmatpush1.msra.mxu0 0.0
        %4939 = vmatprep.subr.mxu0 0.0
        %4940 = vmatpush1.msra.mxu0 0.0
        %4941 = vmatprep.subr.mxu0 0.0
        %4942 = vmatpush1.msra.mxu0 0.0
        %4943 = vmatprep.mubr.f32.mxu0 0.0
        %4944 = vmatmul.mubr.f32.gmra.mrb[0].mxu0 %v4877
        %v4945 = vpop.f32.mrb[0].mxu0
        %v4946 = vadd.f32 %v3509, %v4945
        %v4947 = vpop.f32.mrb[0].mxu0
        %4948 = vdwg.mxu0
        %v4950 = vrot.slane %v4946, 3
        %v4952 = vadd.f32 %v3502, %v4950
        %v4953 = vxor.u32 %v4952, 2147483648
        %v4954 = vmul.f32 %v4953, 1.442695
        %v4955 = vpow.pop %v4954
        %v4956 = vadd.f32 %v4955, 1.0
        %v4957 = vrcp.pop %v4956
        %v4958 = vmul.f32 1.0, %v4957
        %4959 = vrot.lane.b32.xlu0 %v4950, 64
        %v4960 = vpop.permute.xlu0 %4959
        %v4962 = vmul.f32 %v4958, %v4960
        %4964 = vrot.lane.b32.xlu0 %v4962, 64
        %v4965 = vpop.permute.xlu0 %4964
        %v4967 = vadd.f32 %v3502, %v4965
        %v4968 = vtanh.pop %v4967
        %v4969 = vsub.f32 1.0, %v4958
        %4971 = vrot.lane.b32.xlu0 %v4968, 96
        %v4972 = vpop.permute.xlu0 %4971
        %v4974 = vmul.f32 %v4969, %v4972
        %v4975 = vrot.slane %v4872, 7
        %v4977 = vmul.f32 %v4958, %v4975
        %v4978 = vadd.f32 %v4974, %v4977
        %v4980 = vrot.slane %v4978, 5
        %4981 = vrot.lane.b32.xlu0 %v4980, 96
        %v4982 = vpop.permute.xlu0 %4981
        %v4983 = vsel %vm1267, %v4982, 0
        %4985 = vmatprep.subr.mxu0 0.0
        %4986 = vmatpush1.msra.mxu0 %v3505
        %4987 = vmatprep.subr.mxu0 0.0
        %4988 = vmatpush1.msra.mxu0 %v3506
        %4989 = vmatprep.subr.mxu0 0.0
        %4990 = vmatpush1.msra.mxu0 %v3507
        %4991 = vmatprep.subr.mxu0 0.0
        %4992 = vmatpush1.msra.mxu0 %v3508
        %4993 = vmatprep.subr.mxu0 0.0
        %4994 = vmatpush1.msra.mxu0 0.0
        %4995 = vmatprep.subr.mxu0 0.0
        %4996 = vmatpush1.msra.mxu0 0.0
        %4997 = vmatprep.subr.mxu0 0.0
        %4998 = vmatpush1.msra.mxu0 0.0
        %4999 = vmatprep.subr.mxu0 0.0
        %5000 = vmatpush1.msra.mxu0 0.0
        %5001 = vmatprep.subr.mxu0 0.0
        %5002 = vmatpush1.msra.mxu0 0.0
        %5003 = vmatprep.subr.mxu0 0.0
        %5004 = vmatpush1.msra.mxu0 0.0
        %5005 = vmatprep.subr.mxu0 0.0
        %5006 = vmatpush1.msra.mxu0 0.0
        %5007 = vmatprep.subr.mxu0 0.0
        %5008 = vmatpush1.msra.mxu0 0.0
        %5009 = vmatprep.subr.mxu0 0.0
        %5010 = vmatpush1.msra.mxu0 0.0
        %5011 = vmatprep.subr.mxu0 0.0
        %5012 = vmatpush1.msra.mxu0 0.0
        %5013 = vmatprep.subr.mxu0 0.0
        %5014 = vmatpush1.msra.mxu0 0.0
        %5015 = vmatprep.subr.mxu0 0.0
        %5016 = vmatpush1.msra.mxu0 0.0
        %5017 = vmatprep.subr.mxu0 0.0
        %5018 = vmatpush1.msra.mxu0 0.0
        %5019 = vmatprep.subr.mxu0 0.0
        %5020 = vmatpush1.msra.mxu0 0.0
        %5021 = vmatprep.subr.mxu0 0.0
        %5022 = vmatpush1.msra.mxu0 0.0
        %5023 = vmatprep.subr.mxu0 0.0
        %5024 = vmatpush1.msra.mxu0 0.0
        %5025 = vmatprep.subr.mxu0 0.0
        %5026 = vmatpush1.msra.mxu0 0.0
        %5027 = vmatprep.subr.mxu0 0.0
        %5028 = vmatpush1.msra.mxu0 0.0
        %5029 = vmatprep.subr.mxu0 0.0
        %5030 = vmatpush1.msra.mxu0 0.0
        %5031 = vmatprep.subr.mxu0 0.0
        %5032 = vmatpush1.msra.mxu0 0.0
        %5033 = vmatprep.subr.mxu0 0.0
        %5034 = vmatpush1.msra.mxu0 0.0
        %5035 = vmatprep.subr.mxu0 0.0
        %5036 = vmatpush1.msra.mxu0 0.0
        %5037 = vmatprep.subr.mxu0 0.0
        %5038 = vmatpush1.msra.mxu0 0.0
        %5039 = vmatprep.subr.mxu0 0.0
        %5040 = vmatpush1.msra.mxu0 0.0
        %5041 = vmatprep.subr.mxu0 0.0
        %5042 = vmatpush1.msra.mxu0 0.0
        %5043 = vmatprep.subr.mxu0 0.0
        %5044 = vmatpush1.msra.mxu0 0.0
        %5045 = vmatprep.subr.mxu0 0.0
        %5046 = vmatpush1.msra.mxu0 0.0
        %5047 = vmatprep.subr.mxu0 0.0
        %5048 = vmatpush1.msra.mxu0 0.0
        %5049 = vmatprep.mubr.f32.mxu0 0.0
        %5050 = vmatmul.mubr.f32.gmra.mrb[0].mxu0 %v4983
        %v5051 = vpop.f32.mrb[0].mxu0
        %v5052 = vadd.f32 %v3509, %v5051
        %v5053 = vpop.f32.mrb[0].mxu0
        %5054 = vdwg.mxu0
        %v5056 = vrot.slane %v5052, 2
        %v5058 = vadd.f32 %v3502, %v5056
        %v5059 = vxor.u32 %v5058, 2147483648
        %v5060 = vmul.f32 %v5059, 1.442695
        %v5061 = vpow.pop %v5060
        %v5062 = vadd.f32 %v5061, 1.0
        %v5063 = vrcp.pop %v5062
        %v5064 = vmul.f32 1.0, %v5063
        %5065 = vrot.lane.b32.xlu0 %v5056, 64
        %v5066 = vpop.permute.xlu0 %5065
        %v5068 = vmul.f32 %v5064, %v5066
        %5070 = vrot.lane.b32.xlu0 %v5068, 64
        %v5071 = vpop.permute.xlu0 %5070
        %v5073 = vadd.f32 %v3502, %v5071
        %v5074 = vtanh.pop %v5073
        %v5075 = vsub.f32 1.0, %v5064
        %5077 = vrot.lane.b32.xlu0 %v5074, 96
        %v5078 = vpop.permute.xlu0 %5077
        %v5080 = vmul.f32 %v5075, %v5078
        %v5081 = vrot.slane %v4978, 7
        %v5083 = vmul.f32 %v5064, %v5081
        %v5084 = vadd.f32 %v5080, %v5083
        %v5086 = vrot.slane %v5084, 6
        %5087 = vrot.lane.b32.xlu0 %v5086, 96
        %v5088 = vpop.permute.xlu0 %5087
        %v5089 = vsel %vm1267, %v5088, 0
        %5091 = vmatprep.subr.mxu0 0.0
        %5092 = vmatpush1.msra.mxu0 %v3505
        %5093 = vmatprep.subr.mxu0 0.0
        %5094 = vmatpush1.msra.mxu0 %v3506
        %5095 = vmatprep.subr.mxu0 0.0
        %5096 = vmatpush1.msra.mxu0 %v3507
        %5097 = vmatprep.subr.mxu0 0.0
        %5098 = vmatpush1.msra.mxu0 %v3508
        %5099 = vmatprep.subr.mxu0 0.0
        %5100 = vmatpush1.msra.mxu0 0.0
        %5101 = vmatprep.subr.mxu0 0.0
        %5102 = vmatpush1.msra.mxu0 0.0
        %5103 = vmatprep.subr.mxu0 0.0
        %5104 = vmatpush1.msra.mxu0 0.0
        %5105 = vmatprep.subr.mxu0 0.0
        %5106 = vmatpush1.msra.mxu0 0.0
        %5107 = vmatprep.subr.mxu0 0.0
        %5108 = vmatpush1.msra.mxu0 0.0
        %5109 = vmatprep.subr.mxu0 0.0
        %5110 = vmatpush1.msra.mxu0 0.0
        %5111 = vmatprep.subr.mxu0 0.0
        %5112 = vmatpush1.msra.mxu0 0.0
        %5113 = vmatprep.subr.mxu0 0.0
        %5114 = vmatpush1.msra.mxu0 0.0
        %5115 = vmatprep.subr.mxu0 0.0
        %5116 = vmatpush1.msra.mxu0 0.0
        %5117 = vmatprep.subr.mxu0 0.0
        %5118 = vmatpush1.msra.mxu0 0.0
        %5119 = vmatprep.subr.mxu0 0.0
        %5120 = vmatpush1.msra.mxu0 0.0
        %5121 = vmatprep.subr.mxu0 0.0
        %5122 = vmatpush1.msra.mxu0 0.0
        %5123 = vmatprep.subr.mxu0 0.0
        %5124 = vmatpush1.msra.mxu0 0.0
        %5125 = vmatprep.subr.mxu0 0.0
        %5126 = vmatpush1.msra.mxu0 0.0
        %5127 = vmatprep.subr.mxu0 0.0
        %5128 = vmatpush1.msra.mxu0 0.0
        %5129 = vmatprep.subr.mxu0 0.0
        %5130 = vmatpush1.msra.mxu0 0.0
        %5131 = vmatprep.subr.mxu0 0.0
        %5132 = vmatpush1.msra.mxu0 0.0
        %5133 = vmatprep.subr.mxu0 0.0
        %5134 = vmatpush1.msra.mxu0 0.0
        %5135 = vmatprep.subr.mxu0 0.0
        %5136 = vmatpush1.msra.mxu0 0.0
        %5137 = vmatprep.subr.mxu0 0.0
        %5138 = vmatpush1.msra.mxu0 0.0
        %5139 = vmatprep.subr.mxu0 0.0
        %5140 = vmatpush1.msra.mxu0 0.0
        %5141 = vmatprep.subr.mxu0 0.0
        %5142 = vmatpush1.msra.mxu0 0.0
        %5143 = vmatprep.subr.mxu0 0.0
        %5144 = vmatpush1.msra.mxu0 0.0
        %5145 = vmatprep.subr.mxu0 0.0
        %5146 = vmatpush1.msra.mxu0 0.0
        %5147 = vmatprep.subr.mxu0 0.0
        %5148 = vmatpush1.msra.mxu0 0.0
        %5149 = vmatprep.subr.mxu0 0.0
        %5150 = vmatpush1.msra.mxu0 0.0
        %5151 = vmatprep.subr.mxu0 0.0
        %5152 = vmatpush1.msra.mxu0 0.0
        %5153 = vmatprep.subr.mxu0 0.0
        %5154 = vmatpush1.msra.mxu0 0.0
        %5155 = vmatprep.mubr.f32.mxu0 0.0
        %5156 = vmatmul.mubr.f32.gmra.mrb[0].mxu0 %v5089
        %v5157 = vpop.f32.mrb[0].mxu0
        %v5158 = vadd.f32 %v3509, %v5157
        %v5159 = vpop.f32.mrb[0].mxu0
        %5160 = vdwg.mxu0
        %v5162 = vrot.slane %v5158, 1
        %v5164 = vadd.f32 %v3502, %v5162
        %v5165 = vxor.u32 %v5164, 2147483648
        %v5166 = vmul.f32 %v5165, 1.442695
        %v5167 = vpow.pop %v5166
        %v5168 = vadd.f32 %v5167, 1.0
        %v5169 = vrcp.pop %v5168
        %v5170 = vmul.f32 1.0, %v5169
        %5171 = vrot.lane.b32.xlu0 %v5162, 64
        %v5172 = vpop.permute.xlu0 %5171
        %v5174 = vmul.f32 %v5170, %v5172
        %5176 = vrot.lane.b32.xlu0 %v5174, 64
        %v5177 = vpop.permute.xlu0 %5176
        %v5179 = vadd.f32 %v3502, %v5177
        %v5180 = vtanh.pop %v5179
        %v5181 = vsub.f32 1.0, %v5170
        %5183 = vrot.lane.b32.xlu0 %v5180, 96
        %v5184 = vpop.permute.xlu0 %5183
        %v5186 = vmul.f32 %v5181, %v5184
        %v5187 = vrot.slane %v5084, 7
        %v5189 = vmul.f32 %v5170, %v5187
        %v5190 = vadd.f32 %v5186, %v5189
        %v5191 = vsel %vm3158, %v3605, %v3710
        %v5192 = vsel %vm3160, %v5191, %v3816
        %v5193 = vsel %vm3162, %v5192, %v3922
        %v5194 = vsel %vm3164, %v5193, %v4028
        %v5195 = vsel %vm3166, %v5194, %v4134
        %v5196 = vsel %vm3168, %v5195, %v4240
        %v5197 = vsel %vm3170, %v5196, %v4346
        %v5198 = vsel %vm3158, %v4449, %v4554
        %v5199 = vsel %vm3160, %v5198, %v4660
        %v5200 = vsel %vm3162, %v5199, %v4766
        %v5201 = vsel %vm3164, %v5200, %v4872
        %v5202 = vsel %vm3166, %v5201, %v4978
        %v5203 = vsel %vm3168, %v5202, %v5084
        %v5204 = vsel %vm3170, %v5203, %v5190
        %v5205 = vld [vmem:[%s19] sm:$0xff]
        %v5206 = vld [vmem:[%s19 + $0x8] sm:$0xff]
        %v5207 = vld [vmem:[%s19 + $0x10] sm:$0xff]
        %v5208 = vld [vmem:[%s19 + $0x18] sm:$0xff]
        %v5209 = vld [vmem:[%s20] sm:$0x1]
        %v5211 = vlaneseq
        %v5212 = vshrl.u32 %v5211, 7
        %v5213 = vsub.s32 0, %v5212
        %v5214 = vrot.slane %v5209, %v5213
        %5218 = vrot.lane.b32.xlu0 %v5197, 96
        %v5219 = vpop.permute.xlu0 %5218
        %5220 = vrot.lane.b32.xlu0 %v5204, 96
        %v5221 = vpop.permute.xlu0 %5220
        %v5222 = vsel %vm1267, %v5219, 0
        %v5224 = vsel %vm1267, %v5221, 0
        %5226 = vmatprep.subr.mxu0 0.0
        %5227 = vmatpush1.msra.mxu0 %v5205
        %5228 = vmatprep.subr.mxu0 0.0
        %5229 = vmatpush1.msra.mxu0 %v5206
        %5230 = vmatprep.subr.mxu0 0.0
        %5231 = vmatpush1.msra.mxu0 %v5207
        %5232 = vmatprep.subr.mxu0 0.0
        %5233 = vmatpush1.msra.mxu0 %v5208
        %5234 = vmatprep.subr.mxu0 0.0
        %5235 = vmatpush1.msra.mxu0 0.0
        %5236 = vmatprep.subr.mxu0 0.0
        %5237 = vmatpush1.msra.mxu0 0.0
        %5238 = vmatprep.subr.mxu0 0.0
        %5239 = vmatpush1.msra.mxu0 0.0
        %5240 = vmatprep.subr.mxu0 0.0
        %5241 = vmatpush1.msra.mxu0 0.0
        %5242 = vmatprep.subr.mxu0 0.0
        %5243 = vmatpush1.msra.mxu0 0.0
        %5244 = vmatprep.subr.mxu0 0.0
        %5245 = vmatpush1.msra.mxu0 0.0
        %5246 = vmatprep.subr.mxu0 0.0
        %5247 = vmatpush1.msra.mxu0 0.0
        %5248 = vmatprep.subr.mxu0 0.0
        %5249 = vmatpush1.msra.mxu0 0.0
        %5250 = vmatprep.subr.mxu0 0.0
        %5251 = vmatpush1.msra.mxu0 0.0
        %5252 = vmatprep.subr.mxu0 0.0
        %5253 = vmatpush1.msra.mxu0 0.0
        %5254 = vmatprep.subr.mxu0 0.0
        %5255 = vmatpush1.msra.mxu0 0.0
        %5256 = vmatprep.subr.mxu0 0.0
        %5257 = vmatpush1.msra.mxu0 0.0
        %5258 = vmatprep.subr.mxu0 0.0
        %5259 = vmatpush1.msra.mxu0 0.0
        %5260 = vmatprep.subr.mxu0 0.0
        %5261 = vmatpush1.msra.mxu0 0.0
        %5262 = vmatprep.subr.mxu0 0.0
        %5263 = vmatpush1.msra.mxu0 0.0
        %5264 = vmatprep.subr.mxu0 0.0
        %5265 = vmatpush1.msra.mxu0 0.0
        %5266 = vmatprep.subr.mxu0 0.0
        %5267 = vmatpush1.msra.mxu0 0.0
        %5268 = vmatprep.subr.mxu0 0.0
        %5269 = vmatpush1.msra.mxu0 0.0
        %5270 = vmatprep.subr.mxu0 0.0
        %5271 = vmatpush1.msra.mxu0 0.0
        %5272 = vmatprep.subr.mxu0 0.0
        %5273 = vmatpush1.msra.mxu0 0.0
        %5274 = vmatprep.subr.mxu0 0.0
        %5275 = vmatpush1.msra.mxu0 0.0
        %5276 = vmatprep.subr.mxu0 0.0
        %5277 = vmatpush1.msra.mxu0 0.0
        %5278 = vmatprep.subr.mxu0 0.0
        %5279 = vmatpush1.msra.mxu0 0.0
        %5280 = vmatprep.subr.mxu0 0.0
        %5281 = vmatpush1.msra.mxu0 0.0
        %5282 = vmatprep.subr.mxu0 0.0
        %5283 = vmatpush1.msra.mxu0 0.0
        %5284 = vmatprep.subr.mxu0 0.0
        %5285 = vmatpush1.msra.mxu0 0.0
        %5286 = vmatprep.subr.mxu0 0.0
        %5287 = vmatpush1.msra.mxu0 0.0
        %5288 = vmatprep.subr.mxu0 0.0
        %5289 = vmatpush1.msra.mxu0 0.0
        %5290 = vmatprep.mubr.f32.mxu0 0.0
        %5291 = vmatmul.mubr.f32.gmra.mrb[0].mxu0 %v5222
        %v5292 = vpop.f32.mrb[0].mxu0
        %v5293 = vadd.f32 %v5214, %v5292
        %v5294 = vpop.f32.mrb[0].mxu0
        %5295 = vmatprep.mubr.f32.mxu0 0.0
        %5296 = vmatmul.mubr.f32.gmra.mrb[0].mxu0 %v5224
        %v5297 = vpop.f32.mrb[0].mxu0
        %v5298 = vadd.f32 %v5214, %v5297
        %v5299 = vpop.f32.mrb[0].mxu0
        %5300 = vdwg.mxu0
        %v5301 = vmax.f32 %v5293, 0.0
        %v5302 = vmax.f32 %v5298, 0.0
        %v5303 = vld [vmem:[%s21] sm:$0x1]
        %v5305 = vlaneseq
        %v5306 = vshrl.u32 %v5305, 7
        %v5307 = vsub.s32 0, %v5306
        %v5308 = vrot.slane %v5303, %v5307
        %v5310 = vmul.f32 %v5301, %v5308
        %v5311 = vmul.f32 %v5302, %v5308
        %v5312 = vsel %vm1267, %v5310, 0.0
        %5313 = vadd.xlane.f32.xlu0 %v5312
        %v5314 = vpop.xlane.xlu0 %5313
        %v5315 = vsel %vm1267, %v5311, 0.0
        %5316 = vadd.xlane.f32.xlu0 %v5315
        %v5317 = vpop.xlane.xlu0 %5316
        %v5318 = vld [vmem:[#allocation2] sm:$0x1]
        %5320 = vset.pattern.permute.xlu0 0
        %5321 = vperm.xlu0 %5320, %v5318
        %v5322 = vpop.permute.xlu0 %5321
        %v5324 = vlaneseq
        %v5325 = vshrl.u32 %v5324, 7
        %v5326 = vsub.s32 0, %v5325
        %v5327 = vrot.slane %v5322, %v5326
        %v5328 = vadd.f32 %v5314, %v5327
        %v5329 = vadd.f32 %v5317, %v5327
        %v5332 = vlaneseq
        %v5333 = vand.u32 %v5332, 127
        %v5334 = vlaneseq
        %v5335 = vshrl.u32 %v5334, 7
        %v5336 = vsub.s32 %v5333, %v5335
        %v5337 = vrot.slane %v5328, %v5336
        %v5338 = vadd.s32 %v5333, 4294967288
        %v5339 = vlaneseq
        %v5340 = vshrl.u32 %v5339, 7
        %v5341 = vsub.s32 %v5338, %v5340
        %v5342 = vrot.slane %v5329, %v5341
        %vm5343 = vcmask 130112
        %v5344 = vsel %vm5343, %v5342, %v5337
        %vm5346 = vcmask 122880
        %5347 = vst.msk [vmem:[%s759] sm:$0x1] %vm5346, %v5344
        %s5348 = sand.u32 %s538, 1
        %s5349 = scalar_lea.sflag [#allocation4], %s5348
        %s5350 = sand.u32 %s538, 1
        %s5351 = scalar_lea.vmem [#allocation3], %s5350
        %p5352 = scmp.lt.s32.totalorder %s42, 1
        %s5353 = scalar_select %p5352, %s42, 1
        %s5354 = smul.addr %s5353, 2
        %s5355 = smul.addr %s5354, 8
        %s5356 = scalar_lea.vmem %s24, %s5355
        %p5357 = scmp.lt.s32.totalorder %s42, 1
        %s5358 = scalar_select %p5357, %s42, 1
        %s5359 = smul.addr %s5358, 2
        %s5360 = smul.addr %s5359, 8
        %s5361 = scalar_lea.vmem %s25, %s5360
        // Predicated region
        $region113: #{vcd_forward.1} parent=111 // pred_check
          %p5362 = pneg %p548
        $region114: #{vcd_forward.1} parent=111 // pred_check_branch
          %5364 = sbr.rel (%p5362) target = $region116
        $region115: #{vcd_forward.1} parent=111 // pred_region
          %s5366 = ssub.s32 16, 16
          %5367 = vsyncadd %s5349, %s5366
          %s5368 = smul.addr %s42, 16
          %s5369 = scalar_lea.hbm %s23, %s5368
          %s5371 = sshll.u32 %s5351, 4
          %s5372 = int_to_ptr.vmem [resolvable:$true] %s5371
          %5374 = dma.vmem_to_hbm [thread:$0]  %s5372, 16, %s5369, %s5349
        $region116: #{vcd_forward.1} parent=111 // pred_fallthru
          _
        // Predicated region
        $region117: #{vcd_forward.1} parent=111 // pred_check
          %p5375 = pneg %p574
        $region118: #{vcd_forward.1} parent=111 // pred_check_branch
          %5377 = sbr.rel (%p5375) target = $region120
        $region119: #{vcd_forward.1} parent=111 // pred_region
          _
        $region120: #{vcd_forward.1} parent=111 // pred_fallthru
          _
        // Predicated region
        $region121: #{vcd_forward.1} parent=111 // pred_check
          %p5378 = pneg %p600
        $region122: #{vcd_forward.1} parent=111 // pred_check_branch
          %5380 = sbr.rel (%p5378) target = $region124
        $region123: #{vcd_forward.1} parent=111 // pred_region
          _
        $region124: #{vcd_forward.1} parent=111 // pred_fallthru
          _
      $region112: #{vcd_forward.1} parent=5 // pred_fallthru
        _
      %p5381 = scmp.le.s32.totalorder 2, %s37
      // Predicated region
      $region125: #{vcd_forward.1} parent=5 // pred_check
        %p5382 = pneg %p5381
      $region126: #{vcd_forward.1} parent=5 // pred_check_branch
        %5384 = sbr.rel (%p5382) target = $region128
      $region127: #{vcd_forward.1} parent=5 // pred_region
        %s5385 = ssub.s32 %s37, 2
        // Predicated region
        $region129: #{vcd_forward.1} parent=127 // pred_check
          %p5386 = pneg %p554
        $region130: #{vcd_forward.1} parent=127 // pred_check_branch
          %5388 = sbr.rel (%p5386) target = $region132
        $region131: #{vcd_forward.1} parent=127 // pred_region
          %s5389 = sand.u32 %s539, 1
          %s5390 = scalar_lea.sflag [#allocation4], %s5389
          %s5391 = sand.u32 %s539, 1
          %s5392 = scalar_lea.vmem [#allocation3], %s5391
          %5393 = dma.done %s5390, 16
        $region132: #{vcd_forward.1} parent=127 // pred_fallthru
          _
        // Predicated region
        $region133: #{vcd_forward.1} parent=127 // pred_check
          %p5394 = pneg %p580
        $region134: #{vcd_forward.1} parent=127 // pred_check_branch
          %5396 = sbr.rel (%p5394) target = $region136
        $region135: #{vcd_forward.1} parent=127 // pred_region
          %p5397 = scmp.lt.s32.totalorder %s43, 1
          %s5398 = scalar_select %p5397, %s43, 1
          %s5399 = smul.addr %s5398, 2
          %s5400 = smul.addr %s5399, 8
          %s5401 = scalar_lea.vmem %s24, %s5400
        $region136: #{vcd_forward.1} parent=127 // pred_fallthru
          _
        // Predicated region
        $region137: #{vcd_forward.1} parent=127 // pred_check
          %p5402 = pneg %p606
        $region138: #{vcd_forward.1} parent=127 // pred_check_branch
          %5404 = sbr.rel (%p5402) target = $region140
        $region139: #{vcd_forward.1} parent=127 // pred_region
          %p5405 = scmp.lt.s32.totalorder %s43, 1
          %s5406 = scalar_select %p5405, %s43, 1
          %s5407 = smul.addr %s5406, 2
          %s5408 = smul.addr %s5407, 8
          %s5409 = scalar_lea.vmem %s25, %s5408
        $region140: #{vcd_forward.1} parent=127 // pred_fallthru
          _
      $region128: #{vcd_forward.1} parent=5 // pred_fallthru
        _
    $region6: #{vcd_forward.1} parent=1 // loop_footer
      %s41 = sadd.s32 1, %s37
    $region7: #{vcd_forward.1} parent=1 // loop_footer_branch
      %36 = sbr.rel target = $region3
    $region8: #{vcd_forward.1} parent=1 // loop_exit
      _
    %5410 = vsyncpa [#allocation4], 1
    %s5411 = scalar_lea.sflag [#allocation4], 1
    %5412 = vsyncpa %s5411, 1

</llo_original>
